<compile_context>
chip_gen: v5e
topology: v5e:2x2
jax: 0.10.0
libtpu: 0.0.40
codegen_flags: <defaults>
</compile_context>

<pallas_src>
import numpy as np
import jax
import jax.numpy as jnp
from jax.experimental import pallas as pl
from jax.experimental.pallas import tpu as pltpu


# ----------------------------- fused branch math ------------------------------
def _branch_features(x_blk, wbT, wconv, wpool):
    """All four inception branches, fused.

    x_blk : (tile_b, T, C) bfloat16 activation tile.
    wbT   : (C, 1)    bfloat16  -- bottleneck Linear weight, transposed.
    wconv : (Kmax, C) bfloat16  -- the 3 temporal conv branches packed into one
                                   centered tap matrix (zero-padded lanes).
    wpool : (C, C)    bfloat16  -- 1x1 conv of the maxpool branch (zero-padded
                                   lanes), so branch concat == lane-aligned add.
    Returns feat (tile_b*T, C) float32.
    """
    tile_b, T, C = x_blk.shape
    Kmax = wconv.shape[0]
    pmax = (Kmax - 1) // 2
    R = tile_b * T
    f32 = jnp.float32

    xf = x_blk.reshape(R, C)                               # bf16, rows ordered (b, t)
    # per-row time index (iota along the T axis, then flatten -- no modulo)
    t_idx = jax.lax.broadcasted_iota(jnp.int32, (tile_b, T, 1), 1).reshape(R, 1)

    # ---- bottleneck Linear(C -> 1, bias=False): one bf16 MXU pass ------------
    y = jnp.dot(xf, wbT, preferred_element_type=f32)       # (R, 1) f32

    # ---- 3 'same' Conv1d branches fused: tap matrix via sublane rolls --------
    # tap k of row r holds y[r + k - pmax]; rows where t + k - pmax falls outside
    # [0, T) are masked to zero (== the convs' zero padding), which also kills any
    # cross-sequence / wrap-around rows introduced by the rotate.
    taps = []
    for k in range(Kmax):
        sh = (pmax - k) % R
        taps.append(y if sh == 0 else pltpu.roll(y, shift=sh, axis=0))
    y_taps = jnp.concatenate(taps, axis=1)                 # (R, Kmax) f32
    k_idx = jax.lax.broadcasted_iota(jnp.int32, (1, Kmax), 1)
    tk = t_idx + (k_idx - pmax)
    y_taps = jnp.where((tk >= 0) & (tk < T), y_taps, 0.0)
    conv = jnp.dot(y_taps.astype(jnp.bfloat16), wconv,
                   preferred_element_type=f32)             # (R, C)

    # ---- MaxPool1d(3, stride=1, pad=1) + Conv1d(C -> C/4, kernel=1) -----------
    # neighbors via sublane rolls + boundary select (boundary rows reuse the
    # center value, which never changes the max); rolls done in f32.
    xr = xf.astype(f32)
    x_prev = pltpu.roll(xr, shift=1, axis=0)               # row r -> x[r-1]
    x_next = pltpu.roll(xr, shift=R - 1, axis=0)           # row r -> x[r+1]
    x_prev = jnp.where(t_idx > 0, x_prev, xr)
    x_next = jnp.where(t_idx < T - 1, x_next, xr)
    pooled = jnp.maximum(jnp.maximum(x_prev, x_next), xr)
    pconv = jnp.dot(pooled.astype(jnp.bfloat16), wpool,
                    preferred_element_type=f32)            # (R, C)

    # channel-concat of the 4 branches == lane-aligned add (weights are padded to
    # the full C lanes host-side)
    return conv + pconv


# --------------------------------- kernels ------------------------------------
def _stats_kernel(x_ref, wbT_ref, wconv_ref, wpool_ref, stats_ref):
    """Sweep 1: per-tile BatchNorm partial statistics (sum + centered M2)."""
    tile_b, T, C = x_ref.shape
    R = tile_b * T
    feat = _branch_features(x_ref[...], wbT_ref[...], wconv_ref[...], wpool_ref[...])
    s1 = jnp.sum(feat, axis=0, keepdims=True)                    # (1, C)
    d = feat - s1 * (1.0 / R)                                    # tile-centered
    m2 = jnp.sum(d * d, axis=0, keepdims=True)                   # (1, C)
    pad = jnp.zeros((6, C), jnp.float32)                         # pad to 8 sublanes
    stats_ref[...] = jnp.concatenate([s1, m2, pad], axis=0)[None, :, :]


def _apply_kernel(x_ref, wbT_ref, wconv_ref, wpool_ref, scale_ref, shift_ref, o_ref):
    """Sweep 2: recompute branch features, apply BN(scale/shift) + ReLU + residual."""
    tile_b, T, C = x_ref.shape
    R = tile_b * T
    x_blk = x_ref[...]
    feat = _branch_features(x_blk, wbT_ref[...], wconv_ref[...], wpool_ref[...])
    act = jnp.maximum(feat * scale_ref[...] + shift_ref[...], 0.0)      # BN + ReLU
    res = jnp.maximum(act + x_blk.reshape(R, C).astype(jnp.float32), 0.0)
    o_ref[...] = res.reshape(tile_b, T, C).astype(o_ref.dtype)


# --------------------------------- wrappers ------------------------------------
def _pick_tile_b(B, T, target_rows=512, max_rows=4096):
    """Divisor of B giving whole-sequence tiles with >= target_rows rows if possible."""
    best = 1
    for tb in range(1, B + 1):
        if B % tb != 0:
            continue
        if tb * T > max_rows:
            break
        best = tb
        if tb * T >= target_rows:
            break
    return best


def inception_module_forward_btc(x_btc, wb, wconv_full, wpool_full, gamma, beta,
                                 eps=1e-5):
    """Forward pass in (B, T, C) layout (C on lanes). Returns bf16 (B, T, C)."""
    B, T, C = x_btc.shape
    Kmax = wconv_full.shape[0]
    tile_b = _pick_tile_b(B, T)
    nt = B // tile_b
    rows = tile_b * T

    x_bf = x_btc.astype(jnp.bfloat16)
    wbT = jnp.reshape(wb, (C, 1)).astype(jnp.bfloat16)     # (1,C) Linear weight -> (C,1)
    wconv = wconv_full.astype(jnp.bfloat16)
    wpool = wpool_full.astype(jnp.bfloat16)

    x_spec = pl.BlockSpec((tile_b, T, C), lambda i: (i, 0, 0))
    w_specs = [pl.BlockSpec((C, 1), lambda i: (0, 0)),
               pl.BlockSpec((Kmax, C), lambda i: (0, 0)),
               pl.BlockSpec((C, C), lambda i: (0, 0))]

    cparams = pltpu.CompilerParams(
        dimension_semantics=("parallel",),          # megacore split on v7x
        vmem_limit_bytes=32 * 1024 * 1024)          # tile working set is ~2-4 MiB

    mm_flops = 2 * B * T * C * (1 + Kmax + C)
    x_bytes = B * T * C * 2

    # ---- sweep 1: branch features -> per-tile BN partial stats ----------------
    stats = pl.pallas_call(
        _stats_kernel,
        grid=(nt,),
        in_specs=[x_spec] + w_specs,
        out_specs=pl.BlockSpec((1, 8, C), lambda i: (i, 0, 0)),
        out_shape=jax.ShapeDtypeStruct((nt, 8, C), jnp.float32),
        compiler_params=cparams,
        cost_estimate=pl.CostEstimate(flops=mm_flops, transcendentals=0,
                                      bytes_accessed=x_bytes + nt * 8 * C * 4),
    )(x_bf, wbT, wconv, wpool)

    # ---- combine per-tile stats (tiny (C,)-sized math, plain XLA) --------------
    n = B * T
    tile_mean = stats[:, 0, :] * (1.0 / rows)               # (nt, C)
    tile_m2 = stats[:, 1, :]                                # (nt, C)
    mean = jnp.mean(tile_mean, axis=0)                      # equal-sized tiles
    m2 = jnp.sum(tile_m2 + rows * jnp.square(tile_mean - mean[None, :]), axis=0)
    var = m2 * (1.0 / n)                                    # biased, as BN training mode
    scale = (gamma.astype(jnp.float32) * jax.lax.rsqrt(var + eps)).reshape(1, C)
    shift = beta.astype(jnp.float32).reshape(1, C) - mean.reshape(1, C) * scale
    # TODO(synk): BatchNorm running_mean / running_var buffer updates (training
    # side-state) are not materialized; only the forward normalization is done.

    # ---- sweep 2: recompute branches, BN + ReLU + residual + ReLU --------------
    out = pl.pallas_call(
        _apply_kernel,
        grid=(nt,),
        in_specs=[x_spec] + w_specs + [pl.BlockSpec((1, C), lambda i: (0, 0)),
                                       pl.BlockSpec((1, C), lambda i: (0, 0))],
        out_specs=x_spec,
        out_shape=jax.ShapeDtypeStruct((B, T, C), jnp.bfloat16),
        compiler_params=cparams,
        cost_estimate=pl.CostEstimate(flops=mm_flops, transcendentals=0,
                                      bytes_accessed=2 * x_bytes),
    )(x_bf, wbT, wconv, wpool, scale, shift)
    return out


@jax.jit
def inception_module_forward(x_nct, wb, wconv_full, wpool_full, gamma, beta):
    """PyTorch-layout adapter: x (B, C, T) float32 -> (B, C, T) float32.

    When stacking InceptionTime modules keep activations in (B, T, C) bf16 and call
    inception_module_forward_btc directly to skip the transpose + dtype round trips.
    """
    x_btc = jnp.transpose(x_nct, (0, 2, 1))
    out_btc = inception_module_forward_btc(x_btc, wb, wconv_full, wpool_full,
                                           gamma, beta)
    return jnp.transpose(out_btc, (0, 2, 1)).astype(jnp.float32)


# ----------------------------- parameter setup ---------------------------------
def init_params(key, kernel_size, num_filters):
    C, C4 = num_filters, num_filters // 4
    ks_list = [kernel_size // (2 ** i) for i in range(3)]
    conv_ks = [ks + 1 for ks in ks_list]
    conv_pad = [ks // 2 for ks in ks_list]
    keys = jax.random.split(key, 7)
    wb = jax.random.normal(keys[0], (1, C), jnp.float32) / np.sqrt(C)
    wconvs = [jax.random.normal(k, (C4, 1, K), jnp.float32) / np.sqrt(K)
              for k, K in zip(keys[1:4], conv_ks)]
    wpool = jax.random.normal(keys[4], (C4, C, 1), jnp.float32) / np.sqrt(C)
    gamma = 1.0 + 0.1 * jax.random.normal(keys[5], (C,), jnp.float32)
    beta = 0.1 * jax.random.normal(keys[6], (C,), jnp.float32)
    return wb, wconvs, conv_pad, wpool, gamma, beta


def build_fused_weights(wconvs, conv_pad, wpool, kernel_size, num_filters):
    C, C4 = num_filters, num_filters // 4
    Kmax = kernel_size + 1
    pmax = kernel_size // 2
    wconv_full = np.zeros((Kmax, C), np.float32)
    for i, (w, p) in enumerate(zip(wconvs, conv_pad)):
        w = np.asarray(w)
        K = w.shape[-1]
        off = pmax - p
        wconv_full[off:off + K, i * C4:(i + 1) * C4] = w[:, 0, :].T
    wpool_full = np.zeros((C, C), np.float32)
    wpool_full[:, 3 * C4:4 * C4] = np.asarray(wpool)[:, :, 0].T
    return jnp.asarray(wconv_full), jnp.asarray(wpool_full)


# ------------------------- pure NumPy reference --------------------------------
def reference_forward(x, wb, wconvs, conv_pad, wpool, gamma, beta, eps=1e-5):
    x = np.asarray(x, np.float64)
    B, C, T = x.shape
    xt = np.transpose(x, (0, 2, 1))                       # (B, T, C)
    y = (xt @ np.asarray(wb, np.float64).T)[..., 0]       # (B, T)
    branches = []
    for w, p in zip(wconvs, conv_pad):
        w = np.asarray(w, np.float64)
        K = w.shape[-1]
        ypad = np.pad(y, ((0, 0), (p, p)))
        out = np.zeros((B, w.shape[0], T))
        for t in range(T):
            out[:, :, t] = ypad[:, t:t + K] @ w[:, 0, :].T
        branches.append(out)
    xpad = np.pad(x, ((0, 0), (0, 0), (1, 1)), constant_values=-np.inf)
    pooled = np.maximum(np.maximum(xpad[:, :, 0:T], xpad[:, :, 1:T + 1]),
                        xpad[:, :, 2:T + 2])
    branches.append(np.einsum('oc,bct->bot',
                              np.asarray(wpool, np.float64)[:, :, 0], pooled))
    feat = np.concatenate(branches, axis=1)               # (B, C, T)
    mean = feat.mean(axis=(0, 2), keepdims=True)
    var = ((feat - mean) ** 2).mean(axis=(0, 2), keepdims=True)
    g = np.asarray(gamma, np.float64).reshape(1, -1, 1)
    bt = np.asarray(beta, np.float64).reshape(1, -1, 1)
    act = np.maximum((feat - mean) / np.sqrt(var + eps) * g + bt, 0.0)
    return np.maximum(act + x, 0.0)


if __name__ == "__main__":
    # InceptionModule(kernel_size=8, num_filters=128); small shapes, but large
    # enough (B*T = 1024) to exercise a 2-tile grid with 512 rows per tile.
    B, T = 16, 64
    kernel_size, num_filters = 8, 128

    key = jax.random.PRNGKey(0)
    k_x, k_p = jax.random.split(key)
    x = jax.random.normal(k_x, (B, num_filters, T), dtype=jnp.float32)  # PyTorch NCT

    wb, wconvs, conv_pad, wpool, gamma, beta = init_params(k_p, kernel_size, num_filters)
    wconv_full, wpool_full = build_fused_weights(wconvs, conv_pad, wpool,
                                                 kernel_size, num_filters)

    out = inception_module_forward(x, wb, wconv_full, wpool_full, gamma, beta)
    out = jax.block_until_ready(out)

    ref = reference_forward(x, wb, wconvs, conv_pad, wpool, gamma, beta)
    # bf16 activations / matmul operands end-to-end (per perf review); tolerance is
    # sized for ~2^-8 relative rounding through the matmuls, the batch statistics
    # and the residual near-cancellation region.
    np.testing.assert_allclose(np.asarray(out, np.float64), ref, rtol=2e-2, atol=5e-2)
    print("KERNEL_OK")
</pallas_src>

<mosaic_0001>
module attributes {stable_mosaic.version = 11 : i64} {
  func.func @_stats_kernel(%arg0: i32, %arg1: memref<8x64x128xbf16, #tpu.memory_space<vmem>>, %arg2: memref<128x1xbf16, #tpu.memory_space<vmem>>, %arg3: memref<9x128xbf16, #tpu.memory_space<vmem>>, %arg4: memref<128x128xbf16, #tpu.memory_space<vmem>>, %arg5: memref<1x8x128xf32, #tpu.memory_space<vmem>>) attributes {dimension_semantics = [#tpu.dimension_semantics<parallel>], iteration_bounds = array<i64: 2>, scalar_prefetch = 0 : i64, scratch_operands = 0 : i64, tpu.core_type = #tpu.core_type<tc>, window_params = [{transform_indices = @transform_0, window_bounds = array<i64: 8, 64, 128>}, {pipeline_mode = #tpu.pipeline_mode<synchronous>, transform_indices = @transform_1, window_bounds = array<i64: 128, 1>}, {pipeline_mode = #tpu.pipeline_mode<synchronous>, transform_indices = @transform_2, window_bounds = array<i64: 9, 128>}, {pipeline_mode = #tpu.pipeline_mode<synchronous>, transform_indices = @transform_3, window_bounds = array<i64: 128, 128>}, {transform_indices = @transform_4, window_bounds = array<i64: 1, 8, 128>}]} {
    %c0 = arith.constant 0 : index
    %c0_0 = arith.constant 0 : index
    %c0_1 = arith.constant 0 : index
    %0 = vector.load %arg1[%c0, %c0_0, %c0_1] : memref<8x64x128xbf16, #tpu.memory_space<vmem>>, vector<8x64x128xbf16>
    %c0_2 = arith.constant 0 : index
    %c0_3 = arith.constant 0 : index
    %1 = vector.load %arg2[%c0_2, %c0_3] : memref<128x1xbf16, #tpu.memory_space<vmem>>, vector<128x1xbf16>
    %c0_4 = arith.constant 0 : index
    %c0_5 = arith.constant 0 : index
    %2 = vector.load %arg3[%c0_4, %c0_5] : memref<9x128xbf16, #tpu.memory_space<vmem>>, vector<9x128xbf16>
    %c0_6 = arith.constant 0 : index
    %c0_7 = arith.constant 0 : index
    %3 = vector.load %arg4[%c0_6, %c0_7] : memref<128x128xbf16, #tpu.memory_space<vmem>>, vector<128x128xbf16>
    %4 = vector.shape_cast %0 : vector<8x64x128xbf16> to vector<512x128xbf16>
    %5 = tpu.iota {dimensions = array<i32: 1>} : vector<8x64x1xi32>
    %6 = vector.shape_cast %5 : vector<8x64x1xi32> to vector<512x1xi32>
    %cst = arith.constant dense<0.000000e+00> : vector<512x1xf32>
    %7 = tpu.matmul %4, %1, %cst {dimension_numbers = #tpu.dot_dimension_numbers<[1], [0], [0], [1], [0, 0, 1, 1], [], []>} : vector<512x128xbf16>, vector<128x1xbf16>, vector<512x1xf32> -> vector<512x1xf32>
    %c4_i32 = arith.constant 4 : i32
    %8 = tpu.dynamic_rotate %7 by %c4_i32 dim 0 : vector<512x1xf32>, i32 -> vector<512x1xf32>
    %c3_i32 = arith.constant 3 : i32
    %9 = tpu.dynamic_rotate %7 by %c3_i32 dim 0 : vector<512x1xf32>, i32 -> vector<512x1xf32>
    %c2_i32 = arith.constant 2 : i32
    %10 = tpu.dynamic_rotate %7 by %c2_i32 dim 0 : vector<512x1xf32>, i32 -> vector<512x1xf32>
    %c1_i32 = arith.constant 1 : i32
    %11 = tpu.dynamic_rotate %7 by %c1_i32 dim 0 : vector<512x1xf32>, i32 -> vector<512x1xf32>
    %c511_i32 = arith.constant 511 : i32
    %12 = tpu.dynamic_rotate %7 by %c511_i32 dim 0 : vector<512x1xf32>, i32 -> vector<512x1xf32>
    %c510_i32 = arith.constant 510 : i32
    %13 = tpu.dynamic_rotate %7 by %c510_i32 dim 0 : vector<512x1xf32>, i32 -> vector<512x1xf32>
    %c509_i32 = arith.constant 509 : i32
    %14 = tpu.dynamic_rotate %7 by %c509_i32 dim 0 : vector<512x1xf32>, i32 -> vector<512x1xf32>
    %c508_i32 = arith.constant 508 : i32
    %15 = tpu.dynamic_rotate %7 by %c508_i32 dim 0 : vector<512x1xf32>, i32 -> vector<512x1xf32>
    %16 = tpu.concatenate %8, %9, %10, %11, %7, %12, %13, %14, %15 in 1 : vector<512x1xf32>, vector<512x1xf32>, vector<512x1xf32>, vector<512x1xf32>, vector<512x1xf32>, vector<512x1xf32>, vector<512x1xf32>, vector<512x1xf32>, vector<512x1xf32> -> vector<512x9xf32>
    %17 = tpu.iota {dimensions = array<i32: 1>} : vector<1x9xi32>
    %c4_i32_8 = arith.constant 4 : i32
    %18 = vector.broadcast %c4_i32_8 : i32 to vector<1x9xi32>
    %19 = arith.subi %17, %18 : vector<1x9xi32>
    %20 = vector.broadcast %6 : vector<512x1xi32> to vector<512x9xi32>
    %21 = vector.broadcast %19 : vector<1x9xi32> to vector<512x9xi32>
    %22 = arith.addi %20, %21 : vector<512x9xi32>
    %c0_i32 = arith.constant 0 : i32
    %23 = vector.broadcast %c0_i32 : i32 to vector<512x9xi32>
    %24 = arith.cmpi sge, %22, %23 : vector<512x9xi32>
    %c64_i32 = arith.constant 64 : i32
    %25 = vector.broadcast %c64_i32 : i32 to vector<512x9xi32>
    %26 = arith.cmpi slt, %22, %25 : vector<512x9xi32>
    %27 = arith.andi %24, %26 : vector<512x9xi1>
    %cst_9 = arith.constant 0.000000e+00 : f32
    %28 = vector.broadcast %cst_9 : f32 to vector<512x9xf32>
    %29 = arith.select %27, %16, %28 : vector<512x9xi1>, vector<512x9xf32>
    %30 = arith.truncf %29 : vector<512x9xf32> to vector<512x9xbf16>
    %cst_10 = arith.constant dense<0.000000e+00> : vector<512x128xf32>
    %31 = tpu.matmul %30, %2, %cst_10 {dimension_numbers = #tpu.dot_dimension_numbers<[1], [0], [0], [1], [0, 0, 1, 1], [], []>} : vector<512x9xbf16>, vector<9x128xbf16>, vector<512x128xf32> -> vector<512x128xf32>
    %32 = arith.extf %4 : vector<512x128xbf16> to vector<512x128xf32>
    %c1_i32_11 = arith.constant 1 : i32
    %33 = tpu.dynamic_rotate %32 by %c1_i32_11 dim 0 : vector<512x128xf32>, i32 -> vector<512x128xf32>
    %c511_i32_12 = arith.constant 511 : i32
    %34 = tpu.dynamic_rotate %32 by %c511_i32_12 dim 0 : vector<512x128xf32>, i32 -> vector<512x128xf32>
    %c0_i32_13 = arith.constant 0 : i32
    %35 = vector.broadcast %c0_i32_13 : i32 to vector<512x1xi32>
    %36 = arith.cmpi sgt, %6, %35 : vector<512x1xi32>
    %37 = vector.shape_cast %36 : vector<512x1xi1> to vector<512x1xi1>
    %38 = vector.broadcast %37 : vector<512x1xi1> to vector<512x128xi1>
    %39 = arith.select %38, %33, %32 : vector<512x128xi1>, vector<512x128xf32>
    %c63_i32 = arith.constant 63 : i32
    %40 = vector.broadcast %c63_i32 : i32 to vector<512x1xi32>
    %41 = arith.cmpi slt, %6, %40 : vector<512x1xi32>
    %42 = vector.shape_cast %41 : vector<512x1xi1> to vector<512x1xi1>
    %43 = vector.broadcast %42 : vector<512x1xi1> to vector<512x128xi1>
    %44 = arith.select %43, %34, %32 : vector<512x128xi1>, vector<512x128xf32>
    %45 = arith.maximumf %39, %44 : vector<512x128xf32>
    %46 = arith.maximumf %45, %32 : vector<512x128xf32>
    %47 = arith.truncf %46 : vector<512x128xf32> to vector<512x128xbf16>
    %cst_14 = arith.constant dense<0.000000e+00> : vector<512x128xf32>
    %48 = tpu.matmul %47, %3, %cst_14 {dimension_numbers = #tpu.dot_dimension_numbers<[1], [0], [0], [1], [0, 0, 1, 1], [], []>} : vector<512x128xbf16>, vector<128x128xbf16>, vector<512x128xf32> -> vector<512x128xf32>
    %49 = arith.addf %31, %48 : vector<512x128xf32>
    %cst_15 = arith.constant dense<0.000000e+00> : vector<128xf32>
    %50 = vector.multi_reduction <add>, %49, %cst_15 [0] : vector<512x128xf32> to vector<128xf32>
    %51 = vector.shape_cast %50 : vector<128xf32> to vector<1x128xf32>
    %cst_16 = arith.constant 0.001953125 : f32
    %52 = vector.broadcast %cst_16 : f32 to vector<1x128xf32>
    %53 = arith.mulf %51, %52 : vector<1x128xf32>
    %54 = vector.broadcast %53 : vector<1x128xf32> to vector<512x128xf32>
    %55 = arith.subf %49, %54 : vector<512x128xf32>
    %56 = arith.mulf %55, %55 : vector<512x128xf32>
    %cst_17 = arith.constant dense<0.000000e+00> : vector<128xf32>
    %57 = vector.multi_reduction <add>, %56, %cst_17 [0] : vector<512x128xf32> to vector<128xf32>
    %58 = vector.shape_cast %57 : vector<128xf32> to vector<1x128xf32>
    %cst_18 = arith.constant 0.000000e+00 : f32
    %59 = vector.broadcast %cst_18 : f32 to vector<6x128xf32>
    %60 = tpu.concatenate %51, %58, %59 in 0 : vector<1x128xf32>, vector<1x128xf32>, vector<6x128xf32> -> vector<8x128xf32>
    %61 = vector.shape_cast %60 : vector<8x128xf32> to vector<1x8x128xf32>
    %c0_19 = arith.constant 0 : index
    %c0_20 = arith.constant 0 : index
    %c0_21 = arith.constant 0 : index
    %62 = vector.load %arg5[%c0_19, %c0_20, %c0_21] : memref<1x8x128xf32, #tpu.memory_space<vmem>>, vector<1x8x128xf32>
    tpu.vector_store %arg5[%c0_19, %c0_20, %c0_21], %61 {strides = array<i32>} : memref<1x8x128xf32, #tpu.memory_space<vmem>>, vector<1x8x128xf32>,
    return
  }
  func.func @transform_0(%arg0: i32) -> (i32, i32, i32) {
    %c0_i32 = arith.constant 0 : i32
    %c0_i32_0 = arith.constant 0 : i32
    %c0_i32_1 = arith.constant 0 : i32
    return %arg0, %c0_i32, %c0_i32_0 : i32, i32, i32
  }
  func.func @transform_1(%arg0: i32) -> (i32, i32) {
    %c0_i32 = arith.constant 0 : i32
    %c0_i32_0 = arith.constant 0 : i32
    %c0_i32_1 = arith.constant 0 : i32
    return %c0_i32, %c0_i32_0 : i32, i32
  }
  func.func @transform_2(%arg0: i32) -> (i32, i32) {
    %c0_i32 = arith.constant 0 : i32
    %c0_i32_0 = arith.constant 0 : i32
    %c0_i32_1 = arith.constant 0 : i32
    return %c0_i32, %c0_i32_0 : i32, i32
  }
  func.func @transform_3(%arg0: i32) -> (i32, i32) {
    %c0_i32 = arith.constant 0 : i32
    %c0_i32_0 = arith.constant 0 : i32
    %c0_i32_1 = arith.constant 0 : i32
    return %c0_i32, %c0_i32_0 : i32, i32
  }
  func.func @transform_4(%arg0: i32) -> (i32, i32, i32) {
    %c0_i32 = arith.constant 0 : i32
    %c0_i32_0 = arith.constant 0 : i32
    %c0_i32_1 = arith.constant 0 : i32
    return %arg0, %c0_i32, %c0_i32_0 : i32, i32, i32
  }
}

module attributes {stable_mosaic.version = 11 : i64} {
  func.func @_apply_kernel(%arg0: i32, %arg1: memref<8x64x128xbf16, #tpu.memory_space<vmem>>, %arg2: memref<128x1xbf16, #tpu.memory_space<vmem>>, %arg3: memref<9x128xbf16, #tpu.memory_space<vmem>>, %arg4: memref<128x128xbf16, #tpu.memory_space<vmem>>, %arg5: memref<1x128xf32, #tpu.memory_space<vmem>>, %arg6: memref<1x128xf32, #tpu.memory_space<vmem>>, %arg7: memref<8x64x128xbf16, #tpu.memory_space<vmem>>) attributes {dimension_semantics = [#tpu.dimension_semantics<parallel>], iteration_bounds = array<i64: 2>, scalar_prefetch = 0 : i64, scratch_operands = 0 : i64, tpu.core_type = #tpu.core_type<tc>, window_params = [{transform_indices = @transform_0, window_bounds = array<i64: 8, 64, 128>}, {pipeline_mode = #tpu.pipeline_mode<synchronous>, transform_indices = @transform_1, window_bounds = array<i64: 128, 1>}, {pipeline_mode = #tpu.pipeline_mode<synchronous>, transform_indices = @transform_2, window_bounds = array<i64: 9, 128>}, {pipeline_mode = #tpu.pipeline_mode<synchronous>, transform_indices = @transform_3, window_bounds = array<i64: 128, 128>}, {pipeline_mode = #tpu.pipeline_mode<synchronous>, transform_indices = @transform_4, window_bounds = array<i64: 1, 128>}, {pipeline_mode = #tpu.pipeline_mode<synchronous>, transform_indices = @transform_5, window_bounds = array<i64: 1, 128>}, {transform_indices = @transform_6, window_bounds = array<i64: 8, 64, 128>}]} {
    %c0 = arith.constant 0 : index
    %c0_0 = arith.constant 0 : index
    %c0_1 = arith.constant 0 : index
    %0 = vector.load %arg1[%c0, %c0_0, %c0_1] : memref<8x64x128xbf16, #tpu.memory_space<vmem>>, vector<8x64x128xbf16>
    %c0_2 = arith.constant 0 : index
    %c0_3 = arith.constant 0 : index
    %1 = vector.load %arg2[%c0_2, %c0_3] : memref<128x1xbf16, #tpu.memory_space<vmem>>, vector<128x1xbf16>
    %c0_4 = arith.constant 0 : index
    %c0_5 = arith.constant 0 : index
    %2 = vector.load %arg3[%c0_4, %c0_5] : memref<9x128xbf16, #tpu.memory_space<vmem>>, vector<9x128xbf16>
    %c0_6 = arith.constant 0 : index
    %c0_7 = arith.constant 0 : index
    %3 = vector.load %arg4[%c0_6, %c0_7] : memref<128x128xbf16, #tpu.memory_space<vmem>>, vector<128x128xbf16>
    %4 = vector.shape_cast %0 : vector<8x64x128xbf16> to vector<512x128xbf16>
    %5 = tpu.iota {dimensions = array<i32: 1>} : vector<8x64x1xi32>
    %6 = vector.shape_cast %5 : vector<8x64x1xi32> to vector<512x1xi32>
    %cst = arith.constant dense<0.000000e+00> : vector<512x1xf32>
    %7 = tpu.matmul %4, %1, %cst {dimension_numbers = #tpu.dot_dimension_numbers<[1], [0], [0], [1], [0, 0, 1, 1], [], []>} : vector<512x128xbf16>, vector<128x1xbf16>, vector<512x1xf32> -> vector<512x1xf32>
    %c4_i32 = arith.constant 4 : i32
    %8 = tpu.dynamic_rotate %7 by %c4_i32 dim 0 : vector<512x1xf32>, i32 -> vector<512x1xf32>
    %c3_i32 = arith.constant 3 : i32
    %9 = tpu.dynamic_rotate %7 by %c3_i32 dim 0 : vector<512x1xf32>, i32 -> vector<512x1xf32>
    %c2_i32 = arith.constant 2 : i32
    %10 = tpu.dynamic_rotate %7 by %c2_i32 dim 0 : vector<512x1xf32>, i32 -> vector<512x1xf32>
    %c1_i32 = arith.constant 1 : i32
    %11 = tpu.dynamic_rotate %7 by %c1_i32 dim 0 : vector<512x1xf32>, i32 -> vector<512x1xf32>
    %c511_i32 = arith.constant 511 : i32
    %12 = tpu.dynamic_rotate %7 by %c511_i32 dim 0 : vector<512x1xf32>, i32 -> vector<512x1xf32>
    %c510_i32 = arith.constant 510 : i32
    %13 = tpu.dynamic_rotate %7 by %c510_i32 dim 0 : vector<512x1xf32>, i32 -> vector<512x1xf32>
    %c509_i32 = arith.constant 509 : i32
    %14 = tpu.dynamic_rotate %7 by %c509_i32 dim 0 : vector<512x1xf32>, i32 -> vector<512x1xf32>
    %c508_i32 = arith.constant 508 : i32
    %15 = tpu.dynamic_rotate %7 by %c508_i32 dim 0 : vector<512x1xf32>, i32 -> vector<512x1xf32>
    %16 = tpu.concatenate %8, %9, %10, %11, %7, %12, %13, %14, %15 in 1 : vector<512x1xf32>, vector<512x1xf32>, vector<512x1xf32>, vector<512x1xf32>, vector<512x1xf32>, vector<512x1xf32>, vector<512x1xf32>, vector<512x1xf32>, vector<512x1xf32> -> vector<512x9xf32>
    %17 = tpu.iota {dimensions = array<i32: 1>} : vector<1x9xi32>
    %c4_i32_8 = arith.constant 4 : i32
    %18 = vector.broadcast %c4_i32_8 : i32 to vector<1x9xi32>
    %19 = arith.subi %17, %18 : vector<1x9xi32>
    %20 = vector.broadcast %6 : vector<512x1xi32> to vector<512x9xi32>
    %21 = vector.broadcast %19 : vector<1x9xi32> to vector<512x9xi32>
    %22 = arith.addi %20, %21 : vector<512x9xi32>
    %c0_i32 = arith.constant 0 : i32
    %23 = vector.broadcast %c0_i32 : i32 to vector<512x9xi32>
    %24 = arith.cmpi sge, %22, %23 : vector<512x9xi32>
    %c64_i32 = arith.constant 64 : i32
    %25 = vector.broadcast %c64_i32 : i32 to vector<512x9xi32>
    %26 = arith.cmpi slt, %22, %25 : vector<512x9xi32>
    %27 = arith.andi %24, %26 : vector<512x9xi1>
    %cst_9 = arith.constant 0.000000e+00 : f32
    %28 = vector.broadcast %cst_9 : f32 to vector<512x9xf32>
    %29 = arith.select %27, %16, %28 : vector<512x9xi1>, vector<512x9xf32>
    %30 = arith.truncf %29 : vector<512x9xf32> to vector<512x9xbf16>
    %cst_10 = arith.constant dense<0.000000e+00> : vector<512x128xf32>
    %31 = tpu.matmul %30, %2, %cst_10 {dimension_numbers = #tpu.dot_dimension_numbers<[1], [0], [0], [1], [0, 0, 1, 1], [], []>} : vector<512x9xbf16>, vector<9x128xbf16>, vector<512x128xf32> -> vector<512x128xf32>
    %32 = arith.extf %4 : vector<512x128xbf16> to vector<512x128xf32>
    %c1_i32_11 = arith.constant 1 : i32
    %33 = tpu.dynamic_rotate %32 by %c1_i32_11 dim 0 : vector<512x128xf32>, i32 -> vector<512x128xf32>
    %c511_i32_12 = arith.constant 511 : i32
    %34 = tpu.dynamic_rotate %32 by %c511_i32_12 dim 0 : vector<512x128xf32>, i32 -> vector<512x128xf32>
    %c0_i32_13 = arith.constant 0 : i32
    %35 = vector.broadcast %c0_i32_13 : i32 to vector<512x1xi32>
    %36 = arith.cmpi sgt, %6, %35 : vector<512x1xi32>
    %37 = vector.shape_cast %36 : vector<512x1xi1> to vector<512x1xi1>
    %38 = vector.broadcast %37 : vector<512x1xi1> to vector<512x128xi1>
    %39 = arith.select %38, %33, %32 : vector<512x128xi1>, vector<512x128xf32>
    %c63_i32 = arith.constant 63 : i32
    %40 = vector.broadcast %c63_i32 : i32 to vector<512x1xi32>
    %41 = arith.cmpi slt, %6, %40 : vector<512x1xi32>
    %42 = vector.shape_cast %41 : vector<512x1xi1> to vector<512x1xi1>
    %43 = vector.broadcast %42 : vector<512x1xi1> to vector<512x128xi1>
    %44 = arith.select %43, %34, %32 : vector<512x128xi1>, vector<512x128xf32>
    %45 = arith.maximumf %39, %44 : vector<512x128xf32>
    %46 = arith.maximumf %45, %32 : vector<512x128xf32>
    %47 = arith.truncf %46 : vector<512x128xf32> to vector<512x128xbf16>
    %cst_14 = arith.constant dense<0.000000e+00> : vector<512x128xf32>
    %48 = tpu.matmul %47, %3, %cst_14 {dimension_numbers = #tpu.dot_dimension_numbers<[1], [0], [0], [1], [0, 0, 1, 1], [], []>} : vector<512x128xbf16>, vector<128x128xbf16>, vector<512x128xf32> -> vector<512x128xf32>
    %49 = arith.addf %31, %48 : vector<512x128xf32>
    %c0_15 = arith.constant 0 : index
    %c0_16 = arith.constant 0 : index
    %50 = vector.load %arg5[%c0_15, %c0_16] : memref<1x128xf32, #tpu.memory_space<vmem>>, vector<1x128xf32>
    %51 = vector.broadcast %50 : vector<1x128xf32> to vector<512x128xf32>
    %52 = arith.mulf %49, %51 : vector<512x128xf32>
    %c0_17 = arith.constant 0 : index
    %c0_18 = arith.constant 0 : index
    %53 = vector.load %arg6[%c0_17, %c0_18] : memref<1x128xf32, #tpu.memory_space<vmem>>, vector<1x128xf32>
    %54 = vector.broadcast %53 : vector<1x128xf32> to vector<512x128xf32>
    %55 = arith.addf %52, %54 : vector<512x128xf32>
    %cst_19 = arith.constant 0.000000e+00 : f32
    %56 = vector.broadcast %cst_19 : f32 to vector<512x128xf32>
    %57 = arith.maximumf %55, %56 : vector<512x128xf32>
    %58 = vector.shape_cast %0 : vector<8x64x128xbf16> to vector<512x128xbf16>
    %59 = arith.extf %58 : vector<512x128xbf16> to vector<512x128xf32>
    %60 = arith.addf %57, %59 : vector<512x128xf32>
    %cst_20 = arith.constant 0.000000e+00 : f32
    %61 = vector.broadcast %cst_20 : f32 to vector<512x128xf32>
    %62 = arith.maximumf %60, %61 : vector<512x128xf32>
    %63 = vector.shape_cast %62 : vector<512x128xf32> to vector<8x64x128xf32>
    %64 = arith.truncf %63 : vector<8x64x128xf32> to vector<8x64x128xbf16>
    %c0_21 = arith.constant 0 : index
    %c0_22 = arith.constant 0 : index
    %c0_23 = arith.constant 0 : index
    %65 = vector.load %arg7[%c0_21, %c0_22, %c0_23] : memref<8x64x128xbf16, #tpu.memory_space<vmem>>, vector<8x64x128xbf16>
    tpu.vector_store %arg7[%c0_21, %c0_22, %c0_23], %64 {strides = array<i32>} : memref<8x64x128xbf16, #tpu.memory_space<vmem>>, vector<8x64x128xbf16>,
    return
  }
  func.func @transform_0(%arg0: i32) -> (i32, i32, i32) {
    %c0_i32 = arith.constant 0 : i32
    %c0_i32_0 = arith.constant 0 : i32
    %c0_i32_1 = arith.constant 0 : i32
    return %arg0, %c0_i32, %c0_i32_0 : i32, i32, i32
  }
  func.func @transform_1(%arg0: i32) -> (i32, i32) {
    %c0_i32 = arith.constant 0 : i32
    %c0_i32_0 = arith.constant 0 : i32
    %c0_i32_1 = arith.constant 0 : i32
    return %c0_i32, %c0_i32_0 : i32, i32
  }
  func.func @transform_2(%arg0: i32) -> (i32, i32) {
    %c0_i32 = arith.constant 0 : i32
    %c0_i32_0 = arith.constant 0 : i32
    %c0_i32_1 = arith.constant 0 : i32
    return %c0_i32, %c0_i32_0 : i32, i32
  }
  func.func @transform_3(%arg0: i32) -> (i32, i32) {
    %c0_i32 = arith.constant 0 : i32
    %c0_i32_0 = arith.constant 0 : i32
    %c0_i32_1 = arith.constant 0 : i32
    return %c0_i32, %c0_i32_0 : i32, i32
  }
  func.func @transform_4(%arg0: i32) -> (i32, i32) {
    %c0_i32 = arith.constant 0 : i32
    %c0_i32_0 = arith.constant 0 : i32
    %c0_i32_1 = arith.constant 0 : i32
    return %c0_i32, %c0_i32_0 : i32, i32
  }
  func.func @transform_5(%arg0: i32) -> (i32, i32) {
    %c0_i32 = arith.constant 0 : i32
    %c0_i32_0 = arith.constant 0 : i32
    %c0_i32_1 = arith.constant 0 : i32
    return %c0_i32, %c0_i32_0 : i32, i32
  }
  func.func @transform_6(%arg0: i32) -> (i32, i32, i32) {
    %c0_i32 = arith.constant 0 : i32
    %c0_i32_0 = arith.constant 0 : i32
    %c0_i32_1 = arith.constant 0 : i32
    return %arg0, %c0_i32, %c0_i32_0 : i32, i32, i32
  }
}

</mosaic_0001>

<llo_original>
// kernel: inception_module_forward.3
$region0: #{inception_module_forward.3}
  #allocation0 [shape = 'u32[]', space=smem, size = 0x4, offset = 0x4, fixed_abs, tag = 'smem constant byte address 0x4 - core index']
  #allocation1 [shape = 'u32[72,128]{1,0:T(1,128)}', space=vmem, size = 0x9000, scoped, tag = 'internal scratch']
  %s0 = inlined_call_operand.vmem [shape: bf16[16,64,128], index: 0, kind: input, shape index: {}]
  %s1 = inlined_call_operand.vmem [shape: bf16[128,1], index: 1, kind: input, shape index: {}]
  %s2 = inlined_call_operand.vmem [shape: bf16[9,128], index: 2, kind: input, shape index: {}]
  %s3 = inlined_call_operand.vmem [shape: bf16[128,128], index: 3, kind: input, shape index: {}]
  %s4 = inlined_call_operand.vmem [shape: f32[1,128], index: 4, kind: input, shape index: {}]
  %s5 = inlined_call_operand.vmem [shape: f32[1,128], index: 5, kind: input, shape index: {}]
  %s6 = inlined_call_operand.vmem [shape: bf16[16,64,128], index: 6, kind: output, shape index: {}]
  %s7 = sld [smem:[#allocation0]]
  $region57: #{inception_module_forward.3} parent=0
    _
  %s9 = ssub.s32 1, %s7
  %s10 = scalar_select 0, %s9, %s7
  loop: start=0, step=1, limit=4
  $region2: #{inception_module_forward.3} parent=0 // loop_pre_header
    _
  $region3: #{inception_module_forward.3} parent=0 // loop_header
    %s12 = sphi 0, %s16
    %p13 = scmp.ge.s32.totalorder %s12, 4
    %s22 = sphi 0, %s24
    %s25 = sphi 0, %s22
    %s26 = sphi 0, %s25
    %s42 = sphi 0, %s26
    %s46 = sphi 0, %s46
    %s48 = sphi 0, %s46
    %s49 = sphi 0, %s48
    %s63 = sphi 0, %s49
    %s67 = sphi 0, %s67
    %s69 = sphi 0, %s67
    %s70 = sphi 0, %s69
    %s84 = sphi 0, %s70
    %s88 = sphi 0, %s88
    %s90 = sphi 0, %s88
    %s91 = sphi 0, %s90
    %s105 = sphi 0, %s91
    %s109 = sphi 0, %s109
    %s111 = sphi 0, %s109
    %s112 = sphi 0, %s111
    %s126 = sphi 0, %s112
    %s130 = sphi 0, %s130
    %s132 = sphi 0, %s130
    %s133 = sphi 0, %s132
    %s147 = sphi 0, %s133
    %s153 = sphi 0, %s155
    %s156 = sphi 0, %s153
    %s157 = sphi 0, %s156
    %s173 = sphi 0, %s157
  $region4: #{inception_module_forward.3} parent=0 // loop_header_branch
    %15 = sbr.rel (%p13) target = $region8
  $region5: #{inception_module_forward.3} parent=0 // loop_body
    %s17 = ssub.s32 %s12, 1
    %s18 = ssub.s32 %s12, 2
    %s19 = sadd.s32 %s12, 1
    %s20 = ssub.s32 %s12, %s19
    %p21 = scmp.eq.s32.totalorder %s20, 0
    %s23 = sadd.s32 %s22, 1
    %s24 = scalar_select %p21, %s22, %s23
    %p27 = pneg %p21
    %p28 = scmp.eq.s32.totalorder %s12, 1
    %p29 = por %p27, %p28
    %p30 = scmp.ne.s32.totalorder %s22, %s25
    %p31 = scmp.eq.s32.totalorder %s12, 0
    %p32 = por %p30, %p31
    %p33 = scmp.ne.s32.totalorder %s22, %s25
    %p34 = scmp.eq.s32.totalorder %s17, 1
    %p35 = por %p33, %p34
    %p36 = scmp.ne.s32.totalorder %s25, %s26
    %p37 = scmp.eq.s32.totalorder %s17, 0
    %p38 = por %p36, %p37
    %p39 = scmp.ne.s32.totalorder %s25, %s26
    %p40 = scmp.eq.s32.totalorder %s18, 1
    %p41 = por %p39, %p40
    %p43 = scmp.ne.s32.totalorder %s26, %s42
    %p44 = scmp.eq.s32.totalorder %s18, 0
    %p45 = por %p43, %p44
    %s47 = sadd.s32 %s46, 1
    %p50 = scmp.eq.s32.totalorder %s12, 1
    %p51 = scmp.ne.s32.totalorder %s46, %s48
    %p52 = scmp.eq.s32.totalorder %s12, 0
    %p53 = por %p51, %p52
    %p54 = scmp.ne.s32.totalorder %s46, %s48
    %p55 = scmp.eq.s32.totalorder %s17, 1
    %p56 = por %p54, %p55
    %p57 = scmp.ne.s32.totalorder %s48, %s49
    %p58 = scmp.eq.s32.totalorder %s17, 0
    %p59 = por %p57, %p58
    %p60 = scmp.ne.s32.totalorder %s48, %s49
    %p61 = scmp.eq.s32.totalorder %s18, 1
    %p62 = por %p60, %p61
    %p64 = scmp.ne.s32.totalorder %s49, %s63
    %p65 = scmp.eq.s32.totalorder %s18, 0
    %p66 = por %p64, %p65
    %s68 = sadd.s32 %s67, 1
    %p71 = scmp.eq.s32.totalorder %s12, 1
    %p72 = scmp.ne.s32.totalorder %s67, %s69
    %p73 = scmp.eq.s32.totalorder %s12, 0
    %p74 = por %p72, %p73
    %p75 = scmp.ne.s32.totalorder %s67, %s69
    %p76 = scmp.eq.s32.totalorder %s17, 1
    %p77 = por %p75, %p76
    %p78 = scmp.ne.s32.totalorder %s69, %s70
    %p79 = scmp.eq.s32.totalorder %s17, 0
    %p80 = por %p78, %p79
    %p81 = scmp.ne.s32.totalorder %s69, %s70
    %p82 = scmp.eq.s32.totalorder %s18, 1
    %p83 = por %p81, %p82
    %p85 = scmp.ne.s32.totalorder %s70, %s84
    %p86 = scmp.eq.s32.totalorder %s18, 0
    %p87 = por %p85, %p86
    %s89 = sadd.s32 %s88, 1
    %p92 = scmp.eq.s32.totalorder %s12, 1
    %p93 = scmp.ne.s32.totalorder %s88, %s90
    %p94 = scmp.eq.s32.totalorder %s12, 0
    %p95 = por %p93, %p94
    %p96 = scmp.ne.s32.totalorder %s88, %s90
    %p97 = scmp.eq.s32.totalorder %s17, 1
    %p98 = por %p96, %p97
    %p99 = scmp.ne.s32.totalorder %s90, %s91
    %p100 = scmp.eq.s32.totalorder %s17, 0
    %p101 = por %p99, %p100
    %p102 = scmp.ne.s32.totalorder %s90, %s91
    %p103 = scmp.eq.s32.totalorder %s18, 1
    %p104 = por %p102, %p103
    %p106 = scmp.ne.s32.totalorder %s91, %s105
    %p107 = scmp.eq.s32.totalorder %s18, 0
    %p108 = por %p106, %p107
    %s110 = sadd.s32 %s109, 1
    %p113 = scmp.eq.s32.totalorder %s12, 1
    %p114 = scmp.ne.s32.totalorder %s109, %s111
    %p115 = scmp.eq.s32.totalorder %s12, 0
    %p116 = por %p114, %p115
    %p117 = scmp.ne.s32.totalorder %s109, %s111
    %p118 = scmp.eq.s32.totalorder %s17, 1
    %p119 = por %p117, %p118
    %p120 = scmp.ne.s32.totalorder %s111, %s112
    %p121 = scmp.eq.s32.totalorder %s17, 0
    %p122 = por %p120, %p121
    %p123 = scmp.ne.s32.totalorder %s111, %s112
    %p124 = scmp.eq.s32.totalorder %s18, 1
    %p125 = por %p123, %p124
    %p127 = scmp.ne.s32.totalorder %s112, %s126
    %p128 = scmp.eq.s32.totalorder %s18, 0
    %p129 = por %p127, %p128
    %s131 = sadd.s32 %s130, 1
    %p134 = scmp.eq.s32.totalorder %s12, 1
    %p135 = scmp.ne.s32.totalorder %s130, %s132
    %p136 = scmp.eq.s32.totalorder %s12, 0
    %p137 = por %p135, %p136
    %p138 = scmp.ne.s32.totalorder %s130, %s132
    %p139 = scmp.eq.s32.totalorder %s17, 1
    %p140 = por %p138, %p139
    %p141 = scmp.ne.s32.totalorder %s132, %s133
    %p142 = scmp.eq.s32.totalorder %s17, 0
    %p143 = por %p141, %p142
    %p144 = scmp.ne.s32.totalorder %s132, %s133
    %p145 = scmp.eq.s32.totalorder %s18, 1
    %p146 = por %p144, %p145
    %p148 = scmp.ne.s32.totalorder %s133, %s147
    %p149 = scmp.eq.s32.totalorder %s18, 0
    %p150 = por %p148, %p149
    %s151 = ssub.s32 %s12, %s19
    %p152 = scmp.eq.s32.totalorder %s151, 0
    %s154 = sadd.s32 %s153, 1
    %s155 = scalar_select %p152, %s153, %s154
    %p158 = pneg %p152
    %p159 = scmp.eq.s32.totalorder %s12, 1
    %p160 = por %p158, %p159
    %p161 = scmp.ne.s32.totalorder %s153, %s156
    %p162 = scmp.eq.s32.totalorder %s12, 0
    %p163 = por %p161, %p162
    %p164 = scmp.ne.s32.totalorder %s153, %s156
    %p165 = scmp.eq.s32.totalorder %s17, 1
    %p166 = por %p164, %p165
    %p167 = scmp.ne.s32.totalorder %s156, %s157
    %p168 = scmp.eq.s32.totalorder %s17, 0
    %p169 = por %p167, %p168
    %p170 = scmp.ne.s32.totalorder %s156, %s157
    %p171 = scmp.eq.s32.totalorder %s18, 1
    %p172 = por %p170, %p171
    %p174 = scmp.ne.s32.totalorder %s157, %s173
    %p175 = scmp.eq.s32.totalorder %s18, 0
    %p176 = por %p174, %p175
    %p177 = scmp.le.s32.totalorder 1, %s12
    %p178 = scmp.lt.s32.totalorder %s12, 3
    %p179 = pnand %p177, %p178
    %p180 = pneg %p179
    // Predicated region
    $region9: #{inception_module_forward.3} parent=5 // pred_check
      _
    $region10: #{inception_module_forward.3} parent=5 // pred_check_branch
      %182 = sbr.rel (%p179) target = $region12
    $region11: #{inception_module_forward.3} parent=5 // pred_region
      %s183 = ssub.s32 %s12, 1
      // Predicated region
      $region13: #{inception_module_forward.3} parent=11 // pred_check
        %p184 = pneg %p59
      $region14: #{inception_module_forward.3} parent=11 // pred_check_branch
        %186 = sbr.rel (%p184) target = $region16
      $region15: #{inception_module_forward.3} parent=11 // pred_region
        _
      $region16: #{inception_module_forward.3} parent=11 // pred_fallthru
        _
      // Predicated region
      $region17: #{inception_module_forward.3} parent=11 // pred_check
        %p187 = pneg %p80
      $region18: #{inception_module_forward.3} parent=11 // pred_check_branch
        %189 = sbr.rel (%p187) target = $region20
      $region19: #{inception_module_forward.3} parent=11 // pred_region
        _
      $region20: #{inception_module_forward.3} parent=11 // pred_fallthru
        _
      // Predicated region
      $region21: #{inception_module_forward.3} parent=11 // pred_check
        %p190 = pneg %p101
      $region22: #{inception_module_forward.3} parent=11 // pred_check_branch
        %192 = sbr.rel (%p190) target = $region24
      $region23: #{inception_module_forward.3} parent=11 // pred_region
        _
      $region24: #{inception_module_forward.3} parent=11 // pred_fallthru
        _
      // Predicated region
      $region25: #{inception_module_forward.3} parent=11 // pred_check
        %p193 = pneg %p122
      $region26: #{inception_module_forward.3} parent=11 // pred_check_branch
        %195 = sbr.rel (%p193) target = $region28
      $region27: #{inception_module_forward.3} parent=11 // pred_region
        _
      $region28: #{inception_module_forward.3} parent=11 // pred_fallthru
        _
      // Predicated region
      $region29: #{inception_module_forward.3} parent=11 // pred_check
        %p196 = pneg %p143
      $region30: #{inception_module_forward.3} parent=11 // pred_check_branch
        %198 = sbr.rel (%p196) target = $region32
      $region31: #{inception_module_forward.3} parent=11 // pred_region
        _
      $region32: #{inception_module_forward.3} parent=11 // pred_fallthru
        _
    $region12: #{inception_module_forward.3} parent=5 // pred_fallthru
      _
    %p199 = scmp.lt.s32.totalorder %s12, 2
    // Predicated region
    $region33: #{inception_module_forward.3} parent=5 // pred_check
      %p200 = pneg %p199
    $region34: #{inception_module_forward.3} parent=5 // pred_check_branch
      %202 = sbr.rel (%p200) target = $region36
    $region35: #{inception_module_forward.3} parent=5 // pred_region
      // Predicated region
      $region37: #{inception_module_forward.3} parent=35 // pred_check
        %p203 = pneg %p32
      $region38: #{inception_module_forward.3} parent=35 // pred_check_branch
        %205 = sbr.rel (%p203) target = $region40
      $region39: #{inception_module_forward.3} parent=35 // pred_region
        %s206 = smul.u32 8, %s12
        %p207 = scmp.lt.s32.totalorder %s206, 15
        %s208 = scalar_select %p207, %s206, 15
        %s209 = smul.addr %s208, 8
        %s210 = smul.addr %s209, 4
        %s211 = scalar_lea.vmem %s0, %s210
        %s212 = smul.u32 8, %s12
      $region40: #{inception_module_forward.3} parent=35 // pred_fallthru
        _
    $region36: #{inception_module_forward.3} parent=5 // pred_fallthru
      _
    %p213 = scmp.le.s32.totalorder 1, %s12
    %p214 = scmp.lt.s32.totalorder %s12, 3
    %p215 = pnand %p213, %p214
    %p216 = pneg %p215
    // Predicated region
    $region41: #{inception_module_forward.3} parent=5 // pred_check
      _
    $region42: #{inception_module_forward.3} parent=5 // pred_check_branch
      %218 = sbr.rel (%p215) target = $region44
    $region43: #{inception_module_forward.3} parent=5 // pred_region
      %s219 = ssub.s32 %s12, 1
      %s220 = smul.u32 8, %s17
      %p221 = scmp.lt.s32.totalorder %s220, 15
      %s222 = scalar_select %p221, %s220, 15
      %s223 = smul.addr %s222, 8
      %s224 = smul.addr %s223, 4
      %s225 = scalar_lea.vmem %s0, %s224
      %p226 = pneg %p38
      %p227 = pneg %p35
      %p228 = pneg %p59
      %p229 = pneg %p56
      %p230 = pneg %p80
      %p231 = pneg %p77
      %p232 = pneg %p101
      %p233 = pneg %p98
      %p234 = pneg %p122
      %p235 = pneg %p119
      %p236 = pneg %p143
      %p237 = pneg %p140
      %p238 = pneg %p169
      %p239 = pneg %p166
      %s240 = smul.u32 8, %s17
      %p241 = scmp.lt.s32.totalorder %s240, 15
      %s242 = scalar_select %p241, %s240, 15
      %s243 = smul.addr %s242, 8
      %s244 = smul.addr %s243, 4
      %s245 = scalar_lea.vmem %s6, %s244
      %s246 = smul.u32 8, %s17
      %p247 = scmp.lt.s32.totalorder %s246, 15
      %s248 = scalar_select %p247, %s246, 15
      %s249 = smul.addr %s248, 8
      %s250 = smul.addr %s249, 4
      %s251 = scalar_lea.vmem %s0, %s250
      %s252 = smul.u32 8, %s17
      %s253 = smul.u32 8, %s17
      %p254 = scmp.lt.s32.totalorder %s253, 15
      %s255 = scalar_select %p254, %s253, 15
      %s256 = smul.addr %s255, 8
      %s257 = smul.addr %s256, 4
      %s258 = scalar_lea.vmem %s6, %s257
      %s259 = smul.u32 8, %s17
      %v261 = vld [vmem:[%s251] sm:$0xf]
      %v262 = vld [vmem:[%s251 + $0x4] sm:$0xf]
      %v263 = vld [vmem:[%s251 + $0x8] sm:$0xf]
      %v264 = vld [vmem:[%s251 + $0xc] sm:$0xf]
      %v265 = vld [vmem:[%s251 + $0x10] sm:$0xf]
      %v266 = vld [vmem:[%s251 + $0x14] sm:$0xf]
      %v267 = vld [vmem:[%s251 + $0x18] sm:$0xf]
      %v268 = vld [vmem:[%s251 + $0x1c] sm:$0xf]
      %v269 = vld [vmem:[%s251 + $0x20] sm:$0xf]
      %v270 = vld [vmem:[%s251 + $0x24] sm:$0xf]
      %v271 = vld [vmem:[%s251 + $0x28] sm:$0xf]
      %v272 = vld [vmem:[%s251 + $0x2c] sm:$0xf]
      %v273 = vld [vmem:[%s251 + $0x30] sm:$0xf]
      %v274 = vld [vmem:[%s251 + $0x34] sm:$0xf]
      %v275 = vld [vmem:[%s251 + $0x38] sm:$0xf]
      %v276 = vld [vmem:[%s251 + $0x3c] sm:$0xf]
      %v277 = vld [vmem:[%s251 + $0x40] sm:$0xf]
      %v278 = vld [vmem:[%s251 + $0x44] sm:$0xf]
      %v279 = vld [vmem:[%s251 + $0x48] sm:$0xf]
      %v280 = vld [vmem:[%s251 + $0x4c] sm:$0xf]
      %v281 = vld [vmem:[%s251 + $0x50] sm:$0xf]
      %v282 = vld [vmem:[%s251 + $0x54] sm:$0xf]
      %v283 = vld [vmem:[%s251 + $0x58] sm:$0xf]
      %v284 = vld [vmem:[%s251 + $0x5c] sm:$0xf]
      %v285 = vld [vmem:[%s251 + $0x60] sm:$0xf]
      %v286 = vld [vmem:[%s251 + $0x64] sm:$0xf]
      %v287 = vld [vmem:[%s251 + $0x68] sm:$0xf]
      %v288 = vld [vmem:[%s251 + $0x6c] sm:$0xf]
      %v289 = vld [vmem:[%s251 + $0x70] sm:$0xf]
      %v290 = vld [vmem:[%s251 + $0x74] sm:$0xf]
      %v291 = vld [vmem:[%s251 + $0x78] sm:$0xf]
      %v292 = vld [vmem:[%s251 + $0x7c] sm:$0xf]
      %v293 = vld [vmem:[%s251 + $0x80] sm:$0xf]
      %v294 = vld [vmem:[%s251 + $0x84] sm:$0xf]
      %v295 = vld [vmem:[%s251 + $0x88] sm:$0xf]
      %v296 = vld [vmem:[%s251 + $0x8c] sm:$0xf]
      %v297 = vld [vmem:[%s251 + $0x90] sm:$0xf]
      %v298 = vld [vmem:[%s251 + $0x94] sm:$0xf]
      %v299 = vld [vmem:[%s251 + $0x98] sm:$0xf]
      %v300 = vld [vmem:[%s251 + $0x9c] sm:$0xf]
      %v301 = vld [vmem:[%s251 + $0xa0] sm:$0xf]
      %v302 = vld [vmem:[%s251 + $0xa4] sm:$0xf]
      %v303 = vld [vmem:[%s251 + $0xa8] sm:$0xf]
      %v304 = vld [vmem:[%s251 + $0xac] sm:$0xf]
      %v305 = vld [vmem:[%s251 + $0xb0] sm:$0xf]
      %v306 = vld [vmem:[%s251 + $0xb4] sm:$0xf]
      %v307 = vld [vmem:[%s251 + $0xb8] sm:$0xf]
      %v308 = vld [vmem:[%s251 + $0xbc] sm:$0xf]
      %v309 = vld [vmem:[%s251 + $0xc0] sm:$0xf]
      %v310 = vld [vmem:[%s251 + $0xc4] sm:$0xf]
      %v311 = vld [vmem:[%s251 + $0xc8] sm:$0xf]
      %v312 = vld [vmem:[%s251 + $0xcc] sm:$0xf]
      %v313 = vld [vmem:[%s251 + $0xd0] sm:$0xf]
      %v314 = vld [vmem:[%s251 + $0xd4] sm:$0xf]
      %v315 = vld [vmem:[%s251 + $0xd8] sm:$0xf]
      %v316 = vld [vmem:[%s251 + $0xdc] sm:$0xf]
      %v317 = vld [vmem:[%s251 + $0xe0] sm:$0xf]
      %v318 = vld [vmem:[%s251 + $0xe4] sm:$0xf]
      %v319 = vld [vmem:[%s251 + $0xe8] sm:$0xf]
      %v320 = vld [vmem:[%s251 + $0xec] sm:$0xf]
      %v321 = vld [vmem:[%s251 + $0xf0] sm:$0xf]
      %v322 = vld [vmem:[%s251 + $0xf4] sm:$0xf]
      %v323 = vld [vmem:[%s251 + $0xf8] sm:$0xf]
      %v324 = vld [vmem:[%s251 + $0xfc] sm:$0xf]
      %v325 = vld [vmem:[%s1] sm:$0xf]
      %v326 = vld [vmem:[%s1 + $0x4] sm:$0xf]
      %v327 = vld [vmem:[%s1 + $0x8] sm:$0xf]
      %v328 = vld [vmem:[%s1 + $0xc] sm:$0xf]
      %v329 = vld [vmem:[%s1 + $0x10] sm:$0xf]
      %v330 = vld [vmem:[%s1 + $0x14] sm:$0xf]
      %v331 = vld [vmem:[%s1 + $0x18] sm:$0xf]
      %v332 = vld [vmem:[%s1 + $0x1c] sm:$0xf]
      %v333 = vld [vmem:[%s1 + $0x20] sm:$0xf]
      %v334 = vld [vmem:[%s1 + $0x24] sm:$0xf]
      %v335 = vld [vmem:[%s1 + $0x28] sm:$0xf]
      %v336 = vld [vmem:[%s1 + $0x2c] sm:$0xf]
      %v337 = vld [vmem:[%s1 + $0x30] sm:$0xf]
      %v338 = vld [vmem:[%s1 + $0x34] sm:$0xf]
      %v339 = vld [vmem:[%s1 + $0x38] sm:$0xf]
      %v340 = vld [vmem:[%s1 + $0x3c] sm:$0xf]
      %v341 = vld [vmem:[%s2] sm:$0xf]
      %v342 = vld [vmem:[%s2 + $0x4] sm:$0x1]
      %v343 = vld [vmem:[%s3] sm:$0xf]
      %v344 = vld [vmem:[%s3 + $0x4] sm:$0xf]
      %v345 = vld [vmem:[%s3 + $0x8] sm:$0xf]
      %v346 = vld [vmem:[%s3 + $0xc] sm:$0xf]
      %v347 = vld [vmem:[%s3 + $0x10] sm:$0xf]
      %v348 = vld [vmem:[%s3 + $0x14] sm:$0xf]
      %v349 = vld [vmem:[%s3 + $0x18] sm:$0xf]
      %v350 = vld [vmem:[%s3 + $0x1c] sm:$0xf]
      %v351 = vld [vmem:[%s3 + $0x20] sm:$0xf]
      %v352 = vld [vmem:[%s3 + $0x24] sm:$0xf]
      %v353 = vld [vmem:[%s3 + $0x28] sm:$0xf]
      %v354 = vld [vmem:[%s3 + $0x2c] sm:$0xf]
      %v355 = vld [vmem:[%s3 + $0x30] sm:$0xf]
      %v356 = vld [vmem:[%s3 + $0x34] sm:$0xf]
      %v357 = vld [vmem:[%s3 + $0x38] sm:$0xf]
      %v358 = vld [vmem:[%s3 + $0x3c] sm:$0xf]
      %v359 = vlaneseq
      %v360 = vshrl.u32 %v359, 7
      %v361 = vadd.s32 %v360, 8
      %v362 = vadd.s32 %v360, 16
      %v363 = vadd.s32 %v360, 24
      %v364 = vadd.s32 %v360, 32
      %v365 = vadd.s32 %v360, 40
      %v366 = vadd.s32 %v360, 48
      %v367 = vadd.s32 %v360, 56
      %v432 = vunpack.c.l.b16 %v261
      %v433 = vunpack.c.l.b16 %v262
      %v434 = vunpack.c.l.b16 %v263
      %v435 = vunpack.c.l.b16 %v264
      %v436 = vunpack.c.l.b16 %v265
      %v437 = vunpack.c.l.b16 %v266
      %v438 = vunpack.c.l.b16 %v267
      %v439 = vunpack.c.l.b16 %v268
      %v440 = vunpack.c.l.b16 %v269
      %v441 = vunpack.c.l.b16 %v270
      %v442 = vunpack.c.l.b16 %v271
      %v443 = vunpack.c.l.b16 %v272
      %v444 = vunpack.c.l.b16 %v273
      %v445 = vunpack.c.l.b16 %v274
      %v446 = vunpack.c.l.b16 %v275
      %v447 = vunpack.c.l.b16 %v276
      %v448 = vunpack.c.l.b16 %v277
      %v449 = vunpack.c.l.b16 %v278
      %v450 = vunpack.c.l.b16 %v279
      %v451 = vunpack.c.l.b16 %v280
      %v452 = vunpack.c.l.b16 %v281
      %v453 = vunpack.c.l.b16 %v282
      %v454 = vunpack.c.l.b16 %v283
      %v455 = vunpack.c.l.b16 %v284
      %v456 = vunpack.c.l.b16 %v285
      %v457 = vunpack.c.l.b16 %v286
      %v458 = vunpack.c.l.b16 %v287
      %v459 = vunpack.c.l.b16 %v288
      %v460 = vunpack.c.l.b16 %v289
      %v461 = vunpack.c.l.b16 %v290
      %v462 = vunpack.c.l.b16 %v291
      %v463 = vunpack.c.l.b16 %v292
      %v464 = vunpack.c.l.b16 %v293
      %v465 = vunpack.c.l.b16 %v294
      %v466 = vunpack.c.l.b16 %v295
      %v467 = vunpack.c.l.b16 %v296
      %v468 = vunpack.c.l.b16 %v297
      %v469 = vunpack.c.l.b16 %v298
      %v470 = vunpack.c.l.b16 %v299
      %v471 = vunpack.c.l.b16 %v300
      %v472 = vunpack.c.l.b16 %v301
      %v473 = vunpack.c.l.b16 %v302
      %v474 = vunpack.c.l.b16 %v303
      %v475 = vunpack.c.l.b16 %v304
      %v476 = vunpack.c.l.b16 %v305
      %v477 = vunpack.c.l.b16 %v306
      %v478 = vunpack.c.l.b16 %v307
      %v479 = vunpack.c.l.b16 %v308
      %v480 = vunpack.c.l.b16 %v309
      %v481 = vunpack.c.l.b16 %v310
      %v482 = vunpack.c.l.b16 %v311
      %v483 = vunpack.c.l.b16 %v312
      %v484 = vunpack.c.l.b16 %v313
      %v485 = vunpack.c.l.b16 %v314
      %v486 = vunpack.c.l.b16 %v315
      %v487 = vunpack.c.l.b16 %v316
      %v488 = vunpack.c.l.b16 %v317
      %v489 = vunpack.c.l.b16 %v318
      %v490 = vunpack.c.l.b16 %v319
      %v491 = vunpack.c.l.b16 %v320
      %v492 = vunpack.c.l.b16 %v321
      %v493 = vunpack.c.l.b16 %v322
      %v494 = vunpack.c.l.b16 %v323
      %v495 = vunpack.c.l.b16 %v324
      %v496 = vpack.c.b16 %v433, %v432
      %v497 = vpack.c.b16 %v435, %v434
      %v498 = vpack.c.b16 %v437, %v436
      %v499 = vpack.c.b16 %v439, %v438
      %v500 = vpack.c.b16 %v441, %v440
      %v501 = vpack.c.b16 %v443, %v442
      %v502 = vpack.c.b16 %v445, %v444
      %v503 = vpack.c.b16 %v447, %v446
      %v504 = vpack.c.b16 %v449, %v448
      %v505 = vpack.c.b16 %v451, %v450
      %v506 = vpack.c.b16 %v453, %v452
      %v507 = vpack.c.b16 %v455, %v454
      %v508 = vpack.c.b16 %v457, %v456
      %v509 = vpack.c.b16 %v459, %v458
      %v510 = vpack.c.b16 %v461, %v460
      %v511 = vpack.c.b16 %v463, %v462
      %v512 = vpack.c.b16 %v465, %v464
      %v513 = vpack.c.b16 %v467, %v466
      %v514 = vpack.c.b16 %v469, %v468
      %v515 = vpack.c.b16 %v471, %v470
      %v516 = vpack.c.b16 %v473, %v472
      %v517 = vpack.c.b16 %v475, %v474
      %v518 = vpack.c.b16 %v477, %v476
      %v519 = vpack.c.b16 %v479, %v478
      %v520 = vpack.c.b16 %v481, %v480
      %v521 = vpack.c.b16 %v483, %v482
      %v522 = vpack.c.b16 %v485, %v484
      %v523 = vpack.c.b16 %v487, %v486
      %v524 = vpack.c.b16 %v489, %v488
      %v525 = vpack.c.b16 %v491, %v490
      %v526 = vpack.c.b16 %v493, %v492
      %v527 = vpack.c.b16 %v495, %v494
      %v576 = vunpack.c.l.b16 %v325
      %v577 = vunpack.c.l.b16 %v326
      %v578 = vunpack.c.l.b16 %v327
      %v579 = vunpack.c.l.b16 %v328
      %v580 = vunpack.c.l.b16 %v329
      %v581 = vunpack.c.l.b16 %v330
      %v582 = vunpack.c.l.b16 %v331
      %v583 = vunpack.c.l.b16 %v332
      %v584 = vunpack.c.l.b16 %v333
      %v585 = vunpack.c.l.b16 %v334
      %v586 = vunpack.c.l.b16 %v335
      %v587 = vunpack.c.l.b16 %v336
      %v588 = vunpack.c.l.b16 %v337
      %v589 = vunpack.c.l.b16 %v338
      %v590 = vunpack.c.l.b16 %v339
      %v591 = vunpack.c.l.b16 %v340
      %v592 = vpack.c.b16 %v577, %v576
      %v593 = vpack.c.b16 %v579, %v578
      %v594 = vpack.c.b16 %v581, %v580
      %v595 = vpack.c.b16 %v583, %v582
      %v596 = vpack.c.b16 %v585, %v584
      %v597 = vpack.c.b16 %v587, %v586
      %v598 = vpack.c.b16 %v589, %v588
      %v599 = vpack.c.b16 %v591, %v590
      %608 = vmatpush.bf16.msra.mxu0 %v599
      %609 = vmatpush.bf16.msra.mxu0 %v598
      %610 = vmatpush.bf16.msra.mxu0 %v597
      %611 = vmatpush.bf16.msra.mxu0 %v596
      %612 = vmatpush.bf16.msra.mxu0 %v595
      %613 = vmatpush.bf16.msra.mxu0 %v594
      %614 = vmatpush.bf16.msra.mxu0 %v593
      %615 = vmatpush.bf16.msra.mxu0 %v592
      %616 = vmatmul.bf16.gmra.mxu0 %v496
      %v617 = vpop.f32.mrf.mxu0
      %v618 = vadd.f32 0.0, %v617
      %v619 = vpop.f32.mrf.mxu0
      %v620 = vadd.f32 0.0, %v619
      %621 = vmatmul.bf16.gmra.mxu0 %v497
      %v622 = vpop.f32.mrf.mxu0
      %v623 = vadd.f32 0.0, %v622
      %v624 = vpop.f32.mrf.mxu0
      %v625 = vadd.f32 0.0, %v624
      %626 = vmatmul.bf16.gmra.mxu0 %v498
      %v627 = vpop.f32.mrf.mxu0
      %v628 = vadd.f32 0.0, %v627
      %v629 = vpop.f32.mrf.mxu0
      %v630 = vadd.f32 0.0, %v629
      %631 = vmatmul.bf16.gmra.mxu0 %v499
      %v632 = vpop.f32.mrf.mxu0
      %v633 = vadd.f32 0.0, %v632
      %v634 = vpop.f32.mrf.mxu0
      %v635 = vadd.f32 0.0, %v634
      %636 = vmatmul.bf16.gmra.mxu0 %v500
      %v637 = vpop.f32.mrf.mxu0
      %v638 = vadd.f32 0.0, %v637
      %v639 = vpop.f32.mrf.mxu0
      %v640 = vadd.f32 0.0, %v639
      %641 = vmatmul.bf16.gmra.mxu0 %v501
      %v642 = vpop.f32.mrf.mxu0
      %v643 = vadd.f32 0.0, %v642
      %v644 = vpop.f32.mrf.mxu0
      %v645 = vadd.f32 0.0, %v644
      %646 = vmatmul.bf16.gmra.mxu0 %v502
      %v647 = vpop.f32.mrf.mxu0
      %v648 = vadd.f32 0.0, %v647
      %v649 = vpop.f32.mrf.mxu0
      %v650 = vadd.f32 0.0, %v649
      %651 = vmatmul.bf16.gmra.mxu0 %v503
      %v652 = vpop.f32.mrf.mxu0
      %v653 = vadd.f32 0.0, %v652
      %v654 = vpop.f32.mrf.mxu0
      %v655 = vadd.f32 0.0, %v654
      %656 = vmatmul.bf16.gmra.mxu0 %v504
      %v657 = vpop.f32.mrf.mxu0
      %v658 = vadd.f32 0.0, %v657
      %v659 = vpop.f32.mrf.mxu0
      %v660 = vadd.f32 0.0, %v659
      %661 = vmatmul.bf16.gmra.mxu0 %v505
      %v662 = vpop.f32.mrf.mxu0
      %v663 = vadd.f32 0.0, %v662
      %v664 = vpop.f32.mrf.mxu0
      %v665 = vadd.f32 0.0, %v664
      %666 = vmatmul.bf16.gmra.mxu0 %v506
      %v667 = vpop.f32.mrf.mxu0
      %v668 = vadd.f32 0.0, %v667
      %v669 = vpop.f32.mrf.mxu0
      %v670 = vadd.f32 0.0, %v669
      %671 = vmatmul.bf16.gmra.mxu0 %v507
      %v672 = vpop.f32.mrf.mxu0
      %v673 = vadd.f32 0.0, %v672
      %v674 = vpop.f32.mrf.mxu0
      %v675 = vadd.f32 0.0, %v674
      %676 = vmatmul.bf16.gmra.mxu0 %v508
      %v677 = vpop.f32.mrf.mxu0
      %v678 = vadd.f32 0.0, %v677
      %v679 = vpop.f32.mrf.mxu0
      %v680 = vadd.f32 0.0, %v679
      %681 = vmatmul.bf16.gmra.mxu0 %v509
      %v682 = vpop.f32.mrf.mxu0
      %v683 = vadd.f32 0.0, %v682
      %v684 = vpop.f32.mrf.mxu0
      %v685 = vadd.f32 0.0, %v684
      %686 = vmatmul.bf16.gmra.mxu0 %v510
      %v687 = vpop.f32.mrf.mxu0
      %v688 = vadd.f32 0.0, %v687
      %v689 = vpop.f32.mrf.mxu0
      %v690 = vadd.f32 0.0, %v689
      %691 = vmatmul.bf16.gmra.mxu0 %v511
      %v692 = vpop.f32.mrf.mxu0
      %v693 = vadd.f32 0.0, %v692
      %v694 = vpop.f32.mrf.mxu0
      %v695 = vadd.f32 0.0, %v694
      %696 = vmatmul.bf16.gmra.mxu0 %v512
      %v697 = vpop.f32.mrf.mxu0
      %v698 = vadd.f32 0.0, %v697
      %v699 = vpop.f32.mrf.mxu0
      %v700 = vadd.f32 0.0, %v699
      %701 = vmatmul.bf16.gmra.mxu0 %v513
      %v702 = vpop.f32.mrf.mxu0
      %v703 = vadd.f32 0.0, %v702
      %v704 = vpop.f32.mrf.mxu0
      %v705 = vadd.f32 0.0, %v704
      %706 = vmatmul.bf16.gmra.mxu0 %v514
      %v707 = vpop.f32.mrf.mxu0
      %v708 = vadd.f32 0.0, %v707
      %v709 = vpop.f32.mrf.mxu0
      %v710 = vadd.f32 0.0, %v709
      %711 = vmatmul.bf16.gmra.mxu0 %v515
      %v712 = vpop.f32.mrf.mxu0
      %v713 = vadd.f32 0.0, %v712
      %v714 = vpop.f32.mrf.mxu0
      %v715 = vadd.f32 0.0, %v714
      %716 = vmatmul.bf16.gmra.mxu0 %v516
      %v717 = vpop.f32.mrf.mxu0
      %v718 = vadd.f32 0.0, %v717
      %v719 = vpop.f32.mrf.mxu0
      %v720 = vadd.f32 0.0, %v719
      %721 = vmatmul.bf16.gmra.mxu0 %v517
      %v722 = vpop.f32.mrf.mxu0
      %v723 = vadd.f32 0.0, %v722
      %v724 = vpop.f32.mrf.mxu0
      %v725 = vadd.f32 0.0, %v724
      %726 = vmatmul.bf16.gmra.mxu0 %v518
      %v727 = vpop.f32.mrf.mxu0
      %v728 = vadd.f32 0.0, %v727
      %v729 = vpop.f32.mrf.mxu0
      %v730 = vadd.f32 0.0, %v729
      %731 = vmatmul.bf16.gmra.mxu0 %v519
      %v732 = vpop.f32.mrf.mxu0
      %v733 = vadd.f32 0.0, %v732
      %v734 = vpop.f32.mrf.mxu0
      %v735 = vadd.f32 0.0, %v734
      %736 = vmatmul.bf16.gmra.mxu0 %v520
      %v737 = vpop.f32.mrf.mxu0
      %v738 = vadd.f32 0.0, %v737
      %v739 = vpop.f32.mrf.mxu0
      %v740 = vadd.f32 0.0, %v739
      %741 = vmatmul.bf16.gmra.mxu0 %v521
      %v742 = vpop.f32.mrf.mxu0
      %v743 = vadd.f32 0.0, %v742
      %v744 = vpop.f32.mrf.mxu0
      %v745 = vadd.f32 0.0, %v744
      %746 = vmatmul.bf16.gmra.mxu0 %v522
      %v747 = vpop.f32.mrf.mxu0
      %v748 = vadd.f32 0.0, %v747
      %v749 = vpop.f32.mrf.mxu0
      %v750 = vadd.f32 0.0, %v749
      %751 = vmatmul.bf16.gmra.mxu0 %v523
      %v752 = vpop.f32.mrf.mxu0
      %v753 = vadd.f32 0.0, %v752
      %v754 = vpop.f32.mrf.mxu0
      %v755 = vadd.f32 0.0, %v754
      %756 = vmatmul.bf16.gmra.mxu0 %v524
      %v757 = vpop.f32.mrf.mxu0
      %v758 = vadd.f32 0.0, %v757
      %v759 = vpop.f32.mrf.mxu0
      %v760 = vadd.f32 0.0, %v759
      %761 = vmatmul.bf16.gmra.mxu0 %v525
      %v762 = vpop.f32.mrf.mxu0
      %v763 = vadd.f32 0.0, %v762
      %v764 = vpop.f32.mrf.mxu0
      %v765 = vadd.f32 0.0, %v764
      %766 = vmatmul.bf16.gmra.mxu0 %v526
      %v767 = vpop.f32.mrf.mxu0
      %v768 = vadd.f32 0.0, %v767
      %v769 = vpop.f32.mrf.mxu0
      %v770 = vadd.f32 0.0, %v769
      %771 = vmatmul.bf16.gmra.mxu0 %v527
      %v772 = vpop.f32.mrf.mxu0
      %v773 = vadd.f32 0.0, %v772
      %v774 = vpop.f32.mrf.mxu0
      %v775 = vadd.f32 0.0, %v774
      %776 = vdwg.mxu0
      %v777 = vrot.slane %v618, 4
      %v778 = vrot.slane %v620, 4
      %v779 = vrot.slane %v623, 4
      %v780 = vrot.slane %v625, 4
      %v781 = vrot.slane %v628, 4
      %v782 = vrot.slane %v630, 4
      %v783 = vrot.slane %v633, 4
      %v784 = vrot.slane %v635, 4
      %v785 = vrot.slane %v638, 4
      %v786 = vrot.slane %v640, 4
      %v787 = vrot.slane %v643, 4
      %v788 = vrot.slane %v645, 4
      %v789 = vrot.slane %v648, 4
      %v790 = vrot.slane %v650, 4
      %v791 = vrot.slane %v653, 4
      %v792 = vrot.slane %v655, 4
      %v793 = vrot.slane %v658, 4
      %v794 = vrot.slane %v660, 4
      %v795 = vrot.slane %v663, 4
      %v796 = vrot.slane %v665, 4
      %v797 = vrot.slane %v668, 4
      %v798 = vrot.slane %v670, 4
      %v799 = vrot.slane %v673, 4
      %v800 = vrot.slane %v675, 4
      %v801 = vrot.slane %v678, 4
      %v802 = vrot.slane %v680, 4
      %v803 = vrot.slane %v683, 4
      %v804 = vrot.slane %v685, 4
      %v805 = vrot.slane %v688, 4
      %v806 = vrot.slane %v690, 4
      %v807 = vrot.slane %v693, 4
      %v808 = vrot.slane %v695, 4
      %v809 = vrot.slane %v698, 4
      %v810 = vrot.slane %v700, 4
      %v811 = vrot.slane %v703, 4
      %v812 = vrot.slane %v705, 4
      %v813 = vrot.slane %v708, 4
      %v814 = vrot.slane %v710, 4
      %v815 = vrot.slane %v713, 4
      %v816 = vrot.slane %v715, 4
      %v817 = vrot.slane %v718, 4
      %v818 = vrot.slane %v720, 4
      %v819 = vrot.slane %v723, 4
      %v820 = vrot.slane %v725, 4
      %v821 = vrot.slane %v728, 4
      %v822 = vrot.slane %v730, 4
      %v823 = vrot.slane %v733, 4
      %v824 = vrot.slane %v735, 4
      %v825 = vrot.slane %v738, 4
      %v826 = vrot.slane %v740, 4
      %v827 = vrot.slane %v743, 4
      %v828 = vrot.slane %v745, 4
      %v829 = vrot.slane %v748, 4
      %v830 = vrot.slane %v750, 4
      %v831 = vrot.slane %v753, 4
      %v832 = vrot.slane %v755, 4
      %v833 = vrot.slane %v758, 4
      %v834 = vrot.slane %v760, 4
      %v835 = vrot.slane %v763, 4
      %v836 = vrot.slane %v765, 4
      %v837 = vrot.slane %v768, 4
      %v838 = vrot.slane %v770, 4
      %v839 = vrot.slane %v773, 4
      %v840 = vrot.slane %v775, 4
      %vm841 = vcmp.lt.s32.totalorder %v360, 4
      %v842 = vsel %vm841, %v839, %v840
      %v843 = vsel %vm841, %v838, %v839
      %v844 = vsel %vm841, %v837, %v838
      %v845 = vsel %vm841, %v836, %v837
      %v846 = vsel %vm841, %v835, %v836
      %v847 = vsel %vm841, %v834, %v835
      %v848 = vsel %vm841, %v833, %v834
      %v849 = vsel %vm841, %v832, %v833
      %v850 = vsel %vm841, %v831, %v832
      %v851 = vsel %vm841, %v830, %v831
      %v852 = vsel %vm841, %v829, %v830
      %v853 = vsel %vm841, %v828, %v829
      %v854 = vsel %vm841, %v827, %v828
      %v855 = vsel %vm841, %v826, %v827
      %v856 = vsel %vm841, %v825, %v826
      %v857 = vsel %vm841, %v824, %v825
      %v858 = vsel %vm841, %v823, %v824
      %v859 = vsel %vm841, %v822, %v823
      %v860 = vsel %vm841, %v821, %v822
      %v861 = vsel %vm841, %v820, %v821
      %v862 = vsel %vm841, %v819, %v820
      %v863 = vsel %vm841, %v818, %v819
      %v864 = vsel %vm841, %v817, %v818
      %v865 = vsel %vm841, %v816, %v817
      %v866 = vsel %vm841, %v815, %v816
      %v867 = vsel %vm841, %v814, %v815
      %v868 = vsel %vm841, %v813, %v814
      %v869 = vsel %vm841, %v812, %v813
      %v870 = vsel %vm841, %v811, %v812
      %v871 = vsel %vm841, %v810, %v811
      %v872 = vsel %vm841, %v809, %v810
      %v873 = vsel %vm841, %v808, %v809
      %v874 = vsel %vm841, %v807, %v808
      %v875 = vsel %vm841, %v806, %v807
      %v876 = vsel %vm841, %v805, %v806
      %v877 = vsel %vm841, %v804, %v805
      %v878 = vsel %vm841, %v803, %v804
      %v879 = vsel %vm841, %v802, %v803
      %v880 = vsel %vm841, %v801, %v802
      %v881 = vsel %vm841, %v800, %v801
      %v882 = vsel %vm841, %v799, %v800
      %v883 = vsel %vm841, %v798, %v799
      %v884 = vsel %vm841, %v797, %v798
      %v885 = vsel %vm841, %v796, %v797
      %v886 = vsel %vm841, %v795, %v796
      %v887 = vsel %vm841, %v794, %v795
      %v888 = vsel %vm841, %v793, %v794
      %v889 = vsel %vm841, %v792, %v793
      %v890 = vsel %vm841, %v791, %v792
      %v891 = vsel %vm841, %v790, %v791
      %v892 = vsel %vm841, %v789, %v790
      %v893 = vsel %vm841, %v788, %v789
      %v894 = vsel %vm841, %v787, %v788
      %v895 = vsel %vm841, %v786, %v787
      %v896 = vsel %vm841, %v785, %v786
      %v897 = vsel %vm841, %v784, %v785
      %v898 = vsel %vm841, %v783, %v784
      %v899 = vsel %vm841, %v782, %v783
      %v900 = vsel %vm841, %v781, %v782
      %v901 = vsel %vm841, %v780, %v781
      %v902 = vsel %vm841, %v779, %v780
      %v903 = vsel %vm841, %v778, %v779
      %v904 = vsel %vm841, %v777, %v778
      %v905 = vsel %vm841, %v840, %v777
      %v906 = vrot.slane %v618, 5
      %v907 = vrot.slane %v620, 5
      %v908 = vrot.slane %v623, 5
      %v909 = vrot.slane %v625, 5
      %v910 = vrot.slane %v628, 5
      %v911 = vrot.slane %v630, 5
      %v912 = vrot.slane %v633, 5
      %v913 = vrot.slane %v635, 5
      %v914 = vrot.slane %v638, 5
      %v915 = vrot.slane %v640, 5
      %v916 = vrot.slane %v643, 5
      %v917 = vrot.slane %v645, 5
      %v918 = vrot.slane %v648, 5
      %v919 = vrot.slane %v650, 5
      %v920 = vrot.slane %v653, 5
      %v921 = vrot.slane %v655, 5
      %v922 = vrot.slane %v658, 5
      %v923 = vrot.slane %v660, 5
      %v924 = vrot.slane %v663, 5
      %v925 = vrot.slane %v665, 5
      %v926 = vrot.slane %v668, 5
      %v927 = vrot.slane %v670, 5
      %v928 = vrot.slane %v673, 5
      %v929 = vrot.slane %v675, 5
      %v930 = vrot.slane %v678, 5
      %v931 = vrot.slane %v680, 5
      %v932 = vrot.slane %v683, 5
      %v933 = vrot.slane %v685, 5
      %v934 = vrot.slane %v688, 5
      %v935 = vrot.slane %v690, 5
      %v936 = vrot.slane %v693, 5
      %v937 = vrot.slane %v695, 5
      %v938 = vrot.slane %v698, 5
      %v939 = vrot.slane %v700, 5
      %v940 = vrot.slane %v703, 5
      %v941 = vrot.slane %v705, 5
      %v942 = vrot.slane %v708, 5
      %v943 = vrot.slane %v710, 5
      %v944 = vrot.slane %v713, 5
      %v945 = vrot.slane %v715, 5
      %v946 = vrot.slane %v718, 5
      %v947 = vrot.slane %v720, 5
      %v948 = vrot.slane %v723, 5
      %v949 = vrot.slane %v725, 5
      %v950 = vrot.slane %v728, 5
      %v951 = vrot.slane %v730, 5
      %v952 = vrot.slane %v733, 5
      %v953 = vrot.slane %v735, 5
      %v954 = vrot.slane %v738, 5
      %v955 = vrot.slane %v740, 5
      %v956 = vrot.slane %v743, 5
      %v957 = vrot.slane %v745, 5
      %v958 = vrot.slane %v748, 5
      %v959 = vrot.slane %v750, 5
      %v960 = vrot.slane %v753, 5
      %v961 = vrot.slane %v755, 5
      %v962 = vrot.slane %v758, 5
      %v963 = vrot.slane %v760, 5
      %v964 = vrot.slane %v763, 5
      %v965 = vrot.slane %v765, 5
      %v966 = vrot.slane %v768, 5
      %v967 = vrot.slane %v770, 5
      %v968 = vrot.slane %v773, 5
      %v969 = vrot.slane %v775, 5
      %vm970 = vcmp.lt.s32.totalorder %v360, 3
      %v971 = vsel %vm970, %v968, %v969
      %v972 = vsel %vm970, %v967, %v968
      %v973 = vsel %vm970, %v966, %v967
      %v974 = vsel %vm970, %v965, %v966
      %v975 = vsel %vm970, %v964, %v965
      %v976 = vsel %vm970, %v963, %v964
      %v977 = vsel %vm970, %v962, %v963
      %v978 = vsel %vm970, %v961, %v962
      %v979 = vsel %vm970, %v960, %v961
      %v980 = vsel %vm970, %v959, %v960
      %v981 = vsel %vm970, %v958, %v959
      %v982 = vsel %vm970, %v957, %v958
      %v983 = vsel %vm970, %v956, %v957
      %v984 = vsel %vm970, %v955, %v956
      %v985 = vsel %vm970, %v954, %v955
      %v986 = vsel %vm970, %v953, %v954
      %v987 = vsel %vm970, %v952, %v953
      %v988 = vsel %vm970, %v951, %v952
      %v989 = vsel %vm970, %v950, %v951
      %v990 = vsel %vm970, %v949, %v950
      %v991 = vsel %vm970, %v948, %v949
      %v992 = vsel %vm970, %v947, %v948
      %v993 = vsel %vm970, %v946, %v947
      %v994 = vsel %vm970, %v945, %v946
      %v995 = vsel %vm970, %v944, %v945
      %v996 = vsel %vm970, %v943, %v944
      %v997 = vsel %vm970, %v942, %v943
      %v998 = vsel %vm970, %v941, %v942
      %v999 = vsel %vm970, %v940, %v941
      %v1000 = vsel %vm970, %v939, %v940
      %v1001 = vsel %vm970, %v938, %v939
      %v1002 = vsel %vm970, %v937, %v938
      %v1003 = vsel %vm970, %v936, %v937
      %v1004 = vsel %vm970, %v935, %v936
      %v1005 = vsel %vm970, %v934, %v935
      %v1006 = vsel %vm970, %v933, %v934
      %v1007 = vsel %vm970, %v932, %v933
      %v1008 = vsel %vm970, %v931, %v932
      %v1009 = vsel %vm970, %v930, %v931
      %v1010 = vsel %vm970, %v929, %v930
      %v1011 = vsel %vm970, %v928, %v929
      %v1012 = vsel %vm970, %v927, %v928
      %v1013 = vsel %vm970, %v926, %v927
      %v1014 = vsel %vm970, %v925, %v926
      %v1015 = vsel %vm970, %v924, %v925
      %v1016 = vsel %vm970, %v923, %v924
      %v1017 = vsel %vm970, %v922, %v923
      %v1018 = vsel %vm970, %v921, %v922
      %v1019 = vsel %vm970, %v920, %v921
      %v1020 = vsel %vm970, %v919, %v920
      %v1021 = vsel %vm970, %v918, %v919
      %v1022 = vsel %vm970, %v917, %v918
      %v1023 = vsel %vm970, %v916, %v917
      %v1024 = vsel %vm970, %v915, %v916
      %v1025 = vsel %vm970, %v914, %v915
      %v1026 = vsel %vm970, %v913, %v914
      %v1027 = vsel %vm970, %v912, %v913
      %v1028 = vsel %vm970, %v911, %v912
      %v1029 = vsel %vm970, %v910, %v911
      %v1030 = vsel %vm970, %v909, %v910
      %v1031 = vsel %vm970, %v908, %v909
      %v1032 = vsel %vm970, %v907, %v908
      %v1033 = vsel %vm970, %v906, %v907
      %v1034 = vsel %vm970, %v969, %v906
      %v1035 = vrot.slane %v618, 6
      %v1036 = vrot.slane %v620, 6
      %v1037 = vrot.slane %v623, 6
      %v1038 = vrot.slane %v625, 6
      %v1039 = vrot.slane %v628, 6
      %v1040 = vrot.slane %v630, 6
      %v1041 = vrot.slane %v633, 6
      %v1042 = vrot.slane %v635, 6
      %v1043 = vrot.slane %v638, 6
      %v1044 = vrot.slane %v640, 6
      %v1045 = vrot.slane %v643, 6
      %v1046 = vrot.slane %v645, 6
      %v1047 = vrot.slane %v648, 6
      %v1048 = vrot.slane %v650, 6
      %v1049 = vrot.slane %v653, 6
      %v1050 = vrot.slane %v655, 6
      %v1051 = vrot.slane %v658, 6
      %v1052 = vrot.slane %v660, 6
      %v1053 = vrot.slane %v663, 6
      %v1054 = vrot.slane %v665, 6
      %v1055 = vrot.slane %v668, 6
      %v1056 = vrot.slane %v670, 6
      %v1057 = vrot.slane %v673, 6
      %v1058 = vrot.slane %v675, 6
      %v1059 = vrot.slane %v678, 6
      %v1060 = vrot.slane %v680, 6
      %v1061 = vrot.slane %v683, 6
      %v1062 = vrot.slane %v685, 6
      %v1063 = vrot.slane %v688, 6
      %v1064 = vrot.slane %v690, 6
      %v1065 = vrot.slane %v693, 6
      %v1066 = vrot.slane %v695, 6
      %v1067 = vrot.slane %v698, 6
      %v1068 = vrot.slane %v700, 6
      %v1069 = vrot.slane %v703, 6
      %v1070 = vrot.slane %v705, 6
      %v1071 = vrot.slane %v708, 6
      %v1072 = vrot.slane %v710, 6
      %v1073 = vrot.slane %v713, 6
      %v1074 = vrot.slane %v715, 6
      %v1075 = vrot.slane %v718, 6
      %v1076 = vrot.slane %v720, 6
      %v1077 = vrot.slane %v723, 6
      %v1078 = vrot.slane %v725, 6
      %v1079 = vrot.slane %v728, 6
      %v1080 = vrot.slane %v730, 6
      %v1081 = vrot.slane %v733, 6
      %v1082 = vrot.slane %v735, 6
      %v1083 = vrot.slane %v738, 6
      %v1084 = vrot.slane %v740, 6
      %v1085 = vrot.slane %v743, 6
      %v1086 = vrot.slane %v745, 6
      %v1087 = vrot.slane %v748, 6
      %v1088 = vrot.slane %v750, 6
      %v1089 = vrot.slane %v753, 6
      %v1090 = vrot.slane %v755, 6
      %v1091 = vrot.slane %v758, 6
      %v1092 = vrot.slane %v760, 6
      %v1093 = vrot.slane %v763, 6
      %v1094 = vrot.slane %v765, 6
      %v1095 = vrot.slane %v768, 6
      %v1096 = vrot.slane %v770, 6
      %v1097 = vrot.slane %v773, 6
      %v1098 = vrot.slane %v775, 6
      %vm1099 = vcmp.lt.s32.totalorder %v360, 2
      %v1100 = vsel %vm1099, %v1097, %v1098
      %v1101 = vsel %vm1099, %v1096, %v1097
      %v1102 = vsel %vm1099, %v1095, %v1096
      %v1103 = vsel %vm1099, %v1094, %v1095
      %v1104 = vsel %vm1099, %v1093, %v1094
      %v1105 = vsel %vm1099, %v1092, %v1093
      %v1106 = vsel %vm1099, %v1091, %v1092
      %v1107 = vsel %vm1099, %v1090, %v1091
      %v1108 = vsel %vm1099, %v1089, %v1090
      %v1109 = vsel %vm1099, %v1088, %v1089
      %v1110 = vsel %vm1099, %v1087, %v1088
      %v1111 = vsel %vm1099, %v1086, %v1087
      %v1112 = vsel %vm1099, %v1085, %v1086
      %v1113 = vsel %vm1099, %v1084, %v1085
      %v1114 = vsel %vm1099, %v1083, %v1084
      %v1115 = vsel %vm1099, %v1082, %v1083
      %v1116 = vsel %vm1099, %v1081, %v1082
      %v1117 = vsel %vm1099, %v1080, %v1081
      %v1118 = vsel %vm1099, %v1079, %v1080
      %v1119 = vsel %vm1099, %v1078, %v1079
      %v1120 = vsel %vm1099, %v1077, %v1078
      %v1121 = vsel %vm1099, %v1076, %v1077
      %v1122 = vsel %vm1099, %v1075, %v1076
      %v1123 = vsel %vm1099, %v1074, %v1075
      %v1124 = vsel %vm1099, %v1073, %v1074
      %v1125 = vsel %vm1099, %v1072, %v1073
      %v1126 = vsel %vm1099, %v1071, %v1072
      %v1127 = vsel %vm1099, %v1070, %v1071
      %v1128 = vsel %vm1099, %v1069, %v1070
      %v1129 = vsel %vm1099, %v1068, %v1069
      %v1130 = vsel %vm1099, %v1067, %v1068
      %v1131 = vsel %vm1099, %v1066, %v1067
      %v1132 = vsel %vm1099, %v1065, %v1066
      %v1133 = vsel %vm1099, %v1064, %v1065
      %v1134 = vsel %vm1099, %v1063, %v1064
      %v1135 = vsel %vm1099, %v1062, %v1063
      %v1136 = vsel %vm1099, %v1061, %v1062
      %v1137 = vsel %vm1099, %v1060, %v1061
      %v1138 = vsel %vm1099, %v1059, %v1060
      %v1139 = vsel %vm1099, %v1058, %v1059
      %v1140 = vsel %vm1099, %v1057, %v1058
      %v1141 = vsel %vm1099, %v1056, %v1057
      %v1142 = vsel %vm1099, %v1055, %v1056
      %v1143 = vsel %vm1099, %v1054, %v1055
      %v1144 = vsel %vm1099, %v1053, %v1054
      %v1145 = vsel %vm1099, %v1052, %v1053
      %v1146 = vsel %vm1099, %v1051, %v1052
      %v1147 = vsel %vm1099, %v1050, %v1051
      %v1148 = vsel %vm1099, %v1049, %v1050
      %v1149 = vsel %vm1099, %v1048, %v1049
      %v1150 = vsel %vm1099, %v1047, %v1048
      %v1151 = vsel %vm1099, %v1046, %v1047
      %v1152 = vsel %vm1099, %v1045, %v1046
      %v1153 = vsel %vm1099, %v1044, %v1045
      %v1154 = vsel %vm1099, %v1043, %v1044
      %v1155 = vsel %vm1099, %v1042, %v1043
      %v1156 = vsel %vm1099, %v1041, %v1042
      %v1157 = vsel %vm1099, %v1040, %v1041
      %v1158 = vsel %vm1099, %v1039, %v1040
      %v1159 = vsel %vm1099, %v1038, %v1039
      %v1160 = vsel %vm1099, %v1037, %v1038
      %v1161 = vsel %vm1099, %v1036, %v1037
      %v1162 = vsel %vm1099, %v1035, %v1036
      %v1163 = vsel %vm1099, %v1098, %v1035
      %v1164 = vrot.slane %v618, 7
      %v1165 = vrot.slane %v620, 7
      %v1166 = vrot.slane %v623, 7
      %v1167 = vrot.slane %v625, 7
      %v1168 = vrot.slane %v628, 7
      %v1169 = vrot.slane %v630, 7
      %v1170 = vrot.slane %v633, 7
      %v1171 = vrot.slane %v635, 7
      %v1172 = vrot.slane %v638, 7
      %v1173 = vrot.slane %v640, 7
      %v1174 = vrot.slane %v643, 7
      %v1175 = vrot.slane %v645, 7
      %v1176 = vrot.slane %v648, 7
      %v1177 = vrot.slane %v650, 7
      %v1178 = vrot.slane %v653, 7
      %v1179 = vrot.slane %v655, 7
      %v1180 = vrot.slane %v658, 7
      %v1181 = vrot.slane %v660, 7
      %v1182 = vrot.slane %v663, 7
      %v1183 = vrot.slane %v665, 7
      %v1184 = vrot.slane %v668, 7
      %v1185 = vrot.slane %v670, 7
      %v1186 = vrot.slane %v673, 7
      %v1187 = vrot.slane %v675, 7
      %v1188 = vrot.slane %v678, 7
      %v1189 = vrot.slane %v680, 7
      %v1190 = vrot.slane %v683, 7
      %v1191 = vrot.slane %v685, 7
      %v1192 = vrot.slane %v688, 7
      %v1193 = vrot.slane %v690, 7
      %v1194 = vrot.slane %v693, 7
      %v1195 = vrot.slane %v695, 7
      %v1196 = vrot.slane %v698, 7
      %v1197 = vrot.slane %v700, 7
      %v1198 = vrot.slane %v703, 7
      %v1199 = vrot.slane %v705, 7
      %v1200 = vrot.slane %v708, 7
      %v1201 = vrot.slane %v710, 7
      %v1202 = vrot.slane %v713, 7
      %v1203 = vrot.slane %v715, 7
      %v1204 = vrot.slane %v718, 7
      %v1205 = vrot.slane %v720, 7
      %v1206 = vrot.slane %v723, 7
      %v1207 = vrot.slane %v725, 7
      %v1208 = vrot.slane %v728, 7
      %v1209 = vrot.slane %v730, 7
      %v1210 = vrot.slane %v733, 7
      %v1211 = vrot.slane %v735, 7
      %v1212 = vrot.slane %v738, 7
      %v1213 = vrot.slane %v740, 7
      %v1214 = vrot.slane %v743, 7
      %v1215 = vrot.slane %v745, 7
      %v1216 = vrot.slane %v748, 7
      %v1217 = vrot.slane %v750, 7
      %v1218 = vrot.slane %v753, 7
      %v1219 = vrot.slane %v755, 7
      %v1220 = vrot.slane %v758, 7
      %v1221 = vrot.slane %v760, 7
      %v1222 = vrot.slane %v763, 7
      %v1223 = vrot.slane %v765, 7
      %v1224 = vrot.slane %v768, 7
      %v1225 = vrot.slane %v770, 7
      %v1226 = vrot.slane %v773, 7
      %v1227 = vrot.slane %v775, 7
      %vm1228 = vcmp.lt.s32.totalorder %v360, 1
      %v1229 = vsel %vm1228, %v1226, %v1227
      %v1230 = vsel %vm1228, %v1225, %v1226
      %v1231 = vsel %vm1228, %v1224, %v1225
      %v1232 = vsel %vm1228, %v1223, %v1224
      %v1233 = vsel %vm1228, %v1222, %v1223
      %v1234 = vsel %vm1228, %v1221, %v1222
      %v1235 = vsel %vm1228, %v1220, %v1221
      %v1236 = vsel %vm1228, %v1219, %v1220
      %v1237 = vsel %vm1228, %v1218, %v1219
      %v1238 = vsel %vm1228, %v1217, %v1218
      %v1239 = vsel %vm1228, %v1216, %v1217
      %v1240 = vsel %vm1228, %v1215, %v1216
      %v1241 = vsel %vm1228, %v1214, %v1215
      %v1242 = vsel %vm1228, %v1213, %v1214
      %v1243 = vsel %vm1228, %v1212, %v1213
      %v1244 = vsel %vm1228, %v1211, %v1212
      %v1245 = vsel %vm1228, %v1210, %v1211
      %v1246 = vsel %vm1228, %v1209, %v1210
      %v1247 = vsel %vm1228, %v1208, %v1209
      %v1248 = vsel %vm1228, %v1207, %v1208
      %v1249 = vsel %vm1228, %v1206, %v1207
      %v1250 = vsel %vm1228, %v1205, %v1206
      %v1251 = vsel %vm1228, %v1204, %v1205
      %v1252 = vsel %vm1228, %v1203, %v1204
      %v1253 = vsel %vm1228, %v1202, %v1203
      %v1254 = vsel %vm1228, %v1201, %v1202
      %v1255 = vsel %vm1228, %v1200, %v1201
      %v1256 = vsel %vm1228, %v1199, %v1200
      %v1257 = vsel %vm1228, %v1198, %v1199
      %v1258 = vsel %vm1228, %v1197, %v1198
      %v1259 = vsel %vm1228, %v1196, %v1197
      %v1260 = vsel %vm1228, %v1195, %v1196
      %v1261 = vsel %vm1228, %v1194, %v1195
      %v1262 = vsel %vm1228, %v1193, %v1194
      %v1263 = vsel %vm1228, %v1192, %v1193
      %v1264 = vsel %vm1228, %v1191, %v1192
      %v1265 = vsel %vm1228, %v1190, %v1191
      %v1266 = vsel %vm1228, %v1189, %v1190
      %v1267 = vsel %vm1228, %v1188, %v1189
      %v1268 = vsel %vm1228, %v1187, %v1188
      %v1269 = vsel %vm1228, %v1186, %v1187
      %v1270 = vsel %vm1228, %v1185, %v1186
      %v1271 = vsel %vm1228, %v1184, %v1185
      %v1272 = vsel %vm1228, %v1183, %v1184
      %v1273 = vsel %vm1228, %v1182, %v1183
      %v1274 = vsel %vm1228, %v1181, %v1182
      %v1275 = vsel %vm1228, %v1180, %v1181
      %v1276 = vsel %vm1228, %v1179, %v1180
      %v1277 = vsel %vm1228, %v1178, %v1179
      %v1278 = vsel %vm1228, %v1177, %v1178
      %v1279 = vsel %vm1228, %v1176, %v1177
      %v1280 = vsel %vm1228, %v1175, %v1176
      %v1281 = vsel %vm1228, %v1174, %v1175
      %v1282 = vsel %vm1228, %v1173, %v1174
      %v1283 = vsel %vm1228, %v1172, %v1173
      %v1284 = vsel %vm1228, %v1171, %v1172
      %v1285 = vsel %vm1228, %v1170, %v1171
      %v1286 = vsel %vm1228, %v1169, %v1170
      %v1287 = vsel %vm1228, %v1168, %v1169
      %v1288 = vsel %vm1228, %v1167, %v1168
      %v1289 = vsel %vm1228, %v1166, %v1167
      %v1290 = vsel %vm1228, %v1165, %v1166
      %v1291 = vsel %vm1228, %v1164, %v1165
      %v1292 = vsel %vm1228, %v1227, %v1164
      %v1293 = vrot.slane %v618, 1
      %v1294 = vrot.slane %v620, 1
      %v1295 = vrot.slane %v623, 1
      %v1296 = vrot.slane %v625, 1
      %v1297 = vrot.slane %v628, 1
      %v1298 = vrot.slane %v630, 1
      %v1299 = vrot.slane %v633, 1
      %v1300 = vrot.slane %v635, 1
      %v1301 = vrot.slane %v638, 1
      %v1302 = vrot.slane %v640, 1
      %v1303 = vrot.slane %v643, 1
      %v1304 = vrot.slane %v645, 1
      %v1305 = vrot.slane %v648, 1
      %v1306 = vrot.slane %v650, 1
      %v1307 = vrot.slane %v653, 1
      %v1308 = vrot.slane %v655, 1
      %v1309 = vrot.slane %v658, 1
      %v1310 = vrot.slane %v660, 1
      %v1311 = vrot.slane %v663, 1
      %v1312 = vrot.slane %v665, 1
      %v1313 = vrot.slane %v668, 1
      %v1314 = vrot.slane %v670, 1
      %v1315 = vrot.slane %v673, 1
      %v1316 = vrot.slane %v675, 1
      %v1317 = vrot.slane %v678, 1
      %v1318 = vrot.slane %v680, 1
      %v1319 = vrot.slane %v683, 1
      %v1320 = vrot.slane %v685, 1
      %v1321 = vrot.slane %v688, 1
      %v1322 = vrot.slane %v690, 1
      %v1323 = vrot.slane %v693, 1
      %v1324 = vrot.slane %v695, 1
      %v1325 = vrot.slane %v698, 1
      %v1326 = vrot.slane %v700, 1
      %v1327 = vrot.slane %v703, 1
      %v1328 = vrot.slane %v705, 1
      %v1329 = vrot.slane %v708, 1
      %v1330 = vrot.slane %v710, 1
      %v1331 = vrot.slane %v713, 1
      %v1332 = vrot.slane %v715, 1
      %v1333 = vrot.slane %v718, 1
      %v1334 = vrot.slane %v720, 1
      %v1335 = vrot.slane %v723, 1
      %v1336 = vrot.slane %v725, 1
      %v1337 = vrot.slane %v728, 1
      %v1338 = vrot.slane %v730, 1
      %v1339 = vrot.slane %v733, 1
      %v1340 = vrot.slane %v735, 1
      %v1341 = vrot.slane %v738, 1
      %v1342 = vrot.slane %v740, 1
      %v1343 = vrot.slane %v743, 1
      %v1344 = vrot.slane %v745, 1
      %v1345 = vrot.slane %v748, 1
      %v1346 = vrot.slane %v750, 1
      %v1347 = vrot.slane %v753, 1
      %v1348 = vrot.slane %v755, 1
      %v1349 = vrot.slane %v758, 1
      %v1350 = vrot.slane %v760, 1
      %v1351 = vrot.slane %v763, 1
      %v1352 = vrot.slane %v765, 1
      %v1353 = vrot.slane %v768, 1
      %v1354 = vrot.slane %v770, 1
      %v1355 = vrot.slane %v773, 1
      %v1356 = vrot.slane %v775, 1
      %vm1357 = vcmp.lt.s32.totalorder %v360, 7
      %v1358 = vsel %vm1357, %v1355, %v1356
      %v1359 = vsel %vm1357, %v1354, %v1355
      %v1360 = vsel %vm1357, %v1353, %v1354
      %v1361 = vsel %vm1357, %v1352, %v1353
      %v1362 = vsel %vm1357, %v1351, %v1352
      %v1363 = vsel %vm1357, %v1350, %v1351
      %v1364 = vsel %vm1357, %v1349, %v1350
      %v1365 = vsel %vm1357, %v1348, %v1349
      %v1366 = vsel %vm1357, %v1347, %v1348
      %v1367 = vsel %vm1357, %v1346, %v1347
      %v1368 = vsel %vm1357, %v1345, %v1346
      %v1369 = vsel %vm1357, %v1344, %v1345
      %v1370 = vsel %vm1357, %v1343, %v1344
      %v1371 = vsel %vm1357, %v1342, %v1343
      %v1372 = vsel %vm1357, %v1341, %v1342
      %v1373 = vsel %vm1357, %v1340, %v1341
      %v1374 = vsel %vm1357, %v1339, %v1340
      %v1375 = vsel %vm1357, %v1338, %v1339
      %v1376 = vsel %vm1357, %v1337, %v1338
      %v1377 = vsel %vm1357, %v1336, %v1337
      %v1378 = vsel %vm1357, %v1335, %v1336
      %v1379 = vsel %vm1357, %v1334, %v1335
      %v1380 = vsel %vm1357, %v1333, %v1334
      %v1381 = vsel %vm1357, %v1332, %v1333
      %v1382 = vsel %vm1357, %v1331, %v1332
      %v1383 = vsel %vm1357, %v1330, %v1331
      %v1384 = vsel %vm1357, %v1329, %v1330
      %v1385 = vsel %vm1357, %v1328, %v1329
      %v1386 = vsel %vm1357, %v1327, %v1328
      %v1387 = vsel %vm1357, %v1326, %v1327
      %v1388 = vsel %vm1357, %v1325, %v1326
      %v1389 = vsel %vm1357, %v1324, %v1325
      %v1390 = vsel %vm1357, %v1323, %v1324
      %v1391 = vsel %vm1357, %v1322, %v1323
      %v1392 = vsel %vm1357, %v1321, %v1322
      %v1393 = vsel %vm1357, %v1320, %v1321
      %v1394 = vsel %vm1357, %v1319, %v1320
      %v1395 = vsel %vm1357, %v1318, %v1319
      %v1396 = vsel %vm1357, %v1317, %v1318
      %v1397 = vsel %vm1357, %v1316, %v1317
      %v1398 = vsel %vm1357, %v1315, %v1316
      %v1399 = vsel %vm1357, %v1314, %v1315
      %v1400 = vsel %vm1357, %v1313, %v1314
      %v1401 = vsel %vm1357, %v1312, %v1313
      %v1402 = vsel %vm1357, %v1311, %v1312
      %v1403 = vsel %vm1357, %v1310, %v1311
      %v1404 = vsel %vm1357, %v1309, %v1310
      %v1405 = vsel %vm1357, %v1308, %v1309
      %v1406 = vsel %vm1357, %v1307, %v1308
      %v1407 = vsel %vm1357, %v1306, %v1307
      %v1408 = vsel %vm1357, %v1305, %v1306
      %v1409 = vsel %vm1357, %v1304, %v1305
      %v1410 = vsel %vm1357, %v1303, %v1304
      %v1411 = vsel %vm1357, %v1302, %v1303
      %v1412 = vsel %vm1357, %v1301, %v1302
      %v1413 = vsel %vm1357, %v1300, %v1301
      %v1414 = vsel %vm1357, %v1299, %v1300
      %v1415 = vsel %vm1357, %v1298, %v1299
      %v1416 = vsel %vm1357, %v1297, %v1298
      %v1417 = vsel %vm1357, %v1296, %v1297
      %v1418 = vsel %vm1357, %v1295, %v1296
      %v1419 = vsel %vm1357, %v1294, %v1295
      %v1420 = vsel %vm1357, %v1293, %v1294
      %v1421 = vsel %vm1357, %v1356, %v1293
      %v1422 = vrot.slane %v618, 2
      %v1423 = vrot.slane %v620, 2
      %v1424 = vrot.slane %v623, 2
      %v1425 = vrot.slane %v625, 2
      %v1426 = vrot.slane %v628, 2
      %v1427 = vrot.slane %v630, 2
      %v1428 = vrot.slane %v633, 2
      %v1429 = vrot.slane %v635, 2
      %v1430 = vrot.slane %v638, 2
      %v1431 = vrot.slane %v640, 2
      %v1432 = vrot.slane %v643, 2
      %v1433 = vrot.slane %v645, 2
      %v1434 = vrot.slane %v648, 2
      %v1435 = vrot.slane %v650, 2
      %v1436 = vrot.slane %v653, 2
      %v1437 = vrot.slane %v655, 2
      %v1438 = vrot.slane %v658, 2
      %v1439 = vrot.slane %v660, 2
      %v1440 = vrot.slane %v663, 2
      %v1441 = vrot.slane %v665, 2
      %v1442 = vrot.slane %v668, 2
      %v1443 = vrot.slane %v670, 2
      %v1444 = vrot.slane %v673, 2
      %v1445 = vrot.slane %v675, 2
      %v1446 = vrot.slane %v678, 2
      %v1447 = vrot.slane %v680, 2
      %v1448 = vrot.slane %v683, 2
      %v1449 = vrot.slane %v685, 2
      %v1450 = vrot.slane %v688, 2
      %v1451 = vrot.slane %v690, 2
      %v1452 = vrot.slane %v693, 2
      %v1453 = vrot.slane %v695, 2
      %v1454 = vrot.slane %v698, 2
      %v1455 = vrot.slane %v700, 2
      %v1456 = vrot.slane %v703, 2
      %v1457 = vrot.slane %v705, 2
      %v1458 = vrot.slane %v708, 2
      %v1459 = vrot.slane %v710, 2
      %v1460 = vrot.slane %v713, 2
      %v1461 = vrot.slane %v715, 2
      %v1462 = vrot.slane %v718, 2
      %v1463 = vrot.slane %v720, 2
      %v1464 = vrot.slane %v723, 2
      %v1465 = vrot.slane %v725, 2
      %v1466 = vrot.slane %v728, 2
      %v1467 = vrot.slane %v730, 2
      %v1468 = vrot.slane %v733, 2
      %v1469 = vrot.slane %v735, 2
      %v1470 = vrot.slane %v738, 2
      %v1471 = vrot.slane %v740, 2
      %v1472 = vrot.slane %v743, 2
      %v1473 = vrot.slane %v745, 2
      %v1474 = vrot.slane %v748, 2
      %v1475 = vrot.slane %v750, 2
      %v1476 = vrot.slane %v753, 2
      %v1477 = vrot.slane %v755, 2
      %v1478 = vrot.slane %v758, 2
      %v1479 = vrot.slane %v760, 2
      %v1480 = vrot.slane %v763, 2
      %v1481 = vrot.slane %v765, 2
      %v1482 = vrot.slane %v768, 2
      %v1483 = vrot.slane %v770, 2
      %v1484 = vrot.slane %v773, 2
      %v1485 = vrot.slane %v775, 2
      %vm1486 = vcmp.lt.s32.totalorder %v360, 6
      %v1487 = vsel %vm1486, %v1484, %v1485
      %v1488 = vsel %vm1486, %v1483, %v1484
      %v1489 = vsel %vm1486, %v1482, %v1483
      %v1490 = vsel %vm1486, %v1481, %v1482
      %v1491 = vsel %vm1486, %v1480, %v1481
      %v1492 = vsel %vm1486, %v1479, %v1480
      %v1493 = vsel %vm1486, %v1478, %v1479
      %v1494 = vsel %vm1486, %v1477, %v1478
      %v1495 = vsel %vm1486, %v1476, %v1477
      %v1496 = vsel %vm1486, %v1475, %v1476
      %v1497 = vsel %vm1486, %v1474, %v1475
      %v1498 = vsel %vm1486, %v1473, %v1474
      %v1499 = vsel %vm1486, %v1472, %v1473
      %v1500 = vsel %vm1486, %v1471, %v1472
      %v1501 = vsel %vm1486, %v1470, %v1471
      %v1502 = vsel %vm1486, %v1469, %v1470
      %v1503 = vsel %vm1486, %v1468, %v1469
      %v1504 = vsel %vm1486, %v1467, %v1468
      %v1505 = vsel %vm1486, %v1466, %v1467
      %v1506 = vsel %vm1486, %v1465, %v1466
      %v1507 = vsel %vm1486, %v1464, %v1465
      %v1508 = vsel %vm1486, %v1463, %v1464
      %v1509 = vsel %vm1486, %v1462, %v1463
      %v1510 = vsel %vm1486, %v1461, %v1462
      %v1511 = vsel %vm1486, %v1460, %v1461
      %v1512 = vsel %vm1486, %v1459, %v1460
      %v1513 = vsel %vm1486, %v1458, %v1459
      %v1514 = vsel %vm1486, %v1457, %v1458
      %v1515 = vsel %vm1486, %v1456, %v1457
      %v1516 = vsel %vm1486, %v1455, %v1456
      %v1517 = vsel %vm1486, %v1454, %v1455
      %v1518 = vsel %vm1486, %v1453, %v1454
      %v1519 = vsel %vm1486, %v1452, %v1453
      %v1520 = vsel %vm1486, %v1451, %v1452
      %v1521 = vsel %vm1486, %v1450, %v1451
      %v1522 = vsel %vm1486, %v1449, %v1450
      %v1523 = vsel %vm1486, %v1448, %v1449
      %v1524 = vsel %vm1486, %v1447, %v1448
      %v1525 = vsel %vm1486, %v1446, %v1447
      %v1526 = vsel %vm1486, %v1445, %v1446
      %v1527 = vsel %vm1486, %v1444, %v1445
      %v1528 = vsel %vm1486, %v1443, %v1444
      %v1529 = vsel %vm1486, %v1442, %v1443
      %v1530 = vsel %vm1486, %v1441, %v1442
      %v1531 = vsel %vm1486, %v1440, %v1441
      %v1532 = vsel %vm1486, %v1439, %v1440
      %v1533 = vsel %vm1486, %v1438, %v1439
      %v1534 = vsel %vm1486, %v1437, %v1438
      %v1535 = vsel %vm1486, %v1436, %v1437
      %v1536 = vsel %vm1486, %v1435, %v1436
      %v1537 = vsel %vm1486, %v1434, %v1435
      %v1538 = vsel %vm1486, %v1433, %v1434
      %v1539 = vsel %vm1486, %v1432, %v1433
      %v1540 = vsel %vm1486, %v1431, %v1432
      %v1541 = vsel %vm1486, %v1430, %v1431
      %v1542 = vsel %vm1486, %v1429, %v1430
      %v1543 = vsel %vm1486, %v1428, %v1429
      %v1544 = vsel %vm1486, %v1427, %v1428
      %v1545 = vsel %vm1486, %v1426, %v1427
      %v1546 = vsel %vm1486, %v1425, %v1426
      %v1547 = vsel %vm1486, %v1424, %v1425
      %v1548 = vsel %vm1486, %v1423, %v1424
      %v1549 = vsel %vm1486, %v1422, %v1423
      %v1550 = vsel %vm1486, %v1485, %v1422
      %v1551 = vrot.slane %v618, 3
      %v1552 = vrot.slane %v620, 3
      %v1553 = vrot.slane %v623, 3
      %v1554 = vrot.slane %v625, 3
      %v1555 = vrot.slane %v628, 3
      %v1556 = vrot.slane %v630, 3
      %v1557 = vrot.slane %v633, 3
      %v1558 = vrot.slane %v635, 3
      %v1559 = vrot.slane %v638, 3
      %v1560 = vrot.slane %v640, 3
      %v1561 = vrot.slane %v643, 3
      %v1562 = vrot.slane %v645, 3
      %v1563 = vrot.slane %v648, 3
      %v1564 = vrot.slane %v650, 3
      %v1565 = vrot.slane %v653, 3
      %v1566 = vrot.slane %v655, 3
      %v1567 = vrot.slane %v658, 3
      %v1568 = vrot.slane %v660, 3
      %v1569 = vrot.slane %v663, 3
      %v1570 = vrot.slane %v665, 3
      %v1571 = vrot.slane %v668, 3
      %v1572 = vrot.slane %v670, 3
      %v1573 = vrot.slane %v673, 3
      %v1574 = vrot.slane %v675, 3
      %v1575 = vrot.slane %v678, 3
      %v1576 = vrot.slane %v680, 3
      %v1577 = vrot.slane %v683, 3
      %v1578 = vrot.slane %v685, 3
      %v1579 = vrot.slane %v688, 3
      %v1580 = vrot.slane %v690, 3
      %v1581 = vrot.slane %v693, 3
      %v1582 = vrot.slane %v695, 3
      %v1583 = vrot.slane %v698, 3
      %v1584 = vrot.slane %v700, 3
      %v1585 = vrot.slane %v703, 3
      %v1586 = vrot.slane %v705, 3
      %v1587 = vrot.slane %v708, 3
      %v1588 = vrot.slane %v710, 3
      %v1589 = vrot.slane %v713, 3
      %v1590 = vrot.slane %v715, 3
      %v1591 = vrot.slane %v718, 3
      %v1592 = vrot.slane %v720, 3
      %v1593 = vrot.slane %v723, 3
      %v1594 = vrot.slane %v725, 3
      %v1595 = vrot.slane %v728, 3
      %v1596 = vrot.slane %v730, 3
      %v1597 = vrot.slane %v733, 3
      %v1598 = vrot.slane %v735, 3
      %v1599 = vrot.slane %v738, 3
      %v1600 = vrot.slane %v740, 3
      %v1601 = vrot.slane %v743, 3
      %v1602 = vrot.slane %v745, 3
      %v1603 = vrot.slane %v748, 3
      %v1604 = vrot.slane %v750, 3
      %v1605 = vrot.slane %v753, 3
      %v1606 = vrot.slane %v755, 3
      %v1607 = vrot.slane %v758, 3
      %v1608 = vrot.slane %v760, 3
      %v1609 = vrot.slane %v763, 3
      %v1610 = vrot.slane %v765, 3
      %v1611 = vrot.slane %v768, 3
      %v1612 = vrot.slane %v770, 3
      %v1613 = vrot.slane %v773, 3
      %v1614 = vrot.slane %v775, 3
      %vm1615 = vcmp.lt.s32.totalorder %v360, 5
      %v1616 = vsel %vm1615, %v1613, %v1614
      %v1617 = vsel %vm1615, %v1612, %v1613
      %v1618 = vsel %vm1615, %v1611, %v1612
      %v1619 = vsel %vm1615, %v1610, %v1611
      %v1620 = vsel %vm1615, %v1609, %v1610
      %v1621 = vsel %vm1615, %v1608, %v1609
      %v1622 = vsel %vm1615, %v1607, %v1608
      %v1623 = vsel %vm1615, %v1606, %v1607
      %v1624 = vsel %vm1615, %v1605, %v1606
      %v1625 = vsel %vm1615, %v1604, %v1605
      %v1626 = vsel %vm1615, %v1603, %v1604
      %v1627 = vsel %vm1615, %v1602, %v1603
      %v1628 = vsel %vm1615, %v1601, %v1602
      %v1629 = vsel %vm1615, %v1600, %v1601
      %v1630 = vsel %vm1615, %v1599, %v1600
      %v1631 = vsel %vm1615, %v1598, %v1599
      %v1632 = vsel %vm1615, %v1597, %v1598
      %v1633 = vsel %vm1615, %v1596, %v1597
      %v1634 = vsel %vm1615, %v1595, %v1596
      %v1635 = vsel %vm1615, %v1594, %v1595
      %v1636 = vsel %vm1615, %v1593, %v1594
      %v1637 = vsel %vm1615, %v1592, %v1593
      %v1638 = vsel %vm1615, %v1591, %v1592
      %v1639 = vsel %vm1615, %v1590, %v1591
      %v1640 = vsel %vm1615, %v1589, %v1590
      %v1641 = vsel %vm1615, %v1588, %v1589
      %v1642 = vsel %vm1615, %v1587, %v1588
      %v1643 = vsel %vm1615, %v1586, %v1587
      %v1644 = vsel %vm1615, %v1585, %v1586
      %v1645 = vsel %vm1615, %v1584, %v1585
      %v1646 = vsel %vm1615, %v1583, %v1584
      %v1647 = vsel %vm1615, %v1582, %v1583
      %v1648 = vsel %vm1615, %v1581, %v1582
      %v1649 = vsel %vm1615, %v1580, %v1581
      %v1650 = vsel %vm1615, %v1579, %v1580
      %v1651 = vsel %vm1615, %v1578, %v1579
      %v1652 = vsel %vm1615, %v1577, %v1578
      %v1653 = vsel %vm1615, %v1576, %v1577
      %v1654 = vsel %vm1615, %v1575, %v1576
      %v1655 = vsel %vm1615, %v1574, %v1575
      %v1656 = vsel %vm1615, %v1573, %v1574
      %v1657 = vsel %vm1615, %v1572, %v1573
      %v1658 = vsel %vm1615, %v1571, %v1572
      %v1659 = vsel %vm1615, %v1570, %v1571
      %v1660 = vsel %vm1615, %v1569, %v1570
      %v1661 = vsel %vm1615, %v1568, %v1569
      %v1662 = vsel %vm1615, %v1567, %v1568
      %v1663 = vsel %vm1615, %v1566, %v1567
      %v1664 = vsel %vm1615, %v1565, %v1566
      %v1665 = vsel %vm1615, %v1564, %v1565
      %v1666 = vsel %vm1615, %v1563, %v1564
      %v1667 = vsel %vm1615, %v1562, %v1563
      %v1668 = vsel %vm1615, %v1561, %v1562
      %v1669 = vsel %vm1615, %v1560, %v1561
      %v1670 = vsel %vm1615, %v1559, %v1560
      %v1671 = vsel %vm1615, %v1558, %v1559
      %v1672 = vsel %vm1615, %v1557, %v1558
      %v1673 = vsel %vm1615, %v1556, %v1557
      %v1674 = vsel %vm1615, %v1555, %v1556
      %v1675 = vsel %vm1615, %v1554, %v1555
      %v1676 = vsel %vm1615, %v1553, %v1554
      %v1677 = vsel %vm1615, %v1552, %v1553
      %v1678 = vsel %vm1615, %v1551, %v1552
      %v1679 = vsel %vm1615, %v1614, %v1551
      %1744 = vrot.lane.b32.xlu0 %v1034, 1
      %v1745 = vpop.permute.xlu0 %1744
      %1746 = vrot.lane.b32.xlu0 %v1033, 1
      %v1747 = vpop.permute.xlu0 %1746
      %1748 = vrot.lane.b32.xlu0 %v1032, 1
      %v1749 = vpop.permute.xlu0 %1748
      %1750 = vrot.lane.b32.xlu0 %v1031, 1
      %v1751 = vpop.permute.xlu0 %1750
      %1752 = vrot.lane.b32.xlu0 %v1030, 1
      %v1753 = vpop.permute.xlu0 %1752
      %1754 = vrot.lane.b32.xlu0 %v1029, 1
      %v1755 = vpop.permute.xlu0 %1754
      %1756 = vrot.lane.b32.xlu0 %v1028, 1
      %v1757 = vpop.permute.xlu0 %1756
      %1758 = vrot.lane.b32.xlu0 %v1027, 1
      %v1759 = vpop.permute.xlu0 %1758
      %1760 = vrot.lane.b32.xlu0 %v1026, 1
      %v1761 = vpop.permute.xlu0 %1760
      %1762 = vrot.lane.b32.xlu0 %v1025, 1
      %v1763 = vpop.permute.xlu0 %1762
      %1764 = vrot.lane.b32.xlu0 %v1024, 1
      %v1765 = vpop.permute.xlu0 %1764
      %1766 = vrot.lane.b32.xlu0 %v1023, 1
      %v1767 = vpop.permute.xlu0 %1766
      %1768 = vrot.lane.b32.xlu0 %v1022, 1
      %v1769 = vpop.permute.xlu0 %1768
      %1770 = vrot.lane.b32.xlu0 %v1021, 1
      %v1771 = vpop.permute.xlu0 %1770
      %1772 = vrot.lane.b32.xlu0 %v1020, 1
      %v1773 = vpop.permute.xlu0 %1772
      %1774 = vrot.lane.b32.xlu0 %v1019, 1
      %v1775 = vpop.permute.xlu0 %1774
      %1776 = vrot.lane.b32.xlu0 %v1018, 1
      %v1777 = vpop.permute.xlu0 %1776
      %1778 = vrot.lane.b32.xlu0 %v1017, 1
      %v1779 = vpop.permute.xlu0 %1778
      %1780 = vrot.lane.b32.xlu0 %v1016, 1
      %v1781 = vpop.permute.xlu0 %1780
      %1782 = vrot.lane.b32.xlu0 %v1015, 1
      %v1783 = vpop.permute.xlu0 %1782
      %1784 = vrot.lane.b32.xlu0 %v1014, 1
      %v1785 = vpop.permute.xlu0 %1784
      %1786 = vrot.lane.b32.xlu0 %v1013, 1
      %v1787 = vpop.permute.xlu0 %1786
      %1788 = vrot.lane.b32.xlu0 %v1012, 1
      %v1789 = vpop.permute.xlu0 %1788
      %1790 = vrot.lane.b32.xlu0 %v1011, 1
      %v1791 = vpop.permute.xlu0 %1790
      %1792 = vrot.lane.b32.xlu0 %v1010, 1
      %v1793 = vpop.permute.xlu0 %1792
      %1794 = vrot.lane.b32.xlu0 %v1009, 1
      %v1795 = vpop.permute.xlu0 %1794
      %1796 = vrot.lane.b32.xlu0 %v1008, 1
      %v1797 = vpop.permute.xlu0 %1796
      %1798 = vrot.lane.b32.xlu0 %v1007, 1
      %v1799 = vpop.permute.xlu0 %1798
      %1800 = vrot.lane.b32.xlu0 %v1006, 1
      %v1801 = vpop.permute.xlu0 %1800
      %1802 = vrot.lane.b32.xlu0 %v1005, 1
      %v1803 = vpop.permute.xlu0 %1802
      %1804 = vrot.lane.b32.xlu0 %v1004, 1
      %v1805 = vpop.permute.xlu0 %1804
      %1806 = vrot.lane.b32.xlu0 %v1003, 1
      %v1807 = vpop.permute.xlu0 %1806
      %1808 = vrot.lane.b32.xlu0 %v1002, 1
      %v1809 = vpop.permute.xlu0 %1808
      %1810 = vrot.lane.b32.xlu0 %v1001, 1
      %v1811 = vpop.permute.xlu0 %1810
      %1812 = vrot.lane.b32.xlu0 %v1000, 1
      %v1813 = vpop.permute.xlu0 %1812
      %1814 = vrot.lane.b32.xlu0 %v999, 1
      %v1815 = vpop.permute.xlu0 %1814
      %1816 = vrot.lane.b32.xlu0 %v998, 1
      %v1817 = vpop.permute.xlu0 %1816
      %1818 = vrot.lane.b32.xlu0 %v997, 1
      %v1819 = vpop.permute.xlu0 %1818
      %1820 = vrot.lane.b32.xlu0 %v996, 1
      %v1821 = vpop.permute.xlu0 %1820
      %1822 = vrot.lane.b32.xlu0 %v995, 1
      %v1823 = vpop.permute.xlu0 %1822
      %1824 = vrot.lane.b32.xlu0 %v994, 1
      %v1825 = vpop.permute.xlu0 %1824
      %1826 = vrot.lane.b32.xlu0 %v993, 1
      %v1827 = vpop.permute.xlu0 %1826
      %1828 = vrot.lane.b32.xlu0 %v992, 1
      %v1829 = vpop.permute.xlu0 %1828
      %1830 = vrot.lane.b32.xlu0 %v991, 1
      %v1831 = vpop.permute.xlu0 %1830
      %1832 = vrot.lane.b32.xlu0 %v990, 1
      %v1833 = vpop.permute.xlu0 %1832
      %1834 = vrot.lane.b32.xlu0 %v989, 1
      %v1835 = vpop.permute.xlu0 %1834
      %1836 = vrot.lane.b32.xlu0 %v988, 1
      %v1837 = vpop.permute.xlu0 %1836
      %1838 = vrot.lane.b32.xlu0 %v987, 1
      %v1839 = vpop.permute.xlu0 %1838
      %1840 = vrot.lane.b32.xlu0 %v986, 1
      %v1841 = vpop.permute.xlu0 %1840
      %1842 = vrot.lane.b32.xlu0 %v985, 1
      %v1843 = vpop.permute.xlu0 %1842
      %1844 = vrot.lane.b32.xlu0 %v984, 1
      %v1845 = vpop.permute.xlu0 %1844
      %1846 = vrot.lane.b32.xlu0 %v983, 1
      %v1847 = vpop.permute.xlu0 %1846
      %1848 = vrot.lane.b32.xlu0 %v982, 1
      %v1849 = vpop.permute.xlu0 %1848
      %1850 = vrot.lane.b32.xlu0 %v981, 1
      %v1851 = vpop.permute.xlu0 %1850
      %1852 = vrot.lane.b32.xlu0 %v980, 1
      %v1853 = vpop.permute.xlu0 %1852
      %1854 = vrot.lane.b32.xlu0 %v979, 1
      %v1855 = vpop.permute.xlu0 %1854
      %1856 = vrot.lane.b32.xlu0 %v978, 1
      %v1857 = vpop.permute.xlu0 %1856
      %1858 = vrot.lane.b32.xlu0 %v977, 1
      %v1859 = vpop.permute.xlu0 %1858
      %1860 = vrot.lane.b32.xlu0 %v976, 1
      %v1861 = vpop.permute.xlu0 %1860
      %1862 = vrot.lane.b32.xlu0 %v975, 1
      %v1863 = vpop.permute.xlu0 %1862
      %1864 = vrot.lane.b32.xlu0 %v974, 1
      %v1865 = vpop.permute.xlu0 %1864
      %1866 = vrot.lane.b32.xlu0 %v973, 1
      %v1867 = vpop.permute.xlu0 %1866
      %1868 = vrot.lane.b32.xlu0 %v972, 1
      %v1869 = vpop.permute.xlu0 %1868
      %1870 = vrot.lane.b32.xlu0 %v971, 1
      %v1871 = vpop.permute.xlu0 %1870
      %2000 = vrot.lane.b32.xlu0 %v1163, 2
      %v2001 = vpop.permute.xlu0 %2000
      %2002 = vrot.lane.b32.xlu0 %v1162, 2
      %v2003 = vpop.permute.xlu0 %2002
      %2004 = vrot.lane.b32.xlu0 %v1161, 2
      %v2005 = vpop.permute.xlu0 %2004
      %2006 = vrot.lane.b32.xlu0 %v1160, 2
      %v2007 = vpop.permute.xlu0 %2006
      %2008 = vrot.lane.b32.xlu0 %v1159, 2
      %v2009 = vpop.permute.xlu0 %2008
      %2010 = vrot.lane.b32.xlu0 %v1158, 2
      %v2011 = vpop.permute.xlu0 %2010
      %2012 = vrot.lane.b32.xlu0 %v1157, 2
      %v2013 = vpop.permute.xlu0 %2012
      %2014 = vrot.lane.b32.xlu0 %v1156, 2
      %v2015 = vpop.permute.xlu0 %2014
      %2016 = vrot.lane.b32.xlu0 %v1155, 2
      %v2017 = vpop.permute.xlu0 %2016
      %2018 = vrot.lane.b32.xlu0 %v1154, 2
      %v2019 = vpop.permute.xlu0 %2018
      %2020 = vrot.lane.b32.xlu0 %v1153, 2
      %v2021 = vpop.permute.xlu0 %2020
      %2022 = vrot.lane.b32.xlu0 %v1152, 2
      %v2023 = vpop.permute.xlu0 %2022
      %2024 = vrot.lane.b32.xlu0 %v1151, 2
      %v2025 = vpop.permute.xlu0 %2024
      %2026 = vrot.lane.b32.xlu0 %v1150, 2
      %v2027 = vpop.permute.xlu0 %2026
      %2028 = vrot.lane.b32.xlu0 %v1149, 2
      %v2029 = vpop.permute.xlu0 %2028
      %2030 = vrot.lane.b32.xlu0 %v1148, 2
      %v2031 = vpop.permute.xlu0 %2030
      %2032 = vrot.lane.b32.xlu0 %v1147, 2
      %v2033 = vpop.permute.xlu0 %2032
      %2034 = vrot.lane.b32.xlu0 %v1146, 2
      %v2035 = vpop.permute.xlu0 %2034
      %2036 = vrot.lane.b32.xlu0 %v1145, 2
      %v2037 = vpop.permute.xlu0 %2036
      %2038 = vrot.lane.b32.xlu0 %v1144, 2
      %v2039 = vpop.permute.xlu0 %2038
      %2040 = vrot.lane.b32.xlu0 %v1143, 2
      %v2041 = vpop.permute.xlu0 %2040
      %2042 = vrot.lane.b32.xlu0 %v1142, 2
      %v2043 = vpop.permute.xlu0 %2042
      %2044 = vrot.lane.b32.xlu0 %v1141, 2
      %v2045 = vpop.permute.xlu0 %2044
      %2046 = vrot.lane.b32.xlu0 %v1140, 2
      %v2047 = vpop.permute.xlu0 %2046
      %2048 = vrot.lane.b32.xlu0 %v1139, 2
      %v2049 = vpop.permute.xlu0 %2048
      %2050 = vrot.lane.b32.xlu0 %v1138, 2
      %v2051 = vpop.permute.xlu0 %2050
      %2052 = vrot.lane.b32.xlu0 %v1137, 2
      %v2053 = vpop.permute.xlu0 %2052
      %2054 = vrot.lane.b32.xlu0 %v1136, 2
      %v2055 = vpop.permute.xlu0 %2054
      %2056 = vrot.lane.b32.xlu0 %v1135, 2
      %v2057 = vpop.permute.xlu0 %2056
      %2058 = vrot.lane.b32.xlu0 %v1134, 2
      %v2059 = vpop.permute.xlu0 %2058
      %2060 = vrot.lane.b32.xlu0 %v1133, 2
      %v2061 = vpop.permute.xlu0 %2060
      %2062 = vrot.lane.b32.xlu0 %v1132, 2
      %v2063 = vpop.permute.xlu0 %2062
      %2064 = vrot.lane.b32.xlu0 %v1131, 2
      %v2065 = vpop.permute.xlu0 %2064
      %2066 = vrot.lane.b32.xlu0 %v1130, 2
      %v2067 = vpop.permute.xlu0 %2066
      %2068 = vrot.lane.b32.xlu0 %v1129, 2
      %v2069 = vpop.permute.xlu0 %2068
      %2070 = vrot.lane.b32.xlu0 %v1128, 2
      %v2071 = vpop.permute.xlu0 %2070
      %2072 = vrot.lane.b32.xlu0 %v1127, 2
      %v2073 = vpop.permute.xlu0 %2072
      %2074 = vrot.lane.b32.xlu0 %v1126, 2
      %v2075 = vpop.permute.xlu0 %2074
      %2076 = vrot.lane.b32.xlu0 %v1125, 2
      %v2077 = vpop.permute.xlu0 %2076
      %2078 = vrot.lane.b32.xlu0 %v1124, 2
      %v2079 = vpop.permute.xlu0 %2078
      %2080 = vrot.lane.b32.xlu0 %v1123, 2
      %v2081 = vpop.permute.xlu0 %2080
      %2082 = vrot.lane.b32.xlu0 %v1122, 2
      %v2083 = vpop.permute.xlu0 %2082
      %2084 = vrot.lane.b32.xlu0 %v1121, 2
      %v2085 = vpop.permute.xlu0 %2084
      %2086 = vrot.lane.b32.xlu0 %v1120, 2
      %v2087 = vpop.permute.xlu0 %2086
      %2088 = vrot.lane.b32.xlu0 %v1119, 2
      %v2089 = vpop.permute.xlu0 %2088
      %2090 = vrot.lane.b32.xlu0 %v1118, 2
      %v2091 = vpop.permute.xlu0 %2090
      %2092 = vrot.lane.b32.xlu0 %v1117, 2
      %v2093 = vpop.permute.xlu0 %2092
      %2094 = vrot.lane.b32.xlu0 %v1116, 2
      %v2095 = vpop.permute.xlu0 %2094
      %2096 = vrot.lane.b32.xlu0 %v1115, 2
      %v2097 = vpop.permute.xlu0 %2096
      %2098 = vrot.lane.b32.xlu0 %v1114, 2
      %v2099 = vpop.permute.xlu0 %2098
      %2100 = vrot.lane.b32.xlu0 %v1113, 2
      %v2101 = vpop.permute.xlu0 %2100
      %2102 = vrot.lane.b32.xlu0 %v1112, 2
      %v2103 = vpop.permute.xlu0 %2102
      %2104 = vrot.lane.b32.xlu0 %v1111, 2
      %v2105 = vpop.permute.xlu0 %2104
      %2106 = vrot.lane.b32.xlu0 %v1110, 2
      %v2107 = vpop.permute.xlu0 %2106
      %2108 = vrot.lane.b32.xlu0 %v1109, 2
      %v2109 = vpop.permute.xlu0 %2108
      %2110 = vrot.lane.b32.xlu0 %v1108, 2
      %v2111 = vpop.permute.xlu0 %2110
      %2112 = vrot.lane.b32.xlu0 %v1107, 2
      %v2113 = vpop.permute.xlu0 %2112
      %2114 = vrot.lane.b32.xlu0 %v1106, 2
      %v2115 = vpop.permute.xlu0 %2114
      %2116 = vrot.lane.b32.xlu0 %v1105, 2
      %v2117 = vpop.permute.xlu0 %2116
      %2118 = vrot.lane.b32.xlu0 %v1104, 2
      %v2119 = vpop.permute.xlu0 %2118
      %2120 = vrot.lane.b32.xlu0 %v1103, 2
      %v2121 = vpop.permute.xlu0 %2120
      %2122 = vrot.lane.b32.xlu0 %v1102, 2
      %v2123 = vpop.permute.xlu0 %2122
      %2124 = vrot.lane.b32.xlu0 %v1101, 2
      %v2125 = vpop.permute.xlu0 %2124
      %2126 = vrot.lane.b32.xlu0 %v1100, 2
      %v2127 = vpop.permute.xlu0 %2126
      %2256 = vrot.lane.b32.xlu0 %v1292, 3
      %v2257 = vpop.permute.xlu0 %2256
      %2258 = vrot.lane.b32.xlu0 %v1291, 3
      %v2259 = vpop.permute.xlu0 %2258
      %2260 = vrot.lane.b32.xlu0 %v1290, 3
      %v2261 = vpop.permute.xlu0 %2260
      %2262 = vrot.lane.b32.xlu0 %v1289, 3
      %v2263 = vpop.permute.xlu0 %2262
      %2264 = vrot.lane.b32.xlu0 %v1288, 3
      %v2265 = vpop.permute.xlu0 %2264
      %2266 = vrot.lane.b32.xlu0 %v1287, 3
      %v2267 = vpop.permute.xlu0 %2266
      %2268 = vrot.lane.b32.xlu0 %v1286, 3
      %v2269 = vpop.permute.xlu0 %2268
      %2270 = vrot.lane.b32.xlu0 %v1285, 3
      %v2271 = vpop.permute.xlu0 %2270
      %2272 = vrot.lane.b32.xlu0 %v1284, 3
      %v2273 = vpop.permute.xlu0 %2272
      %2274 = vrot.lane.b32.xlu0 %v1283, 3
      %v2275 = vpop.permute.xlu0 %2274
      %2276 = vrot.lane.b32.xlu0 %v1282, 3
      %v2277 = vpop.permute.xlu0 %2276
      %2278 = vrot.lane.b32.xlu0 %v1281, 3
      %v2279 = vpop.permute.xlu0 %2278
      %2280 = vrot.lane.b32.xlu0 %v1280, 3
      %v2281 = vpop.permute.xlu0 %2280
      %2282 = vrot.lane.b32.xlu0 %v1279, 3
      %v2283 = vpop.permute.xlu0 %2282
      %2284 = vrot.lane.b32.xlu0 %v1278, 3
      %v2285 = vpop.permute.xlu0 %2284
      %2286 = vrot.lane.b32.xlu0 %v1277, 3
      %v2287 = vpop.permute.xlu0 %2286
      %2288 = vrot.lane.b32.xlu0 %v1276, 3
      %v2289 = vpop.permute.xlu0 %2288
      %2290 = vrot.lane.b32.xlu0 %v1275, 3
      %v2291 = vpop.permute.xlu0 %2290
      %2292 = vrot.lane.b32.xlu0 %v1274, 3
      %v2293 = vpop.permute.xlu0 %2292
      %2294 = vrot.lane.b32.xlu0 %v1273, 3
      %v2295 = vpop.permute.xlu0 %2294
      %2296 = vrot.lane.b32.xlu0 %v1272, 3
      %v2297 = vpop.permute.xlu0 %2296
      %2298 = vrot.lane.b32.xlu0 %v1271, 3
      %v2299 = vpop.permute.xlu0 %2298
      %2300 = vrot.lane.b32.xlu0 %v1270, 3
      %v2301 = vpop.permute.xlu0 %2300
      %2302 = vrot.lane.b32.xlu0 %v1269, 3
      %v2303 = vpop.permute.xlu0 %2302
      %2304 = vrot.lane.b32.xlu0 %v1268, 3
      %v2305 = vpop.permute.xlu0 %2304
      %2306 = vrot.lane.b32.xlu0 %v1267, 3
      %v2307 = vpop.permute.xlu0 %2306
      %2308 = vrot.lane.b32.xlu0 %v1266, 3
      %v2309 = vpop.permute.xlu0 %2308
      %2310 = vrot.lane.b32.xlu0 %v1265, 3
      %v2311 = vpop.permute.xlu0 %2310
      %2312 = vrot.lane.b32.xlu0 %v1264, 3
      %v2313 = vpop.permute.xlu0 %2312
      %2314 = vrot.lane.b32.xlu0 %v1263, 3
      %v2315 = vpop.permute.xlu0 %2314
      %2316 = vrot.lane.b32.xlu0 %v1262, 3
      %v2317 = vpop.permute.xlu0 %2316
      %2318 = vrot.lane.b32.xlu0 %v1261, 3
      %v2319 = vpop.permute.xlu0 %2318
      %2320 = vrot.lane.b32.xlu0 %v1260, 3
      %v2321 = vpop.permute.xlu0 %2320
      %2322 = vrot.lane.b32.xlu0 %v1259, 3
      %v2323 = vpop.permute.xlu0 %2322
      %2324 = vrot.lane.b32.xlu0 %v1258, 3
      %v2325 = vpop.permute.xlu0 %2324
      %2326 = vrot.lane.b32.xlu0 %v1257, 3
      %v2327 = vpop.permute.xlu0 %2326
      %2328 = vrot.lane.b32.xlu0 %v1256, 3
      %v2329 = vpop.permute.xlu0 %2328
      %2330 = vrot.lane.b32.xlu0 %v1255, 3
      %v2331 = vpop.permute.xlu0 %2330
      %2332 = vrot.lane.b32.xlu0 %v1254, 3
      %v2333 = vpop.permute.xlu0 %2332
      %2334 = vrot.lane.b32.xlu0 %v1253, 3
      %v2335 = vpop.permute.xlu0 %2334
      %2336 = vrot.lane.b32.xlu0 %v1252, 3
      %v2337 = vpop.permute.xlu0 %2336
      %2338 = vrot.lane.b32.xlu0 %v1251, 3
      %v2339 = vpop.permute.xlu0 %2338
      %2340 = vrot.lane.b32.xlu0 %v1250, 3
      %v2341 = vpop.permute.xlu0 %2340
      %2342 = vrot.lane.b32.xlu0 %v1249, 3
      %v2343 = vpop.permute.xlu0 %2342
      %2344 = vrot.lane.b32.xlu0 %v1248, 3
      %v2345 = vpop.permute.xlu0 %2344
      %2346 = vrot.lane.b32.xlu0 %v1247, 3
      %v2347 = vpop.permute.xlu0 %2346
      %2348 = vrot.lane.b32.xlu0 %v1246, 3
      %v2349 = vpop.permute.xlu0 %2348
      %2350 = vrot.lane.b32.xlu0 %v1245, 3
      %v2351 = vpop.permute.xlu0 %2350
      %2352 = vrot.lane.b32.xlu0 %v1244, 3
      %v2353 = vpop.permute.xlu0 %2352
      %2354 = vrot.lane.b32.xlu0 %v1243, 3
      %v2355 = vpop.permute.xlu0 %2354
      %2356 = vrot.lane.b32.xlu0 %v1242, 3
      %v2357 = vpop.permute.xlu0 %2356
      %2358 = vrot.lane.b32.xlu0 %v1241, 3
      %v2359 = vpop.permute.xlu0 %2358
      %2360 = vrot.lane.b32.xlu0 %v1240, 3
      %v2361 = vpop.permute.xlu0 %2360
      %2362 = vrot.lane.b32.xlu0 %v1239, 3
      %v2363 = vpop.permute.xlu0 %2362
      %2364 = vrot.lane.b32.xlu0 %v1238, 3
      %v2365 = vpop.permute.xlu0 %2364
      %2366 = vrot.lane.b32.xlu0 %v1237, 3
      %v2367 = vpop.permute.xlu0 %2366
      %2368 = vrot.lane.b32.xlu0 %v1236, 3
      %v2369 = vpop.permute.xlu0 %2368
      %2370 = vrot.lane.b32.xlu0 %v1235, 3
      %v2371 = vpop.permute.xlu0 %2370
      %2372 = vrot.lane.b32.xlu0 %v1234, 3
      %v2373 = vpop.permute.xlu0 %2372
      %2374 = vrot.lane.b32.xlu0 %v1233, 3
      %v2375 = vpop.permute.xlu0 %2374
      %2376 = vrot.lane.b32.xlu0 %v1232, 3
      %v2377 = vpop.permute.xlu0 %2376
      %2378 = vrot.lane.b32.xlu0 %v1231, 3
      %v2379 = vpop.permute.xlu0 %2378
      %2380 = vrot.lane.b32.xlu0 %v1230, 3
      %v2381 = vpop.permute.xlu0 %2380
      %2382 = vrot.lane.b32.xlu0 %v1229, 3
      %v2383 = vpop.permute.xlu0 %2382
      %2512 = vrot.lane.b32.xlu0 %v618, 4
      %v2513 = vpop.permute.xlu0 %2512
      %2514 = vrot.lane.b32.xlu0 %v620, 4
      %v2515 = vpop.permute.xlu0 %2514
      %2516 = vrot.lane.b32.xlu0 %v623, 4
      %v2517 = vpop.permute.xlu0 %2516
      %2518 = vrot.lane.b32.xlu0 %v625, 4
      %v2519 = vpop.permute.xlu0 %2518
      %2520 = vrot.lane.b32.xlu0 %v628, 4
      %v2521 = vpop.permute.xlu0 %2520
      %2522 = vrot.lane.b32.xlu0 %v630, 4
      %v2523 = vpop.permute.xlu0 %2522
      %2524 = vrot.lane.b32.xlu0 %v633, 4
      %v2525 = vpop.permute.xlu0 %2524
      %2526 = vrot.lane.b32.xlu0 %v635, 4
      %v2527 = vpop.permute.xlu0 %2526
      %2528 = vrot.lane.b32.xlu0 %v638, 4
      %v2529 = vpop.permute.xlu0 %2528
      %2530 = vrot.lane.b32.xlu0 %v640, 4
      %v2531 = vpop.permute.xlu0 %2530
      %2532 = vrot.lane.b32.xlu0 %v643, 4
      %v2533 = vpop.permute.xlu0 %2532
      %2534 = vrot.lane.b32.xlu0 %v645, 4
      %v2535 = vpop.permute.xlu0 %2534
      %2536 = vrot.lane.b32.xlu0 %v648, 4
      %v2537 = vpop.permute.xlu0 %2536
      %2538 = vrot.lane.b32.xlu0 %v650, 4
      %v2539 = vpop.permute.xlu0 %2538
      %2540 = vrot.lane.b32.xlu0 %v653, 4
      %v2541 = vpop.permute.xlu0 %2540
      %2542 = vrot.lane.b32.xlu0 %v655, 4
      %v2543 = vpop.permute.xlu0 %2542
      %2544 = vrot.lane.b32.xlu0 %v658, 4
      %v2545 = vpop.permute.xlu0 %2544
      %2546 = vrot.lane.b32.xlu0 %v660, 4
      %v2547 = vpop.permute.xlu0 %2546
      %2548 = vrot.lane.b32.xlu0 %v663, 4
      %v2549 = vpop.permute.xlu0 %2548
      %2550 = vrot.lane.b32.xlu0 %v665, 4
      %v2551 = vpop.permute.xlu0 %2550
      %2552 = vrot.lane.b32.xlu0 %v668, 4
      %v2553 = vpop.permute.xlu0 %2552
      %2554 = vrot.lane.b32.xlu0 %v670, 4
      %v2555 = vpop.permute.xlu0 %2554
      %2556 = vrot.lane.b32.xlu0 %v673, 4
      %v2557 = vpop.permute.xlu0 %2556
      %2558 = vrot.lane.b32.xlu0 %v675, 4
      %v2559 = vpop.permute.xlu0 %2558
      %2560 = vrot.lane.b32.xlu0 %v678, 4
      %v2561 = vpop.permute.xlu0 %2560
      %2562 = vrot.lane.b32.xlu0 %v680, 4
      %v2563 = vpop.permute.xlu0 %2562
      %2564 = vrot.lane.b32.xlu0 %v683, 4
      %v2565 = vpop.permute.xlu0 %2564
      %2566 = vrot.lane.b32.xlu0 %v685, 4
      %v2567 = vpop.permute.xlu0 %2566
      %2568 = vrot.lane.b32.xlu0 %v688, 4
      %v2569 = vpop.permute.xlu0 %2568
      %2570 = vrot.lane.b32.xlu0 %v690, 4
      %v2571 = vpop.permute.xlu0 %2570
      %2572 = vrot.lane.b32.xlu0 %v693, 4
      %v2573 = vpop.permute.xlu0 %2572
      %2574 = vrot.lane.b32.xlu0 %v695, 4
      %v2575 = vpop.permute.xlu0 %2574
      %2576 = vrot.lane.b32.xlu0 %v698, 4
      %v2577 = vpop.permute.xlu0 %2576
      %2578 = vrot.lane.b32.xlu0 %v700, 4
      %v2579 = vpop.permute.xlu0 %2578
      %2580 = vrot.lane.b32.xlu0 %v703, 4
      %v2581 = vpop.permute.xlu0 %2580
      %2582 = vrot.lane.b32.xlu0 %v705, 4
      %v2583 = vpop.permute.xlu0 %2582
      %2584 = vrot.lane.b32.xlu0 %v708, 4
      %v2585 = vpop.permute.xlu0 %2584
      %2586 = vrot.lane.b32.xlu0 %v710, 4
      %v2587 = vpop.permute.xlu0 %2586
      %2588 = vrot.lane.b32.xlu0 %v713, 4
      %v2589 = vpop.permute.xlu0 %2588
      %2590 = vrot.lane.b32.xlu0 %v715, 4
      %v2591 = vpop.permute.xlu0 %2590
      %2592 = vrot.lane.b32.xlu0 %v718, 4
      %v2593 = vpop.permute.xlu0 %2592
      %2594 = vrot.lane.b32.xlu0 %v720, 4
      %v2595 = vpop.permute.xlu0 %2594
      %2596 = vrot.lane.b32.xlu0 %v723, 4
      %v2597 = vpop.permute.xlu0 %2596
      %2598 = vrot.lane.b32.xlu0 %v725, 4
      %v2599 = vpop.permute.xlu0 %2598
      %2600 = vrot.lane.b32.xlu0 %v728, 4
      %v2601 = vpop.permute.xlu0 %2600
      %2602 = vrot.lane.b32.xlu0 %v730, 4
      %v2603 = vpop.permute.xlu0 %2602
      %2604 = vrot.lane.b32.xlu0 %v733, 4
      %v2605 = vpop.permute.xlu0 %2604
      %2606 = vrot.lane.b32.xlu0 %v735, 4
      %v2607 = vpop.permute.xlu0 %2606
      %2608 = vrot.lane.b32.xlu0 %v738, 4
      %v2609 = vpop.permute.xlu0 %2608
      %2610 = vrot.lane.b32.xlu0 %v740, 4
      %v2611 = vpop.permute.xlu0 %2610
      %2612 = vrot.lane.b32.xlu0 %v743, 4
      %v2613 = vpop.permute.xlu0 %2612
      %2614 = vrot.lane.b32.xlu0 %v745, 4
      %v2615 = vpop.permute.xlu0 %2614
      %2616 = vrot.lane.b32.xlu0 %v748, 4
      %v2617 = vpop.permute.xlu0 %2616
      %2618 = vrot.lane.b32.xlu0 %v750, 4
      %v2619 = vpop.permute.xlu0 %2618
      %2620 = vrot.lane.b32.xlu0 %v753, 4
      %v2621 = vpop.permute.xlu0 %2620
      %2622 = vrot.lane.b32.xlu0 %v755, 4
      %v2623 = vpop.permute.xlu0 %2622
      %2624 = vrot.lane.b32.xlu0 %v758, 4
      %v2625 = vpop.permute.xlu0 %2624
      %2626 = vrot.lane.b32.xlu0 %v760, 4
      %v2627 = vpop.permute.xlu0 %2626
      %2628 = vrot.lane.b32.xlu0 %v763, 4
      %v2629 = vpop.permute.xlu0 %2628
      %2630 = vrot.lane.b32.xlu0 %v765, 4
      %v2631 = vpop.permute.xlu0 %2630
      %2632 = vrot.lane.b32.xlu0 %v768, 4
      %v2633 = vpop.permute.xlu0 %2632
      %2634 = vrot.lane.b32.xlu0 %v770, 4
      %v2635 = vpop.permute.xlu0 %2634
      %2636 = vrot.lane.b32.xlu0 %v773, 4
      %v2637 = vpop.permute.xlu0 %2636
      %2638 = vrot.lane.b32.xlu0 %v775, 4
      %v2639 = vpop.permute.xlu0 %2638
      %2768 = vrot.lane.b32.xlu0 %v1420, 5
      %v2769 = vpop.permute.xlu0 %2768
      %2770 = vrot.lane.b32.xlu0 %v1419, 5
      %v2771 = vpop.permute.xlu0 %2770
      %2772 = vrot.lane.b32.xlu0 %v1418, 5
      %v2773 = vpop.permute.xlu0 %2772
      %2774 = vrot.lane.b32.xlu0 %v1417, 5
      %v2775 = vpop.permute.xlu0 %2774
      %2776 = vrot.lane.b32.xlu0 %v1416, 5
      %v2777 = vpop.permute.xlu0 %2776
      %2778 = vrot.lane.b32.xlu0 %v1415, 5
      %v2779 = vpop.permute.xlu0 %2778
      %2780 = vrot.lane.b32.xlu0 %v1414, 5
      %v2781 = vpop.permute.xlu0 %2780
      %2782 = vrot.lane.b32.xlu0 %v1413, 5
      %v2783 = vpop.permute.xlu0 %2782
      %2784 = vrot.lane.b32.xlu0 %v1412, 5
      %v2785 = vpop.permute.xlu0 %2784
      %2786 = vrot.lane.b32.xlu0 %v1411, 5
      %v2787 = vpop.permute.xlu0 %2786
      %2788 = vrot.lane.b32.xlu0 %v1410, 5
      %v2789 = vpop.permute.xlu0 %2788
      %2790 = vrot.lane.b32.xlu0 %v1409, 5
      %v2791 = vpop.permute.xlu0 %2790
      %2792 = vrot.lane.b32.xlu0 %v1408, 5
      %v2793 = vpop.permute.xlu0 %2792
      %2794 = vrot.lane.b32.xlu0 %v1407, 5
      %v2795 = vpop.permute.xlu0 %2794
      %2796 = vrot.lane.b32.xlu0 %v1406, 5
      %v2797 = vpop.permute.xlu0 %2796
      %2798 = vrot.lane.b32.xlu0 %v1405, 5
      %v2799 = vpop.permute.xlu0 %2798
      %2800 = vrot.lane.b32.xlu0 %v1404, 5
      %v2801 = vpop.permute.xlu0 %2800
      %2802 = vrot.lane.b32.xlu0 %v1403, 5
      %v2803 = vpop.permute.xlu0 %2802
      %2804 = vrot.lane.b32.xlu0 %v1402, 5
      %v2805 = vpop.permute.xlu0 %2804
      %2806 = vrot.lane.b32.xlu0 %v1401, 5
      %v2807 = vpop.permute.xlu0 %2806
      %2808 = vrot.lane.b32.xlu0 %v1400, 5
      %v2809 = vpop.permute.xlu0 %2808
      %2810 = vrot.lane.b32.xlu0 %v1399, 5
      %v2811 = vpop.permute.xlu0 %2810
      %2812 = vrot.lane.b32.xlu0 %v1398, 5
      %v2813 = vpop.permute.xlu0 %2812
      %2814 = vrot.lane.b32.xlu0 %v1397, 5
      %v2815 = vpop.permute.xlu0 %2814
      %2816 = vrot.lane.b32.xlu0 %v1396, 5
      %v2817 = vpop.permute.xlu0 %2816
      %2818 = vrot.lane.b32.xlu0 %v1395, 5
      %v2819 = vpop.permute.xlu0 %2818
      %2820 = vrot.lane.b32.xlu0 %v1394, 5
      %v2821 = vpop.permute.xlu0 %2820
      %2822 = vrot.lane.b32.xlu0 %v1393, 5
      %v2823 = vpop.permute.xlu0 %2822
      %2824 = vrot.lane.b32.xlu0 %v1392, 5
      %v2825 = vpop.permute.xlu0 %2824
      %2826 = vrot.lane.b32.xlu0 %v1391, 5
      %v2827 = vpop.permute.xlu0 %2826
      %2828 = vrot.lane.b32.xlu0 %v1390, 5
      %v2829 = vpop.permute.xlu0 %2828
      %2830 = vrot.lane.b32.xlu0 %v1389, 5
      %v2831 = vpop.permute.xlu0 %2830
      %2832 = vrot.lane.b32.xlu0 %v1388, 5
      %v2833 = vpop.permute.xlu0 %2832
      %2834 = vrot.lane.b32.xlu0 %v1387, 5
      %v2835 = vpop.permute.xlu0 %2834
      %2836 = vrot.lane.b32.xlu0 %v1386, 5
      %v2837 = vpop.permute.xlu0 %2836
      %2838 = vrot.lane.b32.xlu0 %v1385, 5
      %v2839 = vpop.permute.xlu0 %2838
      %2840 = vrot.lane.b32.xlu0 %v1384, 5
      %v2841 = vpop.permute.xlu0 %2840
      %2842 = vrot.lane.b32.xlu0 %v1383, 5
      %v2843 = vpop.permute.xlu0 %2842
      %2844 = vrot.lane.b32.xlu0 %v1382, 5
      %v2845 = vpop.permute.xlu0 %2844
      %2846 = vrot.lane.b32.xlu0 %v1381, 5
      %v2847 = vpop.permute.xlu0 %2846
      %2848 = vrot.lane.b32.xlu0 %v1380, 5
      %v2849 = vpop.permute.xlu0 %2848
      %2850 = vrot.lane.b32.xlu0 %v1379, 5
      %v2851 = vpop.permute.xlu0 %2850
      %2852 = vrot.lane.b32.xlu0 %v1378, 5
      %v2853 = vpop.permute.xlu0 %2852
      %2854 = vrot.lane.b32.xlu0 %v1377, 5
      %v2855 = vpop.permute.xlu0 %2854
      %2856 = vrot.lane.b32.xlu0 %v1376, 5
      %v2857 = vpop.permute.xlu0 %2856
      %2858 = vrot.lane.b32.xlu0 %v1375, 5
      %v2859 = vpop.permute.xlu0 %2858
      %2860 = vrot.lane.b32.xlu0 %v1374, 5
      %v2861 = vpop.permute.xlu0 %2860
      %2862 = vrot.lane.b32.xlu0 %v1373, 5
      %v2863 = vpop.permute.xlu0 %2862
      %2864 = vrot.lane.b32.xlu0 %v1372, 5
      %v2865 = vpop.permute.xlu0 %2864
      %2866 = vrot.lane.b32.xlu0 %v1371, 5
      %v2867 = vpop.permute.xlu0 %2866
      %2868 = vrot.lane.b32.xlu0 %v1370, 5
      %v2869 = vpop.permute.xlu0 %2868
      %2870 = vrot.lane.b32.xlu0 %v1369, 5
      %v2871 = vpop.permute.xlu0 %2870
      %2872 = vrot.lane.b32.xlu0 %v1368, 5
      %v2873 = vpop.permute.xlu0 %2872
      %2874 = vrot.lane.b32.xlu0 %v1367, 5
      %v2875 = vpop.permute.xlu0 %2874
      %2876 = vrot.lane.b32.xlu0 %v1366, 5
      %v2877 = vpop.permute.xlu0 %2876
      %2878 = vrot.lane.b32.xlu0 %v1365, 5
      %v2879 = vpop.permute.xlu0 %2878
      %2880 = vrot.lane.b32.xlu0 %v1364, 5
      %v2881 = vpop.permute.xlu0 %2880
      %2882 = vrot.lane.b32.xlu0 %v1363, 5
      %v2883 = vpop.permute.xlu0 %2882
      %2884 = vrot.lane.b32.xlu0 %v1362, 5
      %v2885 = vpop.permute.xlu0 %2884
      %2886 = vrot.lane.b32.xlu0 %v1361, 5
      %v2887 = vpop.permute.xlu0 %2886
      %2888 = vrot.lane.b32.xlu0 %v1360, 5
      %v2889 = vpop.permute.xlu0 %2888
      %2890 = vrot.lane.b32.xlu0 %v1359, 5
      %v2891 = vpop.permute.xlu0 %2890
      %2892 = vrot.lane.b32.xlu0 %v1358, 5
      %v2893 = vpop.permute.xlu0 %2892
      %2894 = vrot.lane.b32.xlu0 %v1421, 5
      %v2895 = vpop.permute.xlu0 %2894
      %3024 = vrot.lane.b32.xlu0 %v1549, 6
      %v3025 = vpop.permute.xlu0 %3024
      %3026 = vrot.lane.b32.xlu0 %v1548, 6
      %v3027 = vpop.permute.xlu0 %3026
      %3028 = vrot.lane.b32.xlu0 %v1547, 6
      %v3029 = vpop.permute.xlu0 %3028
      %3030 = vrot.lane.b32.xlu0 %v1546, 6
      %v3031 = vpop.permute.xlu0 %3030
      %3032 = vrot.lane.b32.xlu0 %v1545, 6
      %v3033 = vpop.permute.xlu0 %3032
      %3034 = vrot.lane.b32.xlu0 %v1544, 6
      %v3035 = vpop.permute.xlu0 %3034
      %3036 = vrot.lane.b32.xlu0 %v1543, 6
      %v3037 = vpop.permute.xlu0 %3036
      %3038 = vrot.lane.b32.xlu0 %v1542, 6
      %v3039 = vpop.permute.xlu0 %3038
      %3040 = vrot.lane.b32.xlu0 %v1541, 6
      %v3041 = vpop.permute.xlu0 %3040
      %3042 = vrot.lane.b32.xlu0 %v1540, 6
      %v3043 = vpop.permute.xlu0 %3042
      %3044 = vrot.lane.b32.xlu0 %v1539, 6
      %v3045 = vpop.permute.xlu0 %3044
      %3046 = vrot.lane.b32.xlu0 %v1538, 6
      %v3047 = vpop.permute.xlu0 %3046
      %3048 = vrot.lane.b32.xlu0 %v1537, 6
      %v3049 = vpop.permute.xlu0 %3048
      %3050 = vrot.lane.b32.xlu0 %v1536, 6
      %v3051 = vpop.permute.xlu0 %3050
      %3052 = vrot.lane.b32.xlu0 %v1535, 6
      %v3053 = vpop.permute.xlu0 %3052
      %3054 = vrot.lane.b32.xlu0 %v1534, 6
      %v3055 = vpop.permute.xlu0 %3054
      %3056 = vrot.lane.b32.xlu0 %v1533, 6
      %v3057 = vpop.permute.xlu0 %3056
      %3058 = vrot.lane.b32.xlu0 %v1532, 6
      %v3059 = vpop.permute.xlu0 %3058
      %3060 = vrot.lane.b32.xlu0 %v1531, 6
      %v3061 = vpop.permute.xlu0 %3060
      %3062 = vrot.lane.b32.xlu0 %v1530, 6
      %v3063 = vpop.permute.xlu0 %3062
      %3064 = vrot.lane.b32.xlu0 %v1529, 6
      %v3065 = vpop.permute.xlu0 %3064
      %3066 = vrot.lane.b32.xlu0 %v1528, 6
      %v3067 = vpop.permute.xlu0 %3066
      %3068 = vrot.lane.b32.xlu0 %v1527, 6
      %v3069 = vpop.permute.xlu0 %3068
      %3070 = vrot.lane.b32.xlu0 %v1526, 6
      %v3071 = vpop.permute.xlu0 %3070
      %3072 = vrot.lane.b32.xlu0 %v1525, 6
      %v3073 = vpop.permute.xlu0 %3072
      %3074 = vrot.lane.b32.xlu0 %v1524, 6
      %v3075 = vpop.permute.xlu0 %3074
      %3076 = vrot.lane.b32.xlu0 %v1523, 6
      %v3077 = vpop.permute.xlu0 %3076
      %3078 = vrot.lane.b32.xlu0 %v1522, 6
      %v3079 = vpop.permute.xlu0 %3078
      %3080 = vrot.lane.b32.xlu0 %v1521, 6
      %v3081 = vpop.permute.xlu0 %3080
      %3082 = vrot.lane.b32.xlu0 %v1520, 6
      %v3083 = vpop.permute.xlu0 %3082
      %3084 = vrot.lane.b32.xlu0 %v1519, 6
      %v3085 = vpop.permute.xlu0 %3084
      %3086 = vrot.lane.b32.xlu0 %v1518, 6
      %v3087 = vpop.permute.xlu0 %3086
      %3088 = vrot.lane.b32.xlu0 %v1517, 6
      %v3089 = vpop.permute.xlu0 %3088
      %3090 = vrot.lane.b32.xlu0 %v1516, 6
      %v3091 = vpop.permute.xlu0 %3090
      %3092 = vrot.lane.b32.xlu0 %v1515, 6
      %v3093 = vpop.permute.xlu0 %3092
      %3094 = vrot.lane.b32.xlu0 %v1514, 6
      %v3095 = vpop.permute.xlu0 %3094
      %3096 = vrot.lane.b32.xlu0 %v1513, 6
      %v3097 = vpop.permute.xlu0 %3096
      %3098 = vrot.lane.b32.xlu0 %v1512, 6
      %v3099 = vpop.permute.xlu0 %3098
      %3100 = vrot.lane.b32.xlu0 %v1511, 6
      %v3101 = vpop.permute.xlu0 %3100
      %3102 = vrot.lane.b32.xlu0 %v1510, 6
      %v3103 = vpop.permute.xlu0 %3102
      %3104 = vrot.lane.b32.xlu0 %v1509, 6
      %v3105 = vpop.permute.xlu0 %3104
      %3106 = vrot.lane.b32.xlu0 %v1508, 6
      %v3107 = vpop.permute.xlu0 %3106
      %3108 = vrot.lane.b32.xlu0 %v1507, 6
      %v3109 = vpop.permute.xlu0 %3108
      %3110 = vrot.lane.b32.xlu0 %v1506, 6
      %v3111 = vpop.permute.xlu0 %3110
      %3112 = vrot.lane.b32.xlu0 %v1505, 6
      %v3113 = vpop.permute.xlu0 %3112
      %3114 = vrot.lane.b32.xlu0 %v1504, 6
      %v3115 = vpop.permute.xlu0 %3114
      %3116 = vrot.lane.b32.xlu0 %v1503, 6
      %v3117 = vpop.permute.xlu0 %3116
      %3118 = vrot.lane.b32.xlu0 %v1502, 6
      %v3119 = vpop.permute.xlu0 %3118
      %3120 = vrot.lane.b32.xlu0 %v1501, 6
      %v3121 = vpop.permute.xlu0 %3120
      %3122 = vrot.lane.b32.xlu0 %v1500, 6
      %v3123 = vpop.permute.xlu0 %3122
      %3124 = vrot.lane.b32.xlu0 %v1499, 6
      %v3125 = vpop.permute.xlu0 %3124
      %3126 = vrot.lane.b32.xlu0 %v1498, 6
      %v3127 = vpop.permute.xlu0 %3126
      %3128 = vrot.lane.b32.xlu0 %v1497, 6
      %v3129 = vpop.permute.xlu0 %3128
      %3130 = vrot.lane.b32.xlu0 %v1496, 6
      %v3131 = vpop.permute.xlu0 %3130
      %3132 = vrot.lane.b32.xlu0 %v1495, 6
      %v3133 = vpop.permute.xlu0 %3132
      %3134 = vrot.lane.b32.xlu0 %v1494, 6
      %v3135 = vpop.permute.xlu0 %3134
      %3136 = vrot.lane.b32.xlu0 %v1493, 6
      %v3137 = vpop.permute.xlu0 %3136
      %3138 = vrot.lane.b32.xlu0 %v1492, 6
      %v3139 = vpop.permute.xlu0 %3138
      %3140 = vrot.lane.b32.xlu0 %v1491, 6
      %v3141 = vpop.permute.xlu0 %3140
      %3142 = vrot.lane.b32.xlu0 %v1490, 6
      %v3143 = vpop.permute.xlu0 %3142
      %3144 = vrot.lane.b32.xlu0 %v1489, 6
      %v3145 = vpop.permute.xlu0 %3144
      %3146 = vrot.lane.b32.xlu0 %v1488, 6
      %v3147 = vpop.permute.xlu0 %3146
      %3148 = vrot.lane.b32.xlu0 %v1487, 6
      %v3149 = vpop.permute.xlu0 %3148
      %3150 = vrot.lane.b32.xlu0 %v1550, 6
      %v3151 = vpop.permute.xlu0 %3150
      %3280 = vrot.lane.b32.xlu0 %v1678, 7
      %v3281 = vpop.permute.xlu0 %3280
      %3282 = vrot.lane.b32.xlu0 %v1677, 7
      %v3283 = vpop.permute.xlu0 %3282
      %3284 = vrot.lane.b32.xlu0 %v1676, 7
      %v3285 = vpop.permute.xlu0 %3284
      %3286 = vrot.lane.b32.xlu0 %v1675, 7
      %v3287 = vpop.permute.xlu0 %3286
      %3288 = vrot.lane.b32.xlu0 %v1674, 7
      %v3289 = vpop.permute.xlu0 %3288
      %3290 = vrot.lane.b32.xlu0 %v1673, 7
      %v3291 = vpop.permute.xlu0 %3290
      %3292 = vrot.lane.b32.xlu0 %v1672, 7
      %v3293 = vpop.permute.xlu0 %3292
      %3294 = vrot.lane.b32.xlu0 %v1671, 7
      %v3295 = vpop.permute.xlu0 %3294
      %3296 = vrot.lane.b32.xlu0 %v1670, 7
      %v3297 = vpop.permute.xlu0 %3296
      %3298 = vrot.lane.b32.xlu0 %v1669, 7
      %v3299 = vpop.permute.xlu0 %3298
      %3300 = vrot.lane.b32.xlu0 %v1668, 7
      %v3301 = vpop.permute.xlu0 %3300
      %3302 = vrot.lane.b32.xlu0 %v1667, 7
      %v3303 = vpop.permute.xlu0 %3302
      %3304 = vrot.lane.b32.xlu0 %v1666, 7
      %v3305 = vpop.permute.xlu0 %3304
      %3306 = vrot.lane.b32.xlu0 %v1665, 7
      %v3307 = vpop.permute.xlu0 %3306
      %3308 = vrot.lane.b32.xlu0 %v1664, 7
      %v3309 = vpop.permute.xlu0 %3308
      %3310 = vrot.lane.b32.xlu0 %v1663, 7
      %v3311 = vpop.permute.xlu0 %3310
      %3312 = vrot.lane.b32.xlu0 %v1662, 7
      %v3313 = vpop.permute.xlu0 %3312
      %3314 = vrot.lane.b32.xlu0 %v1661, 7
      %v3315 = vpop.permute.xlu0 %3314
      %3316 = vrot.lane.b32.xlu0 %v1660, 7
      %v3317 = vpop.permute.xlu0 %3316
      %3318 = vrot.lane.b32.xlu0 %v1659, 7
      %v3319 = vpop.permute.xlu0 %3318
      %3320 = vrot.lane.b32.xlu0 %v1658, 7
      %v3321 = vpop.permute.xlu0 %3320
      %3322 = vrot.lane.b32.xlu0 %v1657, 7
      %v3323 = vpop.permute.xlu0 %3322
      %3324 = vrot.lane.b32.xlu0 %v1656, 7
      %v3325 = vpop.permute.xlu0 %3324
      %3326 = vrot.lane.b32.xlu0 %v1655, 7
      %v3327 = vpop.permute.xlu0 %3326
      %3328 = vrot.lane.b32.xlu0 %v1654, 7
      %v3329 = vpop.permute.xlu0 %3328
      %3330 = vrot.lane.b32.xlu0 %v1653, 7
      %v3331 = vpop.permute.xlu0 %3330
      %3332 = vrot.lane.b32.xlu0 %v1652, 7
      %v3333 = vpop.permute.xlu0 %3332
      %3334 = vrot.lane.b32.xlu0 %v1651, 7
      %v3335 = vpop.permute.xlu0 %3334
      %3336 = vrot.lane.b32.xlu0 %v1650, 7
      %v3337 = vpop.permute.xlu0 %3336
      %3338 = vrot.lane.b32.xlu0 %v1649, 7
      %v3339 = vpop.permute.xlu0 %3338
      %3340 = vrot.lane.b32.xlu0 %v1648, 7
      %v3341 = vpop.permute.xlu0 %3340
      %3342 = vrot.lane.b32.xlu0 %v1647, 7
      %v3343 = vpop.permute.xlu0 %3342
      %3344 = vrot.lane.b32.xlu0 %v1646, 7
      %v3345 = vpop.permute.xlu0 %3344
      %3346 = vrot.lane.b32.xlu0 %v1645, 7
      %v3347 = vpop.permute.xlu0 %3346
      %3348 = vrot.lane.b32.xlu0 %v1644, 7
      %v3349 = vpop.permute.xlu0 %3348
      %3350 = vrot.lane.b32.xlu0 %v1643, 7
      %v3351 = vpop.permute.xlu0 %3350
      %3352 = vrot.lane.b32.xlu0 %v1642, 7
      %v3353 = vpop.permute.xlu0 %3352
      %3354 = vrot.lane.b32.xlu0 %v1641, 7
      %v3355 = vpop.permute.xlu0 %3354
      %3356 = vrot.lane.b32.xlu0 %v1640, 7
      %v3357 = vpop.permute.xlu0 %3356
      %3358 = vrot.lane.b32.xlu0 %v1639, 7
      %v3359 = vpop.permute.xlu0 %3358
      %3360 = vrot.lane.b32.xlu0 %v1638, 7
      %v3361 = vpop.permute.xlu0 %3360
      %3362 = vrot.lane.b32.xlu0 %v1637, 7
      %v3363 = vpop.permute.xlu0 %3362
      %3364 = vrot.lane.b32.xlu0 %v1636, 7
      %v3365 = vpop.permute.xlu0 %3364
      %3366 = vrot.lane.b32.xlu0 %v1635, 7
      %v3367 = vpop.permute.xlu0 %3366
      %3368 = vrot.lane.b32.xlu0 %v1634, 7
      %v3369 = vpop.permute.xlu0 %3368
      %3370 = vrot.lane.b32.xlu0 %v1633, 7
      %v3371 = vpop.permute.xlu0 %3370
      %3372 = vrot.lane.b32.xlu0 %v1632, 7
      %v3373 = vpop.permute.xlu0 %3372
      %3374 = vrot.lane.b32.xlu0 %v1631, 7
      %v3375 = vpop.permute.xlu0 %3374
      %3376 = vrot.lane.b32.xlu0 %v1630, 7
      %v3377 = vpop.permute.xlu0 %3376
      %3378 = vrot.lane.b32.xlu0 %v1629, 7
      %v3379 = vpop.permute.xlu0 %3378
      %3380 = vrot.lane.b32.xlu0 %v1628, 7
      %v3381 = vpop.permute.xlu0 %3380
      %3382 = vrot.lane.b32.xlu0 %v1627, 7
      %v3383 = vpop.permute.xlu0 %3382
      %3384 = vrot.lane.b32.xlu0 %v1626, 7
      %v3385 = vpop.permute.xlu0 %3384
      %3386 = vrot.lane.b32.xlu0 %v1625, 7
      %v3387 = vpop.permute.xlu0 %3386
      %3388 = vrot.lane.b32.xlu0 %v1624, 7
      %v3389 = vpop.permute.xlu0 %3388
      %3390 = vrot.lane.b32.xlu0 %v1623, 7
      %v3391 = vpop.permute.xlu0 %3390
      %3392 = vrot.lane.b32.xlu0 %v1622, 7
      %v3393 = vpop.permute.xlu0 %3392
      %3394 = vrot.lane.b32.xlu0 %v1621, 7
      %v3395 = vpop.permute.xlu0 %3394
      %3396 = vrot.lane.b32.xlu0 %v1620, 7
      %v3397 = vpop.permute.xlu0 %3396
      %3398 = vrot.lane.b32.xlu0 %v1619, 7
      %v3399 = vpop.permute.xlu0 %3398
      %3400 = vrot.lane.b32.xlu0 %v1618, 7
      %v3401 = vpop.permute.xlu0 %3400
      %3402 = vrot.lane.b32.xlu0 %v1617, 7
      %v3403 = vpop.permute.xlu0 %3402
      %3404 = vrot.lane.b32.xlu0 %v1616, 7
      %v3405 = vpop.permute.xlu0 %3404
      %3406 = vrot.lane.b32.xlu0 %v1679, 7
      %v3407 = vpop.permute.xlu0 %3406
      %3536 = vrot.lane.b32.xlu0 %v904, 8
      %v3537 = vpop.permute.xlu0 %3536
      %3538 = vrot.lane.b32.xlu0 %v903, 8
      %v3539 = vpop.permute.xlu0 %3538
      %3540 = vrot.lane.b32.xlu0 %v902, 8
      %v3541 = vpop.permute.xlu0 %3540
      %3542 = vrot.lane.b32.xlu0 %v901, 8
      %v3543 = vpop.permute.xlu0 %3542
      %3544 = vrot.lane.b32.xlu0 %v900, 8
      %v3545 = vpop.permute.xlu0 %3544
      %3546 = vrot.lane.b32.xlu0 %v899, 8
      %v3547 = vpop.permute.xlu0 %3546
      %3548 = vrot.lane.b32.xlu0 %v898, 8
      %v3549 = vpop.permute.xlu0 %3548
      %3550 = vrot.lane.b32.xlu0 %v897, 8
      %v3551 = vpop.permute.xlu0 %3550
      %3552 = vrot.lane.b32.xlu0 %v896, 8
      %v3553 = vpop.permute.xlu0 %3552
      %3554 = vrot.lane.b32.xlu0 %v895, 8
      %v3555 = vpop.permute.xlu0 %3554
      %3556 = vrot.lane.b32.xlu0 %v894, 8
      %v3557 = vpop.permute.xlu0 %3556
      %3558 = vrot.lane.b32.xlu0 %v893, 8
      %v3559 = vpop.permute.xlu0 %3558
      %3560 = vrot.lane.b32.xlu0 %v892, 8
      %v3561 = vpop.permute.xlu0 %3560
      %3562 = vrot.lane.b32.xlu0 %v891, 8
      %v3563 = vpop.permute.xlu0 %3562
      %3564 = vrot.lane.b32.xlu0 %v890, 8
      %v3565 = vpop.permute.xlu0 %3564
      %3566 = vrot.lane.b32.xlu0 %v889, 8
      %v3567 = vpop.permute.xlu0 %3566
      %3568 = vrot.lane.b32.xlu0 %v888, 8
      %v3569 = vpop.permute.xlu0 %3568
      %3570 = vrot.lane.b32.xlu0 %v887, 8
      %v3571 = vpop.permute.xlu0 %3570
      %3572 = vrot.lane.b32.xlu0 %v886, 8
      %v3573 = vpop.permute.xlu0 %3572
      %3574 = vrot.lane.b32.xlu0 %v885, 8
      %v3575 = vpop.permute.xlu0 %3574
      %3576 = vrot.lane.b32.xlu0 %v884, 8
      %v3577 = vpop.permute.xlu0 %3576
      %3578 = vrot.lane.b32.xlu0 %v883, 8
      %v3579 = vpop.permute.xlu0 %3578
      %3580 = vrot.lane.b32.xlu0 %v882, 8
      %v3581 = vpop.permute.xlu0 %3580
      %3582 = vrot.lane.b32.xlu0 %v881, 8
      %v3583 = vpop.permute.xlu0 %3582
      %3584 = vrot.lane.b32.xlu0 %v880, 8
      %v3585 = vpop.permute.xlu0 %3584
      %3586 = vrot.lane.b32.xlu0 %v879, 8
      %v3587 = vpop.permute.xlu0 %3586
      %3588 = vrot.lane.b32.xlu0 %v878, 8
      %v3589 = vpop.permute.xlu0 %3588
      %3590 = vrot.lane.b32.xlu0 %v877, 8
      %v3591 = vpop.permute.xlu0 %3590
      %3592 = vrot.lane.b32.xlu0 %v876, 8
      %v3593 = vpop.permute.xlu0 %3592
      %3594 = vrot.lane.b32.xlu0 %v875, 8
      %v3595 = vpop.permute.xlu0 %3594
      %3596 = vrot.lane.b32.xlu0 %v874, 8
      %v3597 = vpop.permute.xlu0 %3596
      %3598 = vrot.lane.b32.xlu0 %v873, 8
      %v3599 = vpop.permute.xlu0 %3598
      %3600 = vrot.lane.b32.xlu0 %v872, 8
      %v3601 = vpop.permute.xlu0 %3600
      %3602 = vrot.lane.b32.xlu0 %v871, 8
      %v3603 = vpop.permute.xlu0 %3602
      %3604 = vrot.lane.b32.xlu0 %v870, 8
      %v3605 = vpop.permute.xlu0 %3604
      %3606 = vrot.lane.b32.xlu0 %v869, 8
      %v3607 = vpop.permute.xlu0 %3606
      %3608 = vrot.lane.b32.xlu0 %v868, 8
      %v3609 = vpop.permute.xlu0 %3608
      %3610 = vrot.lane.b32.xlu0 %v867, 8
      %v3611 = vpop.permute.xlu0 %3610
      %3612 = vrot.lane.b32.xlu0 %v866, 8
      %v3613 = vpop.permute.xlu0 %3612
      %3614 = vrot.lane.b32.xlu0 %v865, 8
      %v3615 = vpop.permute.xlu0 %3614
      %3616 = vrot.lane.b32.xlu0 %v864, 8
      %v3617 = vpop.permute.xlu0 %3616
      %3618 = vrot.lane.b32.xlu0 %v863, 8
      %v3619 = vpop.permute.xlu0 %3618
      %3620 = vrot.lane.b32.xlu0 %v862, 8
      %v3621 = vpop.permute.xlu0 %3620
      %3622 = vrot.lane.b32.xlu0 %v861, 8
      %v3623 = vpop.permute.xlu0 %3622
      %3624 = vrot.lane.b32.xlu0 %v860, 8
      %v3625 = vpop.permute.xlu0 %3624
      %3626 = vrot.lane.b32.xlu0 %v859, 8
      %v3627 = vpop.permute.xlu0 %3626
      %3628 = vrot.lane.b32.xlu0 %v858, 8
      %v3629 = vpop.permute.xlu0 %3628
      %3630 = vrot.lane.b32.xlu0 %v857, 8
      %v3631 = vpop.permute.xlu0 %3630
      %3632 = vrot.lane.b32.xlu0 %v856, 8
      %v3633 = vpop.permute.xlu0 %3632
      %3634 = vrot.lane.b32.xlu0 %v855, 8
      %v3635 = vpop.permute.xlu0 %3634
      %3636 = vrot.lane.b32.xlu0 %v854, 8
      %v3637 = vpop.permute.xlu0 %3636
      %3638 = vrot.lane.b32.xlu0 %v853, 8
      %v3639 = vpop.permute.xlu0 %3638
      %3640 = vrot.lane.b32.xlu0 %v852, 8
      %v3641 = vpop.permute.xlu0 %3640
      %3642 = vrot.lane.b32.xlu0 %v851, 8
      %v3643 = vpop.permute.xlu0 %3642
      %3644 = vrot.lane.b32.xlu0 %v850, 8
      %v3645 = vpop.permute.xlu0 %3644
      %3646 = vrot.lane.b32.xlu0 %v849, 8
      %v3647 = vpop.permute.xlu0 %3646
      %3648 = vrot.lane.b32.xlu0 %v848, 8
      %v3649 = vpop.permute.xlu0 %3648
      %3650 = vrot.lane.b32.xlu0 %v847, 8
      %v3651 = vpop.permute.xlu0 %3650
      %3652 = vrot.lane.b32.xlu0 %v846, 8
      %v3653 = vpop.permute.xlu0 %3652
      %3654 = vrot.lane.b32.xlu0 %v845, 8
      %v3655 = vpop.permute.xlu0 %3654
      %3656 = vrot.lane.b32.xlu0 %v844, 8
      %v3657 = vpop.permute.xlu0 %3656
      %3658 = vrot.lane.b32.xlu0 %v843, 8
      %v3659 = vpop.permute.xlu0 %3658
      %3660 = vrot.lane.b32.xlu0 %v842, 8
      %v3661 = vpop.permute.xlu0 %3660
      %3662 = vrot.lane.b32.xlu0 %v905, 8
      %v3663 = vpop.permute.xlu0 %3662
      %vm3728 = vcmask 7168
      %v3729 = vsel %vm3728, %v905, %v1745
      %v3730 = vsel %vm3728, %v904, %v1747
      %v3731 = vsel %vm3728, %v903, %v1749
      %v3732 = vsel %vm3728, %v902, %v1751
      %v3733 = vsel %vm3728, %v901, %v1753
      %v3734 = vsel %vm3728, %v900, %v1755
      %v3735 = vsel %vm3728, %v899, %v1757
      %v3736 = vsel %vm3728, %v898, %v1759
      %v3737 = vsel %vm3728, %v897, %v1761
      %v3738 = vsel %vm3728, %v896, %v1763
      %v3739 = vsel %vm3728, %v895, %v1765
      %v3740 = vsel %vm3728, %v894, %v1767
      %v3741 = vsel %vm3728, %v893, %v1769
      %v3742 = vsel %vm3728, %v892, %v1771
      %v3743 = vsel %vm3728, %v891, %v1773
      %v3744 = vsel %vm3728, %v890, %v1775
      %v3745 = vsel %vm3728, %v889, %v1777
      %v3746 = vsel %vm3728, %v888, %v1779
      %v3747 = vsel %vm3728, %v887, %v1781
      %v3748 = vsel %vm3728, %v886, %v1783
      %v3749 = vsel %vm3728, %v885, %v1785
      %v3750 = vsel %vm3728, %v884, %v1787
      %v3751 = vsel %vm3728, %v883, %v1789
      %v3752 = vsel %vm3728, %v882, %v1791
      %v3753 = vsel %vm3728, %v881, %v1793
      %v3754 = vsel %vm3728, %v880, %v1795
      %v3755 = vsel %vm3728, %v879, %v1797
      %v3756 = vsel %vm3728, %v878, %v1799
      %v3757 = vsel %vm3728, %v877, %v1801
      %v3758 = vsel %vm3728, %v876, %v1803
      %v3759 = vsel %vm3728, %v875, %v1805
      %v3760 = vsel %vm3728, %v874, %v1807
      %v3761 = vsel %vm3728, %v873, %v1809
      %v3762 = vsel %vm3728, %v872, %v1811
      %v3763 = vsel %vm3728, %v871, %v1813
      %v3764 = vsel %vm3728, %v870, %v1815
      %v3765 = vsel %vm3728, %v869, %v1817
      %v3766 = vsel %vm3728, %v868, %v1819
      %v3767 = vsel %vm3728, %v867, %v1821
      %v3768 = vsel %vm3728, %v866, %v1823
      %v3769 = vsel %vm3728, %v865, %v1825
      %v3770 = vsel %vm3728, %v864, %v1827
      %v3771 = vsel %vm3728, %v863, %v1829
      %v3772 = vsel %vm3728, %v862, %v1831
      %v3773 = vsel %vm3728, %v861, %v1833
      %v3774 = vsel %vm3728, %v860, %v1835
      %v3775 = vsel %vm3728, %v859, %v1837
      %v3776 = vsel %vm3728, %v858, %v1839
      %v3777 = vsel %vm3728, %v857, %v1841
      %v3778 = vsel %vm3728, %v856, %v1843
      %v3779 = vsel %vm3728, %v855, %v1845
      %v3780 = vsel %vm3728, %v854, %v1847
      %v3781 = vsel %vm3728, %v853, %v1849
      %v3782 = vsel %vm3728, %v852, %v1851
      %v3783 = vsel %vm3728, %v851, %v1853
      %v3784 = vsel %vm3728, %v850, %v1855
      %v3785 = vsel %vm3728, %v849, %v1857
      %v3786 = vsel %vm3728, %v848, %v1859
      %v3787 = vsel %vm3728, %v847, %v1861
      %v3788 = vsel %vm3728, %v846, %v1863
      %v3789 = vsel %vm3728, %v845, %v1865
      %v3790 = vsel %vm3728, %v844, %v1867
      %v3791 = vsel %vm3728, %v843, %v1869
      %v3792 = vsel %vm3728, %v842, %v1871
      %vm3793 = vcmask 15360
      %v3794 = vsel %vm3793, %v3729, %v2001
      %v3795 = vsel %vm3793, %v3730, %v2003
      %v3796 = vsel %vm3793, %v3731, %v2005
      %v3797 = vsel %vm3793, %v3732, %v2007
      %v3798 = vsel %vm3793, %v3733, %v2009
      %v3799 = vsel %vm3793, %v3734, %v2011
      %v3800 = vsel %vm3793, %v3735, %v2013
      %v3801 = vsel %vm3793, %v3736, %v2015
      %v3802 = vsel %vm3793, %v3737, %v2017
      %v3803 = vsel %vm3793, %v3738, %v2019
      %v3804 = vsel %vm3793, %v3739, %v2021
      %v3805 = vsel %vm3793, %v3740, %v2023
      %v3806 = vsel %vm3793, %v3741, %v2025
      %v3807 = vsel %vm3793, %v3742, %v2027
      %v3808 = vsel %vm3793, %v3743, %v2029
      %v3809 = vsel %vm3793, %v3744, %v2031
      %v3810 = vsel %vm3793, %v3745, %v2033
      %v3811 = vsel %vm3793, %v3746, %v2035
      %v3812 = vsel %vm3793, %v3747, %v2037
      %v3813 = vsel %vm3793, %v3748, %v2039
      %v3814 = vsel %vm3793, %v3749, %v2041
      %v3815 = vsel %vm3793, %v3750, %v2043
      %v3816 = vsel %vm3793, %v3751, %v2045
      %v3817 = vsel %vm3793, %v3752, %v2047
      %v3818 = vsel %vm3793, %v3753, %v2049
      %v3819 = vsel %vm3793, %v3754, %v2051
      %v3820 = vsel %vm3793, %v3755, %v2053
      %v3821 = vsel %vm3793, %v3756, %v2055
      %v3822 = vsel %vm3793, %v3757, %v2057
      %v3823 = vsel %vm3793, %v3758, %v2059
      %v3824 = vsel %vm3793, %v3759, %v2061
      %v3825 = vsel %vm3793, %v3760, %v2063
      %v3826 = vsel %vm3793, %v3761, %v2065
      %v3827 = vsel %vm3793, %v3762, %v2067
      %v3828 = vsel %vm3793, %v3763, %v2069
      %v3829 = vsel %vm3793, %v3764, %v2071
      %v3830 = vsel %vm3793, %v3765, %v2073
      %v3831 = vsel %vm3793, %v3766, %v2075
      %v3832 = vsel %vm3793, %v3767, %v2077
      %v3833 = vsel %vm3793, %v3768, %v2079
      %v3834 = vsel %vm3793, %v3769, %v2081
      %v3835 = vsel %vm3793, %v3770, %v2083
      %v3836 = vsel %vm3793, %v3771, %v2085
      %v3837 = vsel %vm3793, %v3772, %v2087
      %v3838 = vsel %vm3793, %v3773, %v2089
      %v3839 = vsel %vm3793, %v3774, %v2091
      %v3840 = vsel %vm3793, %v3775, %v2093
      %v3841 = vsel %vm3793, %v3776, %v2095
      %v3842 = vsel %vm3793, %v3777, %v2097
      %v3843 = vsel %vm3793, %v3778, %v2099
      %v3844 = vsel %vm3793, %v3779, %v2101
      %v3845 = vsel %vm3793, %v3780, %v2103
      %v3846 = vsel %vm3793, %v3781, %v2105
      %v3847 = vsel %vm3793, %v3782, %v2107
      %v3848 = vsel %vm3793, %v3783, %v2109
      %v3849 = vsel %vm3793, %v3784, %v2111
      %v3850 = vsel %vm3793, %v3785, %v2113
      %v3851 = vsel %vm3793, %v3786, %v2115
      %v3852 = vsel %vm3793, %v3787, %v2117
      %v3853 = vsel %vm3793, %v3788, %v2119
      %v3854 = vsel %vm3793, %v3789, %v2121
      %v3855 = vsel %vm3793, %v3790, %v2123
      %v3856 = vsel %vm3793, %v3791, %v2125
      %v3857 = vsel %vm3793, %v3792, %v2127
      %vm3858 = vcmask 23552
      %v3859 = vsel %vm3858, %v3794, %v2257
      %v3860 = vsel %vm3858, %v3795, %v2259
      %v3861 = vsel %vm3858, %v3796, %v2261
      %v3862 = vsel %vm3858, %v3797, %v2263
      %v3863 = vsel %vm3858, %v3798, %v2265
      %v3864 = vsel %vm3858, %v3799, %v2267
      %v3865 = vsel %vm3858, %v3800, %v2269
      %v3866 = vsel %vm3858, %v3801, %v2271
      %v3867 = vsel %vm3858, %v3802, %v2273
      %v3868 = vsel %vm3858, %v3803, %v2275
      %v3869 = vsel %vm3858, %v3804, %v2277
      %v3870 = vsel %vm3858, %v3805, %v2279
      %v3871 = vsel %vm3858, %v3806, %v2281
      %v3872 = vsel %vm3858, %v3807, %v2283
      %v3873 = vsel %vm3858, %v3808, %v2285
      %v3874 = vsel %vm3858, %v3809, %v2287
      %v3875 = vsel %vm3858, %v3810, %v2289
      %v3876 = vsel %vm3858, %v3811, %v2291
      %v3877 = vsel %vm3858, %v3812, %v2293
      %v3878 = vsel %vm3858, %v3813, %v2295
      %v3879 = vsel %vm3858, %v3814, %v2297
      %v3880 = vsel %vm3858, %v3815, %v2299
      %v3881 = vsel %vm3858, %v3816, %v2301
      %v3882 = vsel %vm3858, %v3817, %v2303
      %v3883 = vsel %vm3858, %v3818, %v2305
      %v3884 = vsel %vm3858, %v3819, %v2307
      %v3885 = vsel %vm3858, %v3820, %v2309
      %v3886 = vsel %vm3858, %v3821, %v2311
      %v3887 = vsel %vm3858, %v3822, %v2313
      %v3888 = vsel %vm3858, %v3823, %v2315
      %v3889 = vsel %vm3858, %v3824, %v2317
      %v3890 = vsel %vm3858, %v3825, %v2319
      %v3891 = vsel %vm3858, %v3826, %v2321
      %v3892 = vsel %vm3858, %v3827, %v2323
      %v3893 = vsel %vm3858, %v3828, %v2325
      %v3894 = vsel %vm3858, %v3829, %v2327
      %v3895 = vsel %vm3858, %v3830, %v2329
      %v3896 = vsel %vm3858, %v3831, %v2331
      %v3897 = vsel %vm3858, %v3832, %v2333
      %v3898 = vsel %vm3858, %v3833, %v2335
      %v3899 = vsel %vm3858, %v3834, %v2337
      %v3900 = vsel %vm3858, %v3835, %v2339
      %v3901 = vsel %vm3858, %v3836, %v2341
      %v3902 = vsel %vm3858, %v3837, %v2343
      %v3903 = vsel %vm3858, %v3838, %v2345
      %v3904 = vsel %vm3858, %v3839, %v2347
      %v3905 = vsel %vm3858, %v3840, %v2349
      %v3906 = vsel %vm3858, %v3841, %v2351
      %v3907 = vsel %vm3858, %v3842, %v2353
      %v3908 = vsel %vm3858, %v3843, %v2355
      %v3909 = vsel %vm3858, %v3844, %v2357
      %v3910 = vsel %vm3858, %v3845, %v2359
      %v3911 = vsel %vm3858, %v3846, %v2361
      %v3912 = vsel %vm3858, %v3847, %v2363
      %v3913 = vsel %vm3858, %v3848, %v2365
      %v3914 = vsel %vm3858, %v3849, %v2367
      %v3915 = vsel %vm3858, %v3850, %v2369
      %v3916 = vsel %vm3858, %v3851, %v2371
      %v3917 = vsel %vm3858, %v3852, %v2373
      %v3918 = vsel %vm3858, %v3853, %v2375
      %v3919 = vsel %vm3858, %v3854, %v2377
      %v3920 = vsel %vm3858, %v3855, %v2379
      %v3921 = vsel %vm3858, %v3856, %v2381
      %v3922 = vsel %vm3858, %v3857, %v2383
      %vm3923 = vcmask 31744
      %v3924 = vsel %vm3923, %v3859, %v2513
      %v3925 = vsel %vm3923, %v3860, %v2515
      %v3926 = vsel %vm3923, %v3861, %v2517
      %v3927 = vsel %vm3923, %v3862, %v2519
      %v3928 = vsel %vm3923, %v3863, %v2521
      %v3929 = vsel %vm3923, %v3864, %v2523
      %v3930 = vsel %vm3923, %v3865, %v2525
      %v3931 = vsel %vm3923, %v3866, %v2527
      %v3932 = vsel %vm3923, %v3867, %v2529
      %v3933 = vsel %vm3923, %v3868, %v2531
      %v3934 = vsel %vm3923, %v3869, %v2533
      %v3935 = vsel %vm3923, %v3870, %v2535
      %v3936 = vsel %vm3923, %v3871, %v2537
      %v3937 = vsel %vm3923, %v3872, %v2539
      %v3938 = vsel %vm3923, %v3873, %v2541
      %v3939 = vsel %vm3923, %v3874, %v2543
      %v3940 = vsel %vm3923, %v3875, %v2545
      %v3941 = vsel %vm3923, %v3876, %v2547
      %v3942 = vsel %vm3923, %v3877, %v2549
      %v3943 = vsel %vm3923, %v3878, %v2551
      %v3944 = vsel %vm3923, %v3879, %v2553
      %v3945 = vsel %vm3923, %v3880, %v2555
      %v3946 = vsel %vm3923, %v3881, %v2557
      %v3947 = vsel %vm3923, %v3882, %v2559
      %v3948 = vsel %vm3923, %v3883, %v2561
      %v3949 = vsel %vm3923, %v3884, %v2563
      %v3950 = vsel %vm3923, %v3885, %v2565
      %v3951 = vsel %vm3923, %v3886, %v2567
      %v3952 = vsel %vm3923, %v3887, %v2569
      %v3953 = vsel %vm3923, %v3888, %v2571
      %v3954 = vsel %vm3923, %v3889, %v2573
      %v3955 = vsel %vm3923, %v3890, %v2575
      %v3956 = vsel %vm3923, %v3891, %v2577
      %v3957 = vsel %vm3923, %v3892, %v2579
      %v3958 = vsel %vm3923, %v3893, %v2581
      %v3959 = vsel %vm3923, %v3894, %v2583
      %v3960 = vsel %vm3923, %v3895, %v2585
      %v3961 = vsel %vm3923, %v3896, %v2587
      %v3962 = vsel %vm3923, %v3897, %v2589
      %v3963 = vsel %vm3923, %v3898, %v2591
      %v3964 = vsel %vm3923, %v3899, %v2593
      %v3965 = vsel %vm3923, %v3900, %v2595
      %v3966 = vsel %vm3923, %v3901, %v2597
      %v3967 = vsel %vm3923, %v3902, %v2599
      %v3968 = vsel %vm3923, %v3903, %v2601
      %v3969 = vsel %vm3923, %v3904, %v2603
      %v3970 = vsel %vm3923, %v3905, %v2605
      %v3971 = vsel %vm3923, %v3906, %v2607
      %v3972 = vsel %vm3923, %v3907, %v2609
      %v3973 = vsel %vm3923, %v3908, %v2611
      %v3974 = vsel %vm3923, %v3909, %v2613
      %v3975 = vsel %vm3923, %v3910, %v2615
      %v3976 = vsel %vm3923, %v3911, %v2617
      %v3977 = vsel %vm3923, %v3912, %v2619
      %v3978 = vsel %vm3923, %v3913, %v2621
      %v3979 = vsel %vm3923, %v3914, %v2623
      %v3980 = vsel %vm3923, %v3915, %v2625
      %v3981 = vsel %vm3923, %v3916, %v2627
      %v3982 = vsel %vm3923, %v3917, %v2629
      %v3983 = vsel %vm3923, %v3918, %v2631
      %v3984 = vsel %vm3923, %v3919, %v2633
      %v3985 = vsel %vm3923, %v3920, %v2635
      %v3986 = vsel %vm3923, %v3921, %v2637
      %v3987 = vsel %vm3923, %v3922, %v2639
      %vm3988 = vcmask 39936
      %v3989 = vsel %vm3988, %v3924, %v2769
      %v3990 = vsel %vm3988, %v3925, %v2771
      %v3991 = vsel %vm3988, %v3926, %v2773
      %v3992 = vsel %vm3988, %v3927, %v2775
      %v3993 = vsel %vm3988, %v3928, %v2777
      %v3994 = vsel %vm3988, %v3929, %v2779
      %v3995 = vsel %vm3988, %v3930, %v2781
      %v3996 = vsel %vm3988, %v3931, %v2783
      %v3997 = vsel %vm3988, %v3932, %v2785
      %v3998 = vsel %vm3988, %v3933, %v2787
      %v3999 = vsel %vm3988, %v3934, %v2789
      %v4000 = vsel %vm3988, %v3935, %v2791
      %v4001 = vsel %vm3988, %v3936, %v2793
      %v4002 = vsel %vm3988, %v3937, %v2795
      %v4003 = vsel %vm3988, %v3938, %v2797
      %v4004 = vsel %vm3988, %v3939, %v2799
      %v4005 = vsel %vm3988, %v3940, %v2801
      %v4006 = vsel %vm3988, %v3941, %v2803
      %v4007 = vsel %vm3988, %v3942, %v2805
      %v4008 = vsel %vm3988, %v3943, %v2807
      %v4009 = vsel %vm3988, %v3944, %v2809
      %v4010 = vsel %vm3988, %v3945, %v2811
      %v4011 = vsel %vm3988, %v3946, %v2813
      %v4012 = vsel %vm3988, %v3947, %v2815
      %v4013 = vsel %vm3988, %v3948, %v2817
      %v4014 = vsel %vm3988, %v3949, %v2819
      %v4015 = vsel %vm3988, %v3950, %v2821
      %v4016 = vsel %vm3988, %v3951, %v2823
      %v4017 = vsel %vm3988, %v3952, %v2825
      %v4018 = vsel %vm3988, %v3953, %v2827
      %v4019 = vsel %vm3988, %v3954, %v2829
      %v4020 = vsel %vm3988, %v3955, %v2831
      %v4021 = vsel %vm3988, %v3956, %v2833
      %v4022 = vsel %vm3988, %v3957, %v2835
      %v4023 = vsel %vm3988, %v3958, %v2837
      %v4024 = vsel %vm3988, %v3959, %v2839
      %v4025 = vsel %vm3988, %v3960, %v2841
      %v4026 = vsel %vm3988, %v3961, %v2843
      %v4027 = vsel %vm3988, %v3962, %v2845
      %v4028 = vsel %vm3988, %v3963, %v2847
      %v4029 = vsel %vm3988, %v3964, %v2849
      %v4030 = vsel %vm3988, %v3965, %v2851
      %v4031 = vsel %vm3988, %v3966, %v2853
      %v4032 = vsel %vm3988, %v3967, %v2855
      %v4033 = vsel %vm3988, %v3968, %v2857
      %v4034 = vsel %vm3988, %v3969, %v2859
      %v4035 = vsel %vm3988, %v3970, %v2861
      %v4036 = vsel %vm3988, %v3971, %v2863
      %v4037 = vsel %vm3988, %v3972, %v2865
      %v4038 = vsel %vm3988, %v3973, %v2867
      %v4039 = vsel %vm3988, %v3974, %v2869
      %v4040 = vsel %vm3988, %v3975, %v2871
      %v4041 = vsel %vm3988, %v3976, %v2873
      %v4042 = vsel %vm3988, %v3977, %v2875
      %v4043 = vsel %vm3988, %v3978, %v2877
      %v4044 = vsel %vm3988, %v3979, %v2879
      %v4045 = vsel %vm3988, %v3980, %v2881
      %v4046 = vsel %vm3988, %v3981, %v2883
      %v4047 = vsel %vm3988, %v3982, %v2885
      %v4048 = vsel %vm3988, %v3983, %v2887
      %v4049 = vsel %vm3988, %v3984, %v2889
      %v4050 = vsel %vm3988, %v3985, %v2891
      %v4051 = vsel %vm3988, %v3986, %v2893
      %v4052 = vsel %vm3988, %v3987, %v2895
      %vm4053 = vcmask 48128
      %v4054 = vsel %vm4053, %v3989, %v3025
      %v4055 = vsel %vm4053, %v3990, %v3027
      %v4056 = vsel %vm4053, %v3991, %v3029
      %v4057 = vsel %vm4053, %v3992, %v3031
      %v4058 = vsel %vm4053, %v3993, %v3033
      %v4059 = vsel %vm4053, %v3994, %v3035
      %v4060 = vsel %vm4053, %v3995, %v3037
      %v4061 = vsel %vm4053, %v3996, %v3039
      %v4062 = vsel %vm4053, %v3997, %v3041
      %v4063 = vsel %vm4053, %v3998, %v3043
      %v4064 = vsel %vm4053, %v3999, %v3045
      %v4065 = vsel %vm4053, %v4000, %v3047
      %v4066 = vsel %vm4053, %v4001, %v3049
      %v4067 = vsel %vm4053, %v4002, %v3051
      %v4068 = vsel %vm4053, %v4003, %v3053
      %v4069 = vsel %vm4053, %v4004, %v3055
      %v4070 = vsel %vm4053, %v4005, %v3057
      %v4071 = vsel %vm4053, %v4006, %v3059
      %v4072 = vsel %vm4053, %v4007, %v3061
      %v4073 = vsel %vm4053, %v4008, %v3063
      %v4074 = vsel %vm4053, %v4009, %v3065
      %v4075 = vsel %vm4053, %v4010, %v3067
      %v4076 = vsel %vm4053, %v4011, %v3069
      %v4077 = vsel %vm4053, %v4012, %v3071
      %v4078 = vsel %vm4053, %v4013, %v3073
      %v4079 = vsel %vm4053, %v4014, %v3075
      %v4080 = vsel %vm4053, %v4015, %v3077
      %v4081 = vsel %vm4053, %v4016, %v3079
      %v4082 = vsel %vm4053, %v4017, %v3081
      %v4083 = vsel %vm4053, %v4018, %v3083
      %v4084 = vsel %vm4053, %v4019, %v3085
      %v4085 = vsel %vm4053, %v4020, %v3087
      %v4086 = vsel %vm4053, %v4021, %v3089
      %v4087 = vsel %vm4053, %v4022, %v3091
      %v4088 = vsel %vm4053, %v4023, %v3093
      %v4089 = vsel %vm4053, %v4024, %v3095
      %v4090 = vsel %vm4053, %v4025, %v3097
      %v4091 = vsel %vm4053, %v4026, %v3099
      %v4092 = vsel %vm4053, %v4027, %v3101
      %v4093 = vsel %vm4053, %v4028, %v3103
      %v4094 = vsel %vm4053, %v4029, %v3105
      %v4095 = vsel %vm4053, %v4030, %v3107
      %v4096 = vsel %vm4053, %v4031, %v3109
      %v4097 = vsel %vm4053, %v4032, %v3111
      %v4098 = vsel %vm4053, %v4033, %v3113
      %v4099 = vsel %vm4053, %v4034, %v3115
      %v4100 = vsel %vm4053, %v4035, %v3117
      %v4101 = vsel %vm4053, %v4036, %v3119
      %v4102 = vsel %vm4053, %v4037, %v3121
      %v4103 = vsel %vm4053, %v4038, %v3123
      %v4104 = vsel %vm4053, %v4039, %v3125
      %v4105 = vsel %vm4053, %v4040, %v3127
      %v4106 = vsel %vm4053, %v4041, %v3129
      %v4107 = vsel %vm4053, %v4042, %v3131
      %v4108 = vsel %vm4053, %v4043, %v3133
      %v4109 = vsel %vm4053, %v4044, %v3135
      %v4110 = vsel %vm4053, %v4045, %v3137
      %v4111 = vsel %vm4053, %v4046, %v3139
      %v4112 = vsel %vm4053, %v4047, %v3141
      %v4113 = vsel %vm4053, %v4048, %v3143
      %v4114 = vsel %vm4053, %v4049, %v3145
      %v4115 = vsel %vm4053, %v4050, %v3147
      %v4116 = vsel %vm4053, %v4051, %v3149
      %v4117 = vsel %vm4053, %v4052, %v3151
      %vm4118 = vcmask 56320
      %v4119 = vsel %vm4118, %v4054, %v3281
      %v4120 = vsel %vm4118, %v4055, %v3283
      %v4121 = vsel %vm4118, %v4056, %v3285
      %v4122 = vsel %vm4118, %v4057, %v3287
      %v4123 = vsel %vm4118, %v4058, %v3289
      %v4124 = vsel %vm4118, %v4059, %v3291
      %v4125 = vsel %vm4118, %v4060, %v3293
      %v4126 = vsel %vm4118, %v4061, %v3295
      %v4127 = vsel %vm4118, %v4062, %v3297
      %v4128 = vsel %vm4118, %v4063, %v3299
      %v4129 = vsel %vm4118, %v4064, %v3301
      %v4130 = vsel %vm4118, %v4065, %v3303
      %v4131 = vsel %vm4118, %v4066, %v3305
      %v4132 = vsel %vm4118, %v4067, %v3307
      %v4133 = vsel %vm4118, %v4068, %v3309
      %v4134 = vsel %vm4118, %v4069, %v3311
      %v4135 = vsel %vm4118, %v4070, %v3313
      %v4136 = vsel %vm4118, %v4071, %v3315
      %v4137 = vsel %vm4118, %v4072, %v3317
      %v4138 = vsel %vm4118, %v4073, %v3319
      %v4139 = vsel %vm4118, %v4074, %v3321
      %v4140 = vsel %vm4118, %v4075, %v3323
      %v4141 = vsel %vm4118, %v4076, %v3325
      %v4142 = vsel %vm4118, %v4077, %v3327
      %v4143 = vsel %vm4118, %v4078, %v3329
      %v4144 = vsel %vm4118, %v4079, %v3331
      %v4145 = vsel %vm4118, %v4080, %v3333
      %v4146 = vsel %vm4118, %v4081, %v3335
      %v4147 = vsel %vm4118, %v4082, %v3337
      %v4148 = vsel %vm4118, %v4083, %v3339
      %v4149 = vsel %vm4118, %v4084, %v3341
      %v4150 = vsel %vm4118, %v4085, %v3343
      %v4151 = vsel %vm4118, %v4086, %v3345
      %v4152 = vsel %vm4118, %v4087, %v3347
      %v4153 = vsel %vm4118, %v4088, %v3349
      %v4154 = vsel %vm4118, %v4089, %v3351
      %v4155 = vsel %vm4118, %v4090, %v3353
      %v4156 = vsel %vm4118, %v4091, %v3355
      %v4157 = vsel %vm4118, %v4092, %v3357
      %v4158 = vsel %vm4118, %v4093, %v3359
      %v4159 = vsel %vm4118, %v4094, %v3361
      %v4160 = vsel %vm4118, %v4095, %v3363
      %v4161 = vsel %vm4118, %v4096, %v3365
      %v4162 = vsel %vm4118, %v4097, %v3367
      %v4163 = vsel %vm4118, %v4098, %v3369
      %v4164 = vsel %vm4118, %v4099, %v3371
      %v4165 = vsel %vm4118, %v4100, %v3373
      %v4166 = vsel %vm4118, %v4101, %v3375
      %v4167 = vsel %vm4118, %v4102, %v3377
      %v4168 = vsel %vm4118, %v4103, %v3379
      %v4169 = vsel %vm4118, %v4104, %v3381
      %v4170 = vsel %vm4118, %v4105, %v3383
      %v4171 = vsel %vm4118, %v4106, %v3385
      %v4172 = vsel %vm4118, %v4107, %v3387
      %v4173 = vsel %vm4118, %v4108, %v3389
      %v4174 = vsel %vm4118, %v4109, %v3391
      %v4175 = vsel %vm4118, %v4110, %v3393
      %v4176 = vsel %vm4118, %v4111, %v3395
      %v4177 = vsel %vm4118, %v4112, %v3397
      %v4178 = vsel %vm4118, %v4113, %v3399
      %v4179 = vsel %vm4118, %v4114, %v3401
      %v4180 = vsel %vm4118, %v4115, %v3403
      %v4181 = vsel %vm4118, %v4116, %v3405
      %v4182 = vsel %vm4118, %v4117, %v3407
      %vm4183 = vcmask 64512
      %v4184 = vsel %vm4183, %v4119, %v3537
      %v4185 = vsel %vm4183, %v4120, %v3539
      %v4186 = vsel %vm4183, %v4121, %v3541
      %v4187 = vsel %vm4183, %v4122, %v3543
      %v4188 = vsel %vm4183, %v4123, %v3545
      %v4189 = vsel %vm4183, %v4124, %v3547
      %v4190 = vsel %vm4183, %v4125, %v3549
      %v4191 = vsel %vm4183, %v4126, %v3551
      %v4192 = vsel %vm4183, %v4127, %v3553
      %v4193 = vsel %vm4183, %v4128, %v3555
      %v4194 = vsel %vm4183, %v4129, %v3557
      %v4195 = vsel %vm4183, %v4130, %v3559
      %v4196 = vsel %vm4183, %v4131, %v3561
      %v4197 = vsel %vm4183, %v4132, %v3563
      %v4198 = vsel %vm4183, %v4133, %v3565
      %v4199 = vsel %vm4183, %v4134, %v3567
      %v4200 = vsel %vm4183, %v4135, %v3569
      %v4201 = vsel %vm4183, %v4136, %v3571
      %v4202 = vsel %vm4183, %v4137, %v3573
      %v4203 = vsel %vm4183, %v4138, %v3575
      %v4204 = vsel %vm4183, %v4139, %v3577
      %v4205 = vsel %vm4183, %v4140, %v3579
      %v4206 = vsel %vm4183, %v4141, %v3581
      %v4207 = vsel %vm4183, %v4142, %v3583
      %v4208 = vsel %vm4183, %v4143, %v3585
      %v4209 = vsel %vm4183, %v4144, %v3587
      %v4210 = vsel %vm4183, %v4145, %v3589
      %v4211 = vsel %vm4183, %v4146, %v3591
      %v4212 = vsel %vm4183, %v4147, %v3593
      %v4213 = vsel %vm4183, %v4148, %v3595
      %v4214 = vsel %vm4183, %v4149, %v3597
      %v4215 = vsel %vm4183, %v4150, %v3599
      %v4216 = vsel %vm4183, %v4151, %v3601
      %v4217 = vsel %vm4183, %v4152, %v3603
      %v4218 = vsel %vm4183, %v4153, %v3605
      %v4219 = vsel %vm4183, %v4154, %v3607
      %v4220 = vsel %vm4183, %v4155, %v3609
      %v4221 = vsel %vm4183, %v4156, %v3611
      %v4222 = vsel %vm4183, %v4157, %v3613
      %v4223 = vsel %vm4183, %v4158, %v3615
      %v4224 = vsel %vm4183, %v4159, %v3617
      %v4225 = vsel %vm4183, %v4160, %v3619
      %v4226 = vsel %vm4183, %v4161, %v3621
      %v4227 = vsel %vm4183, %v4162, %v3623
      %v4228 = vsel %vm4183, %v4163, %v3625
      %v4229 = vsel %vm4183, %v4164, %v3627
      %v4230 = vsel %vm4183, %v4165, %v3629
      %v4231 = vsel %vm4183, %v4166, %v3631
      %v4232 = vsel %vm4183, %v4167, %v3633
      %v4233 = vsel %vm4183, %v4168, %v3635
      %v4234 = vsel %vm4183, %v4169, %v3637
      %v4235 = vsel %vm4183, %v4170, %v3639
      %v4236 = vsel %vm4183, %v4171, %v3641
      %v4237 = vsel %vm4183, %v4172, %v3643
      %v4238 = vsel %vm4183, %v4173, %v3645
      %v4239 = vsel %vm4183, %v4174, %v3647
      %v4240 = vsel %vm4183, %v4175, %v3649
      %v4241 = vsel %vm4183, %v4176, %v3651
      %v4242 = vsel %vm4183, %v4177, %v3653
      %v4243 = vsel %vm4183, %v4178, %v3655
      %v4244 = vsel %vm4183, %v4179, %v3657
      %v4245 = vsel %vm4183, %v4180, %v3659
      %v4246 = vsel %vm4183, %v4181, %v3661
      %v4247 = vsel %vm4183, %v4182, %v3663
      %v4248 = vlaneseq
      %v4249 = vand.u32 %v4248, 127
      %v4250 = vsub.s32 %v4249, 4
      %v4251 = vadd.s32 %v360, %v4250
      %v4252 = vadd.s32 %v361, %v4250
      %v4253 = vadd.s32 %v362, %v4250
      %v4254 = vadd.s32 %v363, %v4250
      %v4255 = vadd.s32 %v364, %v4250
      %v4256 = vadd.s32 %v365, %v4250
      %v4257 = vadd.s32 %v366, %v4250
      %v4258 = vadd.s32 %v367, %v4250
      %vm4259 = vcmp.ge.s32.totalorder %v4251, 0
      %vm4260 = vcmp.ge.s32.totalorder %v4252, 0
      %vm4261 = vcmp.ge.s32.totalorder %v4253, 0
      %vm4262 = vcmp.ge.s32.totalorder %v4254, 0
      %vm4263 = vcmp.ge.s32.totalorder %v4255, 0
      %vm4264 = vcmp.ge.s32.totalorder %v4256, 0
      %vm4265 = vcmp.ge.s32.totalorder %v4257, 0
      %vm4266 = vcmp.ge.s32.totalorder %v4258, 0
      %vm4267 = vcmp.lt.s32.totalorder %v4251, 64
      %vm4268 = vcmp.lt.s32.totalorder %v4252, 64
      %vm4269 = vcmp.lt.s32.totalorder %v4253, 64
      %vm4270 = vcmp.lt.s32.totalorder %v4254, 64
      %vm4271 = vcmp.lt.s32.totalorder %v4255, 64
      %vm4272 = vcmp.lt.s32.totalorder %v4256, 64
      %vm4273 = vcmp.lt.s32.totalorder %v4257, 64
      %vm4274 = vcmp.lt.s32.totalorder %v4258, 64
      %vm4275 = vmand %vm4259, %vm4267
      %vm4276 = vmand %vm4260, %vm4268
      %vm4277 = vmand %vm4261, %vm4269
      %vm4278 = vmand %vm4262, %vm4270
      %vm4279 = vmand %vm4263, %vm4271
      %vm4280 = vmand %vm4264, %vm4272
      %vm4281 = vmand %vm4265, %vm4273
      %vm4282 = vmand %vm4266, %vm4274
      %v4283 = vsel %vm4275, %v4184, 0.0
      %v4284 = vsel %vm4276, %v4185, 0.0
      %v4285 = vsel %vm4277, %v4186, 0.0
      %v4286 = vsel %vm4278, %v4187, 0.0
      %v4287 = vsel %vm4279, %v4188, 0.0
      %v4288 = vsel %vm4280, %v4189, 0.0
      %v4289 = vsel %vm4281, %v4190, 0.0
      %v4290 = vsel %vm4282, %v4191, 0.0
      %v4291 = vsel %vm4275, %v4192, 0.0
      %v4292 = vsel %vm4276, %v4193, 0.0
      %v4293 = vsel %vm4277, %v4194, 0.0
      %v4294 = vsel %vm4278, %v4195, 0.0
      %v4295 = vsel %vm4279, %v4196, 0.0
      %v4296 = vsel %vm4280, %v4197, 0.0
      %v4297 = vsel %vm4281, %v4198, 0.0
      %v4298 = vsel %vm4282, %v4199, 0.0
      %v4299 = vsel %vm4275, %v4200, 0.0
      %v4300 = vsel %vm4276, %v4201, 0.0
      %v4301 = vsel %vm4277, %v4202, 0.0
      %v4302 = vsel %vm4278, %v4203, 0.0
      %v4303 = vsel %vm4279, %v4204, 0.0
      %v4304 = vsel %vm4280, %v4205, 0.0
      %v4305 = vsel %vm4281, %v4206, 0.0
      %v4306 = vsel %vm4282, %v4207, 0.0
      %v4307 = vsel %vm4275, %v4208, 0.0
      %v4308 = vsel %vm4276, %v4209, 0.0
      %v4309 = vsel %vm4277, %v4210, 0.0
      %v4310 = vsel %vm4278, %v4211, 0.0
      %v4311 = vsel %vm4279, %v4212, 0.0
      %v4312 = vsel %vm4280, %v4213, 0.0
      %v4313 = vsel %vm4281, %v4214, 0.0
      %v4314 = vsel %vm4282, %v4215, 0.0
      %v4315 = vsel %vm4275, %v4216, 0.0
      %v4316 = vsel %vm4276, %v4217, 0.0
      %v4317 = vsel %vm4277, %v4218, 0.0
      %v4318 = vsel %vm4278, %v4219, 0.0
      %v4319 = vsel %vm4279, %v4220, 0.0
      %v4320 = vsel %vm4280, %v4221, 0.0
      %v4321 = vsel %vm4281, %v4222, 0.0
      %v4322 = vsel %vm4282, %v4223, 0.0
      %v4323 = vsel %vm4275, %v4224, 0.0
      %v4324 = vsel %vm4276, %v4225, 0.0
      %v4325 = vsel %vm4277, %v4226, 0.0
      %v4326 = vsel %vm4278, %v4227, 0.0
      %v4327 = vsel %vm4279, %v4228, 0.0
      %v4328 = vsel %vm4280, %v4229, 0.0
      %v4329 = vsel %vm4281, %v4230, 0.0
      %v4330 = vsel %vm4282, %v4231, 0.0
      %v4331 = vsel %vm4275, %v4232, 0.0
      %v4332 = vsel %vm4276, %v4233, 0.0
      %v4333 = vsel %vm4277, %v4234, 0.0
      %v4334 = vsel %vm4278, %v4235, 0.0
      %v4335 = vsel %vm4279, %v4236, 0.0
      %v4336 = vsel %vm4280, %v4237, 0.0
      %v4337 = vsel %vm4281, %v4238, 0.0
      %v4338 = vsel %vm4282, %v4239, 0.0
      %v4339 = vsel %vm4275, %v4240, 0.0
      %v4340 = vsel %vm4276, %v4241, 0.0
      %v4341 = vsel %vm4277, %v4242, 0.0
      %v4342 = vsel %vm4278, %v4243, 0.0
      %v4343 = vsel %vm4279, %v4244, 0.0
      %v4344 = vsel %vm4280, %v4245, 0.0
      %v4345 = vsel %vm4281, %v4246, 0.0
      %v4346 = vsel %vm4282, %v4247, 0.0
      %v4347 = vpack.c.bf16 %v4284, %v4283
      %v4348 = vpack.c.bf16 %v4286, %v4285
      %v4349 = vpack.c.bf16 %v4288, %v4287
      %v4350 = vpack.c.bf16 %v4290, %v4289
      %v4351 = vpack.c.bf16 %v4292, %v4291
      %v4352 = vpack.c.bf16 %v4294, %v4293
      %v4353 = vpack.c.bf16 %v4296, %v4295
      %v4354 = vpack.c.bf16 %v4298, %v4297
      %v4355 = vpack.c.bf16 %v4300, %v4299
      %v4356 = vpack.c.bf16 %v4302, %v4301
      %v4357 = vpack.c.bf16 %v4304, %v4303
      %v4358 = vpack.c.bf16 %v4306, %v4305
      %v4359 = vpack.c.bf16 %v4308, %v4307
      %v4360 = vpack.c.bf16 %v4310, %v4309
      %v4361 = vpack.c.bf16 %v4312, %v4311
      %v4362 = vpack.c.bf16 %v4314, %v4313
      %v4363 = vpack.c.bf16 %v4316, %v4315
      %v4364 = vpack.c.bf16 %v4318, %v4317
      %v4365 = vpack.c.bf16 %v4320, %v4319
      %v4366 = vpack.c.bf16 %v4322, %v4321
      %v4367 = vpack.c.bf16 %v4324, %v4323
      %v4368 = vpack.c.bf16 %v4326, %v4325
      %v4369 = vpack.c.bf16 %v4328, %v4327
      %v4370 = vpack.c.bf16 %v4330, %v4329
      %v4371 = vpack.c.bf16 %v4332, %v4331
      %v4372 = vpack.c.bf16 %v4334, %v4333
      %v4373 = vpack.c.bf16 %v4336, %v4335
      %v4374 = vpack.c.bf16 %v4338, %v4337
      %v4375 = vpack.c.bf16 %v4340, %v4339
      %v4376 = vpack.c.bf16 %v4342, %v4341
      %v4377 = vpack.c.bf16 %v4344, %v4343
      %v4378 = vpack.c.bf16 %v4346, %v4345
      %v4379 = vunpack.c.l.bf16 %v261
      %v4380 = vunpack.c.l.bf16 %v262
      %v4381 = vunpack.c.l.bf16 %v263
      %v4382 = vunpack.c.l.bf16 %v264
      %v4383 = vunpack.c.l.bf16 %v265
      %v4384 = vunpack.c.l.bf16 %v266
      %v4385 = vunpack.c.l.bf16 %v267
      %v4386 = vunpack.c.l.bf16 %v268
      %v4387 = vunpack.c.l.bf16 %v269
      %v4388 = vunpack.c.l.bf16 %v270
      %v4389 = vunpack.c.l.bf16 %v271
      %v4390 = vunpack.c.l.bf16 %v272
      %v4391 = vunpack.c.l.bf16 %v273
      %v4392 = vunpack.c.l.bf16 %v274
      %v4393 = vunpack.c.l.bf16 %v275
      %v4394 = vunpack.c.l.bf16 %v276
      %v4395 = vunpack.c.l.bf16 %v277
      %v4396 = vunpack.c.l.bf16 %v278
      %v4397 = vunpack.c.l.bf16 %v279
      %v4398 = vunpack.c.l.bf16 %v280
      %v4399 = vunpack.c.l.bf16 %v281
      %v4400 = vunpack.c.l.bf16 %v282
      %v4401 = vunpack.c.l.bf16 %v283
      %v4402 = vunpack.c.l.bf16 %v284
      %v4403 = vunpack.c.l.bf16 %v285
      %v4404 = vunpack.c.l.bf16 %v286
      %v4405 = vunpack.c.l.bf16 %v287
      %v4406 = vunpack.c.l.bf16 %v288
      %v4407 = vunpack.c.l.bf16 %v289
      %v4408 = vunpack.c.l.bf16 %v290
      %v4409 = vunpack.c.l.bf16 %v291
      %v4410 = vunpack.c.l.bf16 %v292
      %v4411 = vunpack.c.l.bf16 %v293
      %v4412 = vunpack.c.l.bf16 %v294
      %v4413 = vunpack.c.l.bf16 %v295
      %v4414 = vunpack.c.l.bf16 %v296
      %v4415 = vunpack.c.l.bf16 %v297
      %v4416 = vunpack.c.l.bf16 %v298
      %v4417 = vunpack.c.l.bf16 %v299
      %v4418 = vunpack.c.l.bf16 %v300
      %v4419 = vunpack.c.l.bf16 %v301
      %v4420 = vunpack.c.l.bf16 %v302
      %v4421 = vunpack.c.l.bf16 %v303
      %v4422 = vunpack.c.l.bf16 %v304
      %v4423 = vunpack.c.l.bf16 %v305
      %v4424 = vunpack.c.l.bf16 %v306
      %v4425 = vunpack.c.l.bf16 %v307
      %v4426 = vunpack.c.l.bf16 %v308
      %v4427 = vunpack.c.l.bf16 %v309
      %v4428 = vunpack.c.l.bf16 %v310
      %v4429 = vunpack.c.l.bf16 %v311
      %v4430 = vunpack.c.l.bf16 %v312
      %v4431 = vunpack.c.l.bf16 %v313
      %v4432 = vunpack.c.l.bf16 %v314
      %v4433 = vunpack.c.l.bf16 %v315
      %v4434 = vunpack.c.l.bf16 %v316
      %v4435 = vunpack.c.l.bf16 %v317
      %v4436 = vunpack.c.l.bf16 %v318
      %v4437 = vunpack.c.l.bf16 %v319
      %v4438 = vunpack.c.l.bf16 %v320
      %v4439 = vunpack.c.l.bf16 %v321
      %v4440 = vunpack.c.l.bf16 %v322
      %v4441 = vunpack.c.l.bf16 %v323
      %v4442 = vunpack.c.l.bf16 %v324
      %v4443 = vrot.slane %v4379, 7
      %v4444 = vrot.slane %v4380, 7
      %v4445 = vrot.slane %v4381, 7
      %v4446 = vrot.slane %v4382, 7
      %v4447 = vrot.slane %v4383, 7
      %v4448 = vrot.slane %v4384, 7
      %v4449 = vrot.slane %v4385, 7
      %v4450 = vrot.slane %v4386, 7
      %v4451 = vrot.slane %v4387, 7
      %v4452 = vrot.slane %v4388, 7
      %v4453 = vrot.slane %v4389, 7
      %v4454 = vrot.slane %v4390, 7
      %v4455 = vrot.slane %v4391, 7
      %v4456 = vrot.slane %v4392, 7
      %v4457 = vrot.slane %v4393, 7
      %v4458 = vrot.slane %v4394, 7
      %v4459 = vrot.slane %v4395, 7
      %v4460 = vrot.slane %v4396, 7
      %v4461 = vrot.slane %v4397, 7
      %v4462 = vrot.slane %v4398, 7
      %v4463 = vrot.slane %v4399, 7
      %v4464 = vrot.slane %v4400, 7
      %v4465 = vrot.slane %v4401, 7
      %v4466 = vrot.slane %v4402, 7
      %v4467 = vrot.slane %v4403, 7
      %v4468 = vrot.slane %v4404, 7
      %v4469 = vrot.slane %v4405, 7
      %v4470 = vrot.slane %v4406, 7
      %v4471 = vrot.slane %v4407, 7
      %v4472 = vrot.slane %v4408, 7
      %v4473 = vrot.slane %v4409, 7
      %v4474 = vrot.slane %v4410, 7
      %v4475 = vrot.slane %v4411, 7
      %v4476 = vrot.slane %v4412, 7
      %v4477 = vrot.slane %v4413, 7
      %v4478 = vrot.slane %v4414, 7
      %v4479 = vrot.slane %v4415, 7
      %v4480 = vrot.slane %v4416, 7
      %v4481 = vrot.slane %v4417, 7
      %v4482 = vrot.slane %v4418, 7
      %v4483 = vrot.slane %v4419, 7
      %v4484 = vrot.slane %v4420, 7
      %v4485 = vrot.slane %v4421, 7
      %v4486 = vrot.slane %v4422, 7
      %v4487 = vrot.slane %v4423, 7
      %v4488 = vrot.slane %v4424, 7
      %v4489 = vrot.slane %v4425, 7
      %v4490 = vrot.slane %v4426, 7
      %v4491 = vrot.slane %v4427, 7
      %v4492 = vrot.slane %v4428, 7
      %v4493 = vrot.slane %v4429, 7
      %v4494 = vrot.slane %v4430, 7
      %v4495 = vrot.slane %v4431, 7
      %v4496 = vrot.slane %v4432, 7
      %v4497 = vrot.slane %v4433, 7
      %v4498 = vrot.slane %v4434, 7
      %v4499 = vrot.slane %v4435, 7
      %v4500 = vrot.slane %v4436, 7
      %v4501 = vrot.slane %v4437, 7
      %v4502 = vrot.slane %v4438, 7
      %v4503 = vrot.slane %v4439, 7
      %v4504 = vrot.slane %v4440, 7
      %v4505 = vrot.slane %v4441, 7
      %v4506 = vrot.slane %v4442, 7
      %v4507 = vsel %vm1228, %v4505, %v4506
      %v4508 = vsel %vm1228, %v4504, %v4505
      %v4509 = vsel %vm1228, %v4503, %v4504
      %v4510 = vsel %vm1228, %v4502, %v4503
      %v4511 = vsel %vm1228, %v4501, %v4502
      %v4512 = vsel %vm1228, %v4500, %v4501
      %v4513 = vsel %vm1228, %v4499, %v4500
      %v4514 = vsel %vm1228, %v4498, %v4499
      %v4515 = vsel %vm1228, %v4497, %v4498
      %v4516 = vsel %vm1228, %v4496, %v4497
      %v4517 = vsel %vm1228, %v4495, %v4496
      %v4518 = vsel %vm1228, %v4494, %v4495
      %v4519 = vsel %vm1228, %v4493, %v4494
      %v4520 = vsel %vm1228, %v4492, %v4493
      %v4521 = vsel %vm1228, %v4491, %v4492
      %v4522 = vsel %vm1228, %v4490, %v4491
      %v4523 = vsel %vm1228, %v4489, %v4490
      %v4524 = vsel %vm1228, %v4488, %v4489
      %v4525 = vsel %vm1228, %v4487, %v4488
      %v4526 = vsel %vm1228, %v4486, %v4487
      %v4527 = vsel %vm1228, %v4485, %v4486
      %v4528 = vsel %vm1228, %v4484, %v4485
      %v4529 = vsel %vm1228, %v4483, %v4484
      %v4530 = vsel %vm1228, %v4482, %v4483
      %v4531 = vsel %vm1228, %v4481, %v4482
      %v4532 = vsel %vm1228, %v4480, %v4481
      %v4533 = vsel %vm1228, %v4479, %v4480
      %v4534 = vsel %vm1228, %v4478, %v4479
      %v4535 = vsel %vm1228, %v4477, %v4478
      %v4536 = vsel %vm1228, %v4476, %v4477
      %v4537 = vsel %vm1228, %v4475, %v4476
      %v4538 = vsel %vm1228, %v4474, %v4475
      %v4539 = vsel %vm1228, %v4473, %v4474
      %v4540 = vsel %vm1228, %v4472, %v4473
      %v4541 = vsel %vm1228, %v4471, %v4472
      %v4542 = vsel %vm1228, %v4470, %v4471
      %v4543 = vsel %vm1228, %v4469, %v4470
      %v4544 = vsel %vm1228, %v4468, %v4469
      %v4545 = vsel %vm1228, %v4467, %v4468
      %v4546 = vsel %vm1228, %v4466, %v4467
      %v4547 = vsel %vm1228, %v4465, %v4466
      %v4548 = vsel %vm1228, %v4464, %v4465
      %v4549 = vsel %vm1228, %v4463, %v4464
      %v4550 = vsel %vm1228, %v4462, %v4463
      %v4551 = vsel %vm1228, %v4461, %v4462
      %v4552 = vsel %vm1228, %v4460, %v4461
      %v4553 = vsel %vm1228, %v4459, %v4460
      %v4554 = vsel %vm1228, %v4458, %v4459
      %v4555 = vsel %vm1228, %v4457, %v4458
      %v4556 = vsel %vm1228, %v4456, %v4457
      %v4557 = vsel %vm1228, %v4455, %v4456
      %v4558 = vsel %vm1228, %v4454, %v4455
      %v4559 = vsel %vm1228, %v4453, %v4454
      %v4560 = vsel %vm1228, %v4452, %v4453
      %v4561 = vsel %vm1228, %v4451, %v4452
      %v4562 = vsel %vm1228, %v4450, %v4451
      %v4563 = vsel %vm1228, %v4449, %v4450
      %v4564 = vsel %vm1228, %v4448, %v4449
      %v4565 = vsel %vm1228, %v4447, %v4448
      %v4566 = vsel %vm1228, %v4446, %v4447
      %v4567 = vsel %vm1228, %v4445, %v4446
      %v4568 = vsel %vm1228, %v4444, %v4445
      %v4569 = vsel %vm1228, %v4443, %v4444
      %v4570 = vsel %vm1228, %v4506, %v4443
      %v4571 = vrot.slane %v4379, 1
      %v4572 = vrot.slane %v4380, 1
      %v4573 = vrot.slane %v4381, 1
      %v4574 = vrot.slane %v4382, 1
      %v4575 = vrot.slane %v4383, 1
      %v4576 = vrot.slane %v4384, 1
      %v4577 = vrot.slane %v4385, 1
      %v4578 = vrot.slane %v4386, 1
      %v4579 = vrot.slane %v4387, 1
      %v4580 = vrot.slane %v4388, 1
      %v4581 = vrot.slane %v4389, 1
      %v4582 = vrot.slane %v4390, 1
      %v4583 = vrot.slane %v4391, 1
      %v4584 = vrot.slane %v4392, 1
      %v4585 = vrot.slane %v4393, 1
      %v4586 = vrot.slane %v4394, 1
      %v4587 = vrot.slane %v4395, 1
      %v4588 = vrot.slane %v4396, 1
      %v4589 = vrot.slane %v4397, 1
      %v4590 = vrot.slane %v4398, 1
      %v4591 = vrot.slane %v4399, 1
      %v4592 = vrot.slane %v4400, 1
      %v4593 = vrot.slane %v4401, 1
      %v4594 = vrot.slane %v4402, 1
      %v4595 = vrot.slane %v4403, 1
      %v4596 = vrot.slane %v4404, 1
      %v4597 = vrot.slane %v4405, 1
      %v4598 = vrot.slane %v4406, 1
      %v4599 = vrot.slane %v4407, 1
      %v4600 = vrot.slane %v4408, 1
      %v4601 = vrot.slane %v4409, 1
      %v4602 = vrot.slane %v4410, 1
      %v4603 = vrot.slane %v4411, 1
      %v4604 = vrot.slane %v4412, 1
      %v4605 = vrot.slane %v4413, 1
      %v4606 = vrot.slane %v4414, 1
      %v4607 = vrot.slane %v4415, 1
      %v4608 = vrot.slane %v4416, 1
      %v4609 = vrot.slane %v4417, 1
      %v4610 = vrot.slane %v4418, 1
      %v4611 = vrot.slane %v4419, 1
      %v4612 = vrot.slane %v4420, 1
      %v4613 = vrot.slane %v4421, 1
      %v4614 = vrot.slane %v4422, 1
      %v4615 = vrot.slane %v4423, 1
      %v4616 = vrot.slane %v4424, 1
      %v4617 = vrot.slane %v4425, 1
      %v4618 = vrot.slane %v4426, 1
      %v4619 = vrot.slane %v4427, 1
      %v4620 = vrot.slane %v4428, 1
      %v4621 = vrot.slane %v4429, 1
      %v4622 = vrot.slane %v4430, 1
      %v4623 = vrot.slane %v4431, 1
      %v4624 = vrot.slane %v4432, 1
      %v4625 = vrot.slane %v4433, 1
      %v4626 = vrot.slane %v4434, 1
      %v4627 = vrot.slane %v4435, 1
      %v4628 = vrot.slane %v4436, 1
      %v4629 = vrot.slane %v4437, 1
      %v4630 = vrot.slane %v4438, 1
      %v4631 = vrot.slane %v4439, 1
      %v4632 = vrot.slane %v4440, 1
      %v4633 = vrot.slane %v4441, 1
      %v4634 = vrot.slane %v4442, 1
      %v4635 = vsel %vm1357, %v4633, %v4634
      %v4636 = vsel %vm1357, %v4632, %v4633
      %v4637 = vsel %vm1357, %v4631, %v4632
      %v4638 = vsel %vm1357, %v4630, %v4631
      %v4639 = vsel %vm1357, %v4629, %v4630
      %v4640 = vsel %vm1357, %v4628, %v4629
      %v4641 = vsel %vm1357, %v4627, %v4628
      %v4642 = vsel %vm1357, %v4626, %v4627
      %v4643 = vsel %vm1357, %v4625, %v4626
      %v4644 = vsel %vm1357, %v4624, %v4625
      %v4645 = vsel %vm1357, %v4623, %v4624
      %v4646 = vsel %vm1357, %v4622, %v4623
      %v4647 = vsel %vm1357, %v4621, %v4622
      %v4648 = vsel %vm1357, %v4620, %v4621
      %v4649 = vsel %vm1357, %v4619, %v4620
      %v4650 = vsel %vm1357, %v4618, %v4619
      %v4651 = vsel %vm1357, %v4617, %v4618
      %v4652 = vsel %vm1357, %v4616, %v4617
      %v4653 = vsel %vm1357, %v4615, %v4616
      %v4654 = vsel %vm1357, %v4614, %v4615
      %v4655 = vsel %vm1357, %v4613, %v4614
      %v4656 = vsel %vm1357, %v4612, %v4613
      %v4657 = vsel %vm1357, %v4611, %v4612
      %v4658 = vsel %vm1357, %v4610, %v4611
      %v4659 = vsel %vm1357, %v4609, %v4610
      %v4660 = vsel %vm1357, %v4608, %v4609
      %v4661 = vsel %vm1357, %v4607, %v4608
      %v4662 = vsel %vm1357, %v4606, %v4607
      %v4663 = vsel %vm1357, %v4605, %v4606
      %v4664 = vsel %vm1357, %v4604, %v4605
      %v4665 = vsel %vm1357, %v4603, %v4604
      %v4666 = vsel %vm1357, %v4602, %v4603
      %v4667 = vsel %vm1357, %v4601, %v4602
      %v4668 = vsel %vm1357, %v4600, %v4601
      %v4669 = vsel %vm1357, %v4599, %v4600
      %v4670 = vsel %vm1357, %v4598, %v4599
      %v4671 = vsel %vm1357, %v4597, %v4598
      %v4672 = vsel %vm1357, %v4596, %v4597
      %v4673 = vsel %vm1357, %v4595, %v4596
      %v4674 = vsel %vm1357, %v4594, %v4595
      %v4675 = vsel %vm1357, %v4593, %v4594
      %v4676 = vsel %vm1357, %v4592, %v4593
      %v4677 = vsel %vm1357, %v4591, %v4592
      %v4678 = vsel %vm1357, %v4590, %v4591
      %v4679 = vsel %vm1357, %v4589, %v4590
      %v4680 = vsel %vm1357, %v4588, %v4589
      %v4681 = vsel %vm1357, %v4587, %v4588
      %v4682 = vsel %vm1357, %v4586, %v4587
      %v4683 = vsel %vm1357, %v4585, %v4586
      %v4684 = vsel %vm1357, %v4584, %v4585
      %v4685 = vsel %vm1357, %v4583, %v4584
      %v4686 = vsel %vm1357, %v4582, %v4583
      %v4687 = vsel %vm1357, %v4581, %v4582
      %v4688 = vsel %vm1357, %v4580, %v4581
      %v4689 = vsel %vm1357, %v4579, %v4580
      %v4690 = vsel %vm1357, %v4578, %v4579
      %v4691 = vsel %vm1357, %v4577, %v4578
      %v4692 = vsel %vm1357, %v4576, %v4577
      %v4693 = vsel %vm1357, %v4575, %v4576
      %v4694 = vsel %vm1357, %v4574, %v4575
      %v4695 = vsel %vm1357, %v4573, %v4574
      %v4696 = vsel %vm1357, %v4572, %v4573
      %v4697 = vsel %vm1357, %v4571, %v4572
      %v4698 = vsel %vm1357, %v4634, %v4571
      %vm4699 = vcmp.gt.s32.totalorder %v360, 0
      %vm4700 = vcmp.gt.s32.totalorder %v361, 0
      %vm4701 = vcmp.gt.s32.totalorder %v362, 0
      %vm4702 = vcmp.gt.s32.totalorder %v363, 0
      %vm4703 = vcmp.gt.s32.totalorder %v364, 0
      %vm4704 = vcmp.gt.s32.totalorder %v365, 0
      %vm4705 = vcmp.gt.s32.totalorder %v366, 0
      %vm4706 = vcmp.gt.s32.totalorder %v367, 0
      %v4707 = vsel %vm4699, 1, 0
      %v4708 = vsel %vm4700, 1, 0
      %v4709 = vsel %vm4701, 1, 0
      %v4710 = vsel %vm4702, 1, 0
      %v4711 = vsel %vm4703, 1, 0
      %v4712 = vsel %vm4704, 1, 0
      %v4713 = vsel %vm4705, 1, 0
      %v4714 = vsel %vm4706, 1, 0
      %vm4715 = vcmp.eq.s32.totalorder %v4707, 1
      %vm4716 = vcmp.eq.s32.totalorder %v4708, 1
      %vm4717 = vcmp.eq.s32.totalorder %v4709, 1
      %vm4718 = vcmp.eq.s32.totalorder %v4710, 1
      %vm4719 = vcmp.eq.s32.totalorder %v4711, 1
      %vm4720 = vcmp.eq.s32.totalorder %v4712, 1
      %vm4721 = vcmp.eq.s32.totalorder %v4713, 1
      %vm4722 = vcmp.eq.s32.totalorder %v4714, 1
      %v4723 = vsel %vm4715, %v4570, %v4379
      %v4724 = vsel %vm4716, %v4569, %v4380
      %v4725 = vsel %vm4717, %v4568, %v4381
      %v4726 = vsel %vm4718, %v4567, %v4382
      %v4727 = vsel %vm4719, %v4566, %v4383
      %v4728 = vsel %vm4720, %v4565, %v4384
      %v4729 = vsel %vm4721, %v4564, %v4385
      %v4730 = vsel %vm4722, %v4563, %v4386
      %v4731 = vsel %vm4715, %v4562, %v4387
      %v4732 = vsel %vm4716, %v4561, %v4388
      %v4733 = vsel %vm4717, %v4560, %v4389
      %v4734 = vsel %vm4718, %v4559, %v4390
      %v4735 = vsel %vm4719, %v4558, %v4391
      %v4736 = vsel %vm4720, %v4557, %v4392
      %v4737 = vsel %vm4721, %v4556, %v4393
      %v4738 = vsel %vm4722, %v4555, %v4394
      %v4739 = vsel %vm4715, %v4554, %v4395
      %v4740 = vsel %vm4716, %v4553, %v4396
      %v4741 = vsel %vm4717, %v4552, %v4397
      %v4742 = vsel %vm4718, %v4551, %v4398
      %v4743 = vsel %vm4719, %v4550, %v4399
      %v4744 = vsel %vm4720, %v4549, %v4400
      %v4745 = vsel %vm4721, %v4548, %v4401
      %v4746 = vsel %vm4722, %v4547, %v4402
      %v4747 = vsel %vm4715, %v4546, %v4403
      %v4748 = vsel %vm4716, %v4545, %v4404
      %v4749 = vsel %vm4717, %v4544, %v4405
      %v4750 = vsel %vm4718, %v4543, %v4406
      %v4751 = vsel %vm4719, %v4542, %v4407
      %v4752 = vsel %vm4720, %v4541, %v4408
      %v4753 = vsel %vm4721, %v4540, %v4409
      %v4754 = vsel %vm4722, %v4539, %v4410
      %v4755 = vsel %vm4715, %v4538, %v4411
      %v4756 = vsel %vm4716, %v4537, %v4412
      %v4757 = vsel %vm4717, %v4536, %v4413
      %v4758 = vsel %vm4718, %v4535, %v4414
      %v4759 = vsel %vm4719, %v4534, %v4415
      %v4760 = vsel %vm4720, %v4533, %v4416
      %v4761 = vsel %vm4721, %v4532, %v4417
      %v4762 = vsel %vm4722, %v4531, %v4418
      %v4763 = vsel %vm4715, %v4530, %v4419
      %v4764 = vsel %vm4716, %v4529, %v4420
      %v4765 = vsel %vm4717, %v4528, %v4421
      %v4766 = vsel %vm4718, %v4527, %v4422
      %v4767 = vsel %vm4719, %v4526, %v4423
      %v4768 = vsel %vm4720, %v4525, %v4424
      %v4769 = vsel %vm4721, %v4524, %v4425
      %v4770 = vsel %vm4722, %v4523, %v4426
      %v4771 = vsel %vm4715, %v4522, %v4427
      %v4772 = vsel %vm4716, %v4521, %v4428
      %v4773 = vsel %vm4717, %v4520, %v4429
      %v4774 = vsel %vm4718, %v4519, %v4430
      %v4775 = vsel %vm4719, %v4518, %v4431
      %v4776 = vsel %vm4720, %v4517, %v4432
      %v4777 = vsel %vm4721, %v4516, %v4433
      %v4778 = vsel %vm4722, %v4515, %v4434
      %v4779 = vsel %vm4715, %v4514, %v4435
      %v4780 = vsel %vm4716, %v4513, %v4436
      %v4781 = vsel %vm4717, %v4512, %v4437
      %v4782 = vsel %vm4718, %v4511, %v4438
      %v4783 = vsel %vm4719, %v4510, %v4439
      %v4784 = vsel %vm4720, %v4509, %v4440
      %v4785 = vsel %vm4721, %v4508, %v4441
      %v4786 = vsel %vm4722, %v4507, %v4442
      %vm4787 = vcmp.lt.s32.totalorder %v360, 63
      %vm4788 = vcmp.lt.s32.totalorder %v361, 63
      %vm4789 = vcmp.lt.s32.totalorder %v362, 63
      %vm4790 = vcmp.lt.s32.totalorder %v363, 63
      %vm4791 = vcmp.lt.s32.totalorder %v364, 63
      %vm4792 = vcmp.lt.s32.totalorder %v365, 63
      %vm4793 = vcmp.lt.s32.totalorder %v366, 63
      %vm4794 = vcmp.lt.s32.totalorder %v367, 63
      %v4795 = vsel %vm4787, 1, 0
      %v4796 = vsel %vm4788, 1, 0
      %v4797 = vsel %vm4789, 1, 0
      %v4798 = vsel %vm4790, 1, 0
      %v4799 = vsel %vm4791, 1, 0
      %v4800 = vsel %vm4792, 1, 0
      %v4801 = vsel %vm4793, 1, 0
      %v4802 = vsel %vm4794, 1, 0
      %vm4803 = vcmp.eq.s32.totalorder %v4795, 1
      %vm4804 = vcmp.eq.s32.totalorder %v4796, 1
      %vm4805 = vcmp.eq.s32.totalorder %v4797, 1
      %vm4806 = vcmp.eq.s32.totalorder %v4798, 1
      %vm4807 = vcmp.eq.s32.totalorder %v4799, 1
      %vm4808 = vcmp.eq.s32.totalorder %v4800, 1
      %vm4809 = vcmp.eq.s32.totalorder %v4801, 1
      %vm4810 = vcmp.eq.s32.totalorder %v4802, 1
      %v4811 = vsel %vm4803, %v4697, %v4379
      %v4812 = vsel %vm4804, %v4696, %v4380
      %v4813 = vsel %vm4805, %v4695, %v4381
      %v4814 = vsel %vm4806, %v4694, %v4382
      %v4815 = vsel %vm4807, %v4693, %v4383
      %v4816 = vsel %vm4808, %v4692, %v4384
      %v4817 = vsel %vm4809, %v4691, %v4385
      %v4818 = vsel %vm4810, %v4690, %v4386
      %v4819 = vsel %vm4803, %v4689, %v4387
      %v4820 = vsel %vm4804, %v4688, %v4388
      %v4821 = vsel %vm4805, %v4687, %v4389
      %v4822 = vsel %vm4806, %v4686, %v4390
      %v4823 = vsel %vm4807, %v4685, %v4391
      %v4824 = vsel %vm4808, %v4684, %v4392
      %v4825 = vsel %vm4809, %v4683, %v4393
      %v4826 = vsel %vm4810, %v4682, %v4394
      %v4827 = vsel %vm4803, %v4681, %v4395
      %v4828 = vsel %vm4804, %v4680, %v4396
      %v4829 = vsel %vm4805, %v4679, %v4397
      %v4830 = vsel %vm4806, %v4678, %v4398
      %v4831 = vsel %vm4807, %v4677, %v4399
      %v4832 = vsel %vm4808, %v4676, %v4400
      %v4833 = vsel %vm4809, %v4675, %v4401
      %v4834 = vsel %vm4810, %v4674, %v4402
      %v4835 = vsel %vm4803, %v4673, %v4403
      %v4836 = vsel %vm4804, %v4672, %v4404
      %v4837 = vsel %vm4805, %v4671, %v4405
      %v4838 = vsel %vm4806, %v4670, %v4406
      %v4839 = vsel %vm4807, %v4669, %v4407
      %v4840 = vsel %vm4808, %v4668, %v4408
      %v4841 = vsel %vm4809, %v4667, %v4409
      %v4842 = vsel %vm4810, %v4666, %v4410
      %v4843 = vsel %vm4803, %v4665, %v4411
      %v4844 = vsel %vm4804, %v4664, %v4412
      %v4845 = vsel %vm4805, %v4663, %v4413
      %v4846 = vsel %vm4806, %v4662, %v4414
      %v4847 = vsel %vm4807, %v4661, %v4415
      %v4848 = vsel %vm4808, %v4660, %v4416
      %v4849 = vsel %vm4809, %v4659, %v4417
      %v4850 = vsel %vm4810, %v4658, %v4418
      %v4851 = vsel %vm4803, %v4657, %v4419
      %v4852 = vsel %vm4804, %v4656, %v4420
      %v4853 = vsel %vm4805, %v4655, %v4421
      %v4854 = vsel %vm4806, %v4654, %v4422
      %v4855 = vsel %vm4807, %v4653, %v4423
      %v4856 = vsel %vm4808, %v4652, %v4424
      %v4857 = vsel %vm4809, %v4651, %v4425
      %v4858 = vsel %vm4810, %v4650, %v4426
      %v4859 = vsel %vm4803, %v4649, %v4427
      %v4860 = vsel %vm4804, %v4648, %v4428
      %v4861 = vsel %vm4805, %v4647, %v4429
      %v4862 = vsel %vm4806, %v4646, %v4430
      %v4863 = vsel %vm4807, %v4645, %v4431
      %v4864 = vsel %vm4808, %v4644, %v4432
      %v4865 = vsel %vm4809, %v4643, %v4433
      %v4866 = vsel %vm4810, %v4642, %v4434
      %v4867 = vsel %vm4803, %v4641, %v4435
      %v4868 = vsel %vm4804, %v4640, %v4436
      %v4869 = vsel %vm4805, %v4639, %v4437
      %v4870 = vsel %vm4806, %v4638, %v4438
      %v4871 = vsel %vm4807, %v4637, %v4439
      %v4872 = vsel %vm4808, %v4636, %v4440
      %v4873 = vsel %vm4809, %v4635, %v4441
      %v4874 = vsel %vm4810, %v4698, %v4442
      %v4875 = vmax.f32 %v4723, %v4811
      %v4876 = vmax.f32 %v4724, %v4812
      %v4877 = vmax.f32 %v4725, %v4813
      %v4878 = vmax.f32 %v4726, %v4814
      %v4879 = vmax.f32 %v4727, %v4815
      %v4880 = vmax.f32 %v4728, %v4816
      %v4881 = vmax.f32 %v4729, %v4817
      %v4882 = vmax.f32 %v4730, %v4818
      %v4883 = vmax.f32 %v4731, %v4819
      %v4884 = vmax.f32 %v4732, %v4820
      %v4885 = vmax.f32 %v4733, %v4821
      %v4886 = vmax.f32 %v4734, %v4822
      %v4887 = vmax.f32 %v4735, %v4823
      %v4888 = vmax.f32 %v4736, %v4824
      %v4889 = vmax.f32 %v4737, %v4825
      %v4890 = vmax.f32 %v4738, %v4826
      %v4891 = vmax.f32 %v4739, %v4827
      %v4892 = vmax.f32 %v4740, %v4828
      %v4893 = vmax.f32 %v4741, %v4829
      %v4894 = vmax.f32 %v4742, %v4830
      %v4895 = vmax.f32 %v4743, %v4831
      %v4896 = vmax.f32 %v4744, %v4832
      %v4897 = vmax.f32 %v4745, %v4833
      %v4898 = vmax.f32 %v4746, %v4834
      %v4899 = vmax.f32 %v4747, %v4835
      %v4900 = vmax.f32 %v4748, %v4836
      %v4901 = vmax.f32 %v4749, %v4837
      %v4902 = vmax.f32 %v4750, %v4838
      %v4903 = vmax.f32 %v4751, %v4839
      %v4904 = vmax.f32 %v4752, %v4840
      %v4905 = vmax.f32 %v4753, %v4841
      %v4906 = vmax.f32 %v4754, %v4842
      %v4907 = vmax.f32 %v4755, %v4843
      %v4908 = vmax.f32 %v4756, %v4844
      %v4909 = vmax.f32 %v4757, %v4845
      %v4910 = vmax.f32 %v4758, %v4846
      %v4911 = vmax.f32 %v4759, %v4847
      %v4912 = vmax.f32 %v4760, %v4848
      %v4913 = vmax.f32 %v4761, %v4849
      %v4914 = vmax.f32 %v4762, %v4850
      %v4915 = vmax.f32 %v4763, %v4851
      %v4916 = vmax.f32 %v4764, %v4852
      %v4917 = vmax.f32 %v4765, %v4853
      %v4918 = vmax.f32 %v4766, %v4854
      %v4919 = vmax.f32 %v4767, %v4855
      %v4920 = vmax.f32 %v4768, %v4856
      %v4921 = vmax.f32 %v4769, %v4857
      %v4922 = vmax.f32 %v4770, %v4858
      %v4923 = vmax.f32 %v4771, %v4859
      %v4924 = vmax.f32 %v4772, %v4860
      %v4925 = vmax.f32 %v4773, %v4861
      %v4926 = vmax.f32 %v4774, %v4862
      %v4927 = vmax.f32 %v4775, %v4863
      %v4928 = vmax.f32 %v4776, %v4864
      %v4929 = vmax.f32 %v4777, %v4865
      %v4930 = vmax.f32 %v4778, %v4866
      %v4931 = vmax.f32 %v4779, %v4867
      %v4932 = vmax.f32 %v4780, %v4868
      %v4933 = vmax.f32 %v4781, %v4869
      %v4934 = vmax.f32 %v4782, %v4870
      %v4935 = vmax.f32 %v4783, %v4871
      %v4936 = vmax.f32 %v4784, %v4872
      %v4937 = vmax.f32 %v4785, %v4873
      %v4938 = vmax.f32 %v4786, %v4874
      %v4939 = vmax.f32 %v4875, %v4379
      %v4940 = vmax.f32 %v4876, %v4380
      %v4941 = vmax.f32 %v4877, %v4381
      %v4942 = vmax.f32 %v4878, %v4382
      %v4943 = vmax.f32 %v4879, %v4383
      %v4944 = vmax.f32 %v4880, %v4384
      %v4945 = vmax.f32 %v4881, %v4385
      %v4946 = vmax.f32 %v4882, %v4386
      %v4947 = vmax.f32 %v4883, %v4387
      %v4948 = vmax.f32 %v4884, %v4388
      %v4949 = vmax.f32 %v4885, %v4389
      %v4950 = vmax.f32 %v4886, %v4390
      %v4951 = vmax.f32 %v4887, %v4391
      %v4952 = vmax.f32 %v4888, %v4392
      %v4953 = vmax.f32 %v4889, %v4393
      %v4954 = vmax.f32 %v4890, %v4394
      %v4955 = vmax.f32 %v4891, %v4395
      %v4956 = vmax.f32 %v4892, %v4396
      %v4957 = vmax.f32 %v4893, %v4397
      %v4958 = vmax.f32 %v4894, %v4398
      %v4959 = vmax.f32 %v4895, %v4399
      %v4960 = vmax.f32 %v4896, %v4400
      %v4961 = vmax.f32 %v4897, %v4401
      %v4962 = vmax.f32 %v4898, %v4402
      %v4963 = vmax.f32 %v4899, %v4403
      %v4964 = vmax.f32 %v4900, %v4404
      %v4965 = vmax.f32 %v4901, %v4405
      %v4966 = vmax.f32 %v4902, %v4406
      %v4967 = vmax.f32 %v4903, %v4407
      %v4968 = vmax.f32 %v4904, %v4408
      %v4969 = vmax.f32 %v4905, %v4409
      %v4970 = vmax.f32 %v4906, %v4410
      %v4971 = vmax.f32 %v4907, %v4411
      %v4972 = vmax.f32 %v4908, %v4412
      %v4973 = vmax.f32 %v4909, %v4413
      %v4974 = vmax.f32 %v4910, %v4414
      %v4975 = vmax.f32 %v4911, %v4415
      %v4976 = vmax.f32 %v4912, %v4416
      %v4977 = vmax.f32 %v4913, %v4417
      %v4978 = vmax.f32 %v4914, %v4418
      %v4979 = vmax.f32 %v4915, %v4419
      %v4980 = vmax.f32 %v4916, %v4420
      %v4981 = vmax.f32 %v4917, %v4421
      %v4982 = vmax.f32 %v4918, %v4422
      %v4983 = vmax.f32 %v4919, %v4423
      %v4984 = vmax.f32 %v4920, %v4424
      %v4985 = vmax.f32 %v4921, %v4425
      %v4986 = vmax.f32 %v4922, %v4426
      %v4987 = vmax.f32 %v4923, %v4427
      %v4988 = vmax.f32 %v4924, %v4428
      %v4989 = vmax.f32 %v4925, %v4429
      %v4990 = vmax.f32 %v4926, %v4430
      %v4991 = vmax.f32 %v4927, %v4431
      %v4992 = vmax.f32 %v4928, %v4432
      %v4993 = vmax.f32 %v4929, %v4433
      %v4994 = vmax.f32 %v4930, %v4434
      %v4995 = vmax.f32 %v4931, %v4435
      %v4996 = vmax.f32 %v4932, %v4436
      %v4997 = vmax.f32 %v4933, %v4437
      %v4998 = vmax.f32 %v4934, %v4438
      %v4999 = vmax.f32 %v4935, %v4439
      %v5000 = vmax.f32 %v4936, %v4440
      %v5001 = vmax.f32 %v4937, %v4441
      %v5002 = vmax.f32 %v4938, %v4442
      %v5003 = vpack.c.bf16 %v4940, %v4939
      %v5004 = vpack.c.bf16 %v4942, %v4941
      %v5005 = vpack.c.bf16 %v4944, %v4943
      %v5006 = vpack.c.bf16 %v4946, %v4945
      %v5007 = vpack.c.bf16 %v4948, %v4947
      %v5008 = vpack.c.bf16 %v4950, %v4949
      %v5009 = vpack.c.bf16 %v4952, %v4951
      %v5010 = vpack.c.bf16 %v4954, %v4953
      %v5011 = vpack.c.bf16 %v4956, %v4955
      %v5012 = vpack.c.bf16 %v4958, %v4957
      %v5013 = vpack.c.bf16 %v4960, %v4959
      %v5014 = vpack.c.bf16 %v4962, %v4961
      %v5015 = vpack.c.bf16 %v4964, %v4963
      %v5016 = vpack.c.bf16 %v4966, %v4965
      %v5017 = vpack.c.bf16 %v4968, %v4967
      %v5018 = vpack.c.bf16 %v4970, %v4969
      %v5019 = vpack.c.bf16 %v4972, %v4971
      %v5020 = vpack.c.bf16 %v4974, %v4973
      %v5021 = vpack.c.bf16 %v4976, %v4975
      %v5022 = vpack.c.bf16 %v4978, %v4977
      %v5023 = vpack.c.bf16 %v4980, %v4979
      %v5024 = vpack.c.bf16 %v4982, %v4981
      %v5025 = vpack.c.bf16 %v4984, %v4983
      %v5026 = vpack.c.bf16 %v4986, %v4985
      %v5027 = vpack.c.bf16 %v4988, %v4987
      %v5028 = vpack.c.bf16 %v4990, %v4989
      %v5029 = vpack.c.bf16 %v4992, %v4991
      %v5030 = vpack.c.bf16 %v4994, %v4993
      %v5031 = vpack.c.bf16 %v4996, %v4995
      %v5032 = vpack.c.bf16 %v4998, %v4997
      %v5033 = vpack.c.bf16 %v5000, %v4999
      %v5034 = vpack.c.bf16 %v5002, %v5001
      %v5051 = vunpack.c.l.b16 %v343
      %v5052 = vunpack.c.l.b16 %v344
      %v5053 = vunpack.c.l.b16 %v345
      %v5054 = vunpack.c.l.b16 %v346
      %v5055 = vunpack.c.l.b16 %v347
      %v5056 = vunpack.c.l.b16 %v348
      %v5057 = vunpack.c.l.b16 %v349
      %v5058 = vunpack.c.l.b16 %v350
      %v5059 = vunpack.c.l.b16 %v351
      %v5060 = vunpack.c.l.b16 %v352
      %v5061 = vunpack.c.l.b16 %v353
      %v5062 = vunpack.c.l.b16 %v354
      %v5063 = vunpack.c.l.b16 %v355
      %v5064 = vunpack.c.l.b16 %v356
      %v5065 = vunpack.c.l.b16 %v357
      %v5066 = vunpack.c.l.b16 %v358
      %v5067 = vpack.c.b16 %v5052, %v5051
      %v5068 = vpack.c.b16 %v5054, %v5053
      %v5069 = vpack.c.b16 %v5056, %v5055
      %v5070 = vpack.c.b16 %v5058, %v5057
      %v5071 = vpack.c.b16 %v5060, %v5059
      %v5072 = vpack.c.b16 %v5062, %v5061
      %v5073 = vpack.c.b16 %v5064, %v5063
      %v5074 = vpack.c.b16 %v5066, %v5065
      %5083 = vmatpush.bf16.msra.mxu0 %v5074
      %5084 = vmatpush.bf16.msra.mxu0 %v5073
      %5085 = vmatpush.bf16.msra.mxu0 %v5072
      %5086 = vmatpush.bf16.msra.mxu0 %v5071
      %5087 = vmatpush.bf16.msra.mxu0 %v5070
      %5088 = vmatpush.bf16.msra.mxu0 %v5069
      %5089 = vmatpush.bf16.msra.mxu0 %v5068
      %5090 = vmatpush.bf16.msra.mxu0 %v5067
      %5091 = vmatmul.bf16.gmra.mxu0 %v5003
      %v5092 = vpop.f32.mrf.mxu0
      %v5093 = vadd.f32 0.0, %v5092
      %v5094 = vpop.f32.mrf.mxu0
      %v5095 = vadd.f32 0.0, %v5094
      %5096 = vmatmul.bf16.gmra.mxu0 %v5004
      %v5097 = vpop.f32.mrf.mxu0
      %v5098 = vadd.f32 0.0, %v5097
      %v5099 = vpop.f32.mrf.mxu0
      %v5100 = vadd.f32 0.0, %v5099
      %5101 = vmatmul.bf16.gmra.mxu0 %v5005
      %v5102 = vpop.f32.mrf.mxu0
      %v5103 = vadd.f32 0.0, %v5102
      %v5104 = vpop.f32.mrf.mxu0
      %v5105 = vadd.f32 0.0, %v5104
      %5106 = vmatmul.bf16.gmra.mxu0 %v5006
      %v5107 = vpop.f32.mrf.mxu0
      %v5108 = vadd.f32 0.0, %v5107
      %v5109 = vpop.f32.mrf.mxu0
      %v5110 = vadd.f32 0.0, %v5109
      %5111 = vmatmul.bf16.gmra.mxu0 %v5007
      %v5112 = vpop.f32.mrf.mxu0
      %v5113 = vadd.f32 0.0, %v5112
      %v5114 = vpop.f32.mrf.mxu0
      %v5115 = vadd.f32 0.0, %v5114
      %5116 = vmatmul.bf16.gmra.mxu0 %v5008
      %v5117 = vpop.f32.mrf.mxu0
      %v5118 = vadd.f32 0.0, %v5117
      %v5119 = vpop.f32.mrf.mxu0
      %v5120 = vadd.f32 0.0, %v5119
      %5121 = vmatmul.bf16.gmra.mxu0 %v5009
      %v5122 = vpop.f32.mrf.mxu0
      %v5123 = vadd.f32 0.0, %v5122
      %v5124 = vpop.f32.mrf.mxu0
      %v5125 = vadd.f32 0.0, %v5124
      %5126 = vmatmul.bf16.gmra.mxu0 %v5010
      %v5127 = vpop.f32.mrf.mxu0
      %v5128 = vadd.f32 0.0, %v5127
      %v5129 = vpop.f32.mrf.mxu0
      %v5130 = vadd.f32 0.0, %v5129
      %5131 = vmatmul.bf16.gmra.mxu0 %v5011
      %v5132 = vpop.f32.mrf.mxu0
      %v5133 = vadd.f32 0.0, %v5132
      %v5134 = vpop.f32.mrf.mxu0
      %v5135 = vadd.f32 0.0, %v5134
      %5136 = vmatmul.bf16.gmra.mxu0 %v5012
      %v5137 = vpop.f32.mrf.mxu0
      %v5138 = vadd.f32 0.0, %v5137
      %v5139 = vpop.f32.mrf.mxu0
      %v5140 = vadd.f32 0.0, %v5139
      %5141 = vmatmul.bf16.gmra.mxu0 %v5013
      %v5142 = vpop.f32.mrf.mxu0
      %v5143 = vadd.f32 0.0, %v5142
      %v5144 = vpop.f32.mrf.mxu0
      %v5145 = vadd.f32 0.0, %v5144
      %5146 = vmatmul.bf16.gmra.mxu0 %v5014
      %v5147 = vpop.f32.mrf.mxu0
      %v5148 = vadd.f32 0.0, %v5147
      %v5149 = vpop.f32.mrf.mxu0
      %v5150 = vadd.f32 0.0, %v5149
      %5151 = vmatmul.bf16.gmra.mxu0 %v5015
      %v5152 = vpop.f32.mrf.mxu0
      %v5153 = vadd.f32 0.0, %v5152
      %v5154 = vpop.f32.mrf.mxu0
      %v5155 = vadd.f32 0.0, %v5154
      %5156 = vmatmul.bf16.gmra.mxu0 %v5016
      %v5157 = vpop.f32.mrf.mxu0
      %v5158 = vadd.f32 0.0, %v5157
      %v5159 = vpop.f32.mrf.mxu0
      %v5160 = vadd.f32 0.0, %v5159
      %5161 = vmatmul.bf16.gmra.mxu0 %v5017
      %v5162 = vpop.f32.mrf.mxu0
      %v5163 = vadd.f32 0.0, %v5162
      %v5164 = vpop.f32.mrf.mxu0
      %v5165 = vadd.f32 0.0, %v5164
      %5166 = vmatmul.bf16.gmra.mxu0 %v5018
      %v5167 = vpop.f32.mrf.mxu0
      %v5168 = vadd.f32 0.0, %v5167
      %v5169 = vpop.f32.mrf.mxu0
      %v5170 = vadd.f32 0.0, %v5169
      %5171 = vmatmul.bf16.gmra.mxu0 %v5019
      %v5172 = vpop.f32.mrf.mxu0
      %v5173 = vadd.f32 0.0, %v5172
      %v5174 = vpop.f32.mrf.mxu0
      %v5175 = vadd.f32 0.0, %v5174
      %5176 = vmatmul.bf16.gmra.mxu0 %v5020
      %v5177 = vpop.f32.mrf.mxu0
      %v5178 = vadd.f32 0.0, %v5177
      %v5179 = vpop.f32.mrf.mxu0
      %v5180 = vadd.f32 0.0, %v5179
      %5181 = vmatmul.bf16.gmra.mxu0 %v5021
      %v5182 = vpop.f32.mrf.mxu0
      %v5183 = vadd.f32 0.0, %v5182
      %v5184 = vpop.f32.mrf.mxu0
      %v5185 = vadd.f32 0.0, %v5184
      %5186 = vmatmul.bf16.gmra.mxu0 %v5022
      %v5187 = vpop.f32.mrf.mxu0
      %v5188 = vadd.f32 0.0, %v5187
      %v5189 = vpop.f32.mrf.mxu0
      %v5190 = vadd.f32 0.0, %v5189
      %5191 = vmatmul.bf16.gmra.mxu0 %v5023
      %v5192 = vpop.f32.mrf.mxu0
      %v5193 = vadd.f32 0.0, %v5192
      %v5194 = vpop.f32.mrf.mxu0
      %v5195 = vadd.f32 0.0, %v5194
      %5196 = vmatmul.bf16.gmra.mxu0 %v5024
      %v5197 = vpop.f32.mrf.mxu0
      %v5198 = vadd.f32 0.0, %v5197
      %v5199 = vpop.f32.mrf.mxu0
      %v5200 = vadd.f32 0.0, %v5199
      %5201 = vmatmul.bf16.gmra.mxu0 %v5025
      %v5202 = vpop.f32.mrf.mxu0
      %v5203 = vadd.f32 0.0, %v5202
      %v5204 = vpop.f32.mrf.mxu0
      %v5205 = vadd.f32 0.0, %v5204
      %5206 = vmatmul.bf16.gmra.mxu0 %v5026
      %v5207 = vpop.f32.mrf.mxu0
      %v5208 = vadd.f32 0.0, %v5207
      %v5209 = vpop.f32.mrf.mxu0
      %v5210 = vadd.f32 0.0, %v5209
      %5211 = vmatmul.bf16.gmra.mxu0 %v5027
      %v5212 = vpop.f32.mrf.mxu0
      %v5213 = vadd.f32 0.0, %v5212
      %v5214 = vpop.f32.mrf.mxu0
      %v5215 = vadd.f32 0.0, %v5214
      %5216 = vmatmul.bf16.gmra.mxu0 %v5028
      %v5217 = vpop.f32.mrf.mxu0
      %v5218 = vadd.f32 0.0, %v5217
      %v5219 = vpop.f32.mrf.mxu0
      %v5220 = vadd.f32 0.0, %v5219
      %5221 = vmatmul.bf16.gmra.mxu0 %v5029
      %v5222 = vpop.f32.mrf.mxu0
      %v5223 = vadd.f32 0.0, %v5222
      %v5224 = vpop.f32.mrf.mxu0
      %v5225 = vadd.f32 0.0, %v5224
      %5226 = vmatmul.bf16.gmra.mxu0 %v5030
      %v5227 = vpop.f32.mrf.mxu0
      %v5228 = vadd.f32 0.0, %v5227
      %v5229 = vpop.f32.mrf.mxu0
      %v5230 = vadd.f32 0.0, %v5229
      %5231 = vmatmul.bf16.gmra.mxu0 %v5031
      %v5232 = vpop.f32.mrf.mxu0
      %v5233 = vadd.f32 0.0, %v5232
      %v5234 = vpop.f32.mrf.mxu0
      %v5235 = vadd.f32 0.0, %v5234
      %5236 = vmatmul.bf16.gmra.mxu0 %v5032
      %v5237 = vpop.f32.mrf.mxu0
      %v5238 = vadd.f32 0.0, %v5237
      %v5239 = vpop.f32.mrf.mxu0
      %v5240 = vadd.f32 0.0, %v5239
      %5241 = vmatmul.bf16.gmra.mxu0 %v5033
      %v5242 = vpop.f32.mrf.mxu0
      %v5243 = vadd.f32 0.0, %v5242
      %v5244 = vpop.f32.mrf.mxu0
      %v5245 = vadd.f32 0.0, %v5244
      %5246 = vmatmul.bf16.gmra.mxu0 %v5034
      %v5247 = vpop.f32.mrf.mxu0
      %v5248 = vadd.f32 0.0, %v5247
      %v5249 = vpop.f32.mrf.mxu0
      %v5250 = vadd.f32 0.0, %v5249
      %5251 = vdwg.mxu0
      %v5254 = vunpack.c.l.b16 %v341
      %v5255 = vunpack.c.l.b16 %v342
      %v5256 = vpack.c.b16 %v5255, %v5254
      %vm5257 = vcmask 72704
      %v5259 = vsel %vm5257, %v4347, 0
      %v5262 = vsel %vm5257, %v4348, 0
      %v5265 = vsel %vm5257, %v4349, 0
      %v5268 = vsel %vm5257, %v4350, 0
      %v5271 = vsel %vm5257, %v4351, 0
      %v5274 = vsel %vm5257, %v4352, 0
      %v5277 = vsel %vm5257, %v4353, 0
      %v5280 = vsel %vm5257, %v4354, 0
      %v5283 = vsel %vm5257, %v4355, 0
      %v5286 = vsel %vm5257, %v4356, 0
      %v5289 = vsel %vm5257, %v4357, 0
      %v5292 = vsel %vm5257, %v4358, 0
      %v5295 = vsel %vm5257, %v4359, 0
      %v5298 = vsel %vm5257, %v4360, 0
      %v5301 = vsel %vm5257, %v4361, 0
      %v5304 = vsel %vm5257, %v4362, 0
      %v5307 = vsel %vm5257, %v4363, 0
      %v5310 = vsel %vm5257, %v4364, 0
      %v5313 = vsel %vm5257, %v4365, 0
      %v5316 = vsel %vm5257, %v4366, 0
      %v5319 = vsel %vm5257, %v4367, 0
      %v5322 = vsel %vm5257, %v4368, 0
      %v5325 = vsel %vm5257, %v4369, 0
      %v5328 = vsel %vm5257, %v4370, 0
      %v5331 = vsel %vm5257, %v4371, 0
      %v5334 = vsel %vm5257, %v4372, 0
      %v5337 = vsel %vm5257, %v4373, 0
      %v5340 = vsel %vm5257, %v4374, 0
      %v5343 = vsel %vm5257, %v4375, 0
      %v5346 = vsel %vm5257, %v4376, 0
      %v5349 = vsel %vm5257, %v4377, 0
      %v5352 = vsel %vm5257, %v4378, 0
      %vm5354 = vcmask 1043456
      %vm5355 = vcmask 1044480
      %v5356 = vsel %vm5354, 4294967295, 65535
      %v5357 = vsel %vm5355, %v5356, 0
      %v5359 = vand.u32 %v5256, %v5357
      %5361 = vmatpush.bf16.msra.mxu0 0
      %5362 = vmatpush.bf16.msra.mxu0 0
      %5363 = vmatpush.bf16.msra.mxu0 0
      %5364 = vmatpush.bf16.msra.mxu0 0
      %5365 = vmatpush.bf16.msra.mxu0 0
      %5366 = vmatpush.bf16.msra.mxu0 0
      %5367 = vmatpush.bf16.msra.mxu0 0
      %5368 = vmatpush.bf16.msra.mxu0 %v5359
      %5369 = vmatmul.bf16.gmra.mxu0 %v5259
      %v5370 = vpop.f32.mrf.mxu0
      %v5371 = vadd.f32 %v5093, %v5370
      %v5372 = vpop.f32.mrf.mxu0
      %v5373 = vadd.f32 %v5095, %v5372
      %5374 = vmatmul.bf16.gmra.mxu0 %v5262
      %v5375 = vpop.f32.mrf.mxu0
      %v5376 = vadd.f32 %v5098, %v5375
      %v5377 = vpop.f32.mrf.mxu0
      %v5378 = vadd.f32 %v5100, %v5377
      %5379 = vmatmul.bf16.gmra.mxu0 %v5265
      %v5380 = vpop.f32.mrf.mxu0
      %v5381 = vadd.f32 %v5103, %v5380
      %v5382 = vpop.f32.mrf.mxu0
      %v5383 = vadd.f32 %v5105, %v5382
      %5384 = vmatmul.bf16.gmra.mxu0 %v5268
      %v5385 = vpop.f32.mrf.mxu0
      %v5386 = vadd.f32 %v5108, %v5385
      %v5387 = vpop.f32.mrf.mxu0
      %v5388 = vadd.f32 %v5110, %v5387
      %5389 = vmatmul.bf16.gmra.mxu0 %v5271
      %v5390 = vpop.f32.mrf.mxu0
      %v5391 = vadd.f32 %v5113, %v5390
      %v5392 = vpop.f32.mrf.mxu0
      %v5393 = vadd.f32 %v5115, %v5392
      %5394 = vmatmul.bf16.gmra.mxu0 %v5274
      %v5395 = vpop.f32.mrf.mxu0
      %v5396 = vadd.f32 %v5118, %v5395
      %v5397 = vpop.f32.mrf.mxu0
      %v5398 = vadd.f32 %v5120, %v5397
      %5399 = vmatmul.bf16.gmra.mxu0 %v5277
      %v5400 = vpop.f32.mrf.mxu0
      %v5401 = vadd.f32 %v5123, %v5400
      %v5402 = vpop.f32.mrf.mxu0
      %v5403 = vadd.f32 %v5125, %v5402
      %5404 = vmatmul.bf16.gmra.mxu0 %v5280
      %v5405 = vpop.f32.mrf.mxu0
      %v5406 = vadd.f32 %v5128, %v5405
      %v5407 = vpop.f32.mrf.mxu0
      %v5408 = vadd.f32 %v5130, %v5407
      %5409 = vmatmul.bf16.gmra.mxu0 %v5283
      %v5410 = vpop.f32.mrf.mxu0
      %v5411 = vadd.f32 %v5133, %v5410
      %v5412 = vpop.f32.mrf.mxu0
      %v5413 = vadd.f32 %v5135, %v5412
      %5414 = vmatmul.bf16.gmra.mxu0 %v5286
      %v5415 = vpop.f32.mrf.mxu0
      %v5416 = vadd.f32 %v5138, %v5415
      %v5417 = vpop.f32.mrf.mxu0
      %v5418 = vadd.f32 %v5140, %v5417
      %5419 = vmatmul.bf16.gmra.mxu0 %v5289
      %v5420 = vpop.f32.mrf.mxu0
      %v5421 = vadd.f32 %v5143, %v5420
      %v5422 = vpop.f32.mrf.mxu0
      %v5423 = vadd.f32 %v5145, %v5422
      %5424 = vmatmul.bf16.gmra.mxu0 %v5292
      %v5425 = vpop.f32.mrf.mxu0
      %v5426 = vadd.f32 %v5148, %v5425
      %v5427 = vpop.f32.mrf.mxu0
      %v5428 = vadd.f32 %v5150, %v5427
      %5429 = vmatmul.bf16.gmra.mxu0 %v5295
      %v5430 = vpop.f32.mrf.mxu0
      %v5431 = vadd.f32 %v5153, %v5430
      %v5432 = vpop.f32.mrf.mxu0
      %v5433 = vadd.f32 %v5155, %v5432
      %5434 = vmatmul.bf16.gmra.mxu0 %v5298
      %v5435 = vpop.f32.mrf.mxu0
      %v5436 = vadd.f32 %v5158, %v5435
      %v5437 = vpop.f32.mrf.mxu0
      %v5438 = vadd.f32 %v5160, %v5437
      %5439 = vmatmul.bf16.gmra.mxu0 %v5301
      %v5440 = vpop.f32.mrf.mxu0
      %v5441 = vadd.f32 %v5163, %v5440
      %v5442 = vpop.f32.mrf.mxu0
      %v5443 = vadd.f32 %v5165, %v5442
      %5444 = vmatmul.bf16.gmra.mxu0 %v5304
      %v5445 = vpop.f32.mrf.mxu0
      %v5446 = vadd.f32 %v5168, %v5445
      %v5447 = vpop.f32.mrf.mxu0
      %v5448 = vadd.f32 %v5170, %v5447
      %5449 = vmatmul.bf16.gmra.mxu0 %v5307
      %v5450 = vpop.f32.mrf.mxu0
      %v5451 = vadd.f32 %v5173, %v5450
      %v5452 = vpop.f32.mrf.mxu0
      %v5453 = vadd.f32 %v5175, %v5452
      %5454 = vmatmul.bf16.gmra.mxu0 %v5310
      %v5455 = vpop.f32.mrf.mxu0
      %v5456 = vadd.f32 %v5178, %v5455
      %v5457 = vpop.f32.mrf.mxu0
      %v5458 = vadd.f32 %v5180, %v5457
      %5459 = vmatmul.bf16.gmra.mxu0 %v5313
      %v5460 = vpop.f32.mrf.mxu0
      %v5461 = vadd.f32 %v5183, %v5460
      %v5462 = vpop.f32.mrf.mxu0
      %v5463 = vadd.f32 %v5185, %v5462
      %5464 = vmatmul.bf16.gmra.mxu0 %v5316
      %v5465 = vpop.f32.mrf.mxu0
      %v5466 = vadd.f32 %v5188, %v5465
      %v5467 = vpop.f32.mrf.mxu0
      %v5468 = vadd.f32 %v5190, %v5467
      %5469 = vmatmul.bf16.gmra.mxu0 %v5319
      %v5470 = vpop.f32.mrf.mxu0
      %v5471 = vadd.f32 %v5193, %v5470
      %v5472 = vpop.f32.mrf.mxu0
      %v5473 = vadd.f32 %v5195, %v5472
      %5474 = vmatmul.bf16.gmra.mxu0 %v5322
      %v5475 = vpop.f32.mrf.mxu0
      %v5476 = vadd.f32 %v5198, %v5475
      %v5477 = vpop.f32.mrf.mxu0
      %v5478 = vadd.f32 %v5200, %v5477
      %5479 = vmatmul.bf16.gmra.mxu0 %v5325
      %v5480 = vpop.f32.mrf.mxu0
      %v5481 = vadd.f32 %v5203, %v5480
      %v5482 = vpop.f32.mrf.mxu0
      %v5483 = vadd.f32 %v5205, %v5482
      %5484 = vmatmul.bf16.gmra.mxu0 %v5328
      %v5485 = vpop.f32.mrf.mxu0
      %v5486 = vadd.f32 %v5208, %v5485
      %v5487 = vpop.f32.mrf.mxu0
      %v5488 = vadd.f32 %v5210, %v5487
      %5489 = vmatmul.bf16.gmra.mxu0 %v5331
      %v5490 = vpop.f32.mrf.mxu0
      %v5491 = vadd.f32 %v5213, %v5490
      %v5492 = vpop.f32.mrf.mxu0
      %v5493 = vadd.f32 %v5215, %v5492
      %5494 = vmatmul.bf16.gmra.mxu0 %v5334
      %v5495 = vpop.f32.mrf.mxu0
      %v5496 = vadd.f32 %v5218, %v5495
      %v5497 = vpop.f32.mrf.mxu0
      %v5498 = vadd.f32 %v5220, %v5497
      %5499 = vmatmul.bf16.gmra.mxu0 %v5337
      %v5500 = vpop.f32.mrf.mxu0
      %v5501 = vadd.f32 %v5223, %v5500
      %v5502 = vpop.f32.mrf.mxu0
      %v5503 = vadd.f32 %v5225, %v5502
      %5504 = vmatmul.bf16.gmra.mxu0 %v5340
      %v5505 = vpop.f32.mrf.mxu0
      %v5506 = vadd.f32 %v5228, %v5505
      %v5507 = vpop.f32.mrf.mxu0
      %v5508 = vadd.f32 %v5230, %v5507
      %5509 = vmatmul.bf16.gmra.mxu0 %v5343
      %v5510 = vpop.f32.mrf.mxu0
      %v5511 = vadd.f32 %v5233, %v5510
      %v5512 = vpop.f32.mrf.mxu0
      %v5513 = vadd.f32 %v5235, %v5512
      %5514 = vmatmul.bf16.gmra.mxu0 %v5346
      %v5515 = vpop.f32.mrf.mxu0
      %v5516 = vadd.f32 %v5238, %v5515
      %v5517 = vpop.f32.mrf.mxu0
      %v5518 = vadd.f32 %v5240, %v5517
      %5519 = vmatmul.bf16.gmra.mxu0 %v5349
      %v5520 = vpop.f32.mrf.mxu0
      %v5521 = vadd.f32 %v5243, %v5520
      %v5522 = vpop.f32.mrf.mxu0
      %v5523 = vadd.f32 %v5245, %v5522
      %5524 = vmatmul.bf16.gmra.mxu0 %v5352
      %v5525 = vpop.f32.mrf.mxu0
      %v5526 = vadd.f32 %v5248, %v5525
      %v5527 = vpop.f32.mrf.mxu0
      %v5528 = vadd.f32 %v5250, %v5527
      %5529 = vdwg.mxu0
      %v5530 = vld [vmem:[%s4] sm:$0x1]
      %v5532 = vperm.slane %v5530, 0
      %v5534 = vmul.f32 %v5371, %v5532
      %v5535 = vmul.f32 %v5373, %v5532
      %v5536 = vmul.f32 %v5376, %v5532
      %v5537 = vmul.f32 %v5378, %v5532
      %v5538 = vmul.f32 %v5381, %v5532
      %v5539 = vmul.f32 %v5383, %v5532
      %v5540 = vmul.f32 %v5386, %v5532
      %v5541 = vmul.f32 %v5388, %v5532
      %v5542 = vmul.f32 %v5391, %v5532
      %v5543 = vmul.f32 %v5393, %v5532
      %v5544 = vmul.f32 %v5396, %v5532
      %v5545 = vmul.f32 %v5398, %v5532
      %v5546 = vmul.f32 %v5401, %v5532
      %v5547 = vmul.f32 %v5403, %v5532
      %v5548 = vmul.f32 %v5406, %v5532
      %v5549 = vmul.f32 %v5408, %v5532
      %v5550 = vmul.f32 %v5411, %v5532
      %v5551 = vmul.f32 %v5413, %v5532
      %v5552 = vmul.f32 %v5416, %v5532
      %v5553 = vmul.f32 %v5418, %v5532
      %v5554 = vmul.f32 %v5421, %v5532
      %v5555 = vmul.f32 %v5423, %v5532
      %v5556 = vmul.f32 %v5426, %v5532
      %v5557 = vmul.f32 %v5428, %v5532
      %v5558 = vmul.f32 %v5431, %v5532
      %v5559 = vmul.f32 %v5433, %v5532
      %v5560 = vmul.f32 %v5436, %v5532
      %v5561 = vmul.f32 %v5438, %v5532
      %v5562 = vmul.f32 %v5441, %v5532
      %v5563 = vmul.f32 %v5443, %v5532
      %v5564 = vmul.f32 %v5446, %v5532
      %v5565 = vmul.f32 %v5448, %v5532
      %v5566 = vmul.f32 %v5451, %v5532
      %v5567 = vmul.f32 %v5453, %v5532
      %v5568 = vmul.f32 %v5456, %v5532
      %v5569 = vmul.f32 %v5458, %v5532
      %v5570 = vmul.f32 %v5461, %v5532
      %v5571 = vmul.f32 %v5463, %v5532
      %v5572 = vmul.f32 %v5466, %v5532
      %v5573 = vmul.f32 %v5468, %v5532
      %v5574 = vmul.f32 %v5471, %v5532
      %v5575 = vmul.f32 %v5473, %v5532
      %v5576 = vmul.f32 %v5476, %v5532
      %v5577 = vmul.f32 %v5478, %v5532
      %v5578 = vmul.f32 %v5481, %v5532
      %v5579 = vmul.f32 %v5483, %v5532
      %v5580 = vmul.f32 %v5486, %v5532
      %v5581 = vmul.f32 %v5488, %v5532
      %v5582 = vmul.f32 %v5491, %v5532
      %v5583 = vmul.f32 %v5493, %v5532
      %v5584 = vmul.f32 %v5496, %v5532
      %v5585 = vmul.f32 %v5498, %v5532
      %v5586 = vmul.f32 %v5501, %v5532
      %v5587 = vmul.f32 %v5503, %v5532
      %v5588 = vmul.f32 %v5506, %v5532
      %v5589 = vmul.f32 %v5508, %v5532
      %v5590 = vmul.f32 %v5511, %v5532
      %v5591 = vmul.f32 %v5513, %v5532
      %v5592 = vmul.f32 %v5516, %v5532
      %v5593 = vmul.f32 %v5518, %v5532
      %v5594 = vmul.f32 %v5521, %v5532
      %v5595 = vmul.f32 %v5523, %v5532
      %v5596 = vmul.f32 %v5526, %v5532
      %v5597 = vmul.f32 %v5528, %v5532
      %v5598 = vld [vmem:[%s5] sm:$0x1]
      %v5600 = vperm.slane %v5598, 0
      %v5602 = vadd.f32 %v5534, %v5600
      %v5603 = vadd.f32 %v5535, %v5600
      %v5604 = vadd.f32 %v5536, %v5600
      %v5605 = vadd.f32 %v5537, %v5600
      %v5606 = vadd.f32 %v5538, %v5600
      %v5607 = vadd.f32 %v5539, %v5600
      %v5608 = vadd.f32 %v5540, %v5600
      %v5609 = vadd.f32 %v5541, %v5600
      %v5610 = vadd.f32 %v5542, %v5600
      %v5611 = vadd.f32 %v5543, %v5600
      %v5612 = vadd.f32 %v5544, %v5600
      %v5613 = vadd.f32 %v5545, %v5600
      %v5614 = vadd.f32 %v5546, %v5600
      %v5615 = vadd.f32 %v5547, %v5600
      %v5616 = vadd.f32 %v5548, %v5600
      %v5617 = vadd.f32 %v5549, %v5600
      %v5618 = vadd.f32 %v5550, %v5600
      %v5619 = vadd.f32 %v5551, %v5600
      %v5620 = vadd.f32 %v5552, %v5600
      %v5621 = vadd.f32 %v5553, %v5600
      %v5622 = vadd.f32 %v5554, %v5600
      %v5623 = vadd.f32 %v5555, %v5600
      %v5624 = vadd.f32 %v5556, %v5600
      %v5625 = vadd.f32 %v5557, %v5600
      %v5626 = vadd.f32 %v5558, %v5600
      %v5627 = vadd.f32 %v5559, %v5600
      %v5628 = vadd.f32 %v5560, %v5600
      %v5629 = vadd.f32 %v5561, %v5600
      %v5630 = vadd.f32 %v5562, %v5600
      %v5631 = vadd.f32 %v5563, %v5600
      %v5632 = vadd.f32 %v5564, %v5600
      %v5633 = vadd.f32 %v5565, %v5600
      %v5634 = vadd.f32 %v5566, %v5600
      %v5635 = vadd.f32 %v5567, %v5600
      %v5636 = vadd.f32 %v5568, %v5600
      %v5637 = vadd.f32 %v5569, %v5600
      %v5638 = vadd.f32 %v5570, %v5600
      %v5639 = vadd.f32 %v5571, %v5600
      %v5640 = vadd.f32 %v5572, %v5600
      %v5641 = vadd.f32 %v5573, %v5600
      %v5642 = vadd.f32 %v5574, %v5600
      %v5643 = vadd.f32 %v5575, %v5600
      %v5644 = vadd.f32 %v5576, %v5600
      %v5645 = vadd.f32 %v5577, %v5600
      %v5646 = vadd.f32 %v5578, %v5600
      %v5647 = vadd.f32 %v5579, %v5600
      %v5648 = vadd.f32 %v5580, %v5600
      %v5649 = vadd.f32 %v5581, %v5600
      %v5650 = vadd.f32 %v5582, %v5600
      %v5651 = vadd.f32 %v5583, %v5600
      %v5652 = vadd.f32 %v5584, %v5600
      %v5653 = vadd.f32 %v5585, %v5600
      %v5654 = vadd.f32 %v5586, %v5600
      %v5655 = vadd.f32 %v5587, %v5600
      %v5656 = vadd.f32 %v5588, %v5600
      %v5657 = vadd.f32 %v5589, %v5600
      %v5658 = vadd.f32 %v5590, %v5600
      %v5659 = vadd.f32 %v5591, %v5600
      %v5660 = vadd.f32 %v5592, %v5600
      %v5661 = vadd.f32 %v5593, %v5600
      %v5662 = vadd.f32 %v5594, %v5600
      %v5663 = vadd.f32 %v5595, %v5600
      %v5664 = vadd.f32 %v5596, %v5600
      %v5665 = vadd.f32 %v5597, %v5600
      %v5666 = vmax.f32 %v5602, 0.0
      %v5667 = vmax.f32 %v5603, 0.0
      %v5668 = vmax.f32 %v5604, 0.0
      %v5669 = vmax.f32 %v5605, 0.0
      %v5670 = vmax.f32 %v5606, 0.0
      %v5671 = vmax.f32 %v5607, 0.0
      %v5672 = vmax.f32 %v5608, 0.0
      %v5673 = vmax.f32 %v5609, 0.0
      %v5674 = vmax.f32 %v5610, 0.0
      %v5675 = vmax.f32 %v5611, 0.0
      %v5676 = vmax.f32 %v5612, 0.0
      %v5677 = vmax.f32 %v5613, 0.0
      %v5678 = vmax.f32 %v5614, 0.0
      %v5679 = vmax.f32 %v5615, 0.0
      %v5680 = vmax.f32 %v5616, 0.0
      %v5681 = vmax.f32 %v5617, 0.0
      %v5682 = vmax.f32 %v5618, 0.0
      %v5683 = vmax.f32 %v5619, 0.0
      %v5684 = vmax.f32 %v5620, 0.0
      %v5685 = vmax.f32 %v5621, 0.0
      %v5686 = vmax.f32 %v5622, 0.0
      %v5687 = vmax.f32 %v5623, 0.0
      %v5688 = vmax.f32 %v5624, 0.0
      %v5689 = vmax.f32 %v5625, 0.0
      %v5690 = vmax.f32 %v5626, 0.0
      %v5691 = vmax.f32 %v5627, 0.0
      %v5692 = vmax.f32 %v5628, 0.0
      %v5693 = vmax.f32 %v5629, 0.0
      %v5694 = vmax.f32 %v5630, 0.0
      %v5695 = vmax.f32 %v5631, 0.0
      %v5696 = vmax.f32 %v5632, 0.0
      %v5697 = vmax.f32 %v5633, 0.0
      %v5698 = vmax.f32 %v5634, 0.0
      %v5699 = vmax.f32 %v5635, 0.0
      %v5700 = vmax.f32 %v5636, 0.0
      %v5701 = vmax.f32 %v5637, 0.0
      %v5702 = vmax.f32 %v5638, 0.0
      %v5703 = vmax.f32 %v5639, 0.0
      %v5704 = vmax.f32 %v5640, 0.0
      %v5705 = vmax.f32 %v5641, 0.0
      %v5706 = vmax.f32 %v5642, 0.0
      %v5707 = vmax.f32 %v5643, 0.0
      %v5708 = vmax.f32 %v5644, 0.0
      %v5709 = vmax.f32 %v5645, 0.0
      %v5710 = vmax.f32 %v5646, 0.0
      %v5711 = vmax.f32 %v5647, 0.0
      %v5712 = vmax.f32 %v5648, 0.0
      %v5713 = vmax.f32 %v5649, 0.0
      %v5714 = vmax.f32 %v5650, 0.0
      %v5715 = vmax.f32 %v5651, 0.0
      %v5716 = vmax.f32 %v5652, 0.0
      %v5717 = vmax.f32 %v5653, 0.0
      %v5718 = vmax.f32 %v5654, 0.0
      %v5719 = vmax.f32 %v5655, 0.0
      %v5720 = vmax.f32 %v5656, 0.0
      %v5721 = vmax.f32 %v5657, 0.0
      %v5722 = vmax.f32 %v5658, 0.0
      %v5723 = vmax.f32 %v5659, 0.0
      %v5724 = vmax.f32 %v5660, 0.0
      %v5725 = vmax.f32 %v5661, 0.0
      %v5726 = vmax.f32 %v5662, 0.0
      %v5727 = vmax.f32 %v5663, 0.0
      %v5728 = vmax.f32 %v5664, 0.0
      %v5729 = vmax.f32 %v5665, 0.0
      %v5730 = vadd.f32 %v5666, %v4379
      %v5731 = vadd.f32 %v5667, %v4380
      %v5732 = vadd.f32 %v5668, %v4381
      %v5733 = vadd.f32 %v5669, %v4382
      %v5734 = vadd.f32 %v5670, %v4383
      %v5735 = vadd.f32 %v5671, %v4384
      %v5736 = vadd.f32 %v5672, %v4385
      %v5737 = vadd.f32 %v5673, %v4386
      %v5738 = vadd.f32 %v5674, %v4387
      %v5739 = vadd.f32 %v5675, %v4388
      %v5740 = vadd.f32 %v5676, %v4389
      %v5741 = vadd.f32 %v5677, %v4390
      %v5742 = vadd.f32 %v5678, %v4391
      %v5743 = vadd.f32 %v5679, %v4392
      %v5744 = vadd.f32 %v5680, %v4393
      %v5745 = vadd.f32 %v5681, %v4394
      %v5746 = vadd.f32 %v5682, %v4395
      %v5747 = vadd.f32 %v5683, %v4396
      %v5748 = vadd.f32 %v5684, %v4397
      %v5749 = vadd.f32 %v5685, %v4398
      %v5750 = vadd.f32 %v5686, %v4399
      %v5751 = vadd.f32 %v5687, %v4400
      %v5752 = vadd.f32 %v5688, %v4401
      %v5753 = vadd.f32 %v5689, %v4402
      %v5754 = vadd.f32 %v5690, %v4403
      %v5755 = vadd.f32 %v5691, %v4404
      %v5756 = vadd.f32 %v5692, %v4405
      %v5757 = vadd.f32 %v5693, %v4406
      %v5758 = vadd.f32 %v5694, %v4407
      %v5759 = vadd.f32 %v5695, %v4408
      %v5760 = vadd.f32 %v5696, %v4409
      %v5761 = vadd.f32 %v5697, %v4410
      %v5762 = vadd.f32 %v5698, %v4411
      %v5763 = vadd.f32 %v5699, %v4412
      %v5764 = vadd.f32 %v5700, %v4413
      %v5765 = vadd.f32 %v5701, %v4414
      %v5766 = vadd.f32 %v5702, %v4415
      %v5767 = vadd.f32 %v5703, %v4416
      %v5768 = vadd.f32 %v5704, %v4417
      %v5769 = vadd.f32 %v5705, %v4418
      %v5770 = vadd.f32 %v5706, %v4419
      %v5771 = vadd.f32 %v5707, %v4420
      %v5772 = vadd.f32 %v5708, %v4421
      %v5773 = vadd.f32 %v5709, %v4422
      %v5774 = vadd.f32 %v5710, %v4423
      %v5775 = vadd.f32 %v5711, %v4424
      %v5776 = vadd.f32 %v5712, %v4425
      %v5777 = vadd.f32 %v5713, %v4426
      %v5778 = vadd.f32 %v5714, %v4427
      %v5779 = vadd.f32 %v5715, %v4428
      %v5780 = vadd.f32 %v5716, %v4429
      %v5781 = vadd.f32 %v5717, %v4430
      %v5782 = vadd.f32 %v5718, %v4431
      %v5783 = vadd.f32 %v5719, %v4432
      %v5784 = vadd.f32 %v5720, %v4433
      %v5785 = vadd.f32 %v5721, %v4434
      %v5786 = vadd.f32 %v5722, %v4435
      %v5787 = vadd.f32 %v5723, %v4436
      %v5788 = vadd.f32 %v5724, %v4437
      %v5789 = vadd.f32 %v5725, %v4438
      %v5790 = vadd.f32 %v5726, %v4439
      %v5791 = vadd.f32 %v5727, %v4440
      %v5792 = vadd.f32 %v5728, %v4441
      %v5793 = vadd.f32 %v5729, %v4442
      %v5794 = vmax.f32 %v5730, 0.0
      %v5795 = vmax.f32 %v5731, 0.0
      %v5796 = vmax.f32 %v5732, 0.0
      %v5797 = vmax.f32 %v5733, 0.0
      %v5798 = vmax.f32 %v5734, 0.0
      %v5799 = vmax.f32 %v5735, 0.0
      %v5800 = vmax.f32 %v5736, 0.0
      %v5801 = vmax.f32 %v5737, 0.0
      %v5802 = vmax.f32 %v5738, 0.0
      %v5803 = vmax.f32 %v5739, 0.0
      %v5804 = vmax.f32 %v5740, 0.0
      %v5805 = vmax.f32 %v5741, 0.0
      %v5806 = vmax.f32 %v5742, 0.0
      %v5807 = vmax.f32 %v5743, 0.0
      %v5808 = vmax.f32 %v5744, 0.0
      %v5809 = vmax.f32 %v5745, 0.0
      %v5810 = vmax.f32 %v5746, 0.0
      %v5811 = vmax.f32 %v5747, 0.0
      %v5812 = vmax.f32 %v5748, 0.0
      %v5813 = vmax.f32 %v5749, 0.0
      %v5814 = vmax.f32 %v5750, 0.0
      %v5815 = vmax.f32 %v5751, 0.0
      %v5816 = vmax.f32 %v5752, 0.0
      %v5817 = vmax.f32 %v5753, 0.0
      %v5818 = vmax.f32 %v5754, 0.0
      %v5819 = vmax.f32 %v5755, 0.0
      %v5820 = vmax.f32 %v5756, 0.0
      %v5821 = vmax.f32 %v5757, 0.0
      %v5822 = vmax.f32 %v5758, 0.0
      %v5823 = vmax.f32 %v5759, 0.0
      %v5824 = vmax.f32 %v5760, 0.0
      %v5825 = vmax.f32 %v5761, 0.0
      %v5826 = vmax.f32 %v5762, 0.0
      %v5827 = vmax.f32 %v5763, 0.0
      %v5828 = vmax.f32 %v5764, 0.0
      %v5829 = vmax.f32 %v5765, 0.0
      %v5830 = vmax.f32 %v5766, 0.0
      %v5831 = vmax.f32 %v5767, 0.0
      %v5832 = vmax.f32 %v5768, 0.0
      %v5833 = vmax.f32 %v5769, 0.0
      %v5834 = vmax.f32 %v5770, 0.0
      %v5835 = vmax.f32 %v5771, 0.0
      %v5836 = vmax.f32 %v5772, 0.0
      %v5837 = vmax.f32 %v5773, 0.0
      %v5838 = vmax.f32 %v5774, 0.0
      %v5839 = vmax.f32 %v5775, 0.0
      %v5840 = vmax.f32 %v5776, 0.0
      %v5841 = vmax.f32 %v5777, 0.0
      %v5842 = vmax.f32 %v5778, 0.0
      %v5843 = vmax.f32 %v5779, 0.0
      %v5844 = vmax.f32 %v5780, 0.0
      %v5845 = vmax.f32 %v5781, 0.0
      %v5846 = vmax.f32 %v5782, 0.0
      %v5847 = vmax.f32 %v5783, 0.0
      %v5848 = vmax.f32 %v5784, 0.0
      %v5849 = vmax.f32 %v5785, 0.0
      %v5850 = vmax.f32 %v5786, 0.0
      %v5851 = vmax.f32 %v5787, 0.0
      %v5852 = vmax.f32 %v5788, 0.0
      %v5853 = vmax.f32 %v5789, 0.0
      %v5854 = vmax.f32 %v5790, 0.0
      %v5855 = vmax.f32 %v5791, 0.0
      %v5856 = vmax.f32 %v5792, 0.0
      %v5857 = vmax.f32 %v5793, 0.0
      %v5858 = vpack.c.bf16 %v5794, %v5794
      %v5859 = vpack.c.bf16 %v5795, %v5795
      %v5860 = vpack.c.bf16 %v5796, %v5796
      %v5861 = vpack.c.bf16 %v5797, %v5797
      %v5862 = vpack.c.bf16 %v5798, %v5798
      %v5863 = vpack.c.bf16 %v5799, %v5799
      %v5864 = vpack.c.bf16 %v5800, %v5800
      %v5865 = vpack.c.bf16 %v5801, %v5801
      %v5866 = vpack.c.bf16 %v5802, %v5802
      %v5867 = vpack.c.bf16 %v5803, %v5803
      %v5868 = vpack.c.bf16 %v5804, %v5804
      %v5869 = vpack.c.bf16 %v5805, %v5805
      %v5870 = vpack.c.bf16 %v5806, %v5806
      %v5871 = vpack.c.bf16 %v5807, %v5807
      %v5872 = vpack.c.bf16 %v5808, %v5808
      %v5873 = vpack.c.bf16 %v5809, %v5809
      %v5874 = vpack.c.bf16 %v5810, %v5810
      %v5875 = vpack.c.bf16 %v5811, %v5811
      %v5876 = vpack.c.bf16 %v5812, %v5812
      %v5877 = vpack.c.bf16 %v5813, %v5813
      %v5878 = vpack.c.bf16 %v5814, %v5814
      %v5879 = vpack.c.bf16 %v5815, %v5815
      %v5880 = vpack.c.bf16 %v5816, %v5816
      %v5881 = vpack.c.bf16 %v5817, %v5817
      %v5882 = vpack.c.bf16 %v5818, %v5818
      %v5883 = vpack.c.bf16 %v5819, %v5819
      %v5884 = vpack.c.bf16 %v5820, %v5820
      %v5885 = vpack.c.bf16 %v5821, %v5821
      %v5886 = vpack.c.bf16 %v5822, %v5822
      %v5887 = vpack.c.bf16 %v5823, %v5823
      %v5888 = vpack.c.bf16 %v5824, %v5824
      %v5889 = vpack.c.bf16 %v5825, %v5825
      %v5890 = vpack.c.bf16 %v5826, %v5826
      %v5891 = vpack.c.bf16 %v5827, %v5827
      %v5892 = vpack.c.bf16 %v5828, %v5828
      %v5893 = vpack.c.bf16 %v5829, %v5829
      %v5894 = vpack.c.bf16 %v5830, %v5830
      %v5895 = vpack.c.bf16 %v5831, %v5831
      %v5896 = vpack.c.bf16 %v5832, %v5832
      %v5897 = vpack.c.bf16 %v5833, %v5833
      %v5898 = vpack.c.bf16 %v5834, %v5834
      %v5899 = vpack.c.bf16 %v5835, %v5835
      %v5900 = vpack.c.bf16 %v5836, %v5836
      %v5901 = vpack.c.bf16 %v5837, %v5837
      %v5902 = vpack.c.bf16 %v5838, %v5838
      %v5903 = vpack.c.bf16 %v5839, %v5839
      %v5904 = vpack.c.bf16 %v5840, %v5840
      %v5905 = vpack.c.bf16 %v5841, %v5841
      %v5906 = vpack.c.bf16 %v5842, %v5842
      %v5907 = vpack.c.bf16 %v5843, %v5843
      %v5908 = vpack.c.bf16 %v5844, %v5844
      %v5909 = vpack.c.bf16 %v5845, %v5845
      %v5910 = vpack.c.bf16 %v5846, %v5846
      %v5911 = vpack.c.bf16 %v5847, %v5847
      %v5912 = vpack.c.bf16 %v5848, %v5848
      %v5913 = vpack.c.bf16 %v5849, %v5849
      %v5914 = vpack.c.bf16 %v5850, %v5850
      %v5915 = vpack.c.bf16 %v5851, %v5851
      %v5916 = vpack.c.bf16 %v5852, %v5852
      %v5917 = vpack.c.bf16 %v5853, %v5853
      %v5918 = vpack.c.bf16 %v5854, %v5854
      %v5919 = vpack.c.bf16 %v5855, %v5855
      %v5920 = vpack.c.bf16 %v5856, %v5856
      %v5921 = vpack.c.bf16 %v5857, %v5857
      %5922 = vst [vmem:[%s258] sm:$0xf] %v5858
      %5923 = vst [vmem:[%s258 + $0x4] sm:$0xf] %v5859
      %5924 = vst [vmem:[%s258 + $0x8] sm:$0xf] %v5860
      %5925 = vst [vmem:[%s258 + $0xc] sm:$0xf] %v5861
      %5926 = vst [vmem:[%s258 + $0x10] sm:$0xf] %v5862
      %5927 = vst [vmem:[%s258 + $0x14] sm:$0xf] %v5863
      %5928 = vst [vmem:[%s258 + $0x18] sm:$0xf] %v5864
      %5929 = vst [vmem:[%s258 + $0x1c] sm:$0xf] %v5865
      %5930 = vst [vmem:[%s258 + $0x20] sm:$0xf] %v5866
      %5931 = vst [vmem:[%s258 + $0x24] sm:$0xf] %v5867
      %5932 = vst [vmem:[%s258 + $0x28] sm:$0xf] %v5868
      %5933 = vst [vmem:[%s258 + $0x2c] sm:$0xf] %v5869
      %5934 = vst [vmem:[%s258 + $0x30] sm:$0xf] %v5870
      %5935 = vst [vmem:[%s258 + $0x34] sm:$0xf] %v5871
      %5936 = vst [vmem:[%s258 + $0x38] sm:$0xf] %v5872
      %5937 = vst [vmem:[%s258 + $0x3c] sm:$0xf] %v5873
      %5938 = vst [vmem:[%s258 + $0x40] sm:$0xf] %v5874
      %5939 = vst [vmem:[%s258 + $0x44] sm:$0xf] %v5875
      %5940 = vst [vmem:[%s258 + $0x48] sm:$0xf] %v5876
      %5941 = vst [vmem:[%s258 + $0x4c] sm:$0xf] %v5877
      %5942 = vst [vmem:[%s258 + $0x50] sm:$0xf] %v5878
      %5943 = vst [vmem:[%s258 + $0x54] sm:$0xf] %v5879
      %5944 = vst [vmem:[%s258 + $0x58] sm:$0xf] %v5880
      %5945 = vst [vmem:[%s258 + $0x5c] sm:$0xf] %v5881
      %5946 = vst [vmem:[%s258 + $0x60] sm:$0xf] %v5882
      %5947 = vst [vmem:[%s258 + $0x64] sm:$0xf] %v5883
      %5948 = vst [vmem:[%s258 + $0x68] sm:$0xf] %v5884
      %5949 = vst [vmem:[%s258 + $0x6c] sm:$0xf] %v5885
      %5950 = vst [vmem:[%s258 + $0x70] sm:$0xf] %v5886
      %5951 = vst [vmem:[%s258 + $0x74] sm:$0xf] %v5887
      %5952 = vst [vmem:[%s258 + $0x78] sm:$0xf] %v5888
      %5953 = vst [vmem:[%s258 + $0x7c] sm:$0xf] %v5889
      %5954 = vst [vmem:[%s258 + $0x80] sm:$0xf] %v5890
      %5955 = vst [vmem:[%s258 + $0x84] sm:$0xf] %v5891
      %5956 = vst [vmem:[%s258 + $0x88] sm:$0xf] %v5892
      %5957 = vst [vmem:[%s258 + $0x8c] sm:$0xf] %v5893
      %5958 = vst [vmem:[%s258 + $0x90] sm:$0xf] %v5894
      %5959 = vst [vmem:[%s258 + $0x94] sm:$0xf] %v5895
      %5960 = vst [vmem:[%s258 + $0x98] sm:$0xf] %v5896
      %5961 = vst [vmem:[%s258 + $0x9c] sm:$0xf] %v5897
      %5962 = vst [vmem:[%s258 + $0xa0] sm:$0xf] %v5898
      %5963 = vst [vmem:[%s258 + $0xa4] sm:$0xf] %v5899
      %5964 = vst [vmem:[%s258 + $0xa8] sm:$0xf] %v5900
      %5965 = vst [vmem:[%s258 + $0xac] sm:$0xf] %v5901
      %5966 = vst [vmem:[%s258 + $0xb0] sm:$0xf] %v5902
      %5967 = vst [vmem:[%s258 + $0xb4] sm:$0xf] %v5903
      %5968 = vst [vmem:[%s258 + $0xb8] sm:$0xf] %v5904
      %5969 = vst [vmem:[%s258 + $0xbc] sm:$0xf] %v5905
      %5970 = vst [vmem:[%s258 + $0xc0] sm:$0xf] %v5906
      %5971 = vst [vmem:[%s258 + $0xc4] sm:$0xf] %v5907
      %5972 = vst [vmem:[%s258 + $0xc8] sm:$0xf] %v5908
      %5973 = vst [vmem:[%s258 + $0xcc] sm:$0xf] %v5909
      %5974 = vst [vmem:[%s258 + $0xd0] sm:$0xf] %v5910
      %5975 = vst [vmem:[%s258 + $0xd4] sm:$0xf] %v5911
      %5976 = vst [vmem:[%s258 + $0xd8] sm:$0xf] %v5912
      %5977 = vst [vmem:[%s258 + $0xdc] sm:$0xf] %v5913
      %5978 = vst [vmem:[%s258 + $0xe0] sm:$0xf] %v5914
      %5979 = vst [vmem:[%s258 + $0xe4] sm:$0xf] %v5915
      %5980 = vst [vmem:[%s258 + $0xe8] sm:$0xf] %v5916
      %5981 = vst [vmem:[%s258 + $0xec] sm:$0xf] %v5917
      %5982 = vst [vmem:[%s258 + $0xf0] sm:$0xf] %v5918
      %5983 = vst [vmem:[%s258 + $0xf4] sm:$0xf] %v5919
      %5984 = vst [vmem:[%s258 + $0xf8] sm:$0xf] %v5920
      %5985 = vst [vmem:[%s258 + $0xfc] sm:$0xf] %v5921
      %s5986 = smul.u32 8, %s17
      %p5987 = scmp.lt.s32.totalorder %s5986, 15
      %s5988 = scalar_select %p5987, %s5986, 15
      %s5989 = smul.addr %s5988, 8
      %s5990 = smul.addr %s5989, 4
      %s5991 = scalar_lea.vmem %s6, %s5990
      // Predicated region
      $region45: #{inception_module_forward.3} parent=43 // pred_check
        %p5992 = pneg %p166
      $region46: #{inception_module_forward.3} parent=43 // pred_check_branch
        %5994 = sbr.rel (%p5992) target = $region48
      $region47: #{inception_module_forward.3} parent=43 // pred_region
        %s5995 = smul.u32 8, %s17
      $region48: #{inception_module_forward.3} parent=43 // pred_fallthru
        _
    $region44: #{inception_module_forward.3} parent=5 // pred_fallthru
      _
    %p5996 = scmp.le.s32.totalorder 2, %s12
    // Predicated region
    $region49: #{inception_module_forward.3} parent=5 // pred_check
      %p5997 = pneg %p5996
    $region50: #{inception_module_forward.3} parent=5 // pred_check_branch
      %5999 = sbr.rel (%p5997) target = $region52
    $region51: #{inception_module_forward.3} parent=5 // pred_region
      %s6000 = ssub.s32 %s12, 2
      // Predicated region
      $region53: #{inception_module_forward.3} parent=51 // pred_check
        %p6001 = pneg %p172
      $region54: #{inception_module_forward.3} parent=51 // pred_check_branch
        %6003 = sbr.rel (%p6001) target = $region56
      $region55: #{inception_module_forward.3} parent=51 // pred_region
        %s6004 = smul.u32 8, %s18
        %p6005 = scmp.lt.s32.totalorder %s6004, 15
        %s6006 = scalar_select %p6005, %s6004, 15
        %s6007 = smul.addr %s6006, 8
        %s6008 = smul.addr %s6007, 4
        %s6009 = scalar_lea.vmem %s6, %s6008
      $region56: #{inception_module_forward.3} parent=51 // pred_fallthru
        _
    $region52: #{inception_module_forward.3} parent=5 // pred_fallthru
      _
  $region6: #{inception_module_forward.3} parent=0 // loop_footer
    %s16 = sadd.s32 1, %s12
  $region7: #{inception_module_forward.3} parent=0 // loop_footer_branch
    %11 = sbr.rel target = $region3
  $region8: #{inception_module_forward.3} parent=0 // loop_exit
    _

// kernel: inception_module_forward.2
$region0: #{inception_module_forward.2}
  #allocation0 [shape = 'u32[]', space=smem, size = 0x4, offset = 0x4, fixed_abs, tag = 'smem constant byte address 0x4 - core index']
  #allocation1 [shape = 'u32[72,128]{1,0:T(1,128)}', space=vmem, size = 0x9000, scoped, tag = 'internal scratch']
  %s0 = inlined_call_operand.vmem [shape: bf16[16,64,128], index: 0, kind: input, shape index: {}]
  %s1 = inlined_call_operand.vmem [shape: bf16[128,1], index: 1, kind: input, shape index: {}]
  %s2 = inlined_call_operand.vmem [shape: bf16[9,128], index: 2, kind: input, shape index: {}]
  %s3 = inlined_call_operand.vmem [shape: bf16[128,128], index: 3, kind: input, shape index: {}]
  %s4 = inlined_call_operand.vmem [shape: f32[2,8,128], index: 4, kind: output, shape index: {}]
  %s5 = sld [smem:[#allocation0]]
  $region49: #{inception_module_forward.2} parent=0
    _
  %s7 = ssub.s32 1, %s5
  %s8 = scalar_select 0, %s7, %s5
  loop: start=0, step=1, limit=4
  $region2: #{inception_module_forward.2} parent=0 // loop_pre_header
    _
  $region3: #{inception_module_forward.2} parent=0 // loop_header
    %s10 = sphi 0, %s14
    %p11 = scmp.ge.s32.totalorder %s10, 4
    %s20 = sphi 0, %s22
    %s23 = sphi 0, %s20
    %s24 = sphi 0, %s23
    %s40 = sphi 0, %s24
    %s44 = sphi 0, %s44
    %s46 = sphi 0, %s44
    %s47 = sphi 0, %s46
    %s61 = sphi 0, %s47
    %s65 = sphi 0, %s65
    %s67 = sphi 0, %s65
    %s68 = sphi 0, %s67
    %s82 = sphi 0, %s68
    %s86 = sphi 0, %s86
    %s88 = sphi 0, %s86
    %s89 = sphi 0, %s88
    %s103 = sphi 0, %s89
    %s109 = sphi 0, %s111
    %s112 = sphi 0, %s109
    %s113 = sphi 0, %s112
    %s129 = sphi 0, %s113
  $region4: #{inception_module_forward.2} parent=0 // loop_header_branch
    %13 = sbr.rel (%p11) target = $region8
  $region5: #{inception_module_forward.2} parent=0 // loop_body
    %s15 = ssub.s32 %s10, 1
    %s16 = ssub.s32 %s10, 2
    %s17 = sadd.s32 %s10, 1
    %s18 = ssub.s32 %s10, %s17
    %p19 = scmp.eq.s32.totalorder %s18, 0
    %s21 = sadd.s32 %s20, 1
    %s22 = scalar_select %p19, %s20, %s21
    %p25 = pneg %p19
    %p26 = scmp.eq.s32.totalorder %s10, 1
    %p27 = por %p25, %p26
    %p28 = scmp.ne.s32.totalorder %s20, %s23
    %p29 = scmp.eq.s32.totalorder %s10, 0
    %p30 = por %p28, %p29
    %p31 = scmp.ne.s32.totalorder %s20, %s23
    %p32 = scmp.eq.s32.totalorder %s15, 1
    %p33 = por %p31, %p32
    %p34 = scmp.ne.s32.totalorder %s23, %s24
    %p35 = scmp.eq.s32.totalorder %s15, 0
    %p36 = por %p34, %p35
    %p37 = scmp.ne.s32.totalorder %s23, %s24
    %p38 = scmp.eq.s32.totalorder %s16, 1
    %p39 = por %p37, %p38
    %p41 = scmp.ne.s32.totalorder %s24, %s40
    %p42 = scmp.eq.s32.totalorder %s16, 0
    %p43 = por %p41, %p42
    %s45 = sadd.s32 %s44, 1
    %p48 = scmp.eq.s32.totalorder %s10, 1
    %p49 = scmp.ne.s32.totalorder %s44, %s46
    %p50 = scmp.eq.s32.totalorder %s10, 0
    %p51 = por %p49, %p50
    %p52 = scmp.ne.s32.totalorder %s44, %s46
    %p53 = scmp.eq.s32.totalorder %s15, 1
    %p54 = por %p52, %p53
    %p55 = scmp.ne.s32.totalorder %s46, %s47
    %p56 = scmp.eq.s32.totalorder %s15, 0
    %p57 = por %p55, %p56
    %p58 = scmp.ne.s32.totalorder %s46, %s47
    %p59 = scmp.eq.s32.totalorder %s16, 1
    %p60 = por %p58, %p59
    %p62 = scmp.ne.s32.totalorder %s47, %s61
    %p63 = scmp.eq.s32.totalorder %s16, 0
    %p64 = por %p62, %p63
    %s66 = sadd.s32 %s65, 1
    %p69 = scmp.eq.s32.totalorder %s10, 1
    %p70 = scmp.ne.s32.totalorder %s65, %s67
    %p71 = scmp.eq.s32.totalorder %s10, 0
    %p72 = por %p70, %p71
    %p73 = scmp.ne.s32.totalorder %s65, %s67
    %p74 = scmp.eq.s32.totalorder %s15, 1
    %p75 = por %p73, %p74
    %p76 = scmp.ne.s32.totalorder %s67, %s68
    %p77 = scmp.eq.s32.totalorder %s15, 0
    %p78 = por %p76, %p77
    %p79 = scmp.ne.s32.totalorder %s67, %s68
    %p80 = scmp.eq.s32.totalorder %s16, 1
    %p81 = por %p79, %p80
    %p83 = scmp.ne.s32.totalorder %s68, %s82
    %p84 = scmp.eq.s32.totalorder %s16, 0
    %p85 = por %p83, %p84
    %s87 = sadd.s32 %s86, 1
    %p90 = scmp.eq.s32.totalorder %s10, 1
    %p91 = scmp.ne.s32.totalorder %s86, %s88
    %p92 = scmp.eq.s32.totalorder %s10, 0
    %p93 = por %p91, %p92
    %p94 = scmp.ne.s32.totalorder %s86, %s88
    %p95 = scmp.eq.s32.totalorder %s15, 1
    %p96 = por %p94, %p95
    %p97 = scmp.ne.s32.totalorder %s88, %s89
    %p98 = scmp.eq.s32.totalorder %s15, 0
    %p99 = por %p97, %p98
    %p100 = scmp.ne.s32.totalorder %s88, %s89
    %p101 = scmp.eq.s32.totalorder %s16, 1
    %p102 = por %p100, %p101
    %p104 = scmp.ne.s32.totalorder %s89, %s103
    %p105 = scmp.eq.s32.totalorder %s16, 0
    %p106 = por %p104, %p105
    %s107 = ssub.s32 %s10, %s17
    %p108 = scmp.eq.s32.totalorder %s107, 0
    %s110 = sadd.s32 %s109, 1
    %s111 = scalar_select %p108, %s109, %s110
    %p114 = pneg %p108
    %p115 = scmp.eq.s32.totalorder %s10, 1
    %p116 = por %p114, %p115
    %p117 = scmp.ne.s32.totalorder %s109, %s112
    %p118 = scmp.eq.s32.totalorder %s10, 0
    %p119 = por %p117, %p118
    %p120 = scmp.ne.s32.totalorder %s109, %s112
    %p121 = scmp.eq.s32.totalorder %s15, 1
    %p122 = por %p120, %p121
    %p123 = scmp.ne.s32.totalorder %s112, %s113
    %p124 = scmp.eq.s32.totalorder %s15, 0
    %p125 = por %p123, %p124
    %p126 = scmp.ne.s32.totalorder %s112, %s113
    %p127 = scmp.eq.s32.totalorder %s16, 1
    %p128 = por %p126, %p127
    %p130 = scmp.ne.s32.totalorder %s113, %s129
    %p131 = scmp.eq.s32.totalorder %s16, 0
    %p132 = por %p130, %p131
    %p133 = scmp.le.s32.totalorder 1, %s10
    %p134 = scmp.lt.s32.totalorder %s10, 3
    %p135 = pnand %p133, %p134
    %p136 = pneg %p135
    // Predicated region
    $region9: #{inception_module_forward.2} parent=5 // pred_check
      _
    $region10: #{inception_module_forward.2} parent=5 // pred_check_branch
      %138 = sbr.rel (%p135) target = $region12
    $region11: #{inception_module_forward.2} parent=5 // pred_region
      %s139 = ssub.s32 %s10, 1
      // Predicated region
      $region13: #{inception_module_forward.2} parent=11 // pred_check
        %p140 = pneg %p57
      $region14: #{inception_module_forward.2} parent=11 // pred_check_branch
        %142 = sbr.rel (%p140) target = $region16
      $region15: #{inception_module_forward.2} parent=11 // pred_region
        _
      $region16: #{inception_module_forward.2} parent=11 // pred_fallthru
        _
      // Predicated region
      $region17: #{inception_module_forward.2} parent=11 // pred_check
        %p143 = pneg %p78
      $region18: #{inception_module_forward.2} parent=11 // pred_check_branch
        %145 = sbr.rel (%p143) target = $region20
      $region19: #{inception_module_forward.2} parent=11 // pred_region
        _
      $region20: #{inception_module_forward.2} parent=11 // pred_fallthru
        _
      // Predicated region
      $region21: #{inception_module_forward.2} parent=11 // pred_check
        %p146 = pneg %p99
      $region22: #{inception_module_forward.2} parent=11 // pred_check_branch
        %148 = sbr.rel (%p146) target = $region24
      $region23: #{inception_module_forward.2} parent=11 // pred_region
        _
      $region24: #{inception_module_forward.2} parent=11 // pred_fallthru
        _
    $region12: #{inception_module_forward.2} parent=5 // pred_fallthru
      _
    %p149 = scmp.lt.s32.totalorder %s10, 2
    // Predicated region
    $region25: #{inception_module_forward.2} parent=5 // pred_check
      %p150 = pneg %p149
    $region26: #{inception_module_forward.2} parent=5 // pred_check_branch
      %152 = sbr.rel (%p150) target = $region28
    $region27: #{inception_module_forward.2} parent=5 // pred_region
      // Predicated region
      $region29: #{inception_module_forward.2} parent=27 // pred_check
        %p153 = pneg %p30
      $region30: #{inception_module_forward.2} parent=27 // pred_check_branch
        %155 = sbr.rel (%p153) target = $region32
      $region31: #{inception_module_forward.2} parent=27 // pred_region
        %s156 = smul.u32 8, %s10
        %p157 = scmp.lt.s32.totalorder %s156, 15
        %s158 = scalar_select %p157, %s156, 15
        %s159 = smul.addr %s158, 8
        %s160 = smul.addr %s159, 4
        %s161 = scalar_lea.vmem %s0, %s160
        %s162 = smul.u32 8, %s10
      $region32: #{inception_module_forward.2} parent=27 // pred_fallthru
        _
    $region28: #{inception_module_forward.2} parent=5 // pred_fallthru
      _
    %p163 = scmp.le.s32.totalorder 1, %s10
    %p164 = scmp.lt.s32.totalorder %s10, 3
    %p165 = pnand %p163, %p164
    %p166 = pneg %p165
    // Predicated region
    $region33: #{inception_module_forward.2} parent=5 // pred_check
      _
    $region34: #{inception_module_forward.2} parent=5 // pred_check_branch
      %168 = sbr.rel (%p165) target = $region36
    $region35: #{inception_module_forward.2} parent=5 // pred_region
      %s169 = ssub.s32 %s10, 1
      %s170 = smul.u32 8, %s15
      %p171 = scmp.lt.s32.totalorder %s170, 15
      %s172 = scalar_select %p171, %s170, 15
      %s173 = smul.addr %s172, 8
      %s174 = smul.addr %s173, 4
      %s175 = scalar_lea.vmem %s0, %s174
      %p176 = pneg %p36
      %p177 = pneg %p33
      %p178 = pneg %p57
      %p179 = pneg %p54
      %p180 = pneg %p78
      %p181 = pneg %p75
      %p182 = pneg %p99
      %p183 = pneg %p96
      %p184 = pneg %p125
      %p185 = pneg %p122
      %p186 = scmp.lt.s32.totalorder %s15, 1
      %s187 = scalar_select %p186, %s15, 1
      %s188 = smul.addr %s187, 8
      %s189 = scalar_lea.vmem %s4, %s188
      %s190 = smul.u32 8, %s15
      %p191 = scmp.lt.s32.totalorder %s190, 15
      %s192 = scalar_select %p191, %s190, 15
      %s193 = smul.addr %s192, 8
      %s194 = smul.addr %s193, 4
      %s195 = scalar_lea.vmem %s0, %s194
      %s196 = smul.u32 8, %s15
      %p197 = scmp.lt.s32.totalorder %s15, 1
      %s198 = scalar_select %p197, %s15, 1
      %s199 = smul.addr %s198, 8
      %s200 = scalar_lea.vmem %s4, %s199
      %v202 = vld [vmem:[%s195] sm:$0xf]
      %v203 = vld [vmem:[%s195 + $0x4] sm:$0xf]
      %v204 = vld [vmem:[%s195 + $0x8] sm:$0xf]
      %v205 = vld [vmem:[%s195 + $0xc] sm:$0xf]
      %v206 = vld [vmem:[%s195 + $0x10] sm:$0xf]
      %v207 = vld [vmem:[%s195 + $0x14] sm:$0xf]
      %v208 = vld [vmem:[%s195 + $0x18] sm:$0xf]
      %v209 = vld [vmem:[%s195 + $0x1c] sm:$0xf]
      %v210 = vld [vmem:[%s195 + $0x20] sm:$0xf]
      %v211 = vld [vmem:[%s195 + $0x24] sm:$0xf]
      %v212 = vld [vmem:[%s195 + $0x28] sm:$0xf]
      %v213 = vld [vmem:[%s195 + $0x2c] sm:$0xf]
      %v214 = vld [vmem:[%s195 + $0x30] sm:$0xf]
      %v215 = vld [vmem:[%s195 + $0x34] sm:$0xf]
      %v216 = vld [vmem:[%s195 + $0x38] sm:$0xf]
      %v217 = vld [vmem:[%s195 + $0x3c] sm:$0xf]
      %v218 = vld [vmem:[%s195 + $0x40] sm:$0xf]
      %v219 = vld [vmem:[%s195 + $0x44] sm:$0xf]
      %v220 = vld [vmem:[%s195 + $0x48] sm:$0xf]
      %v221 = vld [vmem:[%s195 + $0x4c] sm:$0xf]
      %v222 = vld [vmem:[%s195 + $0x50] sm:$0xf]
      %v223 = vld [vmem:[%s195 + $0x54] sm:$0xf]
      %v224 = vld [vmem:[%s195 + $0x58] sm:$0xf]
      %v225 = vld [vmem:[%s195 + $0x5c] sm:$0xf]
      %v226 = vld [vmem:[%s195 + $0x60] sm:$0xf]
      %v227 = vld [vmem:[%s195 + $0x64] sm:$0xf]
      %v228 = vld [vmem:[%s195 + $0x68] sm:$0xf]
      %v229 = vld [vmem:[%s195 + $0x6c] sm:$0xf]
      %v230 = vld [vmem:[%s195 + $0x70] sm:$0xf]
      %v231 = vld [vmem:[%s195 + $0x74] sm:$0xf]
      %v232 = vld [vmem:[%s195 + $0x78] sm:$0xf]
      %v233 = vld [vmem:[%s195 + $0x7c] sm:$0xf]
      %v234 = vld [vmem:[%s195 + $0x80] sm:$0xf]
      %v235 = vld [vmem:[%s195 + $0x84] sm:$0xf]
      %v236 = vld [vmem:[%s195 + $0x88] sm:$0xf]
      %v237 = vld [vmem:[%s195 + $0x8c] sm:$0xf]
      %v238 = vld [vmem:[%s195 + $0x90] sm:$0xf]
      %v239 = vld [vmem:[%s195 + $0x94] sm:$0xf]
      %v240 = vld [vmem:[%s195 + $0x98] sm:$0xf]
      %v241 = vld [vmem:[%s195 + $0x9c] sm:$0xf]
      %v242 = vld [vmem:[%s195 + $0xa0] sm:$0xf]
      %v243 = vld [vmem:[%s195 + $0xa4] sm:$0xf]
      %v244 = vld [vmem:[%s195 + $0xa8] sm:$0xf]
      %v245 = vld [vmem:[%s195 + $0xac] sm:$0xf]
      %v246 = vld [vmem:[%s195 + $0xb0] sm:$0xf]
      %v247 = vld [vmem:[%s195 + $0xb4] sm:$0xf]
      %v248 = vld [vmem:[%s195 + $0xb8] sm:$0xf]
      %v249 = vld [vmem:[%s195 + $0xbc] sm:$0xf]
      %v250 = vld [vmem:[%s195 + $0xc0] sm:$0xf]
      %v251 = vld [vmem:[%s195 + $0xc4] sm:$0xf]
      %v252 = vld [vmem:[%s195 + $0xc8] sm:$0xf]
      %v253 = vld [vmem:[%s195 + $0xcc] sm:$0xf]
      %v254 = vld [vmem:[%s195 + $0xd0] sm:$0xf]
      %v255 = vld [vmem:[%s195 + $0xd4] sm:$0xf]
      %v256 = vld [vmem:[%s195 + $0xd8] sm:$0xf]
      %v257 = vld [vmem:[%s195 + $0xdc] sm:$0xf]
      %v258 = vld [vmem:[%s195 + $0xe0] sm:$0xf]
      %v259 = vld [vmem:[%s195 + $0xe4] sm:$0xf]
      %v260 = vld [vmem:[%s195 + $0xe8] sm:$0xf]
      %v261 = vld [vmem:[%s195 + $0xec] sm:$0xf]
      %v262 = vld [vmem:[%s195 + $0xf0] sm:$0xf]
      %v263 = vld [vmem:[%s195 + $0xf4] sm:$0xf]
      %v264 = vld [vmem:[%s195 + $0xf8] sm:$0xf]
      %v265 = vld [vmem:[%s195 + $0xfc] sm:$0xf]
      %v266 = vld [vmem:[%s1] sm:$0xf]
      %v267 = vld [vmem:[%s1 + $0x4] sm:$0xf]
      %v268 = vld [vmem:[%s1 + $0x8] sm:$0xf]
      %v269 = vld [vmem:[%s1 + $0xc] sm:$0xf]
      %v270 = vld [vmem:[%s1 + $0x10] sm:$0xf]
      %v271 = vld [vmem:[%s1 + $0x14] sm:$0xf]
      %v272 = vld [vmem:[%s1 + $0x18] sm:$0xf]
      %v273 = vld [vmem:[%s1 + $0x1c] sm:$0xf]
      %v274 = vld [vmem:[%s1 + $0x20] sm:$0xf]
      %v275 = vld [vmem:[%s1 + $0x24] sm:$0xf]
      %v276 = vld [vmem:[%s1 + $0x28] sm:$0xf]
      %v277 = vld [vmem:[%s1 + $0x2c] sm:$0xf]
      %v278 = vld [vmem:[%s1 + $0x30] sm:$0xf]
      %v279 = vld [vmem:[%s1 + $0x34] sm:$0xf]
      %v280 = vld [vmem:[%s1 + $0x38] sm:$0xf]
      %v281 = vld [vmem:[%s1 + $0x3c] sm:$0xf]
      %v282 = vld [vmem:[%s2] sm:$0xf]
      %v283 = vld [vmem:[%s2 + $0x4] sm:$0x1]
      %v284 = vld [vmem:[%s3] sm:$0xf]
      %v285 = vld [vmem:[%s3 + $0x4] sm:$0xf]
      %v286 = vld [vmem:[%s3 + $0x8] sm:$0xf]
      %v287 = vld [vmem:[%s3 + $0xc] sm:$0xf]
      %v288 = vld [vmem:[%s3 + $0x10] sm:$0xf]
      %v289 = vld [vmem:[%s3 + $0x14] sm:$0xf]
      %v290 = vld [vmem:[%s3 + $0x18] sm:$0xf]
      %v291 = vld [vmem:[%s3 + $0x1c] sm:$0xf]
      %v292 = vld [vmem:[%s3 + $0x20] sm:$0xf]
      %v293 = vld [vmem:[%s3 + $0x24] sm:$0xf]
      %v294 = vld [vmem:[%s3 + $0x28] sm:$0xf]
      %v295 = vld [vmem:[%s3 + $0x2c] sm:$0xf]
      %v296 = vld [vmem:[%s3 + $0x30] sm:$0xf]
      %v297 = vld [vmem:[%s3 + $0x34] sm:$0xf]
      %v298 = vld [vmem:[%s3 + $0x38] sm:$0xf]
      %v299 = vld [vmem:[%s3 + $0x3c] sm:$0xf]
      %v300 = vlaneseq
      %v301 = vshrl.u32 %v300, 7
      %v302 = vadd.s32 %v301, 8
      %v303 = vadd.s32 %v301, 16
      %v304 = vadd.s32 %v301, 24
      %v305 = vadd.s32 %v301, 32
      %v306 = vadd.s32 %v301, 40
      %v307 = vadd.s32 %v301, 48
      %v308 = vadd.s32 %v301, 56
      %v373 = vunpack.c.l.b16 %v202
      %v374 = vunpack.c.l.b16 %v203
      %v375 = vunpack.c.l.b16 %v204
      %v376 = vunpack.c.l.b16 %v205
      %v377 = vunpack.c.l.b16 %v206
      %v378 = vunpack.c.l.b16 %v207
      %v379 = vunpack.c.l.b16 %v208
      %v380 = vunpack.c.l.b16 %v209
      %v381 = vunpack.c.l.b16 %v210
      %v382 = vunpack.c.l.b16 %v211
      %v383 = vunpack.c.l.b16 %v212
      %v384 = vunpack.c.l.b16 %v213
      %v385 = vunpack.c.l.b16 %v214
      %v386 = vunpack.c.l.b16 %v215
      %v387 = vunpack.c.l.b16 %v216
      %v388 = vunpack.c.l.b16 %v217
      %v389 = vunpack.c.l.b16 %v218
      %v390 = vunpack.c.l.b16 %v219
      %v391 = vunpack.c.l.b16 %v220
      %v392 = vunpack.c.l.b16 %v221
      %v393 = vunpack.c.l.b16 %v222
      %v394 = vunpack.c.l.b16 %v223
      %v395 = vunpack.c.l.b16 %v224
      %v396 = vunpack.c.l.b16 %v225
      %v397 = vunpack.c.l.b16 %v226
      %v398 = vunpack.c.l.b16 %v227
      %v399 = vunpack.c.l.b16 %v228
      %v400 = vunpack.c.l.b16 %v229
      %v401 = vunpack.c.l.b16 %v230
      %v402 = vunpack.c.l.b16 %v231
      %v403 = vunpack.c.l.b16 %v232
      %v404 = vunpack.c.l.b16 %v233
      %v405 = vunpack.c.l.b16 %v234
      %v406 = vunpack.c.l.b16 %v235
      %v407 = vunpack.c.l.b16 %v236
      %v408 = vunpack.c.l.b16 %v237
      %v409 = vunpack.c.l.b16 %v238
      %v410 = vunpack.c.l.b16 %v239
      %v411 = vunpack.c.l.b16 %v240
      %v412 = vunpack.c.l.b16 %v241
      %v413 = vunpack.c.l.b16 %v242
      %v414 = vunpack.c.l.b16 %v243
      %v415 = vunpack.c.l.b16 %v244
      %v416 = vunpack.c.l.b16 %v245
      %v417 = vunpack.c.l.b16 %v246
      %v418 = vunpack.c.l.b16 %v247
      %v419 = vunpack.c.l.b16 %v248
      %v420 = vunpack.c.l.b16 %v249
      %v421 = vunpack.c.l.b16 %v250
      %v422 = vunpack.c.l.b16 %v251
      %v423 = vunpack.c.l.b16 %v252
      %v424 = vunpack.c.l.b16 %v253
      %v425 = vunpack.c.l.b16 %v254
      %v426 = vunpack.c.l.b16 %v255
      %v427 = vunpack.c.l.b16 %v256
      %v428 = vunpack.c.l.b16 %v257
      %v429 = vunpack.c.l.b16 %v258
      %v430 = vunpack.c.l.b16 %v259
      %v431 = vunpack.c.l.b16 %v260
      %v432 = vunpack.c.l.b16 %v261
      %v433 = vunpack.c.l.b16 %v262
      %v434 = vunpack.c.l.b16 %v263
      %v435 = vunpack.c.l.b16 %v264
      %v436 = vunpack.c.l.b16 %v265
      %v437 = vpack.c.b16 %v374, %v373
      %v438 = vpack.c.b16 %v376, %v375
      %v439 = vpack.c.b16 %v378, %v377
      %v440 = vpack.c.b16 %v380, %v379
      %v441 = vpack.c.b16 %v382, %v381
      %v442 = vpack.c.b16 %v384, %v383
      %v443 = vpack.c.b16 %v386, %v385
      %v444 = vpack.c.b16 %v388, %v387
      %v445 = vpack.c.b16 %v390, %v389
      %v446 = vpack.c.b16 %v392, %v391
      %v447 = vpack.c.b16 %v394, %v393
      %v448 = vpack.c.b16 %v396, %v395
      %v449 = vpack.c.b16 %v398, %v397
      %v450 = vpack.c.b16 %v400, %v399
      %v451 = vpack.c.b16 %v402, %v401
      %v452 = vpack.c.b16 %v404, %v403
      %v453 = vpack.c.b16 %v406, %v405
      %v454 = vpack.c.b16 %v408, %v407
      %v455 = vpack.c.b16 %v410, %v409
      %v456 = vpack.c.b16 %v412, %v411
      %v457 = vpack.c.b16 %v414, %v413
      %v458 = vpack.c.b16 %v416, %v415
      %v459 = vpack.c.b16 %v418, %v417
      %v460 = vpack.c.b16 %v420, %v419
      %v461 = vpack.c.b16 %v422, %v421
      %v462 = vpack.c.b16 %v424, %v423
      %v463 = vpack.c.b16 %v426, %v425
      %v464 = vpack.c.b16 %v428, %v427
      %v465 = vpack.c.b16 %v430, %v429
      %v466 = vpack.c.b16 %v432, %v431
      %v467 = vpack.c.b16 %v434, %v433
      %v468 = vpack.c.b16 %v436, %v435
      %v517 = vunpack.c.l.b16 %v266
      %v518 = vunpack.c.l.b16 %v267
      %v519 = vunpack.c.l.b16 %v268
      %v520 = vunpack.c.l.b16 %v269
      %v521 = vunpack.c.l.b16 %v270
      %v522 = vunpack.c.l.b16 %v271
      %v523 = vunpack.c.l.b16 %v272
      %v524 = vunpack.c.l.b16 %v273
      %v525 = vunpack.c.l.b16 %v274
      %v526 = vunpack.c.l.b16 %v275
      %v527 = vunpack.c.l.b16 %v276
      %v528 = vunpack.c.l.b16 %v277
      %v529 = vunpack.c.l.b16 %v278
      %v530 = vunpack.c.l.b16 %v279
      %v531 = vunpack.c.l.b16 %v280
      %v532 = vunpack.c.l.b16 %v281
      %v533 = vpack.c.b16 %v518, %v517
      %v534 = vpack.c.b16 %v520, %v519
      %v535 = vpack.c.b16 %v522, %v521
      %v536 = vpack.c.b16 %v524, %v523
      %v537 = vpack.c.b16 %v526, %v525
      %v538 = vpack.c.b16 %v528, %v527
      %v539 = vpack.c.b16 %v530, %v529
      %v540 = vpack.c.b16 %v532, %v531
      %549 = vmatpush.bf16.msra.mxu0 %v540
      %550 = vmatpush.bf16.msra.mxu0 %v539
      %551 = vmatpush.bf16.msra.mxu0 %v538
      %552 = vmatpush.bf16.msra.mxu0 %v537
      %553 = vmatpush.bf16.msra.mxu0 %v536
      %554 = vmatpush.bf16.msra.mxu0 %v535
      %555 = vmatpush.bf16.msra.mxu0 %v534
      %556 = vmatpush.bf16.msra.mxu0 %v533
      %557 = vmatmul.bf16.gmra.mxu0 %v437
      %v558 = vpop.f32.mrf.mxu0
      %v559 = vadd.f32 0.0, %v558
      %v560 = vpop.f32.mrf.mxu0
      %v561 = vadd.f32 0.0, %v560
      %562 = vmatmul.bf16.gmra.mxu0 %v438
      %v563 = vpop.f32.mrf.mxu0
      %v564 = vadd.f32 0.0, %v563
      %v565 = vpop.f32.mrf.mxu0
      %v566 = vadd.f32 0.0, %v565
      %567 = vmatmul.bf16.gmra.mxu0 %v439
      %v568 = vpop.f32.mrf.mxu0
      %v569 = vadd.f32 0.0, %v568
      %v570 = vpop.f32.mrf.mxu0
      %v571 = vadd.f32 0.0, %v570
      %572 = vmatmul.bf16.gmra.mxu0 %v440
      %v573 = vpop.f32.mrf.mxu0
      %v574 = vadd.f32 0.0, %v573
      %v575 = vpop.f32.mrf.mxu0
      %v576 = vadd.f32 0.0, %v575
      %577 = vmatmul.bf16.gmra.mxu0 %v441
      %v578 = vpop.f32.mrf.mxu0
      %v579 = vadd.f32 0.0, %v578
      %v580 = vpop.f32.mrf.mxu0
      %v581 = vadd.f32 0.0, %v580
      %582 = vmatmul.bf16.gmra.mxu0 %v442
      %v583 = vpop.f32.mrf.mxu0
      %v584 = vadd.f32 0.0, %v583
      %v585 = vpop.f32.mrf.mxu0
      %v586 = vadd.f32 0.0, %v585
      %587 = vmatmul.bf16.gmra.mxu0 %v443
      %v588 = vpop.f32.mrf.mxu0
      %v589 = vadd.f32 0.0, %v588
      %v590 = vpop.f32.mrf.mxu0
      %v591 = vadd.f32 0.0, %v590
      %592 = vmatmul.bf16.gmra.mxu0 %v444
      %v593 = vpop.f32.mrf.mxu0
      %v594 = vadd.f32 0.0, %v593
      %v595 = vpop.f32.mrf.mxu0
      %v596 = vadd.f32 0.0, %v595
      %597 = vmatmul.bf16.gmra.mxu0 %v445
      %v598 = vpop.f32.mrf.mxu0
      %v599 = vadd.f32 0.0, %v598
      %v600 = vpop.f32.mrf.mxu0
      %v601 = vadd.f32 0.0, %v600
      %602 = vmatmul.bf16.gmra.mxu0 %v446
      %v603 = vpop.f32.mrf.mxu0
      %v604 = vadd.f32 0.0, %v603
      %v605 = vpop.f32.mrf.mxu0
      %v606 = vadd.f32 0.0, %v605
      %607 = vmatmul.bf16.gmra.mxu0 %v447
      %v608 = vpop.f32.mrf.mxu0
      %v609 = vadd.f32 0.0, %v608
      %v610 = vpop.f32.mrf.mxu0
      %v611 = vadd.f32 0.0, %v610
      %612 = vmatmul.bf16.gmra.mxu0 %v448
      %v613 = vpop.f32.mrf.mxu0
      %v614 = vadd.f32 0.0, %v613
      %v615 = vpop.f32.mrf.mxu0
      %v616 = vadd.f32 0.0, %v615
      %617 = vmatmul.bf16.gmra.mxu0 %v449
      %v618 = vpop.f32.mrf.mxu0
      %v619 = vadd.f32 0.0, %v618
      %v620 = vpop.f32.mrf.mxu0
      %v621 = vadd.f32 0.0, %v620
      %622 = vmatmul.bf16.gmra.mxu0 %v450
      %v623 = vpop.f32.mrf.mxu0
      %v624 = vadd.f32 0.0, %v623
      %v625 = vpop.f32.mrf.mxu0
      %v626 = vadd.f32 0.0, %v625
      %627 = vmatmul.bf16.gmra.mxu0 %v451
      %v628 = vpop.f32.mrf.mxu0
      %v629 = vadd.f32 0.0, %v628
      %v630 = vpop.f32.mrf.mxu0
      %v631 = vadd.f32 0.0, %v630
      %632 = vmatmul.bf16.gmra.mxu0 %v452
      %v633 = vpop.f32.mrf.mxu0
      %v634 = vadd.f32 0.0, %v633
      %v635 = vpop.f32.mrf.mxu0
      %v636 = vadd.f32 0.0, %v635
      %637 = vmatmul.bf16.gmra.mxu0 %v453
      %v638 = vpop.f32.mrf.mxu0
      %v639 = vadd.f32 0.0, %v638
      %v640 = vpop.f32.mrf.mxu0
      %v641 = vadd.f32 0.0, %v640
      %642 = vmatmul.bf16.gmra.mxu0 %v454
      %v643 = vpop.f32.mrf.mxu0
      %v644 = vadd.f32 0.0, %v643
      %v645 = vpop.f32.mrf.mxu0
      %v646 = vadd.f32 0.0, %v645
      %647 = vmatmul.bf16.gmra.mxu0 %v455
      %v648 = vpop.f32.mrf.mxu0
      %v649 = vadd.f32 0.0, %v648
      %v650 = vpop.f32.mrf.mxu0
      %v651 = vadd.f32 0.0, %v650
      %652 = vmatmul.bf16.gmra.mxu0 %v456
      %v653 = vpop.f32.mrf.mxu0
      %v654 = vadd.f32 0.0, %v653
      %v655 = vpop.f32.mrf.mxu0
      %v656 = vadd.f32 0.0, %v655
      %657 = vmatmul.bf16.gmra.mxu0 %v457
      %v658 = vpop.f32.mrf.mxu0
      %v659 = vadd.f32 0.0, %v658
      %v660 = vpop.f32.mrf.mxu0
      %v661 = vadd.f32 0.0, %v660
      %662 = vmatmul.bf16.gmra.mxu0 %v458
      %v663 = vpop.f32.mrf.mxu0
      %v664 = vadd.f32 0.0, %v663
      %v665 = vpop.f32.mrf.mxu0
      %v666 = vadd.f32 0.0, %v665
      %667 = vmatmul.bf16.gmra.mxu0 %v459
      %v668 = vpop.f32.mrf.mxu0
      %v669 = vadd.f32 0.0, %v668
      %v670 = vpop.f32.mrf.mxu0
      %v671 = vadd.f32 0.0, %v670
      %672 = vmatmul.bf16.gmra.mxu0 %v460
      %v673 = vpop.f32.mrf.mxu0
      %v674 = vadd.f32 0.0, %v673
      %v675 = vpop.f32.mrf.mxu0
      %v676 = vadd.f32 0.0, %v675
      %677 = vmatmul.bf16.gmra.mxu0 %v461
      %v678 = vpop.f32.mrf.mxu0
      %v679 = vadd.f32 0.0, %v678
      %v680 = vpop.f32.mrf.mxu0
      %v681 = vadd.f32 0.0, %v680
      %682 = vmatmul.bf16.gmra.mxu0 %v462
      %v683 = vpop.f32.mrf.mxu0
      %v684 = vadd.f32 0.0, %v683
      %v685 = vpop.f32.mrf.mxu0
      %v686 = vadd.f32 0.0, %v685
      %687 = vmatmul.bf16.gmra.mxu0 %v463
      %v688 = vpop.f32.mrf.mxu0
      %v689 = vadd.f32 0.0, %v688
      %v690 = vpop.f32.mrf.mxu0
      %v691 = vadd.f32 0.0, %v690
      %692 = vmatmul.bf16.gmra.mxu0 %v464
      %v693 = vpop.f32.mrf.mxu0
      %v694 = vadd.f32 0.0, %v693
      %v695 = vpop.f32.mrf.mxu0
      %v696 = vadd.f32 0.0, %v695
      %697 = vmatmul.bf16.gmra.mxu0 %v465
      %v698 = vpop.f32.mrf.mxu0
      %v699 = vadd.f32 0.0, %v698
      %v700 = vpop.f32.mrf.mxu0
      %v701 = vadd.f32 0.0, %v700
      %702 = vmatmul.bf16.gmra.mxu0 %v466
      %v703 = vpop.f32.mrf.mxu0
      %v704 = vadd.f32 0.0, %v703
      %v705 = vpop.f32.mrf.mxu0
      %v706 = vadd.f32 0.0, %v705
      %707 = vmatmul.bf16.gmra.mxu0 %v467
      %v708 = vpop.f32.mrf.mxu0
      %v709 = vadd.f32 0.0, %v708
      %v710 = vpop.f32.mrf.mxu0
      %v711 = vadd.f32 0.0, %v710
      %712 = vmatmul.bf16.gmra.mxu0 %v468
      %v713 = vpop.f32.mrf.mxu0
      %v714 = vadd.f32 0.0, %v713
      %v715 = vpop.f32.mrf.mxu0
      %v716 = vadd.f32 0.0, %v715
      %717 = vdwg.mxu0
      %v718 = vrot.slane %v559, 4
      %v719 = vrot.slane %v561, 4
      %v720 = vrot.slane %v564, 4
      %v721 = vrot.slane %v566, 4
      %v722 = vrot.slane %v569, 4
      %v723 = vrot.slane %v571, 4
      %v724 = vrot.slane %v574, 4
      %v725 = vrot.slane %v576, 4
      %v726 = vrot.slane %v579, 4
      %v727 = vrot.slane %v581, 4
      %v728 = vrot.slane %v584, 4
      %v729 = vrot.slane %v586, 4
      %v730 = vrot.slane %v589, 4
      %v731 = vrot.slane %v591, 4
      %v732 = vrot.slane %v594, 4
      %v733 = vrot.slane %v596, 4
      %v734 = vrot.slane %v599, 4
      %v735 = vrot.slane %v601, 4
      %v736 = vrot.slane %v604, 4
      %v737 = vrot.slane %v606, 4
      %v738 = vrot.slane %v609, 4
      %v739 = vrot.slane %v611, 4
      %v740 = vrot.slane %v614, 4
      %v741 = vrot.slane %v616, 4
      %v742 = vrot.slane %v619, 4
      %v743 = vrot.slane %v621, 4
      %v744 = vrot.slane %v624, 4
      %v745 = vrot.slane %v626, 4
      %v746 = vrot.slane %v629, 4
      %v747 = vrot.slane %v631, 4
      %v748 = vrot.slane %v634, 4
      %v749 = vrot.slane %v636, 4
      %v750 = vrot.slane %v639, 4
      %v751 = vrot.slane %v641, 4
      %v752 = vrot.slane %v644, 4
      %v753 = vrot.slane %v646, 4
      %v754 = vrot.slane %v649, 4
      %v755 = vrot.slane %v651, 4
      %v756 = vrot.slane %v654, 4
      %v757 = vrot.slane %v656, 4
      %v758 = vrot.slane %v659, 4
      %v759 = vrot.slane %v661, 4
      %v760 = vrot.slane %v664, 4
      %v761 = vrot.slane %v666, 4
      %v762 = vrot.slane %v669, 4
      %v763 = vrot.slane %v671, 4
      %v764 = vrot.slane %v674, 4
      %v765 = vrot.slane %v676, 4
      %v766 = vrot.slane %v679, 4
      %v767 = vrot.slane %v681, 4
      %v768 = vrot.slane %v684, 4
      %v769 = vrot.slane %v686, 4
      %v770 = vrot.slane %v689, 4
      %v771 = vrot.slane %v691, 4
      %v772 = vrot.slane %v694, 4
      %v773 = vrot.slane %v696, 4
      %v774 = vrot.slane %v699, 4
      %v775 = vrot.slane %v701, 4
      %v776 = vrot.slane %v704, 4
      %v777 = vrot.slane %v706, 4
      %v778 = vrot.slane %v709, 4
      %v779 = vrot.slane %v711, 4
      %v780 = vrot.slane %v714, 4
      %v781 = vrot.slane %v716, 4
      %vm782 = vcmp.lt.s32.totalorder %v301, 4
      %v783 = vsel %vm782, %v780, %v781
      %v784 = vsel %vm782, %v779, %v780
      %v785 = vsel %vm782, %v778, %v779
      %v786 = vsel %vm782, %v777, %v778
      %v787 = vsel %vm782, %v776, %v777
      %v788 = vsel %vm782, %v775, %v776
      %v789 = vsel %vm782, %v774, %v775
      %v790 = vsel %vm782, %v773, %v774
      %v791 = vsel %vm782, %v772, %v773
      %v792 = vsel %vm782, %v771, %v772
      %v793 = vsel %vm782, %v770, %v771
      %v794 = vsel %vm782, %v769, %v770
      %v795 = vsel %vm782, %v768, %v769
      %v796 = vsel %vm782, %v767, %v768
      %v797 = vsel %vm782, %v766, %v767
      %v798 = vsel %vm782, %v765, %v766
      %v799 = vsel %vm782, %v764, %v765
      %v800 = vsel %vm782, %v763, %v764
      %v801 = vsel %vm782, %v762, %v763
      %v802 = vsel %vm782, %v761, %v762
      %v803 = vsel %vm782, %v760, %v761
      %v804 = vsel %vm782, %v759, %v760
      %v805 = vsel %vm782, %v758, %v759
      %v806 = vsel %vm782, %v757, %v758
      %v807 = vsel %vm782, %v756, %v757
      %v808 = vsel %vm782, %v755, %v756
      %v809 = vsel %vm782, %v754, %v755
      %v810 = vsel %vm782, %v753, %v754
      %v811 = vsel %vm782, %v752, %v753
      %v812 = vsel %vm782, %v751, %v752
      %v813 = vsel %vm782, %v750, %v751
      %v814 = vsel %vm782, %v749, %v750
      %v815 = vsel %vm782, %v748, %v749
      %v816 = vsel %vm782, %v747, %v748
      %v817 = vsel %vm782, %v746, %v747
      %v818 = vsel %vm782, %v745, %v746
      %v819 = vsel %vm782, %v744, %v745
      %v820 = vsel %vm782, %v743, %v744
      %v821 = vsel %vm782, %v742, %v743
      %v822 = vsel %vm782, %v741, %v742
      %v823 = vsel %vm782, %v740, %v741
      %v824 = vsel %vm782, %v739, %v740
      %v825 = vsel %vm782, %v738, %v739
      %v826 = vsel %vm782, %v737, %v738
      %v827 = vsel %vm782, %v736, %v737
      %v828 = vsel %vm782, %v735, %v736
      %v829 = vsel %vm782, %v734, %v735
      %v830 = vsel %vm782, %v733, %v734
      %v831 = vsel %vm782, %v732, %v733
      %v832 = vsel %vm782, %v731, %v732
      %v833 = vsel %vm782, %v730, %v731
      %v834 = vsel %vm782, %v729, %v730
      %v835 = vsel %vm782, %v728, %v729
      %v836 = vsel %vm782, %v727, %v728
      %v837 = vsel %vm782, %v726, %v727
      %v838 = vsel %vm782, %v725, %v726
      %v839 = vsel %vm782, %v724, %v725
      %v840 = vsel %vm782, %v723, %v724
      %v841 = vsel %vm782, %v722, %v723
      %v842 = vsel %vm782, %v721, %v722
      %v843 = vsel %vm782, %v720, %v721
      %v844 = vsel %vm782, %v719, %v720
      %v845 = vsel %vm782, %v718, %v719
      %v846 = vsel %vm782, %v781, %v718
      %v847 = vrot.slane %v559, 5
      %v848 = vrot.slane %v561, 5
      %v849 = vrot.slane %v564, 5
      %v850 = vrot.slane %v566, 5
      %v851 = vrot.slane %v569, 5
      %v852 = vrot.slane %v571, 5
      %v853 = vrot.slane %v574, 5
      %v854 = vrot.slane %v576, 5
      %v855 = vrot.slane %v579, 5
      %v856 = vrot.slane %v581, 5
      %v857 = vrot.slane %v584, 5
      %v858 = vrot.slane %v586, 5
      %v859 = vrot.slane %v589, 5
      %v860 = vrot.slane %v591, 5
      %v861 = vrot.slane %v594, 5
      %v862 = vrot.slane %v596, 5
      %v863 = vrot.slane %v599, 5
      %v864 = vrot.slane %v601, 5
      %v865 = vrot.slane %v604, 5
      %v866 = vrot.slane %v606, 5
      %v867 = vrot.slane %v609, 5
      %v868 = vrot.slane %v611, 5
      %v869 = vrot.slane %v614, 5
      %v870 = vrot.slane %v616, 5
      %v871 = vrot.slane %v619, 5
      %v872 = vrot.slane %v621, 5
      %v873 = vrot.slane %v624, 5
      %v874 = vrot.slane %v626, 5
      %v875 = vrot.slane %v629, 5
      %v876 = vrot.slane %v631, 5
      %v877 = vrot.slane %v634, 5
      %v878 = vrot.slane %v636, 5
      %v879 = vrot.slane %v639, 5
      %v880 = vrot.slane %v641, 5
      %v881 = vrot.slane %v644, 5
      %v882 = vrot.slane %v646, 5
      %v883 = vrot.slane %v649, 5
      %v884 = vrot.slane %v651, 5
      %v885 = vrot.slane %v654, 5
      %v886 = vrot.slane %v656, 5
      %v887 = vrot.slane %v659, 5
      %v888 = vrot.slane %v661, 5
      %v889 = vrot.slane %v664, 5
      %v890 = vrot.slane %v666, 5
      %v891 = vrot.slane %v669, 5
      %v892 = vrot.slane %v671, 5
      %v893 = vrot.slane %v674, 5
      %v894 = vrot.slane %v676, 5
      %v895 = vrot.slane %v679, 5
      %v896 = vrot.slane %v681, 5
      %v897 = vrot.slane %v684, 5
      %v898 = vrot.slane %v686, 5
      %v899 = vrot.slane %v689, 5
      %v900 = vrot.slane %v691, 5
      %v901 = vrot.slane %v694, 5
      %v902 = vrot.slane %v696, 5
      %v903 = vrot.slane %v699, 5
      %v904 = vrot.slane %v701, 5
      %v905 = vrot.slane %v704, 5
      %v906 = vrot.slane %v706, 5
      %v907 = vrot.slane %v709, 5
      %v908 = vrot.slane %v711, 5
      %v909 = vrot.slane %v714, 5
      %v910 = vrot.slane %v716, 5
      %vm911 = vcmp.lt.s32.totalorder %v301, 3
      %v912 = vsel %vm911, %v909, %v910
      %v913 = vsel %vm911, %v908, %v909
      %v914 = vsel %vm911, %v907, %v908
      %v915 = vsel %vm911, %v906, %v907
      %v916 = vsel %vm911, %v905, %v906
      %v917 = vsel %vm911, %v904, %v905
      %v918 = vsel %vm911, %v903, %v904
      %v919 = vsel %vm911, %v902, %v903
      %v920 = vsel %vm911, %v901, %v902
      %v921 = vsel %vm911, %v900, %v901
      %v922 = vsel %vm911, %v899, %v900
      %v923 = vsel %vm911, %v898, %v899
      %v924 = vsel %vm911, %v897, %v898
      %v925 = vsel %vm911, %v896, %v897
      %v926 = vsel %vm911, %v895, %v896
      %v927 = vsel %vm911, %v894, %v895
      %v928 = vsel %vm911, %v893, %v894
      %v929 = vsel %vm911, %v892, %v893
      %v930 = vsel %vm911, %v891, %v892
      %v931 = vsel %vm911, %v890, %v891
      %v932 = vsel %vm911, %v889, %v890
      %v933 = vsel %vm911, %v888, %v889
      %v934 = vsel %vm911, %v887, %v888
      %v935 = vsel %vm911, %v886, %v887
      %v936 = vsel %vm911, %v885, %v886
      %v937 = vsel %vm911, %v884, %v885
      %v938 = vsel %vm911, %v883, %v884
      %v939 = vsel %vm911, %v882, %v883
      %v940 = vsel %vm911, %v881, %v882
      %v941 = vsel %vm911, %v880, %v881
      %v942 = vsel %vm911, %v879, %v880
      %v943 = vsel %vm911, %v878, %v879
      %v944 = vsel %vm911, %v877, %v878
      %v945 = vsel %vm911, %v876, %v877
      %v946 = vsel %vm911, %v875, %v876
      %v947 = vsel %vm911, %v874, %v875
      %v948 = vsel %vm911, %v873, %v874
      %v949 = vsel %vm911, %v872, %v873
      %v950 = vsel %vm911, %v871, %v872
      %v951 = vsel %vm911, %v870, %v871
      %v952 = vsel %vm911, %v869, %v870
      %v953 = vsel %vm911, %v868, %v869
      %v954 = vsel %vm911, %v867, %v868
      %v955 = vsel %vm911, %v866, %v867
      %v956 = vsel %vm911, %v865, %v866
      %v957 = vsel %vm911, %v864, %v865
      %v958 = vsel %vm911, %v863, %v864
      %v959 = vsel %vm911, %v862, %v863
      %v960 = vsel %vm911, %v861, %v862
      %v961 = vsel %vm911, %v860, %v861
      %v962 = vsel %vm911, %v859, %v860
      %v963 = vsel %vm911, %v858, %v859
      %v964 = vsel %vm911, %v857, %v858
      %v965 = vsel %vm911, %v856, %v857
      %v966 = vsel %vm911, %v855, %v856
      %v967 = vsel %vm911, %v854, %v855
      %v968 = vsel %vm911, %v853, %v854
      %v969 = vsel %vm911, %v852, %v853
      %v970 = vsel %vm911, %v851, %v852
      %v971 = vsel %vm911, %v850, %v851
      %v972 = vsel %vm911, %v849, %v850
      %v973 = vsel %vm911, %v848, %v849
      %v974 = vsel %vm911, %v847, %v848
      %v975 = vsel %vm911, %v910, %v847
      %v976 = vrot.slane %v559, 6
      %v977 = vrot.slane %v561, 6
      %v978 = vrot.slane %v564, 6
      %v979 = vrot.slane %v566, 6
      %v980 = vrot.slane %v569, 6
      %v981 = vrot.slane %v571, 6
      %v982 = vrot.slane %v574, 6
      %v983 = vrot.slane %v576, 6
      %v984 = vrot.slane %v579, 6
      %v985 = vrot.slane %v581, 6
      %v986 = vrot.slane %v584, 6
      %v987 = vrot.slane %v586, 6
      %v988 = vrot.slane %v589, 6
      %v989 = vrot.slane %v591, 6
      %v990 = vrot.slane %v594, 6
      %v991 = vrot.slane %v596, 6
      %v992 = vrot.slane %v599, 6
      %v993 = vrot.slane %v601, 6
      %v994 = vrot.slane %v604, 6
      %v995 = vrot.slane %v606, 6
      %v996 = vrot.slane %v609, 6
      %v997 = vrot.slane %v611, 6
      %v998 = vrot.slane %v614, 6
      %v999 = vrot.slane %v616, 6
      %v1000 = vrot.slane %v619, 6
      %v1001 = vrot.slane %v621, 6
      %v1002 = vrot.slane %v624, 6
      %v1003 = vrot.slane %v626, 6
      %v1004 = vrot.slane %v629, 6
      %v1005 = vrot.slane %v631, 6
      %v1006 = vrot.slane %v634, 6
      %v1007 = vrot.slane %v636, 6
      %v1008 = vrot.slane %v639, 6
      %v1009 = vrot.slane %v641, 6
      %v1010 = vrot.slane %v644, 6
      %v1011 = vrot.slane %v646, 6
      %v1012 = vrot.slane %v649, 6
      %v1013 = vrot.slane %v651, 6
      %v1014 = vrot.slane %v654, 6
      %v1015 = vrot.slane %v656, 6
      %v1016 = vrot.slane %v659, 6
      %v1017 = vrot.slane %v661, 6
      %v1018 = vrot.slane %v664, 6
      %v1019 = vrot.slane %v666, 6
      %v1020 = vrot.slane %v669, 6
      %v1021 = vrot.slane %v671, 6
      %v1022 = vrot.slane %v674, 6
      %v1023 = vrot.slane %v676, 6
      %v1024 = vrot.slane %v679, 6
      %v1025 = vrot.slane %v681, 6
      %v1026 = vrot.slane %v684, 6
      %v1027 = vrot.slane %v686, 6
      %v1028 = vrot.slane %v689, 6
      %v1029 = vrot.slane %v691, 6
      %v1030 = vrot.slane %v694, 6
      %v1031 = vrot.slane %v696, 6
      %v1032 = vrot.slane %v699, 6
      %v1033 = vrot.slane %v701, 6
      %v1034 = vrot.slane %v704, 6
      %v1035 = vrot.slane %v706, 6
      %v1036 = vrot.slane %v709, 6
      %v1037 = vrot.slane %v711, 6
      %v1038 = vrot.slane %v714, 6
      %v1039 = vrot.slane %v716, 6
      %vm1040 = vcmp.lt.s32.totalorder %v301, 2
      %v1041 = vsel %vm1040, %v1038, %v1039
      %v1042 = vsel %vm1040, %v1037, %v1038
      %v1043 = vsel %vm1040, %v1036, %v1037
      %v1044 = vsel %vm1040, %v1035, %v1036
      %v1045 = vsel %vm1040, %v1034, %v1035
      %v1046 = vsel %vm1040, %v1033, %v1034
      %v1047 = vsel %vm1040, %v1032, %v1033
      %v1048 = vsel %vm1040, %v1031, %v1032
      %v1049 = vsel %vm1040, %v1030, %v1031
      %v1050 = vsel %vm1040, %v1029, %v1030
      %v1051 = vsel %vm1040, %v1028, %v1029
      %v1052 = vsel %vm1040, %v1027, %v1028
      %v1053 = vsel %vm1040, %v1026, %v1027
      %v1054 = vsel %vm1040, %v1025, %v1026
      %v1055 = vsel %vm1040, %v1024, %v1025
      %v1056 = vsel %vm1040, %v1023, %v1024
      %v1057 = vsel %vm1040, %v1022, %v1023
      %v1058 = vsel %vm1040, %v1021, %v1022
      %v1059 = vsel %vm1040, %v1020, %v1021
      %v1060 = vsel %vm1040, %v1019, %v1020
      %v1061 = vsel %vm1040, %v1018, %v1019
      %v1062 = vsel %vm1040, %v1017, %v1018
      %v1063 = vsel %vm1040, %v1016, %v1017
      %v1064 = vsel %vm1040, %v1015, %v1016
      %v1065 = vsel %vm1040, %v1014, %v1015
      %v1066 = vsel %vm1040, %v1013, %v1014
      %v1067 = vsel %vm1040, %v1012, %v1013
      %v1068 = vsel %vm1040, %v1011, %v1012
      %v1069 = vsel %vm1040, %v1010, %v1011
      %v1070 = vsel %vm1040, %v1009, %v1010
      %v1071 = vsel %vm1040, %v1008, %v1009
      %v1072 = vsel %vm1040, %v1007, %v1008
      %v1073 = vsel %vm1040, %v1006, %v1007
      %v1074 = vsel %vm1040, %v1005, %v1006
      %v1075 = vsel %vm1040, %v1004, %v1005
      %v1076 = vsel %vm1040, %v1003, %v1004
      %v1077 = vsel %vm1040, %v1002, %v1003
      %v1078 = vsel %vm1040, %v1001, %v1002
      %v1079 = vsel %vm1040, %v1000, %v1001
      %v1080 = vsel %vm1040, %v999, %v1000
      %v1081 = vsel %vm1040, %v998, %v999
      %v1082 = vsel %vm1040, %v997, %v998
      %v1083 = vsel %vm1040, %v996, %v997
      %v1084 = vsel %vm1040, %v995, %v996
      %v1085 = vsel %vm1040, %v994, %v995
      %v1086 = vsel %vm1040, %v993, %v994
      %v1087 = vsel %vm1040, %v992, %v993
      %v1088 = vsel %vm1040, %v991, %v992
      %v1089 = vsel %vm1040, %v990, %v991
      %v1090 = vsel %vm1040, %v989, %v990
      %v1091 = vsel %vm1040, %v988, %v989
      %v1092 = vsel %vm1040, %v987, %v988
      %v1093 = vsel %vm1040, %v986, %v987
      %v1094 = vsel %vm1040, %v985, %v986
      %v1095 = vsel %vm1040, %v984, %v985
      %v1096 = vsel %vm1040, %v983, %v984
      %v1097 = vsel %vm1040, %v982, %v983
      %v1098 = vsel %vm1040, %v981, %v982
      %v1099 = vsel %vm1040, %v980, %v981
      %v1100 = vsel %vm1040, %v979, %v980
      %v1101 = vsel %vm1040, %v978, %v979
      %v1102 = vsel %vm1040, %v977, %v978
      %v1103 = vsel %vm1040, %v976, %v977
      %v1104 = vsel %vm1040, %v1039, %v976
      %v1105 = vrot.slane %v559, 7
      %v1106 = vrot.slane %v561, 7
      %v1107 = vrot.slane %v564, 7
      %v1108 = vrot.slane %v566, 7
      %v1109 = vrot.slane %v569, 7
      %v1110 = vrot.slane %v571, 7
      %v1111 = vrot.slane %v574, 7
      %v1112 = vrot.slane %v576, 7
      %v1113 = vrot.slane %v579, 7
      %v1114 = vrot.slane %v581, 7
      %v1115 = vrot.slane %v584, 7
      %v1116 = vrot.slane %v586, 7
      %v1117 = vrot.slane %v589, 7
      %v1118 = vrot.slane %v591, 7
      %v1119 = vrot.slane %v594, 7
      %v1120 = vrot.slane %v596, 7
      %v1121 = vrot.slane %v599, 7
      %v1122 = vrot.slane %v601, 7
      %v1123 = vrot.slane %v604, 7
      %v1124 = vrot.slane %v606, 7
      %v1125 = vrot.slane %v609, 7
      %v1126 = vrot.slane %v611, 7
      %v1127 = vrot.slane %v614, 7
      %v1128 = vrot.slane %v616, 7
      %v1129 = vrot.slane %v619, 7
      %v1130 = vrot.slane %v621, 7
      %v1131 = vrot.slane %v624, 7
      %v1132 = vrot.slane %v626, 7
      %v1133 = vrot.slane %v629, 7
      %v1134 = vrot.slane %v631, 7
      %v1135 = vrot.slane %v634, 7
      %v1136 = vrot.slane %v636, 7
      %v1137 = vrot.slane %v639, 7
      %v1138 = vrot.slane %v641, 7
      %v1139 = vrot.slane %v644, 7
      %v1140 = vrot.slane %v646, 7
      %v1141 = vrot.slane %v649, 7
      %v1142 = vrot.slane %v651, 7
      %v1143 = vrot.slane %v654, 7
      %v1144 = vrot.slane %v656, 7
      %v1145 = vrot.slane %v659, 7
      %v1146 = vrot.slane %v661, 7
      %v1147 = vrot.slane %v664, 7
      %v1148 = vrot.slane %v666, 7
      %v1149 = vrot.slane %v669, 7
      %v1150 = vrot.slane %v671, 7
      %v1151 = vrot.slane %v674, 7
      %v1152 = vrot.slane %v676, 7
      %v1153 = vrot.slane %v679, 7
      %v1154 = vrot.slane %v681, 7
      %v1155 = vrot.slane %v684, 7
      %v1156 = vrot.slane %v686, 7
      %v1157 = vrot.slane %v689, 7
      %v1158 = vrot.slane %v691, 7
      %v1159 = vrot.slane %v694, 7
      %v1160 = vrot.slane %v696, 7
      %v1161 = vrot.slane %v699, 7
      %v1162 = vrot.slane %v701, 7
      %v1163 = vrot.slane %v704, 7
      %v1164 = vrot.slane %v706, 7
      %v1165 = vrot.slane %v709, 7
      %v1166 = vrot.slane %v711, 7
      %v1167 = vrot.slane %v714, 7
      %v1168 = vrot.slane %v716, 7
      %vm1169 = vcmp.lt.s32.totalorder %v301, 1
      %v1170 = vsel %vm1169, %v1167, %v1168
      %v1171 = vsel %vm1169, %v1166, %v1167
      %v1172 = vsel %vm1169, %v1165, %v1166
      %v1173 = vsel %vm1169, %v1164, %v1165
      %v1174 = vsel %vm1169, %v1163, %v1164
      %v1175 = vsel %vm1169, %v1162, %v1163
      %v1176 = vsel %vm1169, %v1161, %v1162
      %v1177 = vsel %vm1169, %v1160, %v1161
      %v1178 = vsel %vm1169, %v1159, %v1160
      %v1179 = vsel %vm1169, %v1158, %v1159
      %v1180 = vsel %vm1169, %v1157, %v1158
      %v1181 = vsel %vm1169, %v1156, %v1157
      %v1182 = vsel %vm1169, %v1155, %v1156
      %v1183 = vsel %vm1169, %v1154, %v1155
      %v1184 = vsel %vm1169, %v1153, %v1154
      %v1185 = vsel %vm1169, %v1152, %v1153
      %v1186 = vsel %vm1169, %v1151, %v1152
      %v1187 = vsel %vm1169, %v1150, %v1151
      %v1188 = vsel %vm1169, %v1149, %v1150
      %v1189 = vsel %vm1169, %v1148, %v1149
      %v1190 = vsel %vm1169, %v1147, %v1148
      %v1191 = vsel %vm1169, %v1146, %v1147
      %v1192 = vsel %vm1169, %v1145, %v1146
      %v1193 = vsel %vm1169, %v1144, %v1145
      %v1194 = vsel %vm1169, %v1143, %v1144
      %v1195 = vsel %vm1169, %v1142, %v1143
      %v1196 = vsel %vm1169, %v1141, %v1142
      %v1197 = vsel %vm1169, %v1140, %v1141
      %v1198 = vsel %vm1169, %v1139, %v1140
      %v1199 = vsel %vm1169, %v1138, %v1139
      %v1200 = vsel %vm1169, %v1137, %v1138
      %v1201 = vsel %vm1169, %v1136, %v1137
      %v1202 = vsel %vm1169, %v1135, %v1136
      %v1203 = vsel %vm1169, %v1134, %v1135
      %v1204 = vsel %vm1169, %v1133, %v1134
      %v1205 = vsel %vm1169, %v1132, %v1133
      %v1206 = vsel %vm1169, %v1131, %v1132
      %v1207 = vsel %vm1169, %v1130, %v1131
      %v1208 = vsel %vm1169, %v1129, %v1130
      %v1209 = vsel %vm1169, %v1128, %v1129
      %v1210 = vsel %vm1169, %v1127, %v1128
      %v1211 = vsel %vm1169, %v1126, %v1127
      %v1212 = vsel %vm1169, %v1125, %v1126
      %v1213 = vsel %vm1169, %v1124, %v1125
      %v1214 = vsel %vm1169, %v1123, %v1124
      %v1215 = vsel %vm1169, %v1122, %v1123
      %v1216 = vsel %vm1169, %v1121, %v1122
      %v1217 = vsel %vm1169, %v1120, %v1121
      %v1218 = vsel %vm1169, %v1119, %v1120
      %v1219 = vsel %vm1169, %v1118, %v1119
      %v1220 = vsel %vm1169, %v1117, %v1118
      %v1221 = vsel %vm1169, %v1116, %v1117
      %v1222 = vsel %vm1169, %v1115, %v1116
      %v1223 = vsel %vm1169, %v1114, %v1115
      %v1224 = vsel %vm1169, %v1113, %v1114
      %v1225 = vsel %vm1169, %v1112, %v1113
      %v1226 = vsel %vm1169, %v1111, %v1112
      %v1227 = vsel %vm1169, %v1110, %v1111
      %v1228 = vsel %vm1169, %v1109, %v1110
      %v1229 = vsel %vm1169, %v1108, %v1109
      %v1230 = vsel %vm1169, %v1107, %v1108
      %v1231 = vsel %vm1169, %v1106, %v1107
      %v1232 = vsel %vm1169, %v1105, %v1106
      %v1233 = vsel %vm1169, %v1168, %v1105
      %v1234 = vrot.slane %v559, 1
      %v1235 = vrot.slane %v561, 1
      %v1236 = vrot.slane %v564, 1
      %v1237 = vrot.slane %v566, 1
      %v1238 = vrot.slane %v569, 1
      %v1239 = vrot.slane %v571, 1
      %v1240 = vrot.slane %v574, 1
      %v1241 = vrot.slane %v576, 1
      %v1242 = vrot.slane %v579, 1
      %v1243 = vrot.slane %v581, 1
      %v1244 = vrot.slane %v584, 1
      %v1245 = vrot.slane %v586, 1
      %v1246 = vrot.slane %v589, 1
      %v1247 = vrot.slane %v591, 1
      %v1248 = vrot.slane %v594, 1
      %v1249 = vrot.slane %v596, 1
      %v1250 = vrot.slane %v599, 1
      %v1251 = vrot.slane %v601, 1
      %v1252 = vrot.slane %v604, 1
      %v1253 = vrot.slane %v606, 1
      %v1254 = vrot.slane %v609, 1
      %v1255 = vrot.slane %v611, 1
      %v1256 = vrot.slane %v614, 1
      %v1257 = vrot.slane %v616, 1
      %v1258 = vrot.slane %v619, 1
      %v1259 = vrot.slane %v621, 1
      %v1260 = vrot.slane %v624, 1
      %v1261 = vrot.slane %v626, 1
      %v1262 = vrot.slane %v629, 1
      %v1263 = vrot.slane %v631, 1
      %v1264 = vrot.slane %v634, 1
      %v1265 = vrot.slane %v636, 1
      %v1266 = vrot.slane %v639, 1
      %v1267 = vrot.slane %v641, 1
      %v1268 = vrot.slane %v644, 1
      %v1269 = vrot.slane %v646, 1
      %v1270 = vrot.slane %v649, 1
      %v1271 = vrot.slane %v651, 1
      %v1272 = vrot.slane %v654, 1
      %v1273 = vrot.slane %v656, 1
      %v1274 = vrot.slane %v659, 1
      %v1275 = vrot.slane %v661, 1
      %v1276 = vrot.slane %v664, 1
      %v1277 = vrot.slane %v666, 1
      %v1278 = vrot.slane %v669, 1
      %v1279 = vrot.slane %v671, 1
      %v1280 = vrot.slane %v674, 1
      %v1281 = vrot.slane %v676, 1
      %v1282 = vrot.slane %v679, 1
      %v1283 = vrot.slane %v681, 1
      %v1284 = vrot.slane %v684, 1
      %v1285 = vrot.slane %v686, 1
      %v1286 = vrot.slane %v689, 1
      %v1287 = vrot.slane %v691, 1
      %v1288 = vrot.slane %v694, 1
      %v1289 = vrot.slane %v696, 1
      %v1290 = vrot.slane %v699, 1
      %v1291 = vrot.slane %v701, 1
      %v1292 = vrot.slane %v704, 1
      %v1293 = vrot.slane %v706, 1
      %v1294 = vrot.slane %v709, 1
      %v1295 = vrot.slane %v711, 1
      %v1296 = vrot.slane %v714, 1
      %v1297 = vrot.slane %v716, 1
      %vm1298 = vcmp.lt.s32.totalorder %v301, 7
      %v1299 = vsel %vm1298, %v1296, %v1297
      %v1300 = vsel %vm1298, %v1295, %v1296
      %v1301 = vsel %vm1298, %v1294, %v1295
      %v1302 = vsel %vm1298, %v1293, %v1294
      %v1303 = vsel %vm1298, %v1292, %v1293
      %v1304 = vsel %vm1298, %v1291, %v1292
      %v1305 = vsel %vm1298, %v1290, %v1291
      %v1306 = vsel %vm1298, %v1289, %v1290
      %v1307 = vsel %vm1298, %v1288, %v1289
      %v1308 = vsel %vm1298, %v1287, %v1288
      %v1309 = vsel %vm1298, %v1286, %v1287
      %v1310 = vsel %vm1298, %v1285, %v1286
      %v1311 = vsel %vm1298, %v1284, %v1285
      %v1312 = vsel %vm1298, %v1283, %v1284
      %v1313 = vsel %vm1298, %v1282, %v1283
      %v1314 = vsel %vm1298, %v1281, %v1282
      %v1315 = vsel %vm1298, %v1280, %v1281
      %v1316 = vsel %vm1298, %v1279, %v1280
      %v1317 = vsel %vm1298, %v1278, %v1279
      %v1318 = vsel %vm1298, %v1277, %v1278
      %v1319 = vsel %vm1298, %v1276, %v1277
      %v1320 = vsel %vm1298, %v1275, %v1276
      %v1321 = vsel %vm1298, %v1274, %v1275
      %v1322 = vsel %vm1298, %v1273, %v1274
      %v1323 = vsel %vm1298, %v1272, %v1273
      %v1324 = vsel %vm1298, %v1271, %v1272
      %v1325 = vsel %vm1298, %v1270, %v1271
      %v1326 = vsel %vm1298, %v1269, %v1270
      %v1327 = vsel %vm1298, %v1268, %v1269
      %v1328 = vsel %vm1298, %v1267, %v1268
      %v1329 = vsel %vm1298, %v1266, %v1267
      %v1330 = vsel %vm1298, %v1265, %v1266
      %v1331 = vsel %vm1298, %v1264, %v1265
      %v1332 = vsel %vm1298, %v1263, %v1264
      %v1333 = vsel %vm1298, %v1262, %v1263
      %v1334 = vsel %vm1298, %v1261, %v1262
      %v1335 = vsel %vm1298, %v1260, %v1261
      %v1336 = vsel %vm1298, %v1259, %v1260
      %v1337 = vsel %vm1298, %v1258, %v1259
      %v1338 = vsel %vm1298, %v1257, %v1258
      %v1339 = vsel %vm1298, %v1256, %v1257
      %v1340 = vsel %vm1298, %v1255, %v1256
      %v1341 = vsel %vm1298, %v1254, %v1255
      %v1342 = vsel %vm1298, %v1253, %v1254
      %v1343 = vsel %vm1298, %v1252, %v1253
      %v1344 = vsel %vm1298, %v1251, %v1252
      %v1345 = vsel %vm1298, %v1250, %v1251
      %v1346 = vsel %vm1298, %v1249, %v1250
      %v1347 = vsel %vm1298, %v1248, %v1249
      %v1348 = vsel %vm1298, %v1247, %v1248
      %v1349 = vsel %vm1298, %v1246, %v1247
      %v1350 = vsel %vm1298, %v1245, %v1246
      %v1351 = vsel %vm1298, %v1244, %v1245
      %v1352 = vsel %vm1298, %v1243, %v1244
      %v1353 = vsel %vm1298, %v1242, %v1243
      %v1354 = vsel %vm1298, %v1241, %v1242
      %v1355 = vsel %vm1298, %v1240, %v1241
      %v1356 = vsel %vm1298, %v1239, %v1240
      %v1357 = vsel %vm1298, %v1238, %v1239
      %v1358 = vsel %vm1298, %v1237, %v1238
      %v1359 = vsel %vm1298, %v1236, %v1237
      %v1360 = vsel %vm1298, %v1235, %v1236
      %v1361 = vsel %vm1298, %v1234, %v1235
      %v1362 = vsel %vm1298, %v1297, %v1234
      %v1363 = vrot.slane %v559, 2
      %v1364 = vrot.slane %v561, 2
      %v1365 = vrot.slane %v564, 2
      %v1366 = vrot.slane %v566, 2
      %v1367 = vrot.slane %v569, 2
      %v1368 = vrot.slane %v571, 2
      %v1369 = vrot.slane %v574, 2
      %v1370 = vrot.slane %v576, 2
      %v1371 = vrot.slane %v579, 2
      %v1372 = vrot.slane %v581, 2
      %v1373 = vrot.slane %v584, 2
      %v1374 = vrot.slane %v586, 2
      %v1375 = vrot.slane %v589, 2
      %v1376 = vrot.slane %v591, 2
      %v1377 = vrot.slane %v594, 2
      %v1378 = vrot.slane %v596, 2
      %v1379 = vrot.slane %v599, 2
      %v1380 = vrot.slane %v601, 2
      %v1381 = vrot.slane %v604, 2
      %v1382 = vrot.slane %v606, 2
      %v1383 = vrot.slane %v609, 2
      %v1384 = vrot.slane %v611, 2
      %v1385 = vrot.slane %v614, 2
      %v1386 = vrot.slane %v616, 2
      %v1387 = vrot.slane %v619, 2
      %v1388 = vrot.slane %v621, 2
      %v1389 = vrot.slane %v624, 2
      %v1390 = vrot.slane %v626, 2
      %v1391 = vrot.slane %v629, 2
      %v1392 = vrot.slane %v631, 2
      %v1393 = vrot.slane %v634, 2
      %v1394 = vrot.slane %v636, 2
      %v1395 = vrot.slane %v639, 2
      %v1396 = vrot.slane %v641, 2
      %v1397 = vrot.slane %v644, 2
      %v1398 = vrot.slane %v646, 2
      %v1399 = vrot.slane %v649, 2
      %v1400 = vrot.slane %v651, 2
      %v1401 = vrot.slane %v654, 2
      %v1402 = vrot.slane %v656, 2
      %v1403 = vrot.slane %v659, 2
      %v1404 = vrot.slane %v661, 2
      %v1405 = vrot.slane %v664, 2
      %v1406 = vrot.slane %v666, 2
      %v1407 = vrot.slane %v669, 2
      %v1408 = vrot.slane %v671, 2
      %v1409 = vrot.slane %v674, 2
      %v1410 = vrot.slane %v676, 2
      %v1411 = vrot.slane %v679, 2
      %v1412 = vrot.slane %v681, 2
      %v1413 = vrot.slane %v684, 2
      %v1414 = vrot.slane %v686, 2
      %v1415 = vrot.slane %v689, 2
      %v1416 = vrot.slane %v691, 2
      %v1417 = vrot.slane %v694, 2
      %v1418 = vrot.slane %v696, 2
      %v1419 = vrot.slane %v699, 2
      %v1420 = vrot.slane %v701, 2
      %v1421 = vrot.slane %v704, 2
      %v1422 = vrot.slane %v706, 2
      %v1423 = vrot.slane %v709, 2
      %v1424 = vrot.slane %v711, 2
      %v1425 = vrot.slane %v714, 2
      %v1426 = vrot.slane %v716, 2
      %vm1427 = vcmp.lt.s32.totalorder %v301, 6
      %v1428 = vsel %vm1427, %v1425, %v1426
      %v1429 = vsel %vm1427, %v1424, %v1425
      %v1430 = vsel %vm1427, %v1423, %v1424
      %v1431 = vsel %vm1427, %v1422, %v1423
      %v1432 = vsel %vm1427, %v1421, %v1422
      %v1433 = vsel %vm1427, %v1420, %v1421
      %v1434 = vsel %vm1427, %v1419, %v1420
      %v1435 = vsel %vm1427, %v1418, %v1419
      %v1436 = vsel %vm1427, %v1417, %v1418
      %v1437 = vsel %vm1427, %v1416, %v1417
      %v1438 = vsel %vm1427, %v1415, %v1416
      %v1439 = vsel %vm1427, %v1414, %v1415
      %v1440 = vsel %vm1427, %v1413, %v1414
      %v1441 = vsel %vm1427, %v1412, %v1413
      %v1442 = vsel %vm1427, %v1411, %v1412
      %v1443 = vsel %vm1427, %v1410, %v1411
      %v1444 = vsel %vm1427, %v1409, %v1410
      %v1445 = vsel %vm1427, %v1408, %v1409
      %v1446 = vsel %vm1427, %v1407, %v1408
      %v1447 = vsel %vm1427, %v1406, %v1407
      %v1448 = vsel %vm1427, %v1405, %v1406
      %v1449 = vsel %vm1427, %v1404, %v1405
      %v1450 = vsel %vm1427, %v1403, %v1404
      %v1451 = vsel %vm1427, %v1402, %v1403
      %v1452 = vsel %vm1427, %v1401, %v1402
      %v1453 = vsel %vm1427, %v1400, %v1401
      %v1454 = vsel %vm1427, %v1399, %v1400
      %v1455 = vsel %vm1427, %v1398, %v1399
      %v1456 = vsel %vm1427, %v1397, %v1398
      %v1457 = vsel %vm1427, %v1396, %v1397
      %v1458 = vsel %vm1427, %v1395, %v1396
      %v1459 = vsel %vm1427, %v1394, %v1395
      %v1460 = vsel %vm1427, %v1393, %v1394
      %v1461 = vsel %vm1427, %v1392, %v1393
      %v1462 = vsel %vm1427, %v1391, %v1392
      %v1463 = vsel %vm1427, %v1390, %v1391
      %v1464 = vsel %vm1427, %v1389, %v1390
      %v1465 = vsel %vm1427, %v1388, %v1389
      %v1466 = vsel %vm1427, %v1387, %v1388
      %v1467 = vsel %vm1427, %v1386, %v1387
      %v1468 = vsel %vm1427, %v1385, %v1386
      %v1469 = vsel %vm1427, %v1384, %v1385
      %v1470 = vsel %vm1427, %v1383, %v1384
      %v1471 = vsel %vm1427, %v1382, %v1383
      %v1472 = vsel %vm1427, %v1381, %v1382
      %v1473 = vsel %vm1427, %v1380, %v1381
      %v1474 = vsel %vm1427, %v1379, %v1380
      %v1475 = vsel %vm1427, %v1378, %v1379
      %v1476 = vsel %vm1427, %v1377, %v1378
      %v1477 = vsel %vm1427, %v1376, %v1377
      %v1478 = vsel %vm1427, %v1375, %v1376
      %v1479 = vsel %vm1427, %v1374, %v1375
      %v1480 = vsel %vm1427, %v1373, %v1374
      %v1481 = vsel %vm1427, %v1372, %v1373
      %v1482 = vsel %vm1427, %v1371, %v1372
      %v1483 = vsel %vm1427, %v1370, %v1371
      %v1484 = vsel %vm1427, %v1369, %v1370
      %v1485 = vsel %vm1427, %v1368, %v1369
      %v1486 = vsel %vm1427, %v1367, %v1368
      %v1487 = vsel %vm1427, %v1366, %v1367
      %v1488 = vsel %vm1427, %v1365, %v1366
      %v1489 = vsel %vm1427, %v1364, %v1365
      %v1490 = vsel %vm1427, %v1363, %v1364
      %v1491 = vsel %vm1427, %v1426, %v1363
      %v1492 = vrot.slane %v559, 3
      %v1493 = vrot.slane %v561, 3
      %v1494 = vrot.slane %v564, 3
      %v1495 = vrot.slane %v566, 3
      %v1496 = vrot.slane %v569, 3
      %v1497 = vrot.slane %v571, 3
      %v1498 = vrot.slane %v574, 3
      %v1499 = vrot.slane %v576, 3
      %v1500 = vrot.slane %v579, 3
      %v1501 = vrot.slane %v581, 3
      %v1502 = vrot.slane %v584, 3
      %v1503 = vrot.slane %v586, 3
      %v1504 = vrot.slane %v589, 3
      %v1505 = vrot.slane %v591, 3
      %v1506 = vrot.slane %v594, 3
      %v1507 = vrot.slane %v596, 3
      %v1508 = vrot.slane %v599, 3
      %v1509 = vrot.slane %v601, 3
      %v1510 = vrot.slane %v604, 3
      %v1511 = vrot.slane %v606, 3
      %v1512 = vrot.slane %v609, 3
      %v1513 = vrot.slane %v611, 3
      %v1514 = vrot.slane %v614, 3
      %v1515 = vrot.slane %v616, 3
      %v1516 = vrot.slane %v619, 3
      %v1517 = vrot.slane %v621, 3
      %v1518 = vrot.slane %v624, 3
      %v1519 = vrot.slane %v626, 3
      %v1520 = vrot.slane %v629, 3
      %v1521 = vrot.slane %v631, 3
      %v1522 = vrot.slane %v634, 3
      %v1523 = vrot.slane %v636, 3
      %v1524 = vrot.slane %v639, 3
      %v1525 = vrot.slane %v641, 3
      %v1526 = vrot.slane %v644, 3
      %v1527 = vrot.slane %v646, 3
      %v1528 = vrot.slane %v649, 3
      %v1529 = vrot.slane %v651, 3
      %v1530 = vrot.slane %v654, 3
      %v1531 = vrot.slane %v656, 3
      %v1532 = vrot.slane %v659, 3
      %v1533 = vrot.slane %v661, 3
      %v1534 = vrot.slane %v664, 3
      %v1535 = vrot.slane %v666, 3
      %v1536 = vrot.slane %v669, 3
      %v1537 = vrot.slane %v671, 3
      %v1538 = vrot.slane %v674, 3
      %v1539 = vrot.slane %v676, 3
      %v1540 = vrot.slane %v679, 3
      %v1541 = vrot.slane %v681, 3
      %v1542 = vrot.slane %v684, 3
      %v1543 = vrot.slane %v686, 3
      %v1544 = vrot.slane %v689, 3
      %v1545 = vrot.slane %v691, 3
      %v1546 = vrot.slane %v694, 3
      %v1547 = vrot.slane %v696, 3
      %v1548 = vrot.slane %v699, 3
      %v1549 = vrot.slane %v701, 3
      %v1550 = vrot.slane %v704, 3
      %v1551 = vrot.slane %v706, 3
      %v1552 = vrot.slane %v709, 3
      %v1553 = vrot.slane %v711, 3
      %v1554 = vrot.slane %v714, 3
      %v1555 = vrot.slane %v716, 3
      %vm1556 = vcmp.lt.s32.totalorder %v301, 5
      %v1557 = vsel %vm1556, %v1554, %v1555
      %v1558 = vsel %vm1556, %v1553, %v1554
      %v1559 = vsel %vm1556, %v1552, %v1553
      %v1560 = vsel %vm1556, %v1551, %v1552
      %v1561 = vsel %vm1556, %v1550, %v1551
      %v1562 = vsel %vm1556, %v1549, %v1550
      %v1563 = vsel %vm1556, %v1548, %v1549
      %v1564 = vsel %vm1556, %v1547, %v1548
      %v1565 = vsel %vm1556, %v1546, %v1547
      %v1566 = vsel %vm1556, %v1545, %v1546
      %v1567 = vsel %vm1556, %v1544, %v1545
      %v1568 = vsel %vm1556, %v1543, %v1544
      %v1569 = vsel %vm1556, %v1542, %v1543
      %v1570 = vsel %vm1556, %v1541, %v1542
      %v1571 = vsel %vm1556, %v1540, %v1541
      %v1572 = vsel %vm1556, %v1539, %v1540
      %v1573 = vsel %vm1556, %v1538, %v1539
      %v1574 = vsel %vm1556, %v1537, %v1538
      %v1575 = vsel %vm1556, %v1536, %v1537
      %v1576 = vsel %vm1556, %v1535, %v1536
      %v1577 = vsel %vm1556, %v1534, %v1535
      %v1578 = vsel %vm1556, %v1533, %v1534
      %v1579 = vsel %vm1556, %v1532, %v1533
      %v1580 = vsel %vm1556, %v1531, %v1532
      %v1581 = vsel %vm1556, %v1530, %v1531
      %v1582 = vsel %vm1556, %v1529, %v1530
      %v1583 = vsel %vm1556, %v1528, %v1529
      %v1584 = vsel %vm1556, %v1527, %v1528
      %v1585 = vsel %vm1556, %v1526, %v1527
      %v1586 = vsel %vm1556, %v1525, %v1526
      %v1587 = vsel %vm1556, %v1524, %v1525
      %v1588 = vsel %vm1556, %v1523, %v1524
      %v1589 = vsel %vm1556, %v1522, %v1523
      %v1590 = vsel %vm1556, %v1521, %v1522
      %v1591 = vsel %vm1556, %v1520, %v1521
      %v1592 = vsel %vm1556, %v1519, %v1520
      %v1593 = vsel %vm1556, %v1518, %v1519
      %v1594 = vsel %vm1556, %v1517, %v1518
      %v1595 = vsel %vm1556, %v1516, %v1517
      %v1596 = vsel %vm1556, %v1515, %v1516
      %v1597 = vsel %vm1556, %v1514, %v1515
      %v1598 = vsel %vm1556, %v1513, %v1514
      %v1599 = vsel %vm1556, %v1512, %v1513
      %v1600 = vsel %vm1556, %v1511, %v1512
      %v1601 = vsel %vm1556, %v1510, %v1511
      %v1602 = vsel %vm1556, %v1509, %v1510
      %v1603 = vsel %vm1556, %v1508, %v1509
      %v1604 = vsel %vm1556, %v1507, %v1508
      %v1605 = vsel %vm1556, %v1506, %v1507
      %v1606 = vsel %vm1556, %v1505, %v1506
      %v1607 = vsel %vm1556, %v1504, %v1505
      %v1608 = vsel %vm1556, %v1503, %v1504
      %v1609 = vsel %vm1556, %v1502, %v1503
      %v1610 = vsel %vm1556, %v1501, %v1502
      %v1611 = vsel %vm1556, %v1500, %v1501
      %v1612 = vsel %vm1556, %v1499, %v1500
      %v1613 = vsel %vm1556, %v1498, %v1499
      %v1614 = vsel %vm1556, %v1497, %v1498
      %v1615 = vsel %vm1556, %v1496, %v1497
      %v1616 = vsel %vm1556, %v1495, %v1496
      %v1617 = vsel %vm1556, %v1494, %v1495
      %v1618 = vsel %vm1556, %v1493, %v1494
      %v1619 = vsel %vm1556, %v1492, %v1493
      %v1620 = vsel %vm1556, %v1555, %v1492
      %1685 = vrot.lane.b32.xlu0 %v975, 1
      %v1686 = vpop.permute.xlu0 %1685
      %1687 = vrot.lane.b32.xlu0 %v974, 1
      %v1688 = vpop.permute.xlu0 %1687
      %1689 = vrot.lane.b32.xlu0 %v973, 1
      %v1690 = vpop.permute.xlu0 %1689
      %1691 = vrot.lane.b32.xlu0 %v972, 1
      %v1692 = vpop.permute.xlu0 %1691
      %1693 = vrot.lane.b32.xlu0 %v971, 1
      %v1694 = vpop.permute.xlu0 %1693
      %1695 = vrot.lane.b32.xlu0 %v970, 1
      %v1696 = vpop.permute.xlu0 %1695
      %1697 = vrot.lane.b32.xlu0 %v969, 1
      %v1698 = vpop.permute.xlu0 %1697
      %1699 = vrot.lane.b32.xlu0 %v968, 1
      %v1700 = vpop.permute.xlu0 %1699
      %1701 = vrot.lane.b32.xlu0 %v967, 1
      %v1702 = vpop.permute.xlu0 %1701
      %1703 = vrot.lane.b32.xlu0 %v966, 1
      %v1704 = vpop.permute.xlu0 %1703
      %1705 = vrot.lane.b32.xlu0 %v965, 1
      %v1706 = vpop.permute.xlu0 %1705
      %1707 = vrot.lane.b32.xlu0 %v964, 1
      %v1708 = vpop.permute.xlu0 %1707
      %1709 = vrot.lane.b32.xlu0 %v963, 1
      %v1710 = vpop.permute.xlu0 %1709
      %1711 = vrot.lane.b32.xlu0 %v962, 1
      %v1712 = vpop.permute.xlu0 %1711
      %1713 = vrot.lane.b32.xlu0 %v961, 1
      %v1714 = vpop.permute.xlu0 %1713
      %1715 = vrot.lane.b32.xlu0 %v960, 1
      %v1716 = vpop.permute.xlu0 %1715
      %1717 = vrot.lane.b32.xlu0 %v959, 1
      %v1718 = vpop.permute.xlu0 %1717
      %1719 = vrot.lane.b32.xlu0 %v958, 1
      %v1720 = vpop.permute.xlu0 %1719
      %1721 = vrot.lane.b32.xlu0 %v957, 1
      %v1722 = vpop.permute.xlu0 %1721
      %1723 = vrot.lane.b32.xlu0 %v956, 1
      %v1724 = vpop.permute.xlu0 %1723
      %1725 = vrot.lane.b32.xlu0 %v955, 1
      %v1726 = vpop.permute.xlu0 %1725
      %1727 = vrot.lane.b32.xlu0 %v954, 1
      %v1728 = vpop.permute.xlu0 %1727
      %1729 = vrot.lane.b32.xlu0 %v953, 1
      %v1730 = vpop.permute.xlu0 %1729
      %1731 = vrot.lane.b32.xlu0 %v952, 1
      %v1732 = vpop.permute.xlu0 %1731
      %1733 = vrot.lane.b32.xlu0 %v951, 1
      %v1734 = vpop.permute.xlu0 %1733
      %1735 = vrot.lane.b32.xlu0 %v950, 1
      %v1736 = vpop.permute.xlu0 %1735
      %1737 = vrot.lane.b32.xlu0 %v949, 1
      %v1738 = vpop.permute.xlu0 %1737
      %1739 = vrot.lane.b32.xlu0 %v948, 1
      %v1740 = vpop.permute.xlu0 %1739
      %1741 = vrot.lane.b32.xlu0 %v947, 1
      %v1742 = vpop.permute.xlu0 %1741
      %1743 = vrot.lane.b32.xlu0 %v946, 1
      %v1744 = vpop.permute.xlu0 %1743
      %1745 = vrot.lane.b32.xlu0 %v945, 1
      %v1746 = vpop.permute.xlu0 %1745
      %1747 = vrot.lane.b32.xlu0 %v944, 1
      %v1748 = vpop.permute.xlu0 %1747
      %1749 = vrot.lane.b32.xlu0 %v943, 1
      %v1750 = vpop.permute.xlu0 %1749
      %1751 = vrot.lane.b32.xlu0 %v942, 1
      %v1752 = vpop.permute.xlu0 %1751
      %1753 = vrot.lane.b32.xlu0 %v941, 1
      %v1754 = vpop.permute.xlu0 %1753
      %1755 = vrot.lane.b32.xlu0 %v940, 1
      %v1756 = vpop.permute.xlu0 %1755
      %1757 = vrot.lane.b32.xlu0 %v939, 1
      %v1758 = vpop.permute.xlu0 %1757
      %1759 = vrot.lane.b32.xlu0 %v938, 1
      %v1760 = vpop.permute.xlu0 %1759
      %1761 = vrot.lane.b32.xlu0 %v937, 1
      %v1762 = vpop.permute.xlu0 %1761
      %1763 = vrot.lane.b32.xlu0 %v936, 1
      %v1764 = vpop.permute.xlu0 %1763
      %1765 = vrot.lane.b32.xlu0 %v935, 1
      %v1766 = vpop.permute.xlu0 %1765
      %1767 = vrot.lane.b32.xlu0 %v934, 1
      %v1768 = vpop.permute.xlu0 %1767
      %1769 = vrot.lane.b32.xlu0 %v933, 1
      %v1770 = vpop.permute.xlu0 %1769
      %1771 = vrot.lane.b32.xlu0 %v932, 1
      %v1772 = vpop.permute.xlu0 %1771
      %1773 = vrot.lane.b32.xlu0 %v931, 1
      %v1774 = vpop.permute.xlu0 %1773
      %1775 = vrot.lane.b32.xlu0 %v930, 1
      %v1776 = vpop.permute.xlu0 %1775
      %1777 = vrot.lane.b32.xlu0 %v929, 1
      %v1778 = vpop.permute.xlu0 %1777
      %1779 = vrot.lane.b32.xlu0 %v928, 1
      %v1780 = vpop.permute.xlu0 %1779
      %1781 = vrot.lane.b32.xlu0 %v927, 1
      %v1782 = vpop.permute.xlu0 %1781
      %1783 = vrot.lane.b32.xlu0 %v926, 1
      %v1784 = vpop.permute.xlu0 %1783
      %1785 = vrot.lane.b32.xlu0 %v925, 1
      %v1786 = vpop.permute.xlu0 %1785
      %1787 = vrot.lane.b32.xlu0 %v924, 1
      %v1788 = vpop.permute.xlu0 %1787
      %1789 = vrot.lane.b32.xlu0 %v923, 1
      %v1790 = vpop.permute.xlu0 %1789
      %1791 = vrot.lane.b32.xlu0 %v922, 1
      %v1792 = vpop.permute.xlu0 %1791
      %1793 = vrot.lane.b32.xlu0 %v921, 1
      %v1794 = vpop.permute.xlu0 %1793
      %1795 = vrot.lane.b32.xlu0 %v920, 1
      %v1796 = vpop.permute.xlu0 %1795
      %1797 = vrot.lane.b32.xlu0 %v919, 1
      %v1798 = vpop.permute.xlu0 %1797
      %1799 = vrot.lane.b32.xlu0 %v918, 1
      %v1800 = vpop.permute.xlu0 %1799
      %1801 = vrot.lane.b32.xlu0 %v917, 1
      %v1802 = vpop.permute.xlu0 %1801
      %1803 = vrot.lane.b32.xlu0 %v916, 1
      %v1804 = vpop.permute.xlu0 %1803
      %1805 = vrot.lane.b32.xlu0 %v915, 1
      %v1806 = vpop.permute.xlu0 %1805
      %1807 = vrot.lane.b32.xlu0 %v914, 1
      %v1808 = vpop.permute.xlu0 %1807
      %1809 = vrot.lane.b32.xlu0 %v913, 1
      %v1810 = vpop.permute.xlu0 %1809
      %1811 = vrot.lane.b32.xlu0 %v912, 1
      %v1812 = vpop.permute.xlu0 %1811
      %1941 = vrot.lane.b32.xlu0 %v1104, 2
      %v1942 = vpop.permute.xlu0 %1941
      %1943 = vrot.lane.b32.xlu0 %v1103, 2
      %v1944 = vpop.permute.xlu0 %1943
      %1945 = vrot.lane.b32.xlu0 %v1102, 2
      %v1946 = vpop.permute.xlu0 %1945
      %1947 = vrot.lane.b32.xlu0 %v1101, 2
      %v1948 = vpop.permute.xlu0 %1947
      %1949 = vrot.lane.b32.xlu0 %v1100, 2
      %v1950 = vpop.permute.xlu0 %1949
      %1951 = vrot.lane.b32.xlu0 %v1099, 2
      %v1952 = vpop.permute.xlu0 %1951
      %1953 = vrot.lane.b32.xlu0 %v1098, 2
      %v1954 = vpop.permute.xlu0 %1953
      %1955 = vrot.lane.b32.xlu0 %v1097, 2
      %v1956 = vpop.permute.xlu0 %1955
      %1957 = vrot.lane.b32.xlu0 %v1096, 2
      %v1958 = vpop.permute.xlu0 %1957
      %1959 = vrot.lane.b32.xlu0 %v1095, 2
      %v1960 = vpop.permute.xlu0 %1959
      %1961 = vrot.lane.b32.xlu0 %v1094, 2
      %v1962 = vpop.permute.xlu0 %1961
      %1963 = vrot.lane.b32.xlu0 %v1093, 2
      %v1964 = vpop.permute.xlu0 %1963
      %1965 = vrot.lane.b32.xlu0 %v1092, 2
      %v1966 = vpop.permute.xlu0 %1965
      %1967 = vrot.lane.b32.xlu0 %v1091, 2
      %v1968 = vpop.permute.xlu0 %1967
      %1969 = vrot.lane.b32.xlu0 %v1090, 2
      %v1970 = vpop.permute.xlu0 %1969
      %1971 = vrot.lane.b32.xlu0 %v1089, 2
      %v1972 = vpop.permute.xlu0 %1971
      %1973 = vrot.lane.b32.xlu0 %v1088, 2
      %v1974 = vpop.permute.xlu0 %1973
      %1975 = vrot.lane.b32.xlu0 %v1087, 2
      %v1976 = vpop.permute.xlu0 %1975
      %1977 = vrot.lane.b32.xlu0 %v1086, 2
      %v1978 = vpop.permute.xlu0 %1977
      %1979 = vrot.lane.b32.xlu0 %v1085, 2
      %v1980 = vpop.permute.xlu0 %1979
      %1981 = vrot.lane.b32.xlu0 %v1084, 2
      %v1982 = vpop.permute.xlu0 %1981
      %1983 = vrot.lane.b32.xlu0 %v1083, 2
      %v1984 = vpop.permute.xlu0 %1983
      %1985 = vrot.lane.b32.xlu0 %v1082, 2
      %v1986 = vpop.permute.xlu0 %1985
      %1987 = vrot.lane.b32.xlu0 %v1081, 2
      %v1988 = vpop.permute.xlu0 %1987
      %1989 = vrot.lane.b32.xlu0 %v1080, 2
      %v1990 = vpop.permute.xlu0 %1989
      %1991 = vrot.lane.b32.xlu0 %v1079, 2
      %v1992 = vpop.permute.xlu0 %1991
      %1993 = vrot.lane.b32.xlu0 %v1078, 2
      %v1994 = vpop.permute.xlu0 %1993
      %1995 = vrot.lane.b32.xlu0 %v1077, 2
      %v1996 = vpop.permute.xlu0 %1995
      %1997 = vrot.lane.b32.xlu0 %v1076, 2
      %v1998 = vpop.permute.xlu0 %1997
      %1999 = vrot.lane.b32.xlu0 %v1075, 2
      %v2000 = vpop.permute.xlu0 %1999
      %2001 = vrot.lane.b32.xlu0 %v1074, 2
      %v2002 = vpop.permute.xlu0 %2001
      %2003 = vrot.lane.b32.xlu0 %v1073, 2
      %v2004 = vpop.permute.xlu0 %2003
      %2005 = vrot.lane.b32.xlu0 %v1072, 2
      %v2006 = vpop.permute.xlu0 %2005
      %2007 = vrot.lane.b32.xlu0 %v1071, 2
      %v2008 = vpop.permute.xlu0 %2007
      %2009 = vrot.lane.b32.xlu0 %v1070, 2
      %v2010 = vpop.permute.xlu0 %2009
      %2011 = vrot.lane.b32.xlu0 %v1069, 2
      %v2012 = vpop.permute.xlu0 %2011
      %2013 = vrot.lane.b32.xlu0 %v1068, 2
      %v2014 = vpop.permute.xlu0 %2013
      %2015 = vrot.lane.b32.xlu0 %v1067, 2
      %v2016 = vpop.permute.xlu0 %2015
      %2017 = vrot.lane.b32.xlu0 %v1066, 2
      %v2018 = vpop.permute.xlu0 %2017
      %2019 = vrot.lane.b32.xlu0 %v1065, 2
      %v2020 = vpop.permute.xlu0 %2019
      %2021 = vrot.lane.b32.xlu0 %v1064, 2
      %v2022 = vpop.permute.xlu0 %2021
      %2023 = vrot.lane.b32.xlu0 %v1063, 2
      %v2024 = vpop.permute.xlu0 %2023
      %2025 = vrot.lane.b32.xlu0 %v1062, 2
      %v2026 = vpop.permute.xlu0 %2025
      %2027 = vrot.lane.b32.xlu0 %v1061, 2
      %v2028 = vpop.permute.xlu0 %2027
      %2029 = vrot.lane.b32.xlu0 %v1060, 2
      %v2030 = vpop.permute.xlu0 %2029
      %2031 = vrot.lane.b32.xlu0 %v1059, 2
      %v2032 = vpop.permute.xlu0 %2031
      %2033 = vrot.lane.b32.xlu0 %v1058, 2
      %v2034 = vpop.permute.xlu0 %2033
      %2035 = vrot.lane.b32.xlu0 %v1057, 2
      %v2036 = vpop.permute.xlu0 %2035
      %2037 = vrot.lane.b32.xlu0 %v1056, 2
      %v2038 = vpop.permute.xlu0 %2037
      %2039 = vrot.lane.b32.xlu0 %v1055, 2
      %v2040 = vpop.permute.xlu0 %2039
      %2041 = vrot.lane.b32.xlu0 %v1054, 2
      %v2042 = vpop.permute.xlu0 %2041
      %2043 = vrot.lane.b32.xlu0 %v1053, 2
      %v2044 = vpop.permute.xlu0 %2043
      %2045 = vrot.lane.b32.xlu0 %v1052, 2
      %v2046 = vpop.permute.xlu0 %2045
      %2047 = vrot.lane.b32.xlu0 %v1051, 2
      %v2048 = vpop.permute.xlu0 %2047
      %2049 = vrot.lane.b32.xlu0 %v1050, 2
      %v2050 = vpop.permute.xlu0 %2049
      %2051 = vrot.lane.b32.xlu0 %v1049, 2
      %v2052 = vpop.permute.xlu0 %2051
      %2053 = vrot.lane.b32.xlu0 %v1048, 2
      %v2054 = vpop.permute.xlu0 %2053
      %2055 = vrot.lane.b32.xlu0 %v1047, 2
      %v2056 = vpop.permute.xlu0 %2055
      %2057 = vrot.lane.b32.xlu0 %v1046, 2
      %v2058 = vpop.permute.xlu0 %2057
      %2059 = vrot.lane.b32.xlu0 %v1045, 2
      %v2060 = vpop.permute.xlu0 %2059
      %2061 = vrot.lane.b32.xlu0 %v1044, 2
      %v2062 = vpop.permute.xlu0 %2061
      %2063 = vrot.lane.b32.xlu0 %v1043, 2
      %v2064 = vpop.permute.xlu0 %2063
      %2065 = vrot.lane.b32.xlu0 %v1042, 2
      %v2066 = vpop.permute.xlu0 %2065
      %2067 = vrot.lane.b32.xlu0 %v1041, 2
      %v2068 = vpop.permute.xlu0 %2067
      %2197 = vrot.lane.b32.xlu0 %v1233, 3
      %v2198 = vpop.permute.xlu0 %2197
      %2199 = vrot.lane.b32.xlu0 %v1232, 3
      %v2200 = vpop.permute.xlu0 %2199
      %2201 = vrot.lane.b32.xlu0 %v1231, 3
      %v2202 = vpop.permute.xlu0 %2201
      %2203 = vrot.lane.b32.xlu0 %v1230, 3
      %v2204 = vpop.permute.xlu0 %2203
      %2205 = vrot.lane.b32.xlu0 %v1229, 3
      %v2206 = vpop.permute.xlu0 %2205
      %2207 = vrot.lane.b32.xlu0 %v1228, 3
      %v2208 = vpop.permute.xlu0 %2207
      %2209 = vrot.lane.b32.xlu0 %v1227, 3
      %v2210 = vpop.permute.xlu0 %2209
      %2211 = vrot.lane.b32.xlu0 %v1226, 3
      %v2212 = vpop.permute.xlu0 %2211
      %2213 = vrot.lane.b32.xlu0 %v1225, 3
      %v2214 = vpop.permute.xlu0 %2213
      %2215 = vrot.lane.b32.xlu0 %v1224, 3
      %v2216 = vpop.permute.xlu0 %2215
      %2217 = vrot.lane.b32.xlu0 %v1223, 3
      %v2218 = vpop.permute.xlu0 %2217
      %2219 = vrot.lane.b32.xlu0 %v1222, 3
      %v2220 = vpop.permute.xlu0 %2219
      %2221 = vrot.lane.b32.xlu0 %v1221, 3
      %v2222 = vpop.permute.xlu0 %2221
      %2223 = vrot.lane.b32.xlu0 %v1220, 3
      %v2224 = vpop.permute.xlu0 %2223
      %2225 = vrot.lane.b32.xlu0 %v1219, 3
      %v2226 = vpop.permute.xlu0 %2225
      %2227 = vrot.lane.b32.xlu0 %v1218, 3
      %v2228 = vpop.permute.xlu0 %2227
      %2229 = vrot.lane.b32.xlu0 %v1217, 3
      %v2230 = vpop.permute.xlu0 %2229
      %2231 = vrot.lane.b32.xlu0 %v1216, 3
      %v2232 = vpop.permute.xlu0 %2231
      %2233 = vrot.lane.b32.xlu0 %v1215, 3
      %v2234 = vpop.permute.xlu0 %2233
      %2235 = vrot.lane.b32.xlu0 %v1214, 3
      %v2236 = vpop.permute.xlu0 %2235
      %2237 = vrot.lane.b32.xlu0 %v1213, 3
      %v2238 = vpop.permute.xlu0 %2237
      %2239 = vrot.lane.b32.xlu0 %v1212, 3
      %v2240 = vpop.permute.xlu0 %2239
      %2241 = vrot.lane.b32.xlu0 %v1211, 3
      %v2242 = vpop.permute.xlu0 %2241
      %2243 = vrot.lane.b32.xlu0 %v1210, 3
      %v2244 = vpop.permute.xlu0 %2243
      %2245 = vrot.lane.b32.xlu0 %v1209, 3
      %v2246 = vpop.permute.xlu0 %2245
      %2247 = vrot.lane.b32.xlu0 %v1208, 3
      %v2248 = vpop.permute.xlu0 %2247
      %2249 = vrot.lane.b32.xlu0 %v1207, 3
      %v2250 = vpop.permute.xlu0 %2249
      %2251 = vrot.lane.b32.xlu0 %v1206, 3
      %v2252 = vpop.permute.xlu0 %2251
      %2253 = vrot.lane.b32.xlu0 %v1205, 3
      %v2254 = vpop.permute.xlu0 %2253
      %2255 = vrot.lane.b32.xlu0 %v1204, 3
      %v2256 = vpop.permute.xlu0 %2255
      %2257 = vrot.lane.b32.xlu0 %v1203, 3
      %v2258 = vpop.permute.xlu0 %2257
      %2259 = vrot.lane.b32.xlu0 %v1202, 3
      %v2260 = vpop.permute.xlu0 %2259
      %2261 = vrot.lane.b32.xlu0 %v1201, 3
      %v2262 = vpop.permute.xlu0 %2261
      %2263 = vrot.lane.b32.xlu0 %v1200, 3
      %v2264 = vpop.permute.xlu0 %2263
      %2265 = vrot.lane.b32.xlu0 %v1199, 3
      %v2266 = vpop.permute.xlu0 %2265
      %2267 = vrot.lane.b32.xlu0 %v1198, 3
      %v2268 = vpop.permute.xlu0 %2267
      %2269 = vrot.lane.b32.xlu0 %v1197, 3
      %v2270 = vpop.permute.xlu0 %2269
      %2271 = vrot.lane.b32.xlu0 %v1196, 3
      %v2272 = vpop.permute.xlu0 %2271
      %2273 = vrot.lane.b32.xlu0 %v1195, 3
      %v2274 = vpop.permute.xlu0 %2273
      %2275 = vrot.lane.b32.xlu0 %v1194, 3
      %v2276 = vpop.permute.xlu0 %2275
      %2277 = vrot.lane.b32.xlu0 %v1193, 3
      %v2278 = vpop.permute.xlu0 %2277
      %2279 = vrot.lane.b32.xlu0 %v1192, 3
      %v2280 = vpop.permute.xlu0 %2279
      %2281 = vrot.lane.b32.xlu0 %v1191, 3
      %v2282 = vpop.permute.xlu0 %2281
      %2283 = vrot.lane.b32.xlu0 %v1190, 3
      %v2284 = vpop.permute.xlu0 %2283
      %2285 = vrot.lane.b32.xlu0 %v1189, 3
      %v2286 = vpop.permute.xlu0 %2285
      %2287 = vrot.lane.b32.xlu0 %v1188, 3
      %v2288 = vpop.permute.xlu0 %2287
      %2289 = vrot.lane.b32.xlu0 %v1187, 3
      %v2290 = vpop.permute.xlu0 %2289
      %2291 = vrot.lane.b32.xlu0 %v1186, 3
      %v2292 = vpop.permute.xlu0 %2291
      %2293 = vrot.lane.b32.xlu0 %v1185, 3
      %v2294 = vpop.permute.xlu0 %2293
      %2295 = vrot.lane.b32.xlu0 %v1184, 3
      %v2296 = vpop.permute.xlu0 %2295
      %2297 = vrot.lane.b32.xlu0 %v1183, 3
      %v2298 = vpop.permute.xlu0 %2297
      %2299 = vrot.lane.b32.xlu0 %v1182, 3
      %v2300 = vpop.permute.xlu0 %2299
      %2301 = vrot.lane.b32.xlu0 %v1181, 3
      %v2302 = vpop.permute.xlu0 %2301
      %2303 = vrot.lane.b32.xlu0 %v1180, 3
      %v2304 = vpop.permute.xlu0 %2303
      %2305 = vrot.lane.b32.xlu0 %v1179, 3
      %v2306 = vpop.permute.xlu0 %2305
      %2307 = vrot.lane.b32.xlu0 %v1178, 3
      %v2308 = vpop.permute.xlu0 %2307
      %2309 = vrot.lane.b32.xlu0 %v1177, 3
      %v2310 = vpop.permute.xlu0 %2309
      %2311 = vrot.lane.b32.xlu0 %v1176, 3
      %v2312 = vpop.permute.xlu0 %2311
      %2313 = vrot.lane.b32.xlu0 %v1175, 3
      %v2314 = vpop.permute.xlu0 %2313
      %2315 = vrot.lane.b32.xlu0 %v1174, 3
      %v2316 = vpop.permute.xlu0 %2315
      %2317 = vrot.lane.b32.xlu0 %v1173, 3
      %v2318 = vpop.permute.xlu0 %2317
      %2319 = vrot.lane.b32.xlu0 %v1172, 3
      %v2320 = vpop.permute.xlu0 %2319
      %2321 = vrot.lane.b32.xlu0 %v1171, 3
      %v2322 = vpop.permute.xlu0 %2321
      %2323 = vrot.lane.b32.xlu0 %v1170, 3
      %v2324 = vpop.permute.xlu0 %2323
      %2453 = vrot.lane.b32.xlu0 %v559, 4
      %v2454 = vpop.permute.xlu0 %2453
      %2455 = vrot.lane.b32.xlu0 %v561, 4
      %v2456 = vpop.permute.xlu0 %2455
      %2457 = vrot.lane.b32.xlu0 %v564, 4
      %v2458 = vpop.permute.xlu0 %2457
      %2459 = vrot.lane.b32.xlu0 %v566, 4
      %v2460 = vpop.permute.xlu0 %2459
      %2461 = vrot.lane.b32.xlu0 %v569, 4
      %v2462 = vpop.permute.xlu0 %2461
      %2463 = vrot.lane.b32.xlu0 %v571, 4
      %v2464 = vpop.permute.xlu0 %2463
      %2465 = vrot.lane.b32.xlu0 %v574, 4
      %v2466 = vpop.permute.xlu0 %2465
      %2467 = vrot.lane.b32.xlu0 %v576, 4
      %v2468 = vpop.permute.xlu0 %2467
      %2469 = vrot.lane.b32.xlu0 %v579, 4
      %v2470 = vpop.permute.xlu0 %2469
      %2471 = vrot.lane.b32.xlu0 %v581, 4
      %v2472 = vpop.permute.xlu0 %2471
      %2473 = vrot.lane.b32.xlu0 %v584, 4
      %v2474 = vpop.permute.xlu0 %2473
      %2475 = vrot.lane.b32.xlu0 %v586, 4
      %v2476 = vpop.permute.xlu0 %2475
      %2477 = vrot.lane.b32.xlu0 %v589, 4
      %v2478 = vpop.permute.xlu0 %2477
      %2479 = vrot.lane.b32.xlu0 %v591, 4
      %v2480 = vpop.permute.xlu0 %2479
      %2481 = vrot.lane.b32.xlu0 %v594, 4
      %v2482 = vpop.permute.xlu0 %2481
      %2483 = vrot.lane.b32.xlu0 %v596, 4
      %v2484 = vpop.permute.xlu0 %2483
      %2485 = vrot.lane.b32.xlu0 %v599, 4
      %v2486 = vpop.permute.xlu0 %2485
      %2487 = vrot.lane.b32.xlu0 %v601, 4
      %v2488 = vpop.permute.xlu0 %2487
      %2489 = vrot.lane.b32.xlu0 %v604, 4
      %v2490 = vpop.permute.xlu0 %2489
      %2491 = vrot.lane.b32.xlu0 %v606, 4
      %v2492 = vpop.permute.xlu0 %2491
      %2493 = vrot.lane.b32.xlu0 %v609, 4
      %v2494 = vpop.permute.xlu0 %2493
      %2495 = vrot.lane.b32.xlu0 %v611, 4
      %v2496 = vpop.permute.xlu0 %2495
      %2497 = vrot.lane.b32.xlu0 %v614, 4
      %v2498 = vpop.permute.xlu0 %2497
      %2499 = vrot.lane.b32.xlu0 %v616, 4
      %v2500 = vpop.permute.xlu0 %2499
      %2501 = vrot.lane.b32.xlu0 %v619, 4
      %v2502 = vpop.permute.xlu0 %2501
      %2503 = vrot.lane.b32.xlu0 %v621, 4
      %v2504 = vpop.permute.xlu0 %2503
      %2505 = vrot.lane.b32.xlu0 %v624, 4
      %v2506 = vpop.permute.xlu0 %2505
      %2507 = vrot.lane.b32.xlu0 %v626, 4
      %v2508 = vpop.permute.xlu0 %2507
      %2509 = vrot.lane.b32.xlu0 %v629, 4
      %v2510 = vpop.permute.xlu0 %2509
      %2511 = vrot.lane.b32.xlu0 %v631, 4
      %v2512 = vpop.permute.xlu0 %2511
      %2513 = vrot.lane.b32.xlu0 %v634, 4
      %v2514 = vpop.permute.xlu0 %2513
      %2515 = vrot.lane.b32.xlu0 %v636, 4
      %v2516 = vpop.permute.xlu0 %2515
      %2517 = vrot.lane.b32.xlu0 %v639, 4
      %v2518 = vpop.permute.xlu0 %2517
      %2519 = vrot.lane.b32.xlu0 %v641, 4
      %v2520 = vpop.permute.xlu0 %2519
      %2521 = vrot.lane.b32.xlu0 %v644, 4
      %v2522 = vpop.permute.xlu0 %2521
      %2523 = vrot.lane.b32.xlu0 %v646, 4
      %v2524 = vpop.permute.xlu0 %2523
      %2525 = vrot.lane.b32.xlu0 %v649, 4
      %v2526 = vpop.permute.xlu0 %2525
      %2527 = vrot.lane.b32.xlu0 %v651, 4
      %v2528 = vpop.permute.xlu0 %2527
      %2529 = vrot.lane.b32.xlu0 %v654, 4
      %v2530 = vpop.permute.xlu0 %2529
      %2531 = vrot.lane.b32.xlu0 %v656, 4
      %v2532 = vpop.permute.xlu0 %2531
      %2533 = vrot.lane.b32.xlu0 %v659, 4
      %v2534 = vpop.permute.xlu0 %2533
      %2535 = vrot.lane.b32.xlu0 %v661, 4
      %v2536 = vpop.permute.xlu0 %2535
      %2537 = vrot.lane.b32.xlu0 %v664, 4
      %v2538 = vpop.permute.xlu0 %2537
      %2539 = vrot.lane.b32.xlu0 %v666, 4
      %v2540 = vpop.permute.xlu0 %2539
      %2541 = vrot.lane.b32.xlu0 %v669, 4
      %v2542 = vpop.permute.xlu0 %2541
      %2543 = vrot.lane.b32.xlu0 %v671, 4
      %v2544 = vpop.permute.xlu0 %2543
      %2545 = vrot.lane.b32.xlu0 %v674, 4
      %v2546 = vpop.permute.xlu0 %2545
      %2547 = vrot.lane.b32.xlu0 %v676, 4
      %v2548 = vpop.permute.xlu0 %2547
      %2549 = vrot.lane.b32.xlu0 %v679, 4
      %v2550 = vpop.permute.xlu0 %2549
      %2551 = vrot.lane.b32.xlu0 %v681, 4
      %v2552 = vpop.permute.xlu0 %2551
      %2553 = vrot.lane.b32.xlu0 %v684, 4
      %v2554 = vpop.permute.xlu0 %2553
      %2555 = vrot.lane.b32.xlu0 %v686, 4
      %v2556 = vpop.permute.xlu0 %2555
      %2557 = vrot.lane.b32.xlu0 %v689, 4
      %v2558 = vpop.permute.xlu0 %2557
      %2559 = vrot.lane.b32.xlu0 %v691, 4
      %v2560 = vpop.permute.xlu0 %2559
      %2561 = vrot.lane.b32.xlu0 %v694, 4
      %v2562 = vpop.permute.xlu0 %2561
      %2563 = vrot.lane.b32.xlu0 %v696, 4
      %v2564 = vpop.permute.xlu0 %2563
      %2565 = vrot.lane.b32.xlu0 %v699, 4
      %v2566 = vpop.permute.xlu0 %2565
      %2567 = vrot.lane.b32.xlu0 %v701, 4
      %v2568 = vpop.permute.xlu0 %2567
      %2569 = vrot.lane.b32.xlu0 %v704, 4
      %v2570 = vpop.permute.xlu0 %2569
      %2571 = vrot.lane.b32.xlu0 %v706, 4
      %v2572 = vpop.permute.xlu0 %2571
      %2573 = vrot.lane.b32.xlu0 %v709, 4
      %v2574 = vpop.permute.xlu0 %2573
      %2575 = vrot.lane.b32.xlu0 %v711, 4
      %v2576 = vpop.permute.xlu0 %2575
      %2577 = vrot.lane.b32.xlu0 %v714, 4
      %v2578 = vpop.permute.xlu0 %2577
      %2579 = vrot.lane.b32.xlu0 %v716, 4
      %v2580 = vpop.permute.xlu0 %2579
      %2709 = vrot.lane.b32.xlu0 %v1361, 5
      %v2710 = vpop.permute.xlu0 %2709
      %2711 = vrot.lane.b32.xlu0 %v1360, 5
      %v2712 = vpop.permute.xlu0 %2711
      %2713 = vrot.lane.b32.xlu0 %v1359, 5
      %v2714 = vpop.permute.xlu0 %2713
      %2715 = vrot.lane.b32.xlu0 %v1358, 5
      %v2716 = vpop.permute.xlu0 %2715
      %2717 = vrot.lane.b32.xlu0 %v1357, 5
      %v2718 = vpop.permute.xlu0 %2717
      %2719 = vrot.lane.b32.xlu0 %v1356, 5
      %v2720 = vpop.permute.xlu0 %2719
      %2721 = vrot.lane.b32.xlu0 %v1355, 5
      %v2722 = vpop.permute.xlu0 %2721
      %2723 = vrot.lane.b32.xlu0 %v1354, 5
      %v2724 = vpop.permute.xlu0 %2723
      %2725 = vrot.lane.b32.xlu0 %v1353, 5
      %v2726 = vpop.permute.xlu0 %2725
      %2727 = vrot.lane.b32.xlu0 %v1352, 5
      %v2728 = vpop.permute.xlu0 %2727
      %2729 = vrot.lane.b32.xlu0 %v1351, 5
      %v2730 = vpop.permute.xlu0 %2729
      %2731 = vrot.lane.b32.xlu0 %v1350, 5
      %v2732 = vpop.permute.xlu0 %2731
      %2733 = vrot.lane.b32.xlu0 %v1349, 5
      %v2734 = vpop.permute.xlu0 %2733
      %2735 = vrot.lane.b32.xlu0 %v1348, 5
      %v2736 = vpop.permute.xlu0 %2735
      %2737 = vrot.lane.b32.xlu0 %v1347, 5
      %v2738 = vpop.permute.xlu0 %2737
      %2739 = vrot.lane.b32.xlu0 %v1346, 5
      %v2740 = vpop.permute.xlu0 %2739
      %2741 = vrot.lane.b32.xlu0 %v1345, 5
      %v2742 = vpop.permute.xlu0 %2741
      %2743 = vrot.lane.b32.xlu0 %v1344, 5
      %v2744 = vpop.permute.xlu0 %2743
      %2745 = vrot.lane.b32.xlu0 %v1343, 5
      %v2746 = vpop.permute.xlu0 %2745
      %2747 = vrot.lane.b32.xlu0 %v1342, 5
      %v2748 = vpop.permute.xlu0 %2747
      %2749 = vrot.lane.b32.xlu0 %v1341, 5
      %v2750 = vpop.permute.xlu0 %2749
      %2751 = vrot.lane.b32.xlu0 %v1340, 5
      %v2752 = vpop.permute.xlu0 %2751
      %2753 = vrot.lane.b32.xlu0 %v1339, 5
      %v2754 = vpop.permute.xlu0 %2753
      %2755 = vrot.lane.b32.xlu0 %v1338, 5
      %v2756 = vpop.permute.xlu0 %2755
      %2757 = vrot.lane.b32.xlu0 %v1337, 5
      %v2758 = vpop.permute.xlu0 %2757
      %2759 = vrot.lane.b32.xlu0 %v1336, 5
      %v2760 = vpop.permute.xlu0 %2759
      %2761 = vrot.lane.b32.xlu0 %v1335, 5
      %v2762 = vpop.permute.xlu0 %2761
      %2763 = vrot.lane.b32.xlu0 %v1334, 5
      %v2764 = vpop.permute.xlu0 %2763
      %2765 = vrot.lane.b32.xlu0 %v1333, 5
      %v2766 = vpop.permute.xlu0 %2765
      %2767 = vrot.lane.b32.xlu0 %v1332, 5
      %v2768 = vpop.permute.xlu0 %2767
      %2769 = vrot.lane.b32.xlu0 %v1331, 5
      %v2770 = vpop.permute.xlu0 %2769
      %2771 = vrot.lane.b32.xlu0 %v1330, 5
      %v2772 = vpop.permute.xlu0 %2771
      %2773 = vrot.lane.b32.xlu0 %v1329, 5
      %v2774 = vpop.permute.xlu0 %2773
      %2775 = vrot.lane.b32.xlu0 %v1328, 5
      %v2776 = vpop.permute.xlu0 %2775
      %2777 = vrot.lane.b32.xlu0 %v1327, 5
      %v2778 = vpop.permute.xlu0 %2777
      %2779 = vrot.lane.b32.xlu0 %v1326, 5
      %v2780 = vpop.permute.xlu0 %2779
      %2781 = vrot.lane.b32.xlu0 %v1325, 5
      %v2782 = vpop.permute.xlu0 %2781
      %2783 = vrot.lane.b32.xlu0 %v1324, 5
      %v2784 = vpop.permute.xlu0 %2783
      %2785 = vrot.lane.b32.xlu0 %v1323, 5
      %v2786 = vpop.permute.xlu0 %2785
      %2787 = vrot.lane.b32.xlu0 %v1322, 5
      %v2788 = vpop.permute.xlu0 %2787
      %2789 = vrot.lane.b32.xlu0 %v1321, 5
      %v2790 = vpop.permute.xlu0 %2789
      %2791 = vrot.lane.b32.xlu0 %v1320, 5
      %v2792 = vpop.permute.xlu0 %2791
      %2793 = vrot.lane.b32.xlu0 %v1319, 5
      %v2794 = vpop.permute.xlu0 %2793
      %2795 = vrot.lane.b32.xlu0 %v1318, 5
      %v2796 = vpop.permute.xlu0 %2795
      %2797 = vrot.lane.b32.xlu0 %v1317, 5
      %v2798 = vpop.permute.xlu0 %2797
      %2799 = vrot.lane.b32.xlu0 %v1316, 5
      %v2800 = vpop.permute.xlu0 %2799
      %2801 = vrot.lane.b32.xlu0 %v1315, 5
      %v2802 = vpop.permute.xlu0 %2801
      %2803 = vrot.lane.b32.xlu0 %v1314, 5
      %v2804 = vpop.permute.xlu0 %2803
      %2805 = vrot.lane.b32.xlu0 %v1313, 5
      %v2806 = vpop.permute.xlu0 %2805
      %2807 = vrot.lane.b32.xlu0 %v1312, 5
      %v2808 = vpop.permute.xlu0 %2807
      %2809 = vrot.lane.b32.xlu0 %v1311, 5
      %v2810 = vpop.permute.xlu0 %2809
      %2811 = vrot.lane.b32.xlu0 %v1310, 5
      %v2812 = vpop.permute.xlu0 %2811
      %2813 = vrot.lane.b32.xlu0 %v1309, 5
      %v2814 = vpop.permute.xlu0 %2813
      %2815 = vrot.lane.b32.xlu0 %v1308, 5
      %v2816 = vpop.permute.xlu0 %2815
      %2817 = vrot.lane.b32.xlu0 %v1307, 5
      %v2818 = vpop.permute.xlu0 %2817
      %2819 = vrot.lane.b32.xlu0 %v1306, 5
      %v2820 = vpop.permute.xlu0 %2819
      %2821 = vrot.lane.b32.xlu0 %v1305, 5
      %v2822 = vpop.permute.xlu0 %2821
      %2823 = vrot.lane.b32.xlu0 %v1304, 5
      %v2824 = vpop.permute.xlu0 %2823
      %2825 = vrot.lane.b32.xlu0 %v1303, 5
      %v2826 = vpop.permute.xlu0 %2825
      %2827 = vrot.lane.b32.xlu0 %v1302, 5
      %v2828 = vpop.permute.xlu0 %2827
      %2829 = vrot.lane.b32.xlu0 %v1301, 5
      %v2830 = vpop.permute.xlu0 %2829
      %2831 = vrot.lane.b32.xlu0 %v1300, 5
      %v2832 = vpop.permute.xlu0 %2831
      %2833 = vrot.lane.b32.xlu0 %v1299, 5
      %v2834 = vpop.permute.xlu0 %2833
      %2835 = vrot.lane.b32.xlu0 %v1362, 5
      %v2836 = vpop.permute.xlu0 %2835
      %2965 = vrot.lane.b32.xlu0 %v1490, 6
      %v2966 = vpop.permute.xlu0 %2965
      %2967 = vrot.lane.b32.xlu0 %v1489, 6
      %v2968 = vpop.permute.xlu0 %2967
      %2969 = vrot.lane.b32.xlu0 %v1488, 6
      %v2970 = vpop.permute.xlu0 %2969
      %2971 = vrot.lane.b32.xlu0 %v1487, 6
      %v2972 = vpop.permute.xlu0 %2971
      %2973 = vrot.lane.b32.xlu0 %v1486, 6
      %v2974 = vpop.permute.xlu0 %2973
      %2975 = vrot.lane.b32.xlu0 %v1485, 6
      %v2976 = vpop.permute.xlu0 %2975
      %2977 = vrot.lane.b32.xlu0 %v1484, 6
      %v2978 = vpop.permute.xlu0 %2977
      %2979 = vrot.lane.b32.xlu0 %v1483, 6
      %v2980 = vpop.permute.xlu0 %2979
      %2981 = vrot.lane.b32.xlu0 %v1482, 6
      %v2982 = vpop.permute.xlu0 %2981
      %2983 = vrot.lane.b32.xlu0 %v1481, 6
      %v2984 = vpop.permute.xlu0 %2983
      %2985 = vrot.lane.b32.xlu0 %v1480, 6
      %v2986 = vpop.permute.xlu0 %2985
      %2987 = vrot.lane.b32.xlu0 %v1479, 6
      %v2988 = vpop.permute.xlu0 %2987
      %2989 = vrot.lane.b32.xlu0 %v1478, 6
      %v2990 = vpop.permute.xlu0 %2989
      %2991 = vrot.lane.b32.xlu0 %v1477, 6
      %v2992 = vpop.permute.xlu0 %2991
      %2993 = vrot.lane.b32.xlu0 %v1476, 6
      %v2994 = vpop.permute.xlu0 %2993
      %2995 = vrot.lane.b32.xlu0 %v1475, 6
      %v2996 = vpop.permute.xlu0 %2995
      %2997 = vrot.lane.b32.xlu0 %v1474, 6
      %v2998 = vpop.permute.xlu0 %2997
      %2999 = vrot.lane.b32.xlu0 %v1473, 6
      %v3000 = vpop.permute.xlu0 %2999
      %3001 = vrot.lane.b32.xlu0 %v1472, 6
      %v3002 = vpop.permute.xlu0 %3001
      %3003 = vrot.lane.b32.xlu0 %v1471, 6
      %v3004 = vpop.permute.xlu0 %3003
      %3005 = vrot.lane.b32.xlu0 %v1470, 6
      %v3006 = vpop.permute.xlu0 %3005
      %3007 = vrot.lane.b32.xlu0 %v1469, 6
      %v3008 = vpop.permute.xlu0 %3007
      %3009 = vrot.lane.b32.xlu0 %v1468, 6
      %v3010 = vpop.permute.xlu0 %3009
      %3011 = vrot.lane.b32.xlu0 %v1467, 6
      %v3012 = vpop.permute.xlu0 %3011
      %3013 = vrot.lane.b32.xlu0 %v1466, 6
      %v3014 = vpop.permute.xlu0 %3013
      %3015 = vrot.lane.b32.xlu0 %v1465, 6
      %v3016 = vpop.permute.xlu0 %3015
      %3017 = vrot.lane.b32.xlu0 %v1464, 6
      %v3018 = vpop.permute.xlu0 %3017
      %3019 = vrot.lane.b32.xlu0 %v1463, 6
      %v3020 = vpop.permute.xlu0 %3019
      %3021 = vrot.lane.b32.xlu0 %v1462, 6
      %v3022 = vpop.permute.xlu0 %3021
      %3023 = vrot.lane.b32.xlu0 %v1461, 6
      %v3024 = vpop.permute.xlu0 %3023
      %3025 = vrot.lane.b32.xlu0 %v1460, 6
      %v3026 = vpop.permute.xlu0 %3025
      %3027 = vrot.lane.b32.xlu0 %v1459, 6
      %v3028 = vpop.permute.xlu0 %3027
      %3029 = vrot.lane.b32.xlu0 %v1458, 6
      %v3030 = vpop.permute.xlu0 %3029
      %3031 = vrot.lane.b32.xlu0 %v1457, 6
      %v3032 = vpop.permute.xlu0 %3031
      %3033 = vrot.lane.b32.xlu0 %v1456, 6
      %v3034 = vpop.permute.xlu0 %3033
      %3035 = vrot.lane.b32.xlu0 %v1455, 6
      %v3036 = vpop.permute.xlu0 %3035
      %3037 = vrot.lane.b32.xlu0 %v1454, 6
      %v3038 = vpop.permute.xlu0 %3037
      %3039 = vrot.lane.b32.xlu0 %v1453, 6
      %v3040 = vpop.permute.xlu0 %3039
      %3041 = vrot.lane.b32.xlu0 %v1452, 6
      %v3042 = vpop.permute.xlu0 %3041
      %3043 = vrot.lane.b32.xlu0 %v1451, 6
      %v3044 = vpop.permute.xlu0 %3043
      %3045 = vrot.lane.b32.xlu0 %v1450, 6
      %v3046 = vpop.permute.xlu0 %3045
      %3047 = vrot.lane.b32.xlu0 %v1449, 6
      %v3048 = vpop.permute.xlu0 %3047
      %3049 = vrot.lane.b32.xlu0 %v1448, 6
      %v3050 = vpop.permute.xlu0 %3049
      %3051 = vrot.lane.b32.xlu0 %v1447, 6
      %v3052 = vpop.permute.xlu0 %3051
      %3053 = vrot.lane.b32.xlu0 %v1446, 6
      %v3054 = vpop.permute.xlu0 %3053
      %3055 = vrot.lane.b32.xlu0 %v1445, 6
      %v3056 = vpop.permute.xlu0 %3055
      %3057 = vrot.lane.b32.xlu0 %v1444, 6
      %v3058 = vpop.permute.xlu0 %3057
      %3059 = vrot.lane.b32.xlu0 %v1443, 6
      %v3060 = vpop.permute.xlu0 %3059
      %3061 = vrot.lane.b32.xlu0 %v1442, 6
      %v3062 = vpop.permute.xlu0 %3061
      %3063 = vrot.lane.b32.xlu0 %v1441, 6
      %v3064 = vpop.permute.xlu0 %3063
      %3065 = vrot.lane.b32.xlu0 %v1440, 6
      %v3066 = vpop.permute.xlu0 %3065
      %3067 = vrot.lane.b32.xlu0 %v1439, 6
      %v3068 = vpop.permute.xlu0 %3067
      %3069 = vrot.lane.b32.xlu0 %v1438, 6
      %v3070 = vpop.permute.xlu0 %3069
      %3071 = vrot.lane.b32.xlu0 %v1437, 6
      %v3072 = vpop.permute.xlu0 %3071
      %3073 = vrot.lane.b32.xlu0 %v1436, 6
      %v3074 = vpop.permute.xlu0 %3073
      %3075 = vrot.lane.b32.xlu0 %v1435, 6
      %v3076 = vpop.permute.xlu0 %3075
      %3077 = vrot.lane.b32.xlu0 %v1434, 6
      %v3078 = vpop.permute.xlu0 %3077
      %3079 = vrot.lane.b32.xlu0 %v1433, 6
      %v3080 = vpop.permute.xlu0 %3079
      %3081 = vrot.lane.b32.xlu0 %v1432, 6
      %v3082 = vpop.permute.xlu0 %3081
      %3083 = vrot.lane.b32.xlu0 %v1431, 6
      %v3084 = vpop.permute.xlu0 %3083
      %3085 = vrot.lane.b32.xlu0 %v1430, 6
      %v3086 = vpop.permute.xlu0 %3085
      %3087 = vrot.lane.b32.xlu0 %v1429, 6
      %v3088 = vpop.permute.xlu0 %3087
      %3089 = vrot.lane.b32.xlu0 %v1428, 6
      %v3090 = vpop.permute.xlu0 %3089
      %3091 = vrot.lane.b32.xlu0 %v1491, 6
      %v3092 = vpop.permute.xlu0 %3091
      %3221 = vrot.lane.b32.xlu0 %v1619, 7
      %v3222 = vpop.permute.xlu0 %3221
      %3223 = vrot.lane.b32.xlu0 %v1618, 7
      %v3224 = vpop.permute.xlu0 %3223
      %3225 = vrot.lane.b32.xlu0 %v1617, 7
      %v3226 = vpop.permute.xlu0 %3225
      %3227 = vrot.lane.b32.xlu0 %v1616, 7
      %v3228 = vpop.permute.xlu0 %3227
      %3229 = vrot.lane.b32.xlu0 %v1615, 7
      %v3230 = vpop.permute.xlu0 %3229
      %3231 = vrot.lane.b32.xlu0 %v1614, 7
      %v3232 = vpop.permute.xlu0 %3231
      %3233 = vrot.lane.b32.xlu0 %v1613, 7
      %v3234 = vpop.permute.xlu0 %3233
      %3235 = vrot.lane.b32.xlu0 %v1612, 7
      %v3236 = vpop.permute.xlu0 %3235
      %3237 = vrot.lane.b32.xlu0 %v1611, 7
      %v3238 = vpop.permute.xlu0 %3237
      %3239 = vrot.lane.b32.xlu0 %v1610, 7
      %v3240 = vpop.permute.xlu0 %3239
      %3241 = vrot.lane.b32.xlu0 %v1609, 7
      %v3242 = vpop.permute.xlu0 %3241
      %3243 = vrot.lane.b32.xlu0 %v1608, 7
      %v3244 = vpop.permute.xlu0 %3243
      %3245 = vrot.lane.b32.xlu0 %v1607, 7
      %v3246 = vpop.permute.xlu0 %3245
      %3247 = vrot.lane.b32.xlu0 %v1606, 7
      %v3248 = vpop.permute.xlu0 %3247
      %3249 = vrot.lane.b32.xlu0 %v1605, 7
      %v3250 = vpop.permute.xlu0 %3249
      %3251 = vrot.lane.b32.xlu0 %v1604, 7
      %v3252 = vpop.permute.xlu0 %3251
      %3253 = vrot.lane.b32.xlu0 %v1603, 7
      %v3254 = vpop.permute.xlu0 %3253
      %3255 = vrot.lane.b32.xlu0 %v1602, 7
      %v3256 = vpop.permute.xlu0 %3255
      %3257 = vrot.lane.b32.xlu0 %v1601, 7
      %v3258 = vpop.permute.xlu0 %3257
      %3259 = vrot.lane.b32.xlu0 %v1600, 7
      %v3260 = vpop.permute.xlu0 %3259
      %3261 = vrot.lane.b32.xlu0 %v1599, 7
      %v3262 = vpop.permute.xlu0 %3261
      %3263 = vrot.lane.b32.xlu0 %v1598, 7
      %v3264 = vpop.permute.xlu0 %3263
      %3265 = vrot.lane.b32.xlu0 %v1597, 7
      %v3266 = vpop.permute.xlu0 %3265
      %3267 = vrot.lane.b32.xlu0 %v1596, 7
      %v3268 = vpop.permute.xlu0 %3267
      %3269 = vrot.lane.b32.xlu0 %v1595, 7
      %v3270 = vpop.permute.xlu0 %3269
      %3271 = vrot.lane.b32.xlu0 %v1594, 7
      %v3272 = vpop.permute.xlu0 %3271
      %3273 = vrot.lane.b32.xlu0 %v1593, 7
      %v3274 = vpop.permute.xlu0 %3273
      %3275 = vrot.lane.b32.xlu0 %v1592, 7
      %v3276 = vpop.permute.xlu0 %3275
      %3277 = vrot.lane.b32.xlu0 %v1591, 7
      %v3278 = vpop.permute.xlu0 %3277
      %3279 = vrot.lane.b32.xlu0 %v1590, 7
      %v3280 = vpop.permute.xlu0 %3279
      %3281 = vrot.lane.b32.xlu0 %v1589, 7
      %v3282 = vpop.permute.xlu0 %3281
      %3283 = vrot.lane.b32.xlu0 %v1588, 7
      %v3284 = vpop.permute.xlu0 %3283
      %3285 = vrot.lane.b32.xlu0 %v1587, 7
      %v3286 = vpop.permute.xlu0 %3285
      %3287 = vrot.lane.b32.xlu0 %v1586, 7
      %v3288 = vpop.permute.xlu0 %3287
      %3289 = vrot.lane.b32.xlu0 %v1585, 7
      %v3290 = vpop.permute.xlu0 %3289
      %3291 = vrot.lane.b32.xlu0 %v1584, 7
      %v3292 = vpop.permute.xlu0 %3291
      %3293 = vrot.lane.b32.xlu0 %v1583, 7
      %v3294 = vpop.permute.xlu0 %3293
      %3295 = vrot.lane.b32.xlu0 %v1582, 7
      %v3296 = vpop.permute.xlu0 %3295
      %3297 = vrot.lane.b32.xlu0 %v1581, 7
      %v3298 = vpop.permute.xlu0 %3297
      %3299 = vrot.lane.b32.xlu0 %v1580, 7
      %v3300 = vpop.permute.xlu0 %3299
      %3301 = vrot.lane.b32.xlu0 %v1579, 7
      %v3302 = vpop.permute.xlu0 %3301
      %3303 = vrot.lane.b32.xlu0 %v1578, 7
      %v3304 = vpop.permute.xlu0 %3303
      %3305 = vrot.lane.b32.xlu0 %v1577, 7
      %v3306 = vpop.permute.xlu0 %3305
      %3307 = vrot.lane.b32.xlu0 %v1576, 7
      %v3308 = vpop.permute.xlu0 %3307
      %3309 = vrot.lane.b32.xlu0 %v1575, 7
      %v3310 = vpop.permute.xlu0 %3309
      %3311 = vrot.lane.b32.xlu0 %v1574, 7
      %v3312 = vpop.permute.xlu0 %3311
      %3313 = vrot.lane.b32.xlu0 %v1573, 7
      %v3314 = vpop.permute.xlu0 %3313
      %3315 = vrot.lane.b32.xlu0 %v1572, 7
      %v3316 = vpop.permute.xlu0 %3315
      %3317 = vrot.lane.b32.xlu0 %v1571, 7
      %v3318 = vpop.permute.xlu0 %3317
      %3319 = vrot.lane.b32.xlu0 %v1570, 7
      %v3320 = vpop.permute.xlu0 %3319
      %3321 = vrot.lane.b32.xlu0 %v1569, 7
      %v3322 = vpop.permute.xlu0 %3321
      %3323 = vrot.lane.b32.xlu0 %v1568, 7
      %v3324 = vpop.permute.xlu0 %3323
      %3325 = vrot.lane.b32.xlu0 %v1567, 7
      %v3326 = vpop.permute.xlu0 %3325
      %3327 = vrot.lane.b32.xlu0 %v1566, 7
      %v3328 = vpop.permute.xlu0 %3327
      %3329 = vrot.lane.b32.xlu0 %v1565, 7
      %v3330 = vpop.permute.xlu0 %3329
      %3331 = vrot.lane.b32.xlu0 %v1564, 7
      %v3332 = vpop.permute.xlu0 %3331
      %3333 = vrot.lane.b32.xlu0 %v1563, 7
      %v3334 = vpop.permute.xlu0 %3333
      %3335 = vrot.lane.b32.xlu0 %v1562, 7
      %v3336 = vpop.permute.xlu0 %3335
      %3337 = vrot.lane.b32.xlu0 %v1561, 7
      %v3338 = vpop.permute.xlu0 %3337
      %3339 = vrot.lane.b32.xlu0 %v1560, 7
      %v3340 = vpop.permute.xlu0 %3339
      %3341 = vrot.lane.b32.xlu0 %v1559, 7
      %v3342 = vpop.permute.xlu0 %3341
      %3343 = vrot.lane.b32.xlu0 %v1558, 7
      %v3344 = vpop.permute.xlu0 %3343
      %3345 = vrot.lane.b32.xlu0 %v1557, 7
      %v3346 = vpop.permute.xlu0 %3345
      %3347 = vrot.lane.b32.xlu0 %v1620, 7
      %v3348 = vpop.permute.xlu0 %3347
      %3477 = vrot.lane.b32.xlu0 %v845, 8
      %v3478 = vpop.permute.xlu0 %3477
      %3479 = vrot.lane.b32.xlu0 %v844, 8
      %v3480 = vpop.permute.xlu0 %3479
      %3481 = vrot.lane.b32.xlu0 %v843, 8
      %v3482 = vpop.permute.xlu0 %3481
      %3483 = vrot.lane.b32.xlu0 %v842, 8
      %v3484 = vpop.permute.xlu0 %3483
      %3485 = vrot.lane.b32.xlu0 %v841, 8
      %v3486 = vpop.permute.xlu0 %3485
      %3487 = vrot.lane.b32.xlu0 %v840, 8
      %v3488 = vpop.permute.xlu0 %3487
      %3489 = vrot.lane.b32.xlu0 %v839, 8
      %v3490 = vpop.permute.xlu0 %3489
      %3491 = vrot.lane.b32.xlu0 %v838, 8
      %v3492 = vpop.permute.xlu0 %3491
      %3493 = vrot.lane.b32.xlu0 %v837, 8
      %v3494 = vpop.permute.xlu0 %3493
      %3495 = vrot.lane.b32.xlu0 %v836, 8
      %v3496 = vpop.permute.xlu0 %3495
      %3497 = vrot.lane.b32.xlu0 %v835, 8
      %v3498 = vpop.permute.xlu0 %3497
      %3499 = vrot.lane.b32.xlu0 %v834, 8
      %v3500 = vpop.permute.xlu0 %3499
      %3501 = vrot.lane.b32.xlu0 %v833, 8
      %v3502 = vpop.permute.xlu0 %3501
      %3503 = vrot.lane.b32.xlu0 %v832, 8
      %v3504 = vpop.permute.xlu0 %3503
      %3505 = vrot.lane.b32.xlu0 %v831, 8
      %v3506 = vpop.permute.xlu0 %3505
      %3507 = vrot.lane.b32.xlu0 %v830, 8
      %v3508 = vpop.permute.xlu0 %3507
      %3509 = vrot.lane.b32.xlu0 %v829, 8
      %v3510 = vpop.permute.xlu0 %3509
      %3511 = vrot.lane.b32.xlu0 %v828, 8
      %v3512 = vpop.permute.xlu0 %3511
      %3513 = vrot.lane.b32.xlu0 %v827, 8
      %v3514 = vpop.permute.xlu0 %3513
      %3515 = vrot.lane.b32.xlu0 %v826, 8
      %v3516 = vpop.permute.xlu0 %3515
      %3517 = vrot.lane.b32.xlu0 %v825, 8
      %v3518 = vpop.permute.xlu0 %3517
      %3519 = vrot.lane.b32.xlu0 %v824, 8
      %v3520 = vpop.permute.xlu0 %3519
      %3521 = vrot.lane.b32.xlu0 %v823, 8
      %v3522 = vpop.permute.xlu0 %3521
      %3523 = vrot.lane.b32.xlu0 %v822, 8
      %v3524 = vpop.permute.xlu0 %3523
      %3525 = vrot.lane.b32.xlu0 %v821, 8
      %v3526 = vpop.permute.xlu0 %3525
      %3527 = vrot.lane.b32.xlu0 %v820, 8
      %v3528 = vpop.permute.xlu0 %3527
      %3529 = vrot.lane.b32.xlu0 %v819, 8
      %v3530 = vpop.permute.xlu0 %3529
      %3531 = vrot.lane.b32.xlu0 %v818, 8
      %v3532 = vpop.permute.xlu0 %3531
      %3533 = vrot.lane.b32.xlu0 %v817, 8
      %v3534 = vpop.permute.xlu0 %3533
      %3535 = vrot.lane.b32.xlu0 %v816, 8
      %v3536 = vpop.permute.xlu0 %3535
      %3537 = vrot.lane.b32.xlu0 %v815, 8
      %v3538 = vpop.permute.xlu0 %3537
      %3539 = vrot.lane.b32.xlu0 %v814, 8
      %v3540 = vpop.permute.xlu0 %3539
      %3541 = vrot.lane.b32.xlu0 %v813, 8
      %v3542 = vpop.permute.xlu0 %3541
      %3543 = vrot.lane.b32.xlu0 %v812, 8
      %v3544 = vpop.permute.xlu0 %3543
      %3545 = vrot.lane.b32.xlu0 %v811, 8
      %v3546 = vpop.permute.xlu0 %3545
      %3547 = vrot.lane.b32.xlu0 %v810, 8
      %v3548 = vpop.permute.xlu0 %3547
      %3549 = vrot.lane.b32.xlu0 %v809, 8
      %v3550 = vpop.permute.xlu0 %3549
      %3551 = vrot.lane.b32.xlu0 %v808, 8
      %v3552 = vpop.permute.xlu0 %3551
      %3553 = vrot.lane.b32.xlu0 %v807, 8
      %v3554 = vpop.permute.xlu0 %3553
      %3555 = vrot.lane.b32.xlu0 %v806, 8
      %v3556 = vpop.permute.xlu0 %3555
      %3557 = vrot.lane.b32.xlu0 %v805, 8
      %v3558 = vpop.permute.xlu0 %3557
      %3559 = vrot.lane.b32.xlu0 %v804, 8
      %v3560 = vpop.permute.xlu0 %3559
      %3561 = vrot.lane.b32.xlu0 %v803, 8
      %v3562 = vpop.permute.xlu0 %3561
      %3563 = vrot.lane.b32.xlu0 %v802, 8
      %v3564 = vpop.permute.xlu0 %3563
      %3565 = vrot.lane.b32.xlu0 %v801, 8
      %v3566 = vpop.permute.xlu0 %3565
      %3567 = vrot.lane.b32.xlu0 %v800, 8
      %v3568 = vpop.permute.xlu0 %3567
      %3569 = vrot.lane.b32.xlu0 %v799, 8
      %v3570 = vpop.permute.xlu0 %3569
      %3571 = vrot.lane.b32.xlu0 %v798, 8
      %v3572 = vpop.permute.xlu0 %3571
      %3573 = vrot.lane.b32.xlu0 %v797, 8
      %v3574 = vpop.permute.xlu0 %3573
      %3575 = vrot.lane.b32.xlu0 %v796, 8
      %v3576 = vpop.permute.xlu0 %3575
      %3577 = vrot.lane.b32.xlu0 %v795, 8
      %v3578 = vpop.permute.xlu0 %3577
      %3579 = vrot.lane.b32.xlu0 %v794, 8
      %v3580 = vpop.permute.xlu0 %3579
      %3581 = vrot.lane.b32.xlu0 %v793, 8
      %v3582 = vpop.permute.xlu0 %3581
      %3583 = vrot.lane.b32.xlu0 %v792, 8
      %v3584 = vpop.permute.xlu0 %3583
      %3585 = vrot.lane.b32.xlu0 %v791, 8
      %v3586 = vpop.permute.xlu0 %3585
      %3587 = vrot.lane.b32.xlu0 %v790, 8
      %v3588 = vpop.permute.xlu0 %3587
      %3589 = vrot.lane.b32.xlu0 %v789, 8
      %v3590 = vpop.permute.xlu0 %3589
      %3591 = vrot.lane.b32.xlu0 %v788, 8
      %v3592 = vpop.permute.xlu0 %3591
      %3593 = vrot.lane.b32.xlu0 %v787, 8
      %v3594 = vpop.permute.xlu0 %3593
      %3595 = vrot.lane.b32.xlu0 %v786, 8
      %v3596 = vpop.permute.xlu0 %3595
      %3597 = vrot.lane.b32.xlu0 %v785, 8
      %v3598 = vpop.permute.xlu0 %3597
      %3599 = vrot.lane.b32.xlu0 %v784, 8
      %v3600 = vpop.permute.xlu0 %3599
      %3601 = vrot.lane.b32.xlu0 %v783, 8
      %v3602 = vpop.permute.xlu0 %3601
      %3603 = vrot.lane.b32.xlu0 %v846, 8
      %v3604 = vpop.permute.xlu0 %3603
      %vm3669 = vcmask 7168
      %v3670 = vsel %vm3669, %v846, %v1686
      %v3671 = vsel %vm3669, %v845, %v1688
      %v3672 = vsel %vm3669, %v844, %v1690
      %v3673 = vsel %vm3669, %v843, %v1692
      %v3674 = vsel %vm3669, %v842, %v1694
      %v3675 = vsel %vm3669, %v841, %v1696
      %v3676 = vsel %vm3669, %v840, %v1698
      %v3677 = vsel %vm3669, %v839, %v1700
      %v3678 = vsel %vm3669, %v838, %v1702
      %v3679 = vsel %vm3669, %v837, %v1704
      %v3680 = vsel %vm3669, %v836, %v1706
      %v3681 = vsel %vm3669, %v835, %v1708
      %v3682 = vsel %vm3669, %v834, %v1710
      %v3683 = vsel %vm3669, %v833, %v1712
      %v3684 = vsel %vm3669, %v832, %v1714
      %v3685 = vsel %vm3669, %v831, %v1716
      %v3686 = vsel %vm3669, %v830, %v1718
      %v3687 = vsel %vm3669, %v829, %v1720
      %v3688 = vsel %vm3669, %v828, %v1722
      %v3689 = vsel %vm3669, %v827, %v1724
      %v3690 = vsel %vm3669, %v826, %v1726
      %v3691 = vsel %vm3669, %v825, %v1728
      %v3692 = vsel %vm3669, %v824, %v1730
      %v3693 = vsel %vm3669, %v823, %v1732
      %v3694 = vsel %vm3669, %v822, %v1734
      %v3695 = vsel %vm3669, %v821, %v1736
      %v3696 = vsel %vm3669, %v820, %v1738
      %v3697 = vsel %vm3669, %v819, %v1740
      %v3698 = vsel %vm3669, %v818, %v1742
      %v3699 = vsel %vm3669, %v817, %v1744
      %v3700 = vsel %vm3669, %v816, %v1746
      %v3701 = vsel %vm3669, %v815, %v1748
      %v3702 = vsel %vm3669, %v814, %v1750
      %v3703 = vsel %vm3669, %v813, %v1752
      %v3704 = vsel %vm3669, %v812, %v1754
      %v3705 = vsel %vm3669, %v811, %v1756
      %v3706 = vsel %vm3669, %v810, %v1758
      %v3707 = vsel %vm3669, %v809, %v1760
      %v3708 = vsel %vm3669, %v808, %v1762
      %v3709 = vsel %vm3669, %v807, %v1764
      %v3710 = vsel %vm3669, %v806, %v1766
      %v3711 = vsel %vm3669, %v805, %v1768
      %v3712 = vsel %vm3669, %v804, %v1770
      %v3713 = vsel %vm3669, %v803, %v1772
      %v3714 = vsel %vm3669, %v802, %v1774
      %v3715 = vsel %vm3669, %v801, %v1776
      %v3716 = vsel %vm3669, %v800, %v1778
      %v3717 = vsel %vm3669, %v799, %v1780
      %v3718 = vsel %vm3669, %v798, %v1782
      %v3719 = vsel %vm3669, %v797, %v1784
      %v3720 = vsel %vm3669, %v796, %v1786
      %v3721 = vsel %vm3669, %v795, %v1788
      %v3722 = vsel %vm3669, %v794, %v1790
      %v3723 = vsel %vm3669, %v793, %v1792
      %v3724 = vsel %vm3669, %v792, %v1794
      %v3725 = vsel %vm3669, %v791, %v1796
      %v3726 = vsel %vm3669, %v790, %v1798
      %v3727 = vsel %vm3669, %v789, %v1800
      %v3728 = vsel %vm3669, %v788, %v1802
      %v3729 = vsel %vm3669, %v787, %v1804
      %v3730 = vsel %vm3669, %v786, %v1806
      %v3731 = vsel %vm3669, %v785, %v1808
      %v3732 = vsel %vm3669, %v784, %v1810
      %v3733 = vsel %vm3669, %v783, %v1812
      %vm3734 = vcmask 15360
      %v3735 = vsel %vm3734, %v3670, %v1942
      %v3736 = vsel %vm3734, %v3671, %v1944
      %v3737 = vsel %vm3734, %v3672, %v1946
      %v3738 = vsel %vm3734, %v3673, %v1948
      %v3739 = vsel %vm3734, %v3674, %v1950
      %v3740 = vsel %vm3734, %v3675, %v1952
      %v3741 = vsel %vm3734, %v3676, %v1954
      %v3742 = vsel %vm3734, %v3677, %v1956
      %v3743 = vsel %vm3734, %v3678, %v1958
      %v3744 = vsel %vm3734, %v3679, %v1960
      %v3745 = vsel %vm3734, %v3680, %v1962
      %v3746 = vsel %vm3734, %v3681, %v1964
      %v3747 = vsel %vm3734, %v3682, %v1966
      %v3748 = vsel %vm3734, %v3683, %v1968
      %v3749 = vsel %vm3734, %v3684, %v1970
      %v3750 = vsel %vm3734, %v3685, %v1972
      %v3751 = vsel %vm3734, %v3686, %v1974
      %v3752 = vsel %vm3734, %v3687, %v1976
      %v3753 = vsel %vm3734, %v3688, %v1978
      %v3754 = vsel %vm3734, %v3689, %v1980
      %v3755 = vsel %vm3734, %v3690, %v1982
      %v3756 = vsel %vm3734, %v3691, %v1984
      %v3757 = vsel %vm3734, %v3692, %v1986
      %v3758 = vsel %vm3734, %v3693, %v1988
      %v3759 = vsel %vm3734, %v3694, %v1990
      %v3760 = vsel %vm3734, %v3695, %v1992
      %v3761 = vsel %vm3734, %v3696, %v1994
      %v3762 = vsel %vm3734, %v3697, %v1996
      %v3763 = vsel %vm3734, %v3698, %v1998
      %v3764 = vsel %vm3734, %v3699, %v2000
      %v3765 = vsel %vm3734, %v3700, %v2002
      %v3766 = vsel %vm3734, %v3701, %v2004
      %v3767 = vsel %vm3734, %v3702, %v2006
      %v3768 = vsel %vm3734, %v3703, %v2008
      %v3769 = vsel %vm3734, %v3704, %v2010
      %v3770 = vsel %vm3734, %v3705, %v2012
      %v3771 = vsel %vm3734, %v3706, %v2014
      %v3772 = vsel %vm3734, %v3707, %v2016
      %v3773 = vsel %vm3734, %v3708, %v2018
      %v3774 = vsel %vm3734, %v3709, %v2020
      %v3775 = vsel %vm3734, %v3710, %v2022
      %v3776 = vsel %vm3734, %v3711, %v2024
      %v3777 = vsel %vm3734, %v3712, %v2026
      %v3778 = vsel %vm3734, %v3713, %v2028
      %v3779 = vsel %vm3734, %v3714, %v2030
      %v3780 = vsel %vm3734, %v3715, %v2032
      %v3781 = vsel %vm3734, %v3716, %v2034
      %v3782 = vsel %vm3734, %v3717, %v2036
      %v3783 = vsel %vm3734, %v3718, %v2038
      %v3784 = vsel %vm3734, %v3719, %v2040
      %v3785 = vsel %vm3734, %v3720, %v2042
      %v3786 = vsel %vm3734, %v3721, %v2044
      %v3787 = vsel %vm3734, %v3722, %v2046
      %v3788 = vsel %vm3734, %v3723, %v2048
      %v3789 = vsel %vm3734, %v3724, %v2050
      %v3790 = vsel %vm3734, %v3725, %v2052
      %v3791 = vsel %vm3734, %v3726, %v2054
      %v3792 = vsel %vm3734, %v3727, %v2056
      %v3793 = vsel %vm3734, %v3728, %v2058
      %v3794 = vsel %vm3734, %v3729, %v2060
      %v3795 = vsel %vm3734, %v3730, %v2062
      %v3796 = vsel %vm3734, %v3731, %v2064
      %v3797 = vsel %vm3734, %v3732, %v2066
      %v3798 = vsel %vm3734, %v3733, %v2068
      %vm3799 = vcmask 23552
      %v3800 = vsel %vm3799, %v3735, %v2198
      %v3801 = vsel %vm3799, %v3736, %v2200
      %v3802 = vsel %vm3799, %v3737, %v2202
      %v3803 = vsel %vm3799, %v3738, %v2204
      %v3804 = vsel %vm3799, %v3739, %v2206
      %v3805 = vsel %vm3799, %v3740, %v2208
      %v3806 = vsel %vm3799, %v3741, %v2210
      %v3807 = vsel %vm3799, %v3742, %v2212
      %v3808 = vsel %vm3799, %v3743, %v2214
      %v3809 = vsel %vm3799, %v3744, %v2216
      %v3810 = vsel %vm3799, %v3745, %v2218
      %v3811 = vsel %vm3799, %v3746, %v2220
      %v3812 = vsel %vm3799, %v3747, %v2222
      %v3813 = vsel %vm3799, %v3748, %v2224
      %v3814 = vsel %vm3799, %v3749, %v2226
      %v3815 = vsel %vm3799, %v3750, %v2228
      %v3816 = vsel %vm3799, %v3751, %v2230
      %v3817 = vsel %vm3799, %v3752, %v2232
      %v3818 = vsel %vm3799, %v3753, %v2234
      %v3819 = vsel %vm3799, %v3754, %v2236
      %v3820 = vsel %vm3799, %v3755, %v2238
      %v3821 = vsel %vm3799, %v3756, %v2240
      %v3822 = vsel %vm3799, %v3757, %v2242
      %v3823 = vsel %vm3799, %v3758, %v2244
      %v3824 = vsel %vm3799, %v3759, %v2246
      %v3825 = vsel %vm3799, %v3760, %v2248
      %v3826 = vsel %vm3799, %v3761, %v2250
      %v3827 = vsel %vm3799, %v3762, %v2252
      %v3828 = vsel %vm3799, %v3763, %v2254
      %v3829 = vsel %vm3799, %v3764, %v2256
      %v3830 = vsel %vm3799, %v3765, %v2258
      %v3831 = vsel %vm3799, %v3766, %v2260
      %v3832 = vsel %vm3799, %v3767, %v2262
      %v3833 = vsel %vm3799, %v3768, %v2264
      %v3834 = vsel %vm3799, %v3769, %v2266
      %v3835 = vsel %vm3799, %v3770, %v2268
      %v3836 = vsel %vm3799, %v3771, %v2270
      %v3837 = vsel %vm3799, %v3772, %v2272
      %v3838 = vsel %vm3799, %v3773, %v2274
      %v3839 = vsel %vm3799, %v3774, %v2276
      %v3840 = vsel %vm3799, %v3775, %v2278
      %v3841 = vsel %vm3799, %v3776, %v2280
      %v3842 = vsel %vm3799, %v3777, %v2282
      %v3843 = vsel %vm3799, %v3778, %v2284
      %v3844 = vsel %vm3799, %v3779, %v2286
      %v3845 = vsel %vm3799, %v3780, %v2288
      %v3846 = vsel %vm3799, %v3781, %v2290
      %v3847 = vsel %vm3799, %v3782, %v2292
      %v3848 = vsel %vm3799, %v3783, %v2294
      %v3849 = vsel %vm3799, %v3784, %v2296
      %v3850 = vsel %vm3799, %v3785, %v2298
      %v3851 = vsel %vm3799, %v3786, %v2300
      %v3852 = vsel %vm3799, %v3787, %v2302
      %v3853 = vsel %vm3799, %v3788, %v2304
      %v3854 = vsel %vm3799, %v3789, %v2306
      %v3855 = vsel %vm3799, %v3790, %v2308
      %v3856 = vsel %vm3799, %v3791, %v2310
      %v3857 = vsel %vm3799, %v3792, %v2312
      %v3858 = vsel %vm3799, %v3793, %v2314
      %v3859 = vsel %vm3799, %v3794, %v2316
      %v3860 = vsel %vm3799, %v3795, %v2318
      %v3861 = vsel %vm3799, %v3796, %v2320
      %v3862 = vsel %vm3799, %v3797, %v2322
      %v3863 = vsel %vm3799, %v3798, %v2324
      %vm3864 = vcmask 31744
      %v3865 = vsel %vm3864, %v3800, %v2454
      %v3866 = vsel %vm3864, %v3801, %v2456
      %v3867 = vsel %vm3864, %v3802, %v2458
      %v3868 = vsel %vm3864, %v3803, %v2460
      %v3869 = vsel %vm3864, %v3804, %v2462
      %v3870 = vsel %vm3864, %v3805, %v2464
      %v3871 = vsel %vm3864, %v3806, %v2466
      %v3872 = vsel %vm3864, %v3807, %v2468
      %v3873 = vsel %vm3864, %v3808, %v2470
      %v3874 = vsel %vm3864, %v3809, %v2472
      %v3875 = vsel %vm3864, %v3810, %v2474
      %v3876 = vsel %vm3864, %v3811, %v2476
      %v3877 = vsel %vm3864, %v3812, %v2478
      %v3878 = vsel %vm3864, %v3813, %v2480
      %v3879 = vsel %vm3864, %v3814, %v2482
      %v3880 = vsel %vm3864, %v3815, %v2484
      %v3881 = vsel %vm3864, %v3816, %v2486
      %v3882 = vsel %vm3864, %v3817, %v2488
      %v3883 = vsel %vm3864, %v3818, %v2490
      %v3884 = vsel %vm3864, %v3819, %v2492
      %v3885 = vsel %vm3864, %v3820, %v2494
      %v3886 = vsel %vm3864, %v3821, %v2496
      %v3887 = vsel %vm3864, %v3822, %v2498
      %v3888 = vsel %vm3864, %v3823, %v2500
      %v3889 = vsel %vm3864, %v3824, %v2502
      %v3890 = vsel %vm3864, %v3825, %v2504
      %v3891 = vsel %vm3864, %v3826, %v2506
      %v3892 = vsel %vm3864, %v3827, %v2508
      %v3893 = vsel %vm3864, %v3828, %v2510
      %v3894 = vsel %vm3864, %v3829, %v2512
      %v3895 = vsel %vm3864, %v3830, %v2514
      %v3896 = vsel %vm3864, %v3831, %v2516
      %v3897 = vsel %vm3864, %v3832, %v2518
      %v3898 = vsel %vm3864, %v3833, %v2520
      %v3899 = vsel %vm3864, %v3834, %v2522
      %v3900 = vsel %vm3864, %v3835, %v2524
      %v3901 = vsel %vm3864, %v3836, %v2526
      %v3902 = vsel %vm3864, %v3837, %v2528
      %v3903 = vsel %vm3864, %v3838, %v2530
      %v3904 = vsel %vm3864, %v3839, %v2532
      %v3905 = vsel %vm3864, %v3840, %v2534
      %v3906 = vsel %vm3864, %v3841, %v2536
      %v3907 = vsel %vm3864, %v3842, %v2538
      %v3908 = vsel %vm3864, %v3843, %v2540
      %v3909 = vsel %vm3864, %v3844, %v2542
      %v3910 = vsel %vm3864, %v3845, %v2544
      %v3911 = vsel %vm3864, %v3846, %v2546
      %v3912 = vsel %vm3864, %v3847, %v2548
      %v3913 = vsel %vm3864, %v3848, %v2550
      %v3914 = vsel %vm3864, %v3849, %v2552
      %v3915 = vsel %vm3864, %v3850, %v2554
      %v3916 = vsel %vm3864, %v3851, %v2556
      %v3917 = vsel %vm3864, %v3852, %v2558
      %v3918 = vsel %vm3864, %v3853, %v2560
      %v3919 = vsel %vm3864, %v3854, %v2562
      %v3920 = vsel %vm3864, %v3855, %v2564
      %v3921 = vsel %vm3864, %v3856, %v2566
      %v3922 = vsel %vm3864, %v3857, %v2568
      %v3923 = vsel %vm3864, %v3858, %v2570
      %v3924 = vsel %vm3864, %v3859, %v2572
      %v3925 = vsel %vm3864, %v3860, %v2574
      %v3926 = vsel %vm3864, %v3861, %v2576
      %v3927 = vsel %vm3864, %v3862, %v2578
      %v3928 = vsel %vm3864, %v3863, %v2580
      %vm3929 = vcmask 39936
      %v3930 = vsel %vm3929, %v3865, %v2710
      %v3931 = vsel %vm3929, %v3866, %v2712
      %v3932 = vsel %vm3929, %v3867, %v2714
      %v3933 = vsel %vm3929, %v3868, %v2716
      %v3934 = vsel %vm3929, %v3869, %v2718
      %v3935 = vsel %vm3929, %v3870, %v2720
      %v3936 = vsel %vm3929, %v3871, %v2722
      %v3937 = vsel %vm3929, %v3872, %v2724
      %v3938 = vsel %vm3929, %v3873, %v2726
      %v3939 = vsel %vm3929, %v3874, %v2728
      %v3940 = vsel %vm3929, %v3875, %v2730
      %v3941 = vsel %vm3929, %v3876, %v2732
      %v3942 = vsel %vm3929, %v3877, %v2734
      %v3943 = vsel %vm3929, %v3878, %v2736
      %v3944 = vsel %vm3929, %v3879, %v2738
      %v3945 = vsel %vm3929, %v3880, %v2740
      %v3946 = vsel %vm3929, %v3881, %v2742
      %v3947 = vsel %vm3929, %v3882, %v2744
      %v3948 = vsel %vm3929, %v3883, %v2746
      %v3949 = vsel %vm3929, %v3884, %v2748
      %v3950 = vsel %vm3929, %v3885, %v2750
      %v3951 = vsel %vm3929, %v3886, %v2752
      %v3952 = vsel %vm3929, %v3887, %v2754
      %v3953 = vsel %vm3929, %v3888, %v2756
      %v3954 = vsel %vm3929, %v3889, %v2758
      %v3955 = vsel %vm3929, %v3890, %v2760
      %v3956 = vsel %vm3929, %v3891, %v2762
      %v3957 = vsel %vm3929, %v3892, %v2764
      %v3958 = vsel %vm3929, %v3893, %v2766
      %v3959 = vsel %vm3929, %v3894, %v2768
      %v3960 = vsel %vm3929, %v3895, %v2770
      %v3961 = vsel %vm3929, %v3896, %v2772
      %v3962 = vsel %vm3929, %v3897, %v2774
      %v3963 = vsel %vm3929, %v3898, %v2776
      %v3964 = vsel %vm3929, %v3899, %v2778
      %v3965 = vsel %vm3929, %v3900, %v2780
      %v3966 = vsel %vm3929, %v3901, %v2782
      %v3967 = vsel %vm3929, %v3902, %v2784
      %v3968 = vsel %vm3929, %v3903, %v2786
      %v3969 = vsel %vm3929, %v3904, %v2788
      %v3970 = vsel %vm3929, %v3905, %v2790
      %v3971 = vsel %vm3929, %v3906, %v2792
      %v3972 = vsel %vm3929, %v3907, %v2794
      %v3973 = vsel %vm3929, %v3908, %v2796
      %v3974 = vsel %vm3929, %v3909, %v2798
      %v3975 = vsel %vm3929, %v3910, %v2800
      %v3976 = vsel %vm3929, %v3911, %v2802
      %v3977 = vsel %vm3929, %v3912, %v2804
      %v3978 = vsel %vm3929, %v3913, %v2806
      %v3979 = vsel %vm3929, %v3914, %v2808
      %v3980 = vsel %vm3929, %v3915, %v2810
      %v3981 = vsel %vm3929, %v3916, %v2812
      %v3982 = vsel %vm3929, %v3917, %v2814
      %v3983 = vsel %vm3929, %v3918, %v2816
      %v3984 = vsel %vm3929, %v3919, %v2818
      %v3985 = vsel %vm3929, %v3920, %v2820
      %v3986 = vsel %vm3929, %v3921, %v2822
      %v3987 = vsel %vm3929, %v3922, %v2824
      %v3988 = vsel %vm3929, %v3923, %v2826
      %v3989 = vsel %vm3929, %v3924, %v2828
      %v3990 = vsel %vm3929, %v3925, %v2830
      %v3991 = vsel %vm3929, %v3926, %v2832
      %v3992 = vsel %vm3929, %v3927, %v2834
      %v3993 = vsel %vm3929, %v3928, %v2836
      %vm3994 = vcmask 48128
      %v3995 = vsel %vm3994, %v3930, %v2966
      %v3996 = vsel %vm3994, %v3931, %v2968
      %v3997 = vsel %vm3994, %v3932, %v2970
      %v3998 = vsel %vm3994, %v3933, %v2972
      %v3999 = vsel %vm3994, %v3934, %v2974
      %v4000 = vsel %vm3994, %v3935, %v2976
      %v4001 = vsel %vm3994, %v3936, %v2978
      %v4002 = vsel %vm3994, %v3937, %v2980
      %v4003 = vsel %vm3994, %v3938, %v2982
      %v4004 = vsel %vm3994, %v3939, %v2984
      %v4005 = vsel %vm3994, %v3940, %v2986
      %v4006 = vsel %vm3994, %v3941, %v2988
      %v4007 = vsel %vm3994, %v3942, %v2990
      %v4008 = vsel %vm3994, %v3943, %v2992
      %v4009 = vsel %vm3994, %v3944, %v2994
      %v4010 = vsel %vm3994, %v3945, %v2996
      %v4011 = vsel %vm3994, %v3946, %v2998
      %v4012 = vsel %vm3994, %v3947, %v3000
      %v4013 = vsel %vm3994, %v3948, %v3002
      %v4014 = vsel %vm3994, %v3949, %v3004
      %v4015 = vsel %vm3994, %v3950, %v3006
      %v4016 = vsel %vm3994, %v3951, %v3008
      %v4017 = vsel %vm3994, %v3952, %v3010
      %v4018 = vsel %vm3994, %v3953, %v3012
      %v4019 = vsel %vm3994, %v3954, %v3014
      %v4020 = vsel %vm3994, %v3955, %v3016
      %v4021 = vsel %vm3994, %v3956, %v3018
      %v4022 = vsel %vm3994, %v3957, %v3020
      %v4023 = vsel %vm3994, %v3958, %v3022
      %v4024 = vsel %vm3994, %v3959, %v3024
      %v4025 = vsel %vm3994, %v3960, %v3026
      %v4026 = vsel %vm3994, %v3961, %v3028
      %v4027 = vsel %vm3994, %v3962, %v3030
      %v4028 = vsel %vm3994, %v3963, %v3032
      %v4029 = vsel %vm3994, %v3964, %v3034
      %v4030 = vsel %vm3994, %v3965, %v3036
      %v4031 = vsel %vm3994, %v3966, %v3038
      %v4032 = vsel %vm3994, %v3967, %v3040
      %v4033 = vsel %vm3994, %v3968, %v3042
      %v4034 = vsel %vm3994, %v3969, %v3044
      %v4035 = vsel %vm3994, %v3970, %v3046
      %v4036 = vsel %vm3994, %v3971, %v3048
      %v4037 = vsel %vm3994, %v3972, %v3050
      %v4038 = vsel %vm3994, %v3973, %v3052
      %v4039 = vsel %vm3994, %v3974, %v3054
      %v4040 = vsel %vm3994, %v3975, %v3056
      %v4041 = vsel %vm3994, %v3976, %v3058
      %v4042 = vsel %vm3994, %v3977, %v3060
      %v4043 = vsel %vm3994, %v3978, %v3062
      %v4044 = vsel %vm3994, %v3979, %v3064
      %v4045 = vsel %vm3994, %v3980, %v3066
      %v4046 = vsel %vm3994, %v3981, %v3068
      %v4047 = vsel %vm3994, %v3982, %v3070
      %v4048 = vsel %vm3994, %v3983, %v3072
      %v4049 = vsel %vm3994, %v3984, %v3074
      %v4050 = vsel %vm3994, %v3985, %v3076
      %v4051 = vsel %vm3994, %v3986, %v3078
      %v4052 = vsel %vm3994, %v3987, %v3080
      %v4053 = vsel %vm3994, %v3988, %v3082
      %v4054 = vsel %vm3994, %v3989, %v3084
      %v4055 = vsel %vm3994, %v3990, %v3086
      %v4056 = vsel %vm3994, %v3991, %v3088
      %v4057 = vsel %vm3994, %v3992, %v3090
      %v4058 = vsel %vm3994, %v3993, %v3092
      %vm4059 = vcmask 56320
      %v4060 = vsel %vm4059, %v3995, %v3222
      %v4061 = vsel %vm4059, %v3996, %v3224
      %v4062 = vsel %vm4059, %v3997, %v3226
      %v4063 = vsel %vm4059, %v3998, %v3228
      %v4064 = vsel %vm4059, %v3999, %v3230
      %v4065 = vsel %vm4059, %v4000, %v3232
      %v4066 = vsel %vm4059, %v4001, %v3234
      %v4067 = vsel %vm4059, %v4002, %v3236
      %v4068 = vsel %vm4059, %v4003, %v3238
      %v4069 = vsel %vm4059, %v4004, %v3240
      %v4070 = vsel %vm4059, %v4005, %v3242
      %v4071 = vsel %vm4059, %v4006, %v3244
      %v4072 = vsel %vm4059, %v4007, %v3246
      %v4073 = vsel %vm4059, %v4008, %v3248
      %v4074 = vsel %vm4059, %v4009, %v3250
      %v4075 = vsel %vm4059, %v4010, %v3252
      %v4076 = vsel %vm4059, %v4011, %v3254
      %v4077 = vsel %vm4059, %v4012, %v3256
      %v4078 = vsel %vm4059, %v4013, %v3258
      %v4079 = vsel %vm4059, %v4014, %v3260
      %v4080 = vsel %vm4059, %v4015, %v3262
      %v4081 = vsel %vm4059, %v4016, %v3264
      %v4082 = vsel %vm4059, %v4017, %v3266
      %v4083 = vsel %vm4059, %v4018, %v3268
      %v4084 = vsel %vm4059, %v4019, %v3270
      %v4085 = vsel %vm4059, %v4020, %v3272
      %v4086 = vsel %vm4059, %v4021, %v3274
      %v4087 = vsel %vm4059, %v4022, %v3276
      %v4088 = vsel %vm4059, %v4023, %v3278
      %v4089 = vsel %vm4059, %v4024, %v3280
      %v4090 = vsel %vm4059, %v4025, %v3282
      %v4091 = vsel %vm4059, %v4026, %v3284
      %v4092 = vsel %vm4059, %v4027, %v3286
      %v4093 = vsel %vm4059, %v4028, %v3288
      %v4094 = vsel %vm4059, %v4029, %v3290
      %v4095 = vsel %vm4059, %v4030, %v3292
      %v4096 = vsel %vm4059, %v4031, %v3294
      %v4097 = vsel %vm4059, %v4032, %v3296
      %v4098 = vsel %vm4059, %v4033, %v3298
      %v4099 = vsel %vm4059, %v4034, %v3300
      %v4100 = vsel %vm4059, %v4035, %v3302
      %v4101 = vsel %vm4059, %v4036, %v3304
      %v4102 = vsel %vm4059, %v4037, %v3306
      %v4103 = vsel %vm4059, %v4038, %v3308
      %v4104 = vsel %vm4059, %v4039, %v3310
      %v4105 = vsel %vm4059, %v4040, %v3312
      %v4106 = vsel %vm4059, %v4041, %v3314
      %v4107 = vsel %vm4059, %v4042, %v3316
      %v4108 = vsel %vm4059, %v4043, %v3318
      %v4109 = vsel %vm4059, %v4044, %v3320
      %v4110 = vsel %vm4059, %v4045, %v3322
      %v4111 = vsel %vm4059, %v4046, %v3324
      %v4112 = vsel %vm4059, %v4047, %v3326
      %v4113 = vsel %vm4059, %v4048, %v3328
      %v4114 = vsel %vm4059, %v4049, %v3330
      %v4115 = vsel %vm4059, %v4050, %v3332
      %v4116 = vsel %vm4059, %v4051, %v3334
      %v4117 = vsel %vm4059, %v4052, %v3336
      %v4118 = vsel %vm4059, %v4053, %v3338
      %v4119 = vsel %vm4059, %v4054, %v3340
      %v4120 = vsel %vm4059, %v4055, %v3342
      %v4121 = vsel %vm4059, %v4056, %v3344
      %v4122 = vsel %vm4059, %v4057, %v3346
      %v4123 = vsel %vm4059, %v4058, %v3348
      %vm4124 = vcmask 64512
      %v4125 = vsel %vm4124, %v4060, %v3478
      %v4126 = vsel %vm4124, %v4061, %v3480
      %v4127 = vsel %vm4124, %v4062, %v3482
      %v4128 = vsel %vm4124, %v4063, %v3484
      %v4129 = vsel %vm4124, %v4064, %v3486
      %v4130 = vsel %vm4124, %v4065, %v3488
      %v4131 = vsel %vm4124, %v4066, %v3490
      %v4132 = vsel %vm4124, %v4067, %v3492
      %v4133 = vsel %vm4124, %v4068, %v3494
      %v4134 = vsel %vm4124, %v4069, %v3496
      %v4135 = vsel %vm4124, %v4070, %v3498
      %v4136 = vsel %vm4124, %v4071, %v3500
      %v4137 = vsel %vm4124, %v4072, %v3502
      %v4138 = vsel %vm4124, %v4073, %v3504
      %v4139 = vsel %vm4124, %v4074, %v3506
      %v4140 = vsel %vm4124, %v4075, %v3508
      %v4141 = vsel %vm4124, %v4076, %v3510
      %v4142 = vsel %vm4124, %v4077, %v3512
      %v4143 = vsel %vm4124, %v4078, %v3514
      %v4144 = vsel %vm4124, %v4079, %v3516
      %v4145 = vsel %vm4124, %v4080, %v3518
      %v4146 = vsel %vm4124, %v4081, %v3520
      %v4147 = vsel %vm4124, %v4082, %v3522
      %v4148 = vsel %vm4124, %v4083, %v3524
      %v4149 = vsel %vm4124, %v4084, %v3526
      %v4150 = vsel %vm4124, %v4085, %v3528
      %v4151 = vsel %vm4124, %v4086, %v3530
      %v4152 = vsel %vm4124, %v4087, %v3532
      %v4153 = vsel %vm4124, %v4088, %v3534
      %v4154 = vsel %vm4124, %v4089, %v3536
      %v4155 = vsel %vm4124, %v4090, %v3538
      %v4156 = vsel %vm4124, %v4091, %v3540
      %v4157 = vsel %vm4124, %v4092, %v3542
      %v4158 = vsel %vm4124, %v4093, %v3544
      %v4159 = vsel %vm4124, %v4094, %v3546
      %v4160 = vsel %vm4124, %v4095, %v3548
      %v4161 = vsel %vm4124, %v4096, %v3550
      %v4162 = vsel %vm4124, %v4097, %v3552
      %v4163 = vsel %vm4124, %v4098, %v3554
      %v4164 = vsel %vm4124, %v4099, %v3556
      %v4165 = vsel %vm4124, %v4100, %v3558
      %v4166 = vsel %vm4124, %v4101, %v3560
      %v4167 = vsel %vm4124, %v4102, %v3562
      %v4168 = vsel %vm4124, %v4103, %v3564
      %v4169 = vsel %vm4124, %v4104, %v3566
      %v4170 = vsel %vm4124, %v4105, %v3568
      %v4171 = vsel %vm4124, %v4106, %v3570
      %v4172 = vsel %vm4124, %v4107, %v3572
      %v4173 = vsel %vm4124, %v4108, %v3574
      %v4174 = vsel %vm4124, %v4109, %v3576
      %v4175 = vsel %vm4124, %v4110, %v3578
      %v4176 = vsel %vm4124, %v4111, %v3580
      %v4177 = vsel %vm4124, %v4112, %v3582
      %v4178 = vsel %vm4124, %v4113, %v3584
      %v4179 = vsel %vm4124, %v4114, %v3586
      %v4180 = vsel %vm4124, %v4115, %v3588
      %v4181 = vsel %vm4124, %v4116, %v3590
      %v4182 = vsel %vm4124, %v4117, %v3592
      %v4183 = vsel %vm4124, %v4118, %v3594
      %v4184 = vsel %vm4124, %v4119, %v3596
      %v4185 = vsel %vm4124, %v4120, %v3598
      %v4186 = vsel %vm4124, %v4121, %v3600
      %v4187 = vsel %vm4124, %v4122, %v3602
      %v4188 = vsel %vm4124, %v4123, %v3604
      %v4189 = vlaneseq
      %v4190 = vand.u32 %v4189, 127
      %v4191 = vsub.s32 %v4190, 4
      %v4192 = vadd.s32 %v301, %v4191
      %v4193 = vadd.s32 %v302, %v4191
      %v4194 = vadd.s32 %v303, %v4191
      %v4195 = vadd.s32 %v304, %v4191
      %v4196 = vadd.s32 %v305, %v4191
      %v4197 = vadd.s32 %v306, %v4191
      %v4198 = vadd.s32 %v307, %v4191
      %v4199 = vadd.s32 %v308, %v4191
      %vm4200 = vcmp.ge.s32.totalorder %v4192, 0
      %vm4201 = vcmp.ge.s32.totalorder %v4193, 0
      %vm4202 = vcmp.ge.s32.totalorder %v4194, 0
      %vm4203 = vcmp.ge.s32.totalorder %v4195, 0
      %vm4204 = vcmp.ge.s32.totalorder %v4196, 0
      %vm4205 = vcmp.ge.s32.totalorder %v4197, 0
      %vm4206 = vcmp.ge.s32.totalorder %v4198, 0
      %vm4207 = vcmp.ge.s32.totalorder %v4199, 0
      %vm4208 = vcmp.lt.s32.totalorder %v4192, 64
      %vm4209 = vcmp.lt.s32.totalorder %v4193, 64
      %vm4210 = vcmp.lt.s32.totalorder %v4194, 64
      %vm4211 = vcmp.lt.s32.totalorder %v4195, 64
      %vm4212 = vcmp.lt.s32.totalorder %v4196, 64
      %vm4213 = vcmp.lt.s32.totalorder %v4197, 64
      %vm4214 = vcmp.lt.s32.totalorder %v4198, 64
      %vm4215 = vcmp.lt.s32.totalorder %v4199, 64
      %vm4216 = vmand %vm4200, %vm4208
      %vm4217 = vmand %vm4201, %vm4209
      %vm4218 = vmand %vm4202, %vm4210
      %vm4219 = vmand %vm4203, %vm4211
      %vm4220 = vmand %vm4204, %vm4212
      %vm4221 = vmand %vm4205, %vm4213
      %vm4222 = vmand %vm4206, %vm4214
      %vm4223 = vmand %vm4207, %vm4215
      %v4224 = vsel %vm4216, %v4125, 0.0
      %v4225 = vsel %vm4217, %v4126, 0.0
      %v4226 = vsel %vm4218, %v4127, 0.0
      %v4227 = vsel %vm4219, %v4128, 0.0
      %v4228 = vsel %vm4220, %v4129, 0.0
      %v4229 = vsel %vm4221, %v4130, 0.0
      %v4230 = vsel %vm4222, %v4131, 0.0
      %v4231 = vsel %vm4223, %v4132, 0.0
      %v4232 = vsel %vm4216, %v4133, 0.0
      %v4233 = vsel %vm4217, %v4134, 0.0
      %v4234 = vsel %vm4218, %v4135, 0.0
      %v4235 = vsel %vm4219, %v4136, 0.0
      %v4236 = vsel %vm4220, %v4137, 0.0
      %v4237 = vsel %vm4221, %v4138, 0.0
      %v4238 = vsel %vm4222, %v4139, 0.0
      %v4239 = vsel %vm4223, %v4140, 0.0
      %v4240 = vsel %vm4216, %v4141, 0.0
      %v4241 = vsel %vm4217, %v4142, 0.0
      %v4242 = vsel %vm4218, %v4143, 0.0
      %v4243 = vsel %vm4219, %v4144, 0.0
      %v4244 = vsel %vm4220, %v4145, 0.0
      %v4245 = vsel %vm4221, %v4146, 0.0
      %v4246 = vsel %vm4222, %v4147, 0.0
      %v4247 = vsel %vm4223, %v4148, 0.0
      %v4248 = vsel %vm4216, %v4149, 0.0
      %v4249 = vsel %vm4217, %v4150, 0.0
      %v4250 = vsel %vm4218, %v4151, 0.0
      %v4251 = vsel %vm4219, %v4152, 0.0
      %v4252 = vsel %vm4220, %v4153, 0.0
      %v4253 = vsel %vm4221, %v4154, 0.0
      %v4254 = vsel %vm4222, %v4155, 0.0
      %v4255 = vsel %vm4223, %v4156, 0.0
      %v4256 = vsel %vm4216, %v4157, 0.0
      %v4257 = vsel %vm4217, %v4158, 0.0
      %v4258 = vsel %vm4218, %v4159, 0.0
      %v4259 = vsel %vm4219, %v4160, 0.0
      %v4260 = vsel %vm4220, %v4161, 0.0
      %v4261 = vsel %vm4221, %v4162, 0.0
      %v4262 = vsel %vm4222, %v4163, 0.0
      %v4263 = vsel %vm4223, %v4164, 0.0
      %v4264 = vsel %vm4216, %v4165, 0.0
      %v4265 = vsel %vm4217, %v4166, 0.0
      %v4266 = vsel %vm4218, %v4167, 0.0
      %v4267 = vsel %vm4219, %v4168, 0.0
      %v4268 = vsel %vm4220, %v4169, 0.0
      %v4269 = vsel %vm4221, %v4170, 0.0
      %v4270 = vsel %vm4222, %v4171, 0.0
      %v4271 = vsel %vm4223, %v4172, 0.0
      %v4272 = vsel %vm4216, %v4173, 0.0
      %v4273 = vsel %vm4217, %v4174, 0.0
      %v4274 = vsel %vm4218, %v4175, 0.0
      %v4275 = vsel %vm4219, %v4176, 0.0
      %v4276 = vsel %vm4220, %v4177, 0.0
      %v4277 = vsel %vm4221, %v4178, 0.0
      %v4278 = vsel %vm4222, %v4179, 0.0
      %v4279 = vsel %vm4223, %v4180, 0.0
      %v4280 = vsel %vm4216, %v4181, 0.0
      %v4281 = vsel %vm4217, %v4182, 0.0
      %v4282 = vsel %vm4218, %v4183, 0.0
      %v4283 = vsel %vm4219, %v4184, 0.0
      %v4284 = vsel %vm4220, %v4185, 0.0
      %v4285 = vsel %vm4221, %v4186, 0.0
      %v4286 = vsel %vm4222, %v4187, 0.0
      %v4287 = vsel %vm4223, %v4188, 0.0
      %v4288 = vpack.c.bf16 %v4225, %v4224
      %v4289 = vpack.c.bf16 %v4227, %v4226
      %v4290 = vpack.c.bf16 %v4229, %v4228
      %v4291 = vpack.c.bf16 %v4231, %v4230
      %v4292 = vpack.c.bf16 %v4233, %v4232
      %v4293 = vpack.c.bf16 %v4235, %v4234
      %v4294 = vpack.c.bf16 %v4237, %v4236
      %v4295 = vpack.c.bf16 %v4239, %v4238
      %v4296 = vpack.c.bf16 %v4241, %v4240
      %v4297 = vpack.c.bf16 %v4243, %v4242
      %v4298 = vpack.c.bf16 %v4245, %v4244
      %v4299 = vpack.c.bf16 %v4247, %v4246
      %v4300 = vpack.c.bf16 %v4249, %v4248
      %v4301 = vpack.c.bf16 %v4251, %v4250
      %v4302 = vpack.c.bf16 %v4253, %v4252
      %v4303 = vpack.c.bf16 %v4255, %v4254
      %v4304 = vpack.c.bf16 %v4257, %v4256
      %v4305 = vpack.c.bf16 %v4259, %v4258
      %v4306 = vpack.c.bf16 %v4261, %v4260
      %v4307 = vpack.c.bf16 %v4263, %v4262
      %v4308 = vpack.c.bf16 %v4265, %v4264
      %v4309 = vpack.c.bf16 %v4267, %v4266
      %v4310 = vpack.c.bf16 %v4269, %v4268
      %v4311 = vpack.c.bf16 %v4271, %v4270
      %v4312 = vpack.c.bf16 %v4273, %v4272
      %v4313 = vpack.c.bf16 %v4275, %v4274
      %v4314 = vpack.c.bf16 %v4277, %v4276
      %v4315 = vpack.c.bf16 %v4279, %v4278
      %v4316 = vpack.c.bf16 %v4281, %v4280
      %v4317 = vpack.c.bf16 %v4283, %v4282
      %v4318 = vpack.c.bf16 %v4285, %v4284
      %v4319 = vpack.c.bf16 %v4287, %v4286
      %v4320 = vunpack.c.l.bf16 %v202
      %v4321 = vunpack.c.l.bf16 %v203
      %v4322 = vunpack.c.l.bf16 %v204
      %v4323 = vunpack.c.l.bf16 %v205
      %v4324 = vunpack.c.l.bf16 %v206
      %v4325 = vunpack.c.l.bf16 %v207
      %v4326 = vunpack.c.l.bf16 %v208
      %v4327 = vunpack.c.l.bf16 %v209
      %v4328 = vunpack.c.l.bf16 %v210
      %v4329 = vunpack.c.l.bf16 %v211
      %v4330 = vunpack.c.l.bf16 %v212
      %v4331 = vunpack.c.l.bf16 %v213
      %v4332 = vunpack.c.l.bf16 %v214
      %v4333 = vunpack.c.l.bf16 %v215
      %v4334 = vunpack.c.l.bf16 %v216
      %v4335 = vunpack.c.l.bf16 %v217
      %v4336 = vunpack.c.l.bf16 %v218
      %v4337 = vunpack.c.l.bf16 %v219
      %v4338 = vunpack.c.l.bf16 %v220
      %v4339 = vunpack.c.l.bf16 %v221
      %v4340 = vunpack.c.l.bf16 %v222
      %v4341 = vunpack.c.l.bf16 %v223
      %v4342 = vunpack.c.l.bf16 %v224
      %v4343 = vunpack.c.l.bf16 %v225
      %v4344 = vunpack.c.l.bf16 %v226
      %v4345 = vunpack.c.l.bf16 %v227
      %v4346 = vunpack.c.l.bf16 %v228
      %v4347 = vunpack.c.l.bf16 %v229
      %v4348 = vunpack.c.l.bf16 %v230
      %v4349 = vunpack.c.l.bf16 %v231
      %v4350 = vunpack.c.l.bf16 %v232
      %v4351 = vunpack.c.l.bf16 %v233
      %v4352 = vunpack.c.l.bf16 %v234
      %v4353 = vunpack.c.l.bf16 %v235
      %v4354 = vunpack.c.l.bf16 %v236
      %v4355 = vunpack.c.l.bf16 %v237
      %v4356 = vunpack.c.l.bf16 %v238
      %v4357 = vunpack.c.l.bf16 %v239
      %v4358 = vunpack.c.l.bf16 %v240
      %v4359 = vunpack.c.l.bf16 %v241
      %v4360 = vunpack.c.l.bf16 %v242
      %v4361 = vunpack.c.l.bf16 %v243
      %v4362 = vunpack.c.l.bf16 %v244
      %v4363 = vunpack.c.l.bf16 %v245
      %v4364 = vunpack.c.l.bf16 %v246
      %v4365 = vunpack.c.l.bf16 %v247
      %v4366 = vunpack.c.l.bf16 %v248
      %v4367 = vunpack.c.l.bf16 %v249
      %v4368 = vunpack.c.l.bf16 %v250
      %v4369 = vunpack.c.l.bf16 %v251
      %v4370 = vunpack.c.l.bf16 %v252
      %v4371 = vunpack.c.l.bf16 %v253
      %v4372 = vunpack.c.l.bf16 %v254
      %v4373 = vunpack.c.l.bf16 %v255
      %v4374 = vunpack.c.l.bf16 %v256
      %v4375 = vunpack.c.l.bf16 %v257
      %v4376 = vunpack.c.l.bf16 %v258
      %v4377 = vunpack.c.l.bf16 %v259
      %v4378 = vunpack.c.l.bf16 %v260
      %v4379 = vunpack.c.l.bf16 %v261
      %v4380 = vunpack.c.l.bf16 %v262
      %v4381 = vunpack.c.l.bf16 %v263
      %v4382 = vunpack.c.l.bf16 %v264
      %v4383 = vunpack.c.l.bf16 %v265
      %v4384 = vrot.slane %v4320, 7
      %v4385 = vrot.slane %v4321, 7
      %v4386 = vrot.slane %v4322, 7
      %v4387 = vrot.slane %v4323, 7
      %v4388 = vrot.slane %v4324, 7
      %v4389 = vrot.slane %v4325, 7
      %v4390 = vrot.slane %v4326, 7
      %v4391 = vrot.slane %v4327, 7
      %v4392 = vrot.slane %v4328, 7
      %v4393 = vrot.slane %v4329, 7
      %v4394 = vrot.slane %v4330, 7
      %v4395 = vrot.slane %v4331, 7
      %v4396 = vrot.slane %v4332, 7
      %v4397 = vrot.slane %v4333, 7
      %v4398 = vrot.slane %v4334, 7
      %v4399 = vrot.slane %v4335, 7
      %v4400 = vrot.slane %v4336, 7
      %v4401 = vrot.slane %v4337, 7
      %v4402 = vrot.slane %v4338, 7
      %v4403 = vrot.slane %v4339, 7
      %v4404 = vrot.slane %v4340, 7
      %v4405 = vrot.slane %v4341, 7
      %v4406 = vrot.slane %v4342, 7
      %v4407 = vrot.slane %v4343, 7
      %v4408 = vrot.slane %v4344, 7
      %v4409 = vrot.slane %v4345, 7
      %v4410 = vrot.slane %v4346, 7
      %v4411 = vrot.slane %v4347, 7
      %v4412 = vrot.slane %v4348, 7
      %v4413 = vrot.slane %v4349, 7
      %v4414 = vrot.slane %v4350, 7
      %v4415 = vrot.slane %v4351, 7
      %v4416 = vrot.slane %v4352, 7
      %v4417 = vrot.slane %v4353, 7
      %v4418 = vrot.slane %v4354, 7
      %v4419 = vrot.slane %v4355, 7
      %v4420 = vrot.slane %v4356, 7
      %v4421 = vrot.slane %v4357, 7
      %v4422 = vrot.slane %v4358, 7
      %v4423 = vrot.slane %v4359, 7
      %v4424 = vrot.slane %v4360, 7
      %v4425 = vrot.slane %v4361, 7
      %v4426 = vrot.slane %v4362, 7
      %v4427 = vrot.slane %v4363, 7
      %v4428 = vrot.slane %v4364, 7
      %v4429 = vrot.slane %v4365, 7
      %v4430 = vrot.slane %v4366, 7
      %v4431 = vrot.slane %v4367, 7
      %v4432 = vrot.slane %v4368, 7
      %v4433 = vrot.slane %v4369, 7
      %v4434 = vrot.slane %v4370, 7
      %v4435 = vrot.slane %v4371, 7
      %v4436 = vrot.slane %v4372, 7
      %v4437 = vrot.slane %v4373, 7
      %v4438 = vrot.slane %v4374, 7
      %v4439 = vrot.slane %v4375, 7
      %v4440 = vrot.slane %v4376, 7
      %v4441 = vrot.slane %v4377, 7
      %v4442 = vrot.slane %v4378, 7
      %v4443 = vrot.slane %v4379, 7
      %v4444 = vrot.slane %v4380, 7
      %v4445 = vrot.slane %v4381, 7
      %v4446 = vrot.slane %v4382, 7
      %v4447 = vrot.slane %v4383, 7
      %v4448 = vsel %vm1169, %v4446, %v4447
      %v4449 = vsel %vm1169, %v4445, %v4446
      %v4450 = vsel %vm1169, %v4444, %v4445
      %v4451 = vsel %vm1169, %v4443, %v4444
      %v4452 = vsel %vm1169, %v4442, %v4443
      %v4453 = vsel %vm1169, %v4441, %v4442
      %v4454 = vsel %vm1169, %v4440, %v4441
      %v4455 = vsel %vm1169, %v4439, %v4440
      %v4456 = vsel %vm1169, %v4438, %v4439
      %v4457 = vsel %vm1169, %v4437, %v4438
      %v4458 = vsel %vm1169, %v4436, %v4437
      %v4459 = vsel %vm1169, %v4435, %v4436
      %v4460 = vsel %vm1169, %v4434, %v4435
      %v4461 = vsel %vm1169, %v4433, %v4434
      %v4462 = vsel %vm1169, %v4432, %v4433
      %v4463 = vsel %vm1169, %v4431, %v4432
      %v4464 = vsel %vm1169, %v4430, %v4431
      %v4465 = vsel %vm1169, %v4429, %v4430
      %v4466 = vsel %vm1169, %v4428, %v4429
      %v4467 = vsel %vm1169, %v4427, %v4428
      %v4468 = vsel %vm1169, %v4426, %v4427
      %v4469 = vsel %vm1169, %v4425, %v4426
      %v4470 = vsel %vm1169, %v4424, %v4425
      %v4471 = vsel %vm1169, %v4423, %v4424
      %v4472 = vsel %vm1169, %v4422, %v4423
      %v4473 = vsel %vm1169, %v4421, %v4422
      %v4474 = vsel %vm1169, %v4420, %v4421
      %v4475 = vsel %vm1169, %v4419, %v4420
      %v4476 = vsel %vm1169, %v4418, %v4419
      %v4477 = vsel %vm1169, %v4417, %v4418
      %v4478 = vsel %vm1169, %v4416, %v4417
      %v4479 = vsel %vm1169, %v4415, %v4416
      %v4480 = vsel %vm1169, %v4414, %v4415
      %v4481 = vsel %vm1169, %v4413, %v4414
      %v4482 = vsel %vm1169, %v4412, %v4413
      %v4483 = vsel %vm1169, %v4411, %v4412
      %v4484 = vsel %vm1169, %v4410, %v4411
      %v4485 = vsel %vm1169, %v4409, %v4410
      %v4486 = vsel %vm1169, %v4408, %v4409
      %v4487 = vsel %vm1169, %v4407, %v4408
      %v4488 = vsel %vm1169, %v4406, %v4407
      %v4489 = vsel %vm1169, %v4405, %v4406
      %v4490 = vsel %vm1169, %v4404, %v4405
      %v4491 = vsel %vm1169, %v4403, %v4404
      %v4492 = vsel %vm1169, %v4402, %v4403
      %v4493 = vsel %vm1169, %v4401, %v4402
      %v4494 = vsel %vm1169, %v4400, %v4401
      %v4495 = vsel %vm1169, %v4399, %v4400
      %v4496 = vsel %vm1169, %v4398, %v4399
      %v4497 = vsel %vm1169, %v4397, %v4398
      %v4498 = vsel %vm1169, %v4396, %v4397
      %v4499 = vsel %vm1169, %v4395, %v4396
      %v4500 = vsel %vm1169, %v4394, %v4395
      %v4501 = vsel %vm1169, %v4393, %v4394
      %v4502 = vsel %vm1169, %v4392, %v4393
      %v4503 = vsel %vm1169, %v4391, %v4392
      %v4504 = vsel %vm1169, %v4390, %v4391
      %v4505 = vsel %vm1169, %v4389, %v4390
      %v4506 = vsel %vm1169, %v4388, %v4389
      %v4507 = vsel %vm1169, %v4387, %v4388
      %v4508 = vsel %vm1169, %v4386, %v4387
      %v4509 = vsel %vm1169, %v4385, %v4386
      %v4510 = vsel %vm1169, %v4384, %v4385
      %v4511 = vsel %vm1169, %v4447, %v4384
      %v4512 = vrot.slane %v4320, 1
      %v4513 = vrot.slane %v4321, 1
      %v4514 = vrot.slane %v4322, 1
      %v4515 = vrot.slane %v4323, 1
      %v4516 = vrot.slane %v4324, 1
      %v4517 = vrot.slane %v4325, 1
      %v4518 = vrot.slane %v4326, 1
      %v4519 = vrot.slane %v4327, 1
      %v4520 = vrot.slane %v4328, 1
      %v4521 = vrot.slane %v4329, 1
      %v4522 = vrot.slane %v4330, 1
      %v4523 = vrot.slane %v4331, 1
      %v4524 = vrot.slane %v4332, 1
      %v4525 = vrot.slane %v4333, 1
      %v4526 = vrot.slane %v4334, 1
      %v4527 = vrot.slane %v4335, 1
      %v4528 = vrot.slane %v4336, 1
      %v4529 = vrot.slane %v4337, 1
      %v4530 = vrot.slane %v4338, 1
      %v4531 = vrot.slane %v4339, 1
      %v4532 = vrot.slane %v4340, 1
      %v4533 = vrot.slane %v4341, 1
      %v4534 = vrot.slane %v4342, 1
      %v4535 = vrot.slane %v4343, 1
      %v4536 = vrot.slane %v4344, 1
      %v4537 = vrot.slane %v4345, 1
      %v4538 = vrot.slane %v4346, 1
      %v4539 = vrot.slane %v4347, 1
      %v4540 = vrot.slane %v4348, 1
      %v4541 = vrot.slane %v4349, 1
      %v4542 = vrot.slane %v4350, 1
      %v4543 = vrot.slane %v4351, 1
      %v4544 = vrot.slane %v4352, 1
      %v4545 = vrot.slane %v4353, 1
      %v4546 = vrot.slane %v4354, 1
      %v4547 = vrot.slane %v4355, 1
      %v4548 = vrot.slane %v4356, 1
      %v4549 = vrot.slane %v4357, 1
      %v4550 = vrot.slane %v4358, 1
      %v4551 = vrot.slane %v4359, 1
      %v4552 = vrot.slane %v4360, 1
      %v4553 = vrot.slane %v4361, 1
      %v4554 = vrot.slane %v4362, 1
      %v4555 = vrot.slane %v4363, 1
      %v4556 = vrot.slane %v4364, 1
      %v4557 = vrot.slane %v4365, 1
      %v4558 = vrot.slane %v4366, 1
      %v4559 = vrot.slane %v4367, 1
      %v4560 = vrot.slane %v4368, 1
      %v4561 = vrot.slane %v4369, 1
      %v4562 = vrot.slane %v4370, 1
      %v4563 = vrot.slane %v4371, 1
      %v4564 = vrot.slane %v4372, 1
      %v4565 = vrot.slane %v4373, 1
      %v4566 = vrot.slane %v4374, 1
      %v4567 = vrot.slane %v4375, 1
      %v4568 = vrot.slane %v4376, 1
      %v4569 = vrot.slane %v4377, 1
      %v4570 = vrot.slane %v4378, 1
      %v4571 = vrot.slane %v4379, 1
      %v4572 = vrot.slane %v4380, 1
      %v4573 = vrot.slane %v4381, 1
      %v4574 = vrot.slane %v4382, 1
      %v4575 = vrot.slane %v4383, 1
      %v4576 = vsel %vm1298, %v4574, %v4575
      %v4577 = vsel %vm1298, %v4573, %v4574
      %v4578 = vsel %vm1298, %v4572, %v4573
      %v4579 = vsel %vm1298, %v4571, %v4572
      %v4580 = vsel %vm1298, %v4570, %v4571
      %v4581 = vsel %vm1298, %v4569, %v4570
      %v4582 = vsel %vm1298, %v4568, %v4569
      %v4583 = vsel %vm1298, %v4567, %v4568
      %v4584 = vsel %vm1298, %v4566, %v4567
      %v4585 = vsel %vm1298, %v4565, %v4566
      %v4586 = vsel %vm1298, %v4564, %v4565
      %v4587 = vsel %vm1298, %v4563, %v4564
      %v4588 = vsel %vm1298, %v4562, %v4563
      %v4589 = vsel %vm1298, %v4561, %v4562
      %v4590 = vsel %vm1298, %v4560, %v4561
      %v4591 = vsel %vm1298, %v4559, %v4560
      %v4592 = vsel %vm1298, %v4558, %v4559
      %v4593 = vsel %vm1298, %v4557, %v4558
      %v4594 = vsel %vm1298, %v4556, %v4557
      %v4595 = vsel %vm1298, %v4555, %v4556
      %v4596 = vsel %vm1298, %v4554, %v4555
      %v4597 = vsel %vm1298, %v4553, %v4554
      %v4598 = vsel %vm1298, %v4552, %v4553
      %v4599 = vsel %vm1298, %v4551, %v4552
      %v4600 = vsel %vm1298, %v4550, %v4551
      %v4601 = vsel %vm1298, %v4549, %v4550
      %v4602 = vsel %vm1298, %v4548, %v4549
      %v4603 = vsel %vm1298, %v4547, %v4548
      %v4604 = vsel %vm1298, %v4546, %v4547
      %v4605 = vsel %vm1298, %v4545, %v4546
      %v4606 = vsel %vm1298, %v4544, %v4545
      %v4607 = vsel %vm1298, %v4543, %v4544
      %v4608 = vsel %vm1298, %v4542, %v4543
      %v4609 = vsel %vm1298, %v4541, %v4542
      %v4610 = vsel %vm1298, %v4540, %v4541
      %v4611 = vsel %vm1298, %v4539, %v4540
      %v4612 = vsel %vm1298, %v4538, %v4539
      %v4613 = vsel %vm1298, %v4537, %v4538
      %v4614 = vsel %vm1298, %v4536, %v4537
      %v4615 = vsel %vm1298, %v4535, %v4536
      %v4616 = vsel %vm1298, %v4534, %v4535
      %v4617 = vsel %vm1298, %v4533, %v4534
      %v4618 = vsel %vm1298, %v4532, %v4533
      %v4619 = vsel %vm1298, %v4531, %v4532
      %v4620 = vsel %vm1298, %v4530, %v4531
      %v4621 = vsel %vm1298, %v4529, %v4530
      %v4622 = vsel %vm1298, %v4528, %v4529
      %v4623 = vsel %vm1298, %v4527, %v4528
      %v4624 = vsel %vm1298, %v4526, %v4527
      %v4625 = vsel %vm1298, %v4525, %v4526
      %v4626 = vsel %vm1298, %v4524, %v4525
      %v4627 = vsel %vm1298, %v4523, %v4524
      %v4628 = vsel %vm1298, %v4522, %v4523
      %v4629 = vsel %vm1298, %v4521, %v4522
      %v4630 = vsel %vm1298, %v4520, %v4521
      %v4631 = vsel %vm1298, %v4519, %v4520
      %v4632 = vsel %vm1298, %v4518, %v4519
      %v4633 = vsel %vm1298, %v4517, %v4518
      %v4634 = vsel %vm1298, %v4516, %v4517
      %v4635 = vsel %vm1298, %v4515, %v4516
      %v4636 = vsel %vm1298, %v4514, %v4515
      %v4637 = vsel %vm1298, %v4513, %v4514
      %v4638 = vsel %vm1298, %v4512, %v4513
      %v4639 = vsel %vm1298, %v4575, %v4512
      %vm4640 = vcmp.gt.s32.totalorder %v301, 0
      %vm4641 = vcmp.gt.s32.totalorder %v302, 0
      %vm4642 = vcmp.gt.s32.totalorder %v303, 0
      %vm4643 = vcmp.gt.s32.totalorder %v304, 0
      %vm4644 = vcmp.gt.s32.totalorder %v305, 0
      %vm4645 = vcmp.gt.s32.totalorder %v306, 0
      %vm4646 = vcmp.gt.s32.totalorder %v307, 0
      %vm4647 = vcmp.gt.s32.totalorder %v308, 0
      %v4648 = vsel %vm4640, 1, 0
      %v4649 = vsel %vm4641, 1, 0
      %v4650 = vsel %vm4642, 1, 0
      %v4651 = vsel %vm4643, 1, 0
      %v4652 = vsel %vm4644, 1, 0
      %v4653 = vsel %vm4645, 1, 0
      %v4654 = vsel %vm4646, 1, 0
      %v4655 = vsel %vm4647, 1, 0
      %vm4656 = vcmp.eq.s32.totalorder %v4648, 1
      %vm4657 = vcmp.eq.s32.totalorder %v4649, 1
      %vm4658 = vcmp.eq.s32.totalorder %v4650, 1
      %vm4659 = vcmp.eq.s32.totalorder %v4651, 1
      %vm4660 = vcmp.eq.s32.totalorder %v4652, 1
      %vm4661 = vcmp.eq.s32.totalorder %v4653, 1
      %vm4662 = vcmp.eq.s32.totalorder %v4654, 1
      %vm4663 = vcmp.eq.s32.totalorder %v4655, 1
      %v4664 = vsel %vm4656, %v4511, %v4320
      %v4665 = vsel %vm4657, %v4510, %v4321
      %v4666 = vsel %vm4658, %v4509, %v4322
      %v4667 = vsel %vm4659, %v4508, %v4323
      %v4668 = vsel %vm4660, %v4507, %v4324
      %v4669 = vsel %vm4661, %v4506, %v4325
      %v4670 = vsel %vm4662, %v4505, %v4326
      %v4671 = vsel %vm4663, %v4504, %v4327
      %v4672 = vsel %vm4656, %v4503, %v4328
      %v4673 = vsel %vm4657, %v4502, %v4329
      %v4674 = vsel %vm4658, %v4501, %v4330
      %v4675 = vsel %vm4659, %v4500, %v4331
      %v4676 = vsel %vm4660, %v4499, %v4332
      %v4677 = vsel %vm4661, %v4498, %v4333
      %v4678 = vsel %vm4662, %v4497, %v4334
      %v4679 = vsel %vm4663, %v4496, %v4335
      %v4680 = vsel %vm4656, %v4495, %v4336
      %v4681 = vsel %vm4657, %v4494, %v4337
      %v4682 = vsel %vm4658, %v4493, %v4338
      %v4683 = vsel %vm4659, %v4492, %v4339
      %v4684 = vsel %vm4660, %v4491, %v4340
      %v4685 = vsel %vm4661, %v4490, %v4341
      %v4686 = vsel %vm4662, %v4489, %v4342
      %v4687 = vsel %vm4663, %v4488, %v4343
      %v4688 = vsel %vm4656, %v4487, %v4344
      %v4689 = vsel %vm4657, %v4486, %v4345
      %v4690 = vsel %vm4658, %v4485, %v4346
      %v4691 = vsel %vm4659, %v4484, %v4347
      %v4692 = vsel %vm4660, %v4483, %v4348
      %v4693 = vsel %vm4661, %v4482, %v4349
      %v4694 = vsel %vm4662, %v4481, %v4350
      %v4695 = vsel %vm4663, %v4480, %v4351
      %v4696 = vsel %vm4656, %v4479, %v4352
      %v4697 = vsel %vm4657, %v4478, %v4353
      %v4698 = vsel %vm4658, %v4477, %v4354
      %v4699 = vsel %vm4659, %v4476, %v4355
      %v4700 = vsel %vm4660, %v4475, %v4356
      %v4701 = vsel %vm4661, %v4474, %v4357
      %v4702 = vsel %vm4662, %v4473, %v4358
      %v4703 = vsel %vm4663, %v4472, %v4359
      %v4704 = vsel %vm4656, %v4471, %v4360
      %v4705 = vsel %vm4657, %v4470, %v4361
      %v4706 = vsel %vm4658, %v4469, %v4362
      %v4707 = vsel %vm4659, %v4468, %v4363
      %v4708 = vsel %vm4660, %v4467, %v4364
      %v4709 = vsel %vm4661, %v4466, %v4365
      %v4710 = vsel %vm4662, %v4465, %v4366
      %v4711 = vsel %vm4663, %v4464, %v4367
      %v4712 = vsel %vm4656, %v4463, %v4368
      %v4713 = vsel %vm4657, %v4462, %v4369
      %v4714 = vsel %vm4658, %v4461, %v4370
      %v4715 = vsel %vm4659, %v4460, %v4371
      %v4716 = vsel %vm4660, %v4459, %v4372
      %v4717 = vsel %vm4661, %v4458, %v4373
      %v4718 = vsel %vm4662, %v4457, %v4374
      %v4719 = vsel %vm4663, %v4456, %v4375
      %v4720 = vsel %vm4656, %v4455, %v4376
      %v4721 = vsel %vm4657, %v4454, %v4377
      %v4722 = vsel %vm4658, %v4453, %v4378
      %v4723 = vsel %vm4659, %v4452, %v4379
      %v4724 = vsel %vm4660, %v4451, %v4380
      %v4725 = vsel %vm4661, %v4450, %v4381
      %v4726 = vsel %vm4662, %v4449, %v4382
      %v4727 = vsel %vm4663, %v4448, %v4383
      %vm4728 = vcmp.lt.s32.totalorder %v301, 63
      %vm4729 = vcmp.lt.s32.totalorder %v302, 63
      %vm4730 = vcmp.lt.s32.totalorder %v303, 63
      %vm4731 = vcmp.lt.s32.totalorder %v304, 63
      %vm4732 = vcmp.lt.s32.totalorder %v305, 63
      %vm4733 = vcmp.lt.s32.totalorder %v306, 63
      %vm4734 = vcmp.lt.s32.totalorder %v307, 63
      %vm4735 = vcmp.lt.s32.totalorder %v308, 63
      %v4736 = vsel %vm4728, 1, 0
      %v4737 = vsel %vm4729, 1, 0
      %v4738 = vsel %vm4730, 1, 0
      %v4739 = vsel %vm4731, 1, 0
      %v4740 = vsel %vm4732, 1, 0
      %v4741 = vsel %vm4733, 1, 0
      %v4742 = vsel %vm4734, 1, 0
      %v4743 = vsel %vm4735, 1, 0
      %vm4744 = vcmp.eq.s32.totalorder %v4736, 1
      %vm4745 = vcmp.eq.s32.totalorder %v4737, 1
      %vm4746 = vcmp.eq.s32.totalorder %v4738, 1
      %vm4747 = vcmp.eq.s32.totalorder %v4739, 1
      %vm4748 = vcmp.eq.s32.totalorder %v4740, 1
      %vm4749 = vcmp.eq.s32.totalorder %v4741, 1
      %vm4750 = vcmp.eq.s32.totalorder %v4742, 1
      %vm4751 = vcmp.eq.s32.totalorder %v4743, 1
      %v4752 = vsel %vm4744, %v4638, %v4320
      %v4753 = vsel %vm4745, %v4637, %v4321
      %v4754 = vsel %vm4746, %v4636, %v4322
      %v4755 = vsel %vm4747, %v4635, %v4323
      %v4756 = vsel %vm4748, %v4634, %v4324
      %v4757 = vsel %vm4749, %v4633, %v4325
      %v4758 = vsel %vm4750, %v4632, %v4326
      %v4759 = vsel %vm4751, %v4631, %v4327
      %v4760 = vsel %vm4744, %v4630, %v4328
      %v4761 = vsel %vm4745, %v4629, %v4329
      %v4762 = vsel %vm4746, %v4628, %v4330
      %v4763 = vsel %vm4747, %v4627, %v4331
      %v4764 = vsel %vm4748, %v4626, %v4332
      %v4765 = vsel %vm4749, %v4625, %v4333
      %v4766 = vsel %vm4750, %v4624, %v4334
      %v4767 = vsel %vm4751, %v4623, %v4335
      %v4768 = vsel %vm4744, %v4622, %v4336
      %v4769 = vsel %vm4745, %v4621, %v4337
      %v4770 = vsel %vm4746, %v4620, %v4338
      %v4771 = vsel %vm4747, %v4619, %v4339
      %v4772 = vsel %vm4748, %v4618, %v4340
      %v4773 = vsel %vm4749, %v4617, %v4341
      %v4774 = vsel %vm4750, %v4616, %v4342
      %v4775 = vsel %vm4751, %v4615, %v4343
      %v4776 = vsel %vm4744, %v4614, %v4344
      %v4777 = vsel %vm4745, %v4613, %v4345
      %v4778 = vsel %vm4746, %v4612, %v4346
      %v4779 = vsel %vm4747, %v4611, %v4347
      %v4780 = vsel %vm4748, %v4610, %v4348
      %v4781 = vsel %vm4749, %v4609, %v4349
      %v4782 = vsel %vm4750, %v4608, %v4350
      %v4783 = vsel %vm4751, %v4607, %v4351
      %v4784 = vsel %vm4744, %v4606, %v4352
      %v4785 = vsel %vm4745, %v4605, %v4353
      %v4786 = vsel %vm4746, %v4604, %v4354
      %v4787 = vsel %vm4747, %v4603, %v4355
      %v4788 = vsel %vm4748, %v4602, %v4356
      %v4789 = vsel %vm4749, %v4601, %v4357
      %v4790 = vsel %vm4750, %v4600, %v4358
      %v4791 = vsel %vm4751, %v4599, %v4359
      %v4792 = vsel %vm4744, %v4598, %v4360
      %v4793 = vsel %vm4745, %v4597, %v4361
      %v4794 = vsel %vm4746, %v4596, %v4362
      %v4795 = vsel %vm4747, %v4595, %v4363
      %v4796 = vsel %vm4748, %v4594, %v4364
      %v4797 = vsel %vm4749, %v4593, %v4365
      %v4798 = vsel %vm4750, %v4592, %v4366
      %v4799 = vsel %vm4751, %v4591, %v4367
      %v4800 = vsel %vm4744, %v4590, %v4368
      %v4801 = vsel %vm4745, %v4589, %v4369
      %v4802 = vsel %vm4746, %v4588, %v4370
      %v4803 = vsel %vm4747, %v4587, %v4371
      %v4804 = vsel %vm4748, %v4586, %v4372
      %v4805 = vsel %vm4749, %v4585, %v4373
      %v4806 = vsel %vm4750, %v4584, %v4374
      %v4807 = vsel %vm4751, %v4583, %v4375
      %v4808 = vsel %vm4744, %v4582, %v4376
      %v4809 = vsel %vm4745, %v4581, %v4377
      %v4810 = vsel %vm4746, %v4580, %v4378
      %v4811 = vsel %vm4747, %v4579, %v4379
      %v4812 = vsel %vm4748, %v4578, %v4380
      %v4813 = vsel %vm4749, %v4577, %v4381
      %v4814 = vsel %vm4750, %v4576, %v4382
      %v4815 = vsel %vm4751, %v4639, %v4383
      %v4816 = vmax.f32 %v4664, %v4752
      %v4817 = vmax.f32 %v4665, %v4753
      %v4818 = vmax.f32 %v4666, %v4754
      %v4819 = vmax.f32 %v4667, %v4755
      %v4820 = vmax.f32 %v4668, %v4756
      %v4821 = vmax.f32 %v4669, %v4757
      %v4822 = vmax.f32 %v4670, %v4758
      %v4823 = vmax.f32 %v4671, %v4759
      %v4824 = vmax.f32 %v4672, %v4760
      %v4825 = vmax.f32 %v4673, %v4761
      %v4826 = vmax.f32 %v4674, %v4762
      %v4827 = vmax.f32 %v4675, %v4763
      %v4828 = vmax.f32 %v4676, %v4764
      %v4829 = vmax.f32 %v4677, %v4765
      %v4830 = vmax.f32 %v4678, %v4766
      %v4831 = vmax.f32 %v4679, %v4767
      %v4832 = vmax.f32 %v4680, %v4768
      %v4833 = vmax.f32 %v4681, %v4769
      %v4834 = vmax.f32 %v4682, %v4770
      %v4835 = vmax.f32 %v4683, %v4771
      %v4836 = vmax.f32 %v4684, %v4772
      %v4837 = vmax.f32 %v4685, %v4773
      %v4838 = vmax.f32 %v4686, %v4774
      %v4839 = vmax.f32 %v4687, %v4775
      %v4840 = vmax.f32 %v4688, %v4776
      %v4841 = vmax.f32 %v4689, %v4777
      %v4842 = vmax.f32 %v4690, %v4778
      %v4843 = vmax.f32 %v4691, %v4779
      %v4844 = vmax.f32 %v4692, %v4780
      %v4845 = vmax.f32 %v4693, %v4781
      %v4846 = vmax.f32 %v4694, %v4782
      %v4847 = vmax.f32 %v4695, %v4783
      %v4848 = vmax.f32 %v4696, %v4784
      %v4849 = vmax.f32 %v4697, %v4785
      %v4850 = vmax.f32 %v4698, %v4786
      %v4851 = vmax.f32 %v4699, %v4787
      %v4852 = vmax.f32 %v4700, %v4788
      %v4853 = vmax.f32 %v4701, %v4789
      %v4854 = vmax.f32 %v4702, %v4790
      %v4855 = vmax.f32 %v4703, %v4791
      %v4856 = vmax.f32 %v4704, %v4792
      %v4857 = vmax.f32 %v4705, %v4793
      %v4858 = vmax.f32 %v4706, %v4794
      %v4859 = vmax.f32 %v4707, %v4795
      %v4860 = vmax.f32 %v4708, %v4796
      %v4861 = vmax.f32 %v4709, %v4797
      %v4862 = vmax.f32 %v4710, %v4798
      %v4863 = vmax.f32 %v4711, %v4799
      %v4864 = vmax.f32 %v4712, %v4800
      %v4865 = vmax.f32 %v4713, %v4801
      %v4866 = vmax.f32 %v4714, %v4802
      %v4867 = vmax.f32 %v4715, %v4803
      %v4868 = vmax.f32 %v4716, %v4804
      %v4869 = vmax.f32 %v4717, %v4805
      %v4870 = vmax.f32 %v4718, %v4806
      %v4871 = vmax.f32 %v4719, %v4807
      %v4872 = vmax.f32 %v4720, %v4808
      %v4873 = vmax.f32 %v4721, %v4809
      %v4874 = vmax.f32 %v4722, %v4810
      %v4875 = vmax.f32 %v4723, %v4811
      %v4876 = vmax.f32 %v4724, %v4812
      %v4877 = vmax.f32 %v4725, %v4813
      %v4878 = vmax.f32 %v4726, %v4814
      %v4879 = vmax.f32 %v4727, %v4815
      %v4880 = vmax.f32 %v4816, %v4320
      %v4881 = vmax.f32 %v4817, %v4321
      %v4882 = vmax.f32 %v4818, %v4322
      %v4883 = vmax.f32 %v4819, %v4323
      %v4884 = vmax.f32 %v4820, %v4324
      %v4885 = vmax.f32 %v4821, %v4325
      %v4886 = vmax.f32 %v4822, %v4326
      %v4887 = vmax.f32 %v4823, %v4327
      %v4888 = vmax.f32 %v4824, %v4328
      %v4889 = vmax.f32 %v4825, %v4329
      %v4890 = vmax.f32 %v4826, %v4330
      %v4891 = vmax.f32 %v4827, %v4331
      %v4892 = vmax.f32 %v4828, %v4332
      %v4893 = vmax.f32 %v4829, %v4333
      %v4894 = vmax.f32 %v4830, %v4334
      %v4895 = vmax.f32 %v4831, %v4335
      %v4896 = vmax.f32 %v4832, %v4336
      %v4897 = vmax.f32 %v4833, %v4337
      %v4898 = vmax.f32 %v4834, %v4338
      %v4899 = vmax.f32 %v4835, %v4339
      %v4900 = vmax.f32 %v4836, %v4340
      %v4901 = vmax.f32 %v4837, %v4341
      %v4902 = vmax.f32 %v4838, %v4342
      %v4903 = vmax.f32 %v4839, %v4343
      %v4904 = vmax.f32 %v4840, %v4344
      %v4905 = vmax.f32 %v4841, %v4345
      %v4906 = vmax.f32 %v4842, %v4346
      %v4907 = vmax.f32 %v4843, %v4347
      %v4908 = vmax.f32 %v4844, %v4348
      %v4909 = vmax.f32 %v4845, %v4349
      %v4910 = vmax.f32 %v4846, %v4350
      %v4911 = vmax.f32 %v4847, %v4351
      %v4912 = vmax.f32 %v4848, %v4352
      %v4913 = vmax.f32 %v4849, %v4353
      %v4914 = vmax.f32 %v4850, %v4354
      %v4915 = vmax.f32 %v4851, %v4355
      %v4916 = vmax.f32 %v4852, %v4356
      %v4917 = vmax.f32 %v4853, %v4357
      %v4918 = vmax.f32 %v4854, %v4358
      %v4919 = vmax.f32 %v4855, %v4359
      %v4920 = vmax.f32 %v4856, %v4360
      %v4921 = vmax.f32 %v4857, %v4361
      %v4922 = vmax.f32 %v4858, %v4362
      %v4923 = vmax.f32 %v4859, %v4363
      %v4924 = vmax.f32 %v4860, %v4364
      %v4925 = vmax.f32 %v4861, %v4365
      %v4926 = vmax.f32 %v4862, %v4366
      %v4927 = vmax.f32 %v4863, %v4367
      %v4928 = vmax.f32 %v4864, %v4368
      %v4929 = vmax.f32 %v4865, %v4369
      %v4930 = vmax.f32 %v4866, %v4370
      %v4931 = vmax.f32 %v4867, %v4371
      %v4932 = vmax.f32 %v4868, %v4372
      %v4933 = vmax.f32 %v4869, %v4373
      %v4934 = vmax.f32 %v4870, %v4374
      %v4935 = vmax.f32 %v4871, %v4375
      %v4936 = vmax.f32 %v4872, %v4376
      %v4937 = vmax.f32 %v4873, %v4377
      %v4938 = vmax.f32 %v4874, %v4378
      %v4939 = vmax.f32 %v4875, %v4379
      %v4940 = vmax.f32 %v4876, %v4380
      %v4941 = vmax.f32 %v4877, %v4381
      %v4942 = vmax.f32 %v4878, %v4382
      %v4943 = vmax.f32 %v4879, %v4383
      %v4944 = vpack.c.bf16 %v4881, %v4880
      %v4945 = vpack.c.bf16 %v4883, %v4882
      %v4946 = vpack.c.bf16 %v4885, %v4884
      %v4947 = vpack.c.bf16 %v4887, %v4886
      %v4948 = vpack.c.bf16 %v4889, %v4888
      %v4949 = vpack.c.bf16 %v4891, %v4890
      %v4950 = vpack.c.bf16 %v4893, %v4892
      %v4951 = vpack.c.bf16 %v4895, %v4894
      %v4952 = vpack.c.bf16 %v4897, %v4896
      %v4953 = vpack.c.bf16 %v4899, %v4898
      %v4954 = vpack.c.bf16 %v4901, %v4900
      %v4955 = vpack.c.bf16 %v4903, %v4902
      %v4956 = vpack.c.bf16 %v4905, %v4904
      %v4957 = vpack.c.bf16 %v4907, %v4906
      %v4958 = vpack.c.bf16 %v4909, %v4908
      %v4959 = vpack.c.bf16 %v4911, %v4910
      %v4960 = vpack.c.bf16 %v4913, %v4912
      %v4961 = vpack.c.bf16 %v4915, %v4914
      %v4962 = vpack.c.bf16 %v4917, %v4916
      %v4963 = vpack.c.bf16 %v4919, %v4918
      %v4964 = vpack.c.bf16 %v4921, %v4920
      %v4965 = vpack.c.bf16 %v4923, %v4922
      %v4966 = vpack.c.bf16 %v4925, %v4924
      %v4967 = vpack.c.bf16 %v4927, %v4926
      %v4968 = vpack.c.bf16 %v4929, %v4928
      %v4969 = vpack.c.bf16 %v4931, %v4930
      %v4970 = vpack.c.bf16 %v4933, %v4932
      %v4971 = vpack.c.bf16 %v4935, %v4934
      %v4972 = vpack.c.bf16 %v4937, %v4936
      %v4973 = vpack.c.bf16 %v4939, %v4938
      %v4974 = vpack.c.bf16 %v4941, %v4940
      %v4975 = vpack.c.bf16 %v4943, %v4942
      %v4992 = vunpack.c.l.b16 %v284
      %v4993 = vunpack.c.l.b16 %v285
      %v4994 = vunpack.c.l.b16 %v286
      %v4995 = vunpack.c.l.b16 %v287
      %v4996 = vunpack.c.l.b16 %v288
      %v4997 = vunpack.c.l.b16 %v289
      %v4998 = vunpack.c.l.b16 %v290
      %v4999 = vunpack.c.l.b16 %v291
      %v5000 = vunpack.c.l.b16 %v292
      %v5001 = vunpack.c.l.b16 %v293
      %v5002 = vunpack.c.l.b16 %v294
      %v5003 = vunpack.c.l.b16 %v295
      %v5004 = vunpack.c.l.b16 %v296
      %v5005 = vunpack.c.l.b16 %v297
      %v5006 = vunpack.c.l.b16 %v298
      %v5007 = vunpack.c.l.b16 %v299
      %v5008 = vpack.c.b16 %v4993, %v4992
      %v5009 = vpack.c.b16 %v4995, %v4994
      %v5010 = vpack.c.b16 %v4997, %v4996
      %v5011 = vpack.c.b16 %v4999, %v4998
      %v5012 = vpack.c.b16 %v5001, %v5000
      %v5013 = vpack.c.b16 %v5003, %v5002
      %v5014 = vpack.c.b16 %v5005, %v5004
      %v5015 = vpack.c.b16 %v5007, %v5006
      %5024 = vmatpush.bf16.msra.mxu0 %v5015
      %5025 = vmatpush.bf16.msra.mxu0 %v5014
      %5026 = vmatpush.bf16.msra.mxu0 %v5013
      %5027 = vmatpush.bf16.msra.mxu0 %v5012
      %5028 = vmatpush.bf16.msra.mxu0 %v5011
      %5029 = vmatpush.bf16.msra.mxu0 %v5010
      %5030 = vmatpush.bf16.msra.mxu0 %v5009
      %5031 = vmatpush.bf16.msra.mxu0 %v5008
      %5032 = vmatmul.bf16.gmra.mxu0 %v4944
      %v5033 = vpop.f32.mrf.mxu0
      %v5034 = vadd.f32 0.0, %v5033
      %v5035 = vpop.f32.mrf.mxu0
      %v5036 = vadd.f32 0.0, %v5035
      %5037 = vmatmul.bf16.gmra.mxu0 %v4945
      %v5038 = vpop.f32.mrf.mxu0
      %v5039 = vadd.f32 0.0, %v5038
      %v5040 = vpop.f32.mrf.mxu0
      %v5041 = vadd.f32 0.0, %v5040
      %5042 = vmatmul.bf16.gmra.mxu0 %v4946
      %v5043 = vpop.f32.mrf.mxu0
      %v5044 = vadd.f32 0.0, %v5043
      %v5045 = vpop.f32.mrf.mxu0
      %v5046 = vadd.f32 0.0, %v5045
      %5047 = vmatmul.bf16.gmra.mxu0 %v4947
      %v5048 = vpop.f32.mrf.mxu0
      %v5049 = vadd.f32 0.0, %v5048
      %v5050 = vpop.f32.mrf.mxu0
      %v5051 = vadd.f32 0.0, %v5050
      %5052 = vmatmul.bf16.gmra.mxu0 %v4948
      %v5053 = vpop.f32.mrf.mxu0
      %v5054 = vadd.f32 0.0, %v5053
      %v5055 = vpop.f32.mrf.mxu0
      %v5056 = vadd.f32 0.0, %v5055
      %5057 = vmatmul.bf16.gmra.mxu0 %v4949
      %v5058 = vpop.f32.mrf.mxu0
      %v5059 = vadd.f32 0.0, %v5058
      %v5060 = vpop.f32.mrf.mxu0
      %v5061 = vadd.f32 0.0, %v5060
      %5062 = vmatmul.bf16.gmra.mxu0 %v4950
      %v5063 = vpop.f32.mrf.mxu0
      %v5064 = vadd.f32 0.0, %v5063
      %v5065 = vpop.f32.mrf.mxu0
      %v5066 = vadd.f32 0.0, %v5065
      %5067 = vmatmul.bf16.gmra.mxu0 %v4951
      %v5068 = vpop.f32.mrf.mxu0
      %v5069 = vadd.f32 0.0, %v5068
      %v5070 = vpop.f32.mrf.mxu0
      %v5071 = vadd.f32 0.0, %v5070
      %5072 = vmatmul.bf16.gmra.mxu0 %v4952
      %v5073 = vpop.f32.mrf.mxu0
      %v5074 = vadd.f32 0.0, %v5073
      %v5075 = vpop.f32.mrf.mxu0
      %v5076 = vadd.f32 0.0, %v5075
      %5077 = vmatmul.bf16.gmra.mxu0 %v4953
      %v5078 = vpop.f32.mrf.mxu0
      %v5079 = vadd.f32 0.0, %v5078
      %v5080 = vpop.f32.mrf.mxu0
      %v5081 = vadd.f32 0.0, %v5080
      %5082 = vmatmul.bf16.gmra.mxu0 %v4954
      %v5083 = vpop.f32.mrf.mxu0
      %v5084 = vadd.f32 0.0, %v5083
      %v5085 = vpop.f32.mrf.mxu0
      %v5086 = vadd.f32 0.0, %v5085
      %5087 = vmatmul.bf16.gmra.mxu0 %v4955
      %v5088 = vpop.f32.mrf.mxu0
      %v5089 = vadd.f32 0.0, %v5088
      %v5090 = vpop.f32.mrf.mxu0
      %v5091 = vadd.f32 0.0, %v5090
      %5092 = vmatmul.bf16.gmra.mxu0 %v4956
      %v5093 = vpop.f32.mrf.mxu0
      %v5094 = vadd.f32 0.0, %v5093
      %v5095 = vpop.f32.mrf.mxu0
      %v5096 = vadd.f32 0.0, %v5095
      %5097 = vmatmul.bf16.gmra.mxu0 %v4957
      %v5098 = vpop.f32.mrf.mxu0
      %v5099 = vadd.f32 0.0, %v5098
      %v5100 = vpop.f32.mrf.mxu0
      %v5101 = vadd.f32 0.0, %v5100
      %5102 = vmatmul.bf16.gmra.mxu0 %v4958
      %v5103 = vpop.f32.mrf.mxu0
      %v5104 = vadd.f32 0.0, %v5103
      %v5105 = vpop.f32.mrf.mxu0
      %v5106 = vadd.f32 0.0, %v5105
      %5107 = vmatmul.bf16.gmra.mxu0 %v4959
      %v5108 = vpop.f32.mrf.mxu0
      %v5109 = vadd.f32 0.0, %v5108
      %v5110 = vpop.f32.mrf.mxu0
      %v5111 = vadd.f32 0.0, %v5110
      %5112 = vmatmul.bf16.gmra.mxu0 %v4960
      %v5113 = vpop.f32.mrf.mxu0
      %v5114 = vadd.f32 0.0, %v5113
      %v5115 = vpop.f32.mrf.mxu0
      %v5116 = vadd.f32 0.0, %v5115
      %5117 = vmatmul.bf16.gmra.mxu0 %v4961
      %v5118 = vpop.f32.mrf.mxu0
      %v5119 = vadd.f32 0.0, %v5118
      %v5120 = vpop.f32.mrf.mxu0
      %v5121 = vadd.f32 0.0, %v5120
      %5122 = vmatmul.bf16.gmra.mxu0 %v4962
      %v5123 = vpop.f32.mrf.mxu0
      %v5124 = vadd.f32 0.0, %v5123
      %v5125 = vpop.f32.mrf.mxu0
      %v5126 = vadd.f32 0.0, %v5125
      %5127 = vmatmul.bf16.gmra.mxu0 %v4963
      %v5128 = vpop.f32.mrf.mxu0
      %v5129 = vadd.f32 0.0, %v5128
      %v5130 = vpop.f32.mrf.mxu0
      %v5131 = vadd.f32 0.0, %v5130
      %5132 = vmatmul.bf16.gmra.mxu0 %v4964
      %v5133 = vpop.f32.mrf.mxu0
      %v5134 = vadd.f32 0.0, %v5133
      %v5135 = vpop.f32.mrf.mxu0
      %v5136 = vadd.f32 0.0, %v5135
      %5137 = vmatmul.bf16.gmra.mxu0 %v4965
      %v5138 = vpop.f32.mrf.mxu0
      %v5139 = vadd.f32 0.0, %v5138
      %v5140 = vpop.f32.mrf.mxu0
      %v5141 = vadd.f32 0.0, %v5140
      %5142 = vmatmul.bf16.gmra.mxu0 %v4966
      %v5143 = vpop.f32.mrf.mxu0
      %v5144 = vadd.f32 0.0, %v5143
      %v5145 = vpop.f32.mrf.mxu0
      %v5146 = vadd.f32 0.0, %v5145
      %5147 = vmatmul.bf16.gmra.mxu0 %v4967
      %v5148 = vpop.f32.mrf.mxu0
      %v5149 = vadd.f32 0.0, %v5148
      %v5150 = vpop.f32.mrf.mxu0
      %v5151 = vadd.f32 0.0, %v5150
      %5152 = vmatmul.bf16.gmra.mxu0 %v4968
      %v5153 = vpop.f32.mrf.mxu0
      %v5154 = vadd.f32 0.0, %v5153
      %v5155 = vpop.f32.mrf.mxu0
      %v5156 = vadd.f32 0.0, %v5155
      %5157 = vmatmul.bf16.gmra.mxu0 %v4969
      %v5158 = vpop.f32.mrf.mxu0
      %v5159 = vadd.f32 0.0, %v5158
      %v5160 = vpop.f32.mrf.mxu0
      %v5161 = vadd.f32 0.0, %v5160
      %5162 = vmatmul.bf16.gmra.mxu0 %v4970
      %v5163 = vpop.f32.mrf.mxu0
      %v5164 = vadd.f32 0.0, %v5163
      %v5165 = vpop.f32.mrf.mxu0
      %v5166 = vadd.f32 0.0, %v5165
      %5167 = vmatmul.bf16.gmra.mxu0 %v4971
      %v5168 = vpop.f32.mrf.mxu0
      %v5169 = vadd.f32 0.0, %v5168
      %v5170 = vpop.f32.mrf.mxu0
      %v5171 = vadd.f32 0.0, %v5170
      %5172 = vmatmul.bf16.gmra.mxu0 %v4972
      %v5173 = vpop.f32.mrf.mxu0
      %v5174 = vadd.f32 0.0, %v5173
      %v5175 = vpop.f32.mrf.mxu0
      %v5176 = vadd.f32 0.0, %v5175
      %5177 = vmatmul.bf16.gmra.mxu0 %v4973
      %v5178 = vpop.f32.mrf.mxu0
      %v5179 = vadd.f32 0.0, %v5178
      %v5180 = vpop.f32.mrf.mxu0
      %v5181 = vadd.f32 0.0, %v5180
      %5182 = vmatmul.bf16.gmra.mxu0 %v4974
      %v5183 = vpop.f32.mrf.mxu0
      %v5184 = vadd.f32 0.0, %v5183
      %v5185 = vpop.f32.mrf.mxu0
      %v5186 = vadd.f32 0.0, %v5185
      %5187 = vmatmul.bf16.gmra.mxu0 %v4975
      %v5188 = vpop.f32.mrf.mxu0
      %v5189 = vadd.f32 0.0, %v5188
      %v5190 = vpop.f32.mrf.mxu0
      %v5191 = vadd.f32 0.0, %v5190
      %5192 = vdwg.mxu0
      %v5195 = vunpack.c.l.b16 %v282
      %v5196 = vunpack.c.l.b16 %v283
      %v5197 = vpack.c.b16 %v5196, %v5195
      %vm5198 = vcmask 72704
      %v5200 = vsel %vm5198, %v4288, 0
      %v5203 = vsel %vm5198, %v4289, 0
      %v5206 = vsel %vm5198, %v4290, 0
      %v5209 = vsel %vm5198, %v4291, 0
      %v5212 = vsel %vm5198, %v4292, 0
      %v5215 = vsel %vm5198, %v4293, 0
      %v5218 = vsel %vm5198, %v4294, 0
      %v5221 = vsel %vm5198, %v4295, 0
      %v5224 = vsel %vm5198, %v4296, 0
      %v5227 = vsel %vm5198, %v4297, 0
      %v5230 = vsel %vm5198, %v4298, 0
      %v5233 = vsel %vm5198, %v4299, 0
      %v5236 = vsel %vm5198, %v4300, 0
      %v5239 = vsel %vm5198, %v4301, 0
      %v5242 = vsel %vm5198, %v4302, 0
      %v5245 = vsel %vm5198, %v4303, 0
      %v5248 = vsel %vm5198, %v4304, 0
      %v5251 = vsel %vm5198, %v4305, 0
      %v5254 = vsel %vm5198, %v4306, 0
      %v5257 = vsel %vm5198, %v4307, 0
      %v5260 = vsel %vm5198, %v4308, 0
      %v5263 = vsel %vm5198, %v4309, 0
      %v5266 = vsel %vm5198, %v4310, 0
      %v5269 = vsel %vm5198, %v4311, 0
      %v5272 = vsel %vm5198, %v4312, 0
      %v5275 = vsel %vm5198, %v4313, 0
      %v5278 = vsel %vm5198, %v4314, 0
      %v5281 = vsel %vm5198, %v4315, 0
      %v5284 = vsel %vm5198, %v4316, 0
      %v5287 = vsel %vm5198, %v4317, 0
      %v5290 = vsel %vm5198, %v4318, 0
      %v5293 = vsel %vm5198, %v4319, 0
      %vm5295 = vcmask 1043456
      %vm5296 = vcmask 1044480
      %v5297 = vsel %vm5295, 4294967295, 65535
      %v5298 = vsel %vm5296, %v5297, 0
      %v5300 = vand.u32 %v5197, %v5298
      %5302 = vmatpush.bf16.msra.mxu0 0
      %5303 = vmatpush.bf16.msra.mxu0 0
      %5304 = vmatpush.bf16.msra.mxu0 0
      %5305 = vmatpush.bf16.msra.mxu0 0
      %5306 = vmatpush.bf16.msra.mxu0 0
      %5307 = vmatpush.bf16.msra.mxu0 0
      %5308 = vmatpush.bf16.msra.mxu0 0
      %5309 = vmatpush.bf16.msra.mxu0 %v5300
      %5310 = vmatmul.bf16.gmra.mxu0 %v5200
      %v5311 = vpop.f32.mrf.mxu0
      %v5312 = vadd.f32 %v5034, %v5311
      %v5313 = vpop.f32.mrf.mxu0
      %v5314 = vadd.f32 %v5036, %v5313
      %5315 = vmatmul.bf16.gmra.mxu0 %v5203
      %v5316 = vpop.f32.mrf.mxu0
      %v5317 = vadd.f32 %v5039, %v5316
      %v5318 = vpop.f32.mrf.mxu0
      %v5319 = vadd.f32 %v5041, %v5318
      %5320 = vmatmul.bf16.gmra.mxu0 %v5206
      %v5321 = vpop.f32.mrf.mxu0
      %v5322 = vadd.f32 %v5044, %v5321
      %v5323 = vpop.f32.mrf.mxu0
      %v5324 = vadd.f32 %v5046, %v5323
      %5325 = vmatmul.bf16.gmra.mxu0 %v5209
      %v5326 = vpop.f32.mrf.mxu0
      %v5327 = vadd.f32 %v5049, %v5326
      %v5328 = vpop.f32.mrf.mxu0
      %v5329 = vadd.f32 %v5051, %v5328
      %5330 = vmatmul.bf16.gmra.mxu0 %v5212
      %v5331 = vpop.f32.mrf.mxu0
      %v5332 = vadd.f32 %v5054, %v5331
      %v5333 = vpop.f32.mrf.mxu0
      %v5334 = vadd.f32 %v5056, %v5333
      %5335 = vmatmul.bf16.gmra.mxu0 %v5215
      %v5336 = vpop.f32.mrf.mxu0
      %v5337 = vadd.f32 %v5059, %v5336
      %v5338 = vpop.f32.mrf.mxu0
      %v5339 = vadd.f32 %v5061, %v5338
      %5340 = vmatmul.bf16.gmra.mxu0 %v5218
      %v5341 = vpop.f32.mrf.mxu0
      %v5342 = vadd.f32 %v5064, %v5341
      %v5343 = vpop.f32.mrf.mxu0
      %v5344 = vadd.f32 %v5066, %v5343
      %5345 = vmatmul.bf16.gmra.mxu0 %v5221
      %v5346 = vpop.f32.mrf.mxu0
      %v5347 = vadd.f32 %v5069, %v5346
      %v5348 = vpop.f32.mrf.mxu0
      %v5349 = vadd.f32 %v5071, %v5348
      %5350 = vmatmul.bf16.gmra.mxu0 %v5224
      %v5351 = vpop.f32.mrf.mxu0
      %v5352 = vadd.f32 %v5074, %v5351
      %v5353 = vpop.f32.mrf.mxu0
      %v5354 = vadd.f32 %v5076, %v5353
      %5355 = vmatmul.bf16.gmra.mxu0 %v5227
      %v5356 = vpop.f32.mrf.mxu0
      %v5357 = vadd.f32 %v5079, %v5356
      %v5358 = vpop.f32.mrf.mxu0
      %v5359 = vadd.f32 %v5081, %v5358
      %5360 = vmatmul.bf16.gmra.mxu0 %v5230
      %v5361 = vpop.f32.mrf.mxu0
      %v5362 = vadd.f32 %v5084, %v5361
      %v5363 = vpop.f32.mrf.mxu0
      %v5364 = vadd.f32 %v5086, %v5363
      %5365 = vmatmul.bf16.gmra.mxu0 %v5233
      %v5366 = vpop.f32.mrf.mxu0
      %v5367 = vadd.f32 %v5089, %v5366
      %v5368 = vpop.f32.mrf.mxu0
      %v5369 = vadd.f32 %v5091, %v5368
      %5370 = vmatmul.bf16.gmra.mxu0 %v5236
      %v5371 = vpop.f32.mrf.mxu0
      %v5372 = vadd.f32 %v5094, %v5371
      %v5373 = vpop.f32.mrf.mxu0
      %v5374 = vadd.f32 %v5096, %v5373
      %5375 = vmatmul.bf16.gmra.mxu0 %v5239
      %v5376 = vpop.f32.mrf.mxu0
      %v5377 = vadd.f32 %v5099, %v5376
      %v5378 = vpop.f32.mrf.mxu0
      %v5379 = vadd.f32 %v5101, %v5378
      %5380 = vmatmul.bf16.gmra.mxu0 %v5242
      %v5381 = vpop.f32.mrf.mxu0
      %v5382 = vadd.f32 %v5104, %v5381
      %v5383 = vpop.f32.mrf.mxu0
      %v5384 = vadd.f32 %v5106, %v5383
      %5385 = vmatmul.bf16.gmra.mxu0 %v5245
      %v5386 = vpop.f32.mrf.mxu0
      %v5387 = vadd.f32 %v5109, %v5386
      %v5388 = vpop.f32.mrf.mxu0
      %v5389 = vadd.f32 %v5111, %v5388
      %5390 = vmatmul.bf16.gmra.mxu0 %v5248
      %v5391 = vpop.f32.mrf.mxu0
      %v5392 = vadd.f32 %v5114, %v5391
      %v5393 = vpop.f32.mrf.mxu0
      %v5394 = vadd.f32 %v5116, %v5393
      %5395 = vmatmul.bf16.gmra.mxu0 %v5251
      %v5396 = vpop.f32.mrf.mxu0
      %v5397 = vadd.f32 %v5119, %v5396
      %v5398 = vpop.f32.mrf.mxu0
      %v5399 = vadd.f32 %v5121, %v5398
      %5400 = vmatmul.bf16.gmra.mxu0 %v5254
      %v5401 = vpop.f32.mrf.mxu0
      %v5402 = vadd.f32 %v5124, %v5401
      %v5403 = vpop.f32.mrf.mxu0
      %v5404 = vadd.f32 %v5126, %v5403
      %5405 = vmatmul.bf16.gmra.mxu0 %v5257
      %v5406 = vpop.f32.mrf.mxu0
      %v5407 = vadd.f32 %v5129, %v5406
      %v5408 = vpop.f32.mrf.mxu0
      %v5409 = vadd.f32 %v5131, %v5408
      %5410 = vmatmul.bf16.gmra.mxu0 %v5260
      %v5411 = vpop.f32.mrf.mxu0
      %v5412 = vadd.f32 %v5134, %v5411
      %v5413 = vpop.f32.mrf.mxu0
      %v5414 = vadd.f32 %v5136, %v5413
      %5415 = vmatmul.bf16.gmra.mxu0 %v5263
      %v5416 = vpop.f32.mrf.mxu0
      %v5417 = vadd.f32 %v5139, %v5416
      %v5418 = vpop.f32.mrf.mxu0
      %v5419 = vadd.f32 %v5141, %v5418
      %5420 = vmatmul.bf16.gmra.mxu0 %v5266
      %v5421 = vpop.f32.mrf.mxu0
      %v5422 = vadd.f32 %v5144, %v5421
      %v5423 = vpop.f32.mrf.mxu0
      %v5424 = vadd.f32 %v5146, %v5423
      %5425 = vmatmul.bf16.gmra.mxu0 %v5269
      %v5426 = vpop.f32.mrf.mxu0
      %v5427 = vadd.f32 %v5149, %v5426
      %v5428 = vpop.f32.mrf.mxu0
      %v5429 = vadd.f32 %v5151, %v5428
      %5430 = vmatmul.bf16.gmra.mxu0 %v5272
      %v5431 = vpop.f32.mrf.mxu0
      %v5432 = vadd.f32 %v5154, %v5431
      %v5433 = vpop.f32.mrf.mxu0
      %v5434 = vadd.f32 %v5156, %v5433
      %5435 = vmatmul.bf16.gmra.mxu0 %v5275
      %v5436 = vpop.f32.mrf.mxu0
      %v5437 = vadd.f32 %v5159, %v5436
      %v5438 = vpop.f32.mrf.mxu0
      %v5439 = vadd.f32 %v5161, %v5438
      %5440 = vmatmul.bf16.gmra.mxu0 %v5278
      %v5441 = vpop.f32.mrf.mxu0
      %v5442 = vadd.f32 %v5164, %v5441
      %v5443 = vpop.f32.mrf.mxu0
      %v5444 = vadd.f32 %v5166, %v5443
      %5445 = vmatmul.bf16.gmra.mxu0 %v5281
      %v5446 = vpop.f32.mrf.mxu0
      %v5447 = vadd.f32 %v5169, %v5446
      %v5448 = vpop.f32.mrf.mxu0
      %v5449 = vadd.f32 %v5171, %v5448
      %5450 = vmatmul.bf16.gmra.mxu0 %v5284
      %v5451 = vpop.f32.mrf.mxu0
      %v5452 = vadd.f32 %v5174, %v5451
      %v5453 = vpop.f32.mrf.mxu0
      %v5454 = vadd.f32 %v5176, %v5453
      %5455 = vmatmul.bf16.gmra.mxu0 %v5287
      %v5456 = vpop.f32.mrf.mxu0
      %v5457 = vadd.f32 %v5179, %v5456
      %v5458 = vpop.f32.mrf.mxu0
      %v5459 = vadd.f32 %v5181, %v5458
      %5460 = vmatmul.bf16.gmra.mxu0 %v5290
      %v5461 = vpop.f32.mrf.mxu0
      %v5462 = vadd.f32 %v5184, %v5461
      %v5463 = vpop.f32.mrf.mxu0
      %v5464 = vadd.f32 %v5186, %v5463
      %5465 = vmatmul.bf16.gmra.mxu0 %v5293
      %v5466 = vpop.f32.mrf.mxu0
      %v5467 = vadd.f32 %v5189, %v5466
      %v5468 = vpop.f32.mrf.mxu0
      %v5469 = vadd.f32 %v5191, %v5468
      %5470 = vdwg.mxu0
      %v5471 = vadd.f32 %v5312, %v5314
      %v5472 = vadd.f32 %v5471, %v5317
      %v5473 = vadd.f32 %v5472, %v5319
      %v5474 = vadd.f32 %v5473, %v5322
      %v5475 = vadd.f32 %v5474, %v5324
      %v5476 = vadd.f32 %v5475, %v5327
      %v5477 = vadd.f32 %v5476, %v5329
      %v5478 = vadd.f32 %v5477, %v5332
      %v5479 = vadd.f32 %v5478, %v5334
      %v5480 = vadd.f32 %v5479, %v5337
      %v5481 = vadd.f32 %v5480, %v5339
      %v5482 = vadd.f32 %v5481, %v5342
      %v5483 = vadd.f32 %v5482, %v5344
      %v5484 = vadd.f32 %v5483, %v5347
      %v5485 = vadd.f32 %v5484, %v5349
      %v5486 = vadd.f32 %v5485, %v5352
      %v5487 = vadd.f32 %v5486, %v5354
      %v5488 = vadd.f32 %v5487, %v5357
      %v5489 = vadd.f32 %v5488, %v5359
      %v5490 = vadd.f32 %v5489, %v5362
      %v5491 = vadd.f32 %v5490, %v5364
      %v5492 = vadd.f32 %v5491, %v5367
      %v5493 = vadd.f32 %v5492, %v5369
      %v5494 = vadd.f32 %v5493, %v5372
      %v5495 = vadd.f32 %v5494, %v5374
      %v5496 = vadd.f32 %v5495, %v5377
      %v5497 = vadd.f32 %v5496, %v5379
      %v5498 = vadd.f32 %v5497, %v5382
      %v5499 = vadd.f32 %v5498, %v5384
      %v5500 = vadd.f32 %v5499, %v5387
      %v5501 = vadd.f32 %v5500, %v5389
      %v5502 = vadd.f32 %v5501, %v5392
      %v5503 = vadd.f32 %v5502, %v5394
      %v5504 = vadd.f32 %v5503, %v5397
      %v5505 = vadd.f32 %v5504, %v5399
      %v5506 = vadd.f32 %v5505, %v5402
      %v5507 = vadd.f32 %v5506, %v5404
      %v5508 = vadd.f32 %v5507, %v5407
      %v5509 = vadd.f32 %v5508, %v5409
      %v5510 = vadd.f32 %v5509, %v5412
      %v5511 = vadd.f32 %v5510, %v5414
      %v5512 = vadd.f32 %v5511, %v5417
      %v5513 = vadd.f32 %v5512, %v5419
      %v5514 = vadd.f32 %v5513, %v5422
      %v5515 = vadd.f32 %v5514, %v5424
      %v5516 = vadd.f32 %v5515, %v5427
      %v5517 = vadd.f32 %v5516, %v5429
      %v5518 = vadd.f32 %v5517, %v5432
      %v5519 = vadd.f32 %v5518, %v5434
      %v5520 = vadd.f32 %v5519, %v5437
      %v5521 = vadd.f32 %v5520, %v5439
      %v5522 = vadd.f32 %v5521, %v5442
      %v5523 = vadd.f32 %v5522, %v5444
      %v5524 = vadd.f32 %v5523, %v5447
      %v5525 = vadd.f32 %v5524, %v5449
      %v5526 = vadd.f32 %v5525, %v5452
      %v5527 = vadd.f32 %v5526, %v5454
      %v5528 = vadd.f32 %v5527, %v5457
      %v5529 = vadd.f32 %v5528, %v5459
      %v5530 = vadd.f32 %v5529, %v5462
      %v5531 = vadd.f32 %v5530, %v5464
      %v5532 = vadd.f32 %v5531, %v5467
      %v5533 = vadd.f32 %v5532, %v5469
      %v5534 = vrot.slane %v5533, 4
      %v5535 = vadd.f32 %v5533, %v5534
      %v5536 = vrot.slane %v5535, 2
      %v5537 = vadd.f32 %v5535, %v5536
      %v5538 = vrot.slane %v5537, 1
      %v5539 = vadd.f32 %v5537, %v5538
      %v5540 = vmul.f32 %v5539, 0.001953125
      %v5541 = vsub.f32 %v5312, %v5540
      %v5542 = vsub.f32 %v5314, %v5540
      %v5543 = vsub.f32 %v5317, %v5540
      %v5544 = vsub.f32 %v5319, %v5540
      %v5545 = vsub.f32 %v5322, %v5540
      %v5546 = vsub.f32 %v5324, %v5540
      %v5547 = vsub.f32 %v5327, %v5540
      %v5548 = vsub.f32 %v5329, %v5540
      %v5549 = vsub.f32 %v5332, %v5540
      %v5550 = vsub.f32 %v5334, %v5540
      %v5551 = vsub.f32 %v5337, %v5540
      %v5552 = vsub.f32 %v5339, %v5540
      %v5553 = vsub.f32 %v5342, %v5540
      %v5554 = vsub.f32 %v5344, %v5540
      %v5555 = vsub.f32 %v5347, %v5540
      %v5556 = vsub.f32 %v5349, %v5540
      %v5557 = vsub.f32 %v5352, %v5540
      %v5558 = vsub.f32 %v5354, %v5540
      %v5559 = vsub.f32 %v5357, %v5540
      %v5560 = vsub.f32 %v5359, %v5540
      %v5561 = vsub.f32 %v5362, %v5540
      %v5562 = vsub.f32 %v5364, %v5540
      %v5563 = vsub.f32 %v5367, %v5540
      %v5564 = vsub.f32 %v5369, %v5540
      %v5565 = vsub.f32 %v5372, %v5540
      %v5566 = vsub.f32 %v5374, %v5540
      %v5567 = vsub.f32 %v5377, %v5540
      %v5568 = vsub.f32 %v5379, %v5540
      %v5569 = vsub.f32 %v5382, %v5540
      %v5570 = vsub.f32 %v5384, %v5540
      %v5571 = vsub.f32 %v5387, %v5540
      %v5572 = vsub.f32 %v5389, %v5540
      %v5573 = vsub.f32 %v5392, %v5540
      %v5574 = vsub.f32 %v5394, %v5540
      %v5575 = vsub.f32 %v5397, %v5540
      %v5576 = vsub.f32 %v5399, %v5540
      %v5577 = vsub.f32 %v5402, %v5540
      %v5578 = vsub.f32 %v5404, %v5540
      %v5579 = vsub.f32 %v5407, %v5540
      %v5580 = vsub.f32 %v5409, %v5540
      %v5581 = vsub.f32 %v5412, %v5540
      %v5582 = vsub.f32 %v5414, %v5540
      %v5583 = vsub.f32 %v5417, %v5540
      %v5584 = vsub.f32 %v5419, %v5540
      %v5585 = vsub.f32 %v5422, %v5540
      %v5586 = vsub.f32 %v5424, %v5540
      %v5587 = vsub.f32 %v5427, %v5540
      %v5588 = vsub.f32 %v5429, %v5540
      %v5589 = vsub.f32 %v5432, %v5540
      %v5590 = vsub.f32 %v5434, %v5540
      %v5591 = vsub.f32 %v5437, %v5540
      %v5592 = vsub.f32 %v5439, %v5540
      %v5593 = vsub.f32 %v5442, %v5540
      %v5594 = vsub.f32 %v5444, %v5540
      %v5595 = vsub.f32 %v5447, %v5540
      %v5596 = vsub.f32 %v5449, %v5540
      %v5597 = vsub.f32 %v5452, %v5540
      %v5598 = vsub.f32 %v5454, %v5540
      %v5599 = vsub.f32 %v5457, %v5540
      %v5600 = vsub.f32 %v5459, %v5540
      %v5601 = vsub.f32 %v5462, %v5540
      %v5602 = vsub.f32 %v5464, %v5540
      %v5603 = vsub.f32 %v5467, %v5540
      %v5604 = vsub.f32 %v5469, %v5540
      %v5605 = vmul.f32 %v5541, %v5541
      %v5606 = vmul.f32 %v5542, %v5542
      %v5607 = vmul.f32 %v5543, %v5543
      %v5608 = vmul.f32 %v5544, %v5544
      %v5609 = vmul.f32 %v5545, %v5545
      %v5610 = vmul.f32 %v5546, %v5546
      %v5611 = vmul.f32 %v5547, %v5547
      %v5612 = vmul.f32 %v5548, %v5548
      %v5613 = vmul.f32 %v5549, %v5549
      %v5614 = vmul.f32 %v5550, %v5550
      %v5615 = vmul.f32 %v5551, %v5551
      %v5616 = vmul.f32 %v5552, %v5552
      %v5617 = vmul.f32 %v5553, %v5553
      %v5618 = vmul.f32 %v5554, %v5554
      %v5619 = vmul.f32 %v5555, %v5555
      %v5620 = vmul.f32 %v5556, %v5556
      %v5621 = vmul.f32 %v5557, %v5557
      %v5622 = vmul.f32 %v5558, %v5558
      %v5623 = vmul.f32 %v5559, %v5559
      %v5624 = vmul.f32 %v5560, %v5560
      %v5625 = vmul.f32 %v5561, %v5561
      %v5626 = vmul.f32 %v5562, %v5562
      %v5627 = vmul.f32 %v5563, %v5563
      %v5628 = vmul.f32 %v5564, %v5564
      %v5629 = vmul.f32 %v5565, %v5565
      %v5630 = vmul.f32 %v5566, %v5566
      %v5631 = vmul.f32 %v5567, %v5567
      %v5632 = vmul.f32 %v5568, %v5568
      %v5633 = vmul.f32 %v5569, %v5569
      %v5634 = vmul.f32 %v5570, %v5570
      %v5635 = vmul.f32 %v5571, %v5571
      %v5636 = vmul.f32 %v5572, %v5572
      %v5637 = vmul.f32 %v5573, %v5573
      %v5638 = vmul.f32 %v5574, %v5574
      %v5639 = vmul.f32 %v5575, %v5575
      %v5640 = vmul.f32 %v5576, %v5576
      %v5641 = vmul.f32 %v5577, %v5577
      %v5642 = vmul.f32 %v5578, %v5578
      %v5643 = vmul.f32 %v5579, %v5579
      %v5644 = vmul.f32 %v5580, %v5580
      %v5645 = vmul.f32 %v5581, %v5581
      %v5646 = vmul.f32 %v5582, %v5582
      %v5647 = vmul.f32 %v5583, %v5583
      %v5648 = vmul.f32 %v5584, %v5584
      %v5649 = vmul.f32 %v5585, %v5585
      %v5650 = vmul.f32 %v5586, %v5586
      %v5651 = vmul.f32 %v5587, %v5587
      %v5652 = vmul.f32 %v5588, %v5588
      %v5653 = vmul.f32 %v5589, %v5589
      %v5654 = vmul.f32 %v5590, %v5590
      %v5655 = vmul.f32 %v5591, %v5591
      %v5656 = vmul.f32 %v5592, %v5592
      %v5657 = vmul.f32 %v5593, %v5593
      %v5658 = vmul.f32 %v5594, %v5594
      %v5659 = vmul.f32 %v5595, %v5595
      %v5660 = vmul.f32 %v5596, %v5596
      %v5661 = vmul.f32 %v5597, %v5597
      %v5662 = vmul.f32 %v5598, %v5598
      %v5663 = vmul.f32 %v5599, %v5599
      %v5664 = vmul.f32 %v5600, %v5600
      %v5665 = vmul.f32 %v5601, %v5601
      %v5666 = vmul.f32 %v5602, %v5602
      %v5667 = vmul.f32 %v5603, %v5603
      %v5668 = vmul.f32 %v5604, %v5604
      %v5669 = vadd.f32 %v5605, %v5606
      %v5670 = vadd.f32 %v5669, %v5607
      %v5671 = vadd.f32 %v5670, %v5608
      %v5672 = vadd.f32 %v5671, %v5609
      %v5673 = vadd.f32 %v5672, %v5610
      %v5674 = vadd.f32 %v5673, %v5611
      %v5675 = vadd.f32 %v5674, %v5612
      %v5676 = vadd.f32 %v5675, %v5613
      %v5677 = vadd.f32 %v5676, %v5614
      %v5678 = vadd.f32 %v5677, %v5615
      %v5679 = vadd.f32 %v5678, %v5616
      %v5680 = vadd.f32 %v5679, %v5617
      %v5681 = vadd.f32 %v5680, %v5618
      %v5682 = vadd.f32 %v5681, %v5619
      %v5683 = vadd.f32 %v5682, %v5620
      %v5684 = vadd.f32 %v5683, %v5621
      %v5685 = vadd.f32 %v5684, %v5622
      %v5686 = vadd.f32 %v5685, %v5623
      %v5687 = vadd.f32 %v5686, %v5624
      %v5688 = vadd.f32 %v5687, %v5625
      %v5689 = vadd.f32 %v5688, %v5626
      %v5690 = vadd.f32 %v5689, %v5627
      %v5691 = vadd.f32 %v5690, %v5628
      %v5692 = vadd.f32 %v5691, %v5629
      %v5693 = vadd.f32 %v5692, %v5630
      %v5694 = vadd.f32 %v5693, %v5631
      %v5695 = vadd.f32 %v5694, %v5632
      %v5696 = vadd.f32 %v5695, %v5633
      %v5697 = vadd.f32 %v5696, %v5634
      %v5698 = vadd.f32 %v5697, %v5635
      %v5699 = vadd.f32 %v5698, %v5636
      %v5700 = vadd.f32 %v5699, %v5637
      %v5701 = vadd.f32 %v5700, %v5638
      %v5702 = vadd.f32 %v5701, %v5639
      %v5703 = vadd.f32 %v5702, %v5640
      %v5704 = vadd.f32 %v5703, %v5641
      %v5705 = vadd.f32 %v5704, %v5642
      %v5706 = vadd.f32 %v5705, %v5643
      %v5707 = vadd.f32 %v5706, %v5644
      %v5708 = vadd.f32 %v5707, %v5645
      %v5709 = vadd.f32 %v5708, %v5646
      %v5710 = vadd.f32 %v5709, %v5647
      %v5711 = vadd.f32 %v5710, %v5648
      %v5712 = vadd.f32 %v5711, %v5649
      %v5713 = vadd.f32 %v5712, %v5650
      %v5714 = vadd.f32 %v5713, %v5651
      %v5715 = vadd.f32 %v5714, %v5652
      %v5716 = vadd.f32 %v5715, %v5653
      %v5717 = vadd.f32 %v5716, %v5654
      %v5718 = vadd.f32 %v5717, %v5655
      %v5719 = vadd.f32 %v5718, %v5656
      %v5720 = vadd.f32 %v5719, %v5657
      %v5721 = vadd.f32 %v5720, %v5658
      %v5722 = vadd.f32 %v5721, %v5659
      %v5723 = vadd.f32 %v5722, %v5660
      %v5724 = vadd.f32 %v5723, %v5661
      %v5725 = vadd.f32 %v5724, %v5662
      %v5726 = vadd.f32 %v5725, %v5663
      %v5727 = vadd.f32 %v5726, %v5664
      %v5728 = vadd.f32 %v5727, %v5665
      %v5729 = vadd.f32 %v5728, %v5666
      %v5730 = vadd.f32 %v5729, %v5667
      %v5731 = vadd.f32 %v5730, %v5668
      %v5732 = vrot.slane %v5731, 4
      %v5733 = vadd.f32 %v5731, %v5732
      %v5734 = vrot.slane %v5733, 2
      %v5735 = vadd.f32 %v5733, %v5734
      %v5736 = vrot.slane %v5735, 1
      %v5737 = vadd.f32 %v5735, %v5736
      %vm5738 = vcmask 1040384
      %v5739 = vsel %vm5738, %v5539, %v5737
      %vm5740 = vcmask 1041408
      %v5741 = vsel %vm5740, %v5739, 0.0
      %5742 = vst [vmem:[%s200] sm:$0xff] %v5741
      %p5743 = scmp.lt.s32.totalorder %s15, 1
      %s5744 = scalar_select %p5743, %s15, 1
      %s5745 = smul.addr %s5744, 8
      %s5746 = scalar_lea.vmem %s4, %s5745
      // Predicated region
      $region37: #{inception_module_forward.2} parent=35 // pred_check
        %p5747 = pneg %p122
      $region38: #{inception_module_forward.2} parent=35 // pred_check_branch
        %5749 = sbr.rel (%p5747) target = $region40
      $region39: #{inception_module_forward.2} parent=35 // pred_region
        _
      $region40: #{inception_module_forward.2} parent=35 // pred_fallthru
        _
    $region36: #{inception_module_forward.2} parent=5 // pred_fallthru
      _
    %p5750 = scmp.le.s32.totalorder 2, %s10
    // Predicated region
    $region41: #{inception_module_forward.2} parent=5 // pred_check
      %p5751 = pneg %p5750
    $region42: #{inception_module_forward.2} parent=5 // pred_check_branch
      %5753 = sbr.rel (%p5751) target = $region44
    $region43: #{inception_module_forward.2} parent=5 // pred_region
      %s5754 = ssub.s32 %s10, 2
      // Predicated region
      $region45: #{inception_module_forward.2} parent=43 // pred_check
        %p5755 = pneg %p128
      $region46: #{inception_module_forward.2} parent=43 // pred_check_branch
        %5757 = sbr.rel (%p5755) target = $region48
      $region47: #{inception_module_forward.2} parent=43 // pred_region
        %p5758 = scmp.lt.s32.totalorder %s16, 1
        %s5759 = scalar_select %p5758, %s16, 1
        %s5760 = smul.addr %s5759, 8
        %s5761 = scalar_lea.vmem %s4, %s5760
      $region48: #{inception_module_forward.2} parent=43 // pred_fallthru
        _
    $region44: #{inception_module_forward.2} parent=5 // pred_fallthru
      _
  $region6: #{inception_module_forward.2} parent=0 // loop_footer
    %s14 = sadd.s32 1, %s10
  $region7: #{inception_module_forward.2} parent=0 // loop_footer_branch
    %9 = sbr.rel target = $region3
  $region8: #{inception_module_forward.2} parent=0 // loop_exit
    _

</llo_original>
